<compile_context>
chip_gen: v6e
topology: v6e:2x2x1
jax: 0.10.0
libtpu: 0.0.40
codegen_flags: <defaults>
</compile_context>

<pallas_src>
import jax
import jax.numpy as jnp
from jax.experimental import pallas as pl
from jax.experimental.pallas import tpu as pltpu


def calc_out_size(w, h, kernel, padding, stride):
    w_out = (w - kernel + 2 * padding) // stride + 1
    h_out = (h - kernel + 2 * padding) // stride + 1
    return w_out, h_out


def _elu(y):
    # ELU(alpha=1); exp clamped so the (discarded) positive branch never overflows.
    return jnp.where(y > 0.0, y, jnp.exp(jnp.minimum(y, 0.0)) - 1.0)


# -----------------------------------------------------------------------------
# Fused conv kernel (transposed im2col layout):
#   O = ELU( (Wt @ A) * scale + shift )
#   Wt:(Cout,K) bf16, A:(K,Mtile) bf16, scale/shift:(Cout,1) f32, O:(Cout,Mtile) f32
# -----------------------------------------------------------------------------
def _conv_affine_elu_kernel(w_ref, a_ref, s_ref, b_ref, o_ref):
    acc = jnp.dot(w_ref[...], a_ref[...], preferred_element_type=jnp.float32)
    y = acc * s_ref[...] + b_ref[...]
    o_ref[...] = _elu(y).astype(o_ref.dtype)


def fused_conv_affine_elu(w_t, a, scale, shift, tm_max=1024):
    cout, K = w_t.shape
    K2, M = a.shape
    assert K == K2
    # Big lane tiles; ragged last block handled by Pallas masked partial writes
    # (columns are independent, garbage in OOB lanes never reaches valid output).
    tm = M if M <= tm_max else tm_max
    grid = (pl.cdiv(M, tm),)
    return pl.pallas_call(
        _conv_affine_elu_kernel,
        out_shape=jax.ShapeDtypeStruct((cout, M), jnp.float32),
        grid_spec=pltpu.PrefetchScalarGridSpec(
            num_scalar_prefetch=0,
            grid=grid,
            in_specs=[
                pl.BlockSpec((cout, K), lambda i: (0, 0)),  # weights (stay resident)
                pl.BlockSpec((K, tm), lambda i: (0, i)),    # im2col patch tile
                pl.BlockSpec((cout, 1), lambda i: (0, 0)),  # BN scale
                pl.BlockSpec((cout, 1), lambda i: (0, 0)),  # bias / BN shift
            ],
            out_specs=pl.BlockSpec((cout, tm), lambda i: (0, i)),
        ),
        compiler_params=pltpu.CompilerParams(
            dimension_semantics=("parallel",)),
    )(w_t, a, scale, shift)


# -----------------------------------------------------------------------------
# Conv layer glue: transposed im2col (channel/kernel-major rows, N*OH*OW cols)
# -----------------------------------------------------------------------------
def im2col_t(x_cnhw, kh, kw, stride):
    c, n, h, w = x_cnhw.shape
    oh = (h - kh) // stride + 1
    ow = (w - kw) // stride + 1
    cols = []
    for i in range(kh):
        for j in range(kw):
            cols.append(
                x_cnhw[:, :, i:i + stride * oh:stride, j:j + stride * ow:stride])
    patches = jnp.concatenate(cols, axis=0)            # (kh*kw*c, n, oh, ow)
    return patches.reshape(kh * kw * c, n * oh * ow), oh, ow


def conv_bn_elu(x_cnhw, weight, bias, bn, stride):
    """x in CNHW layout; weight in torch OIHW; bn=(gamma,beta,mean,var,eps) or None."""
    cout, cin, kh, kw = weight.shape
    a, oh, ow = im2col_t(x_cnhw, kh, kw, stride)
    a = a.astype(jnp.bfloat16)
    # K ordering = (ki*kw + kj)*cin + c, matching im2col_t's concat order.
    w_t = jnp.transpose(weight, (0, 2, 3, 1)).reshape(cout, kh * kw * cin)
    w_t = w_t.astype(jnp.bfloat16)
    if bn is None:
        scale = jnp.ones((cout,), jnp.float32)
        shift = bias.astype(jnp.float32)
    else:
        gamma, beta, mean, var, eps = bn
        scale = gamma / jnp.sqrt(var + eps)
        shift = (bias - mean) * scale + beta
    out = fused_conv_affine_elu(
        w_t, a,
        scale.reshape(cout, 1).astype(jnp.float32),
        shift.reshape(cout, 1).astype(jnp.float32))
    n = x_cnhw.shape[1]
    return out.reshape(cout, n, oh, ow)                # stays in CNHW layout


# -----------------------------------------------------------------------------
# Fused FC chain: one pallas_call for ELU(fc1) -> ELU(fc2) -> ELU(fc3) -> ELU(fc4)
# -----------------------------------------------------------------------------
def _fc_chain_kernel(x_ref, w1_ref, b1_ref, w2_ref, b2_ref,
                     w3_ref, b3_ref, w4_ref, b4_ref, o_ref):
    def layer(h, w_ref, b_ref):
        acc = jnp.dot(h.astype(jnp.bfloat16), w_ref[...],
                      preferred_element_type=jnp.float32)
        return _elu(acc + b_ref[...])

    h = x_ref[...]
    h = layer(h, w1_ref, b1_ref)
    h = layer(h, w2_ref, b2_ref)
    h = layer(h, w3_ref, b3_ref)
    o_ref[...] = layer(h, w4_ref, b4_ref).astype(o_ref.dtype)


def fc_chain(x, weights, biases):
    """x:(M,K0) f32; weights[i] in torch (out,in); chains 4x ELU(x @ W.T + b)."""
    M = x.shape[0]
    Mp = ((M + 7) // 8) * 8          # pad batch to the 8-sublane minimum only
    x_p = jnp.pad(x.astype(jnp.float32), ((0, Mp - M), (0, 0)))
    args = [x_p]
    for w, b in zip(weights, biases):
        args.append(jnp.transpose(w).astype(jnp.bfloat16))   # (in, out)
        args.append(b.reshape(1, -1).astype(jnp.float32))
    n_out = weights[-1].shape[0]
    out = pl.pallas_call(
        _fc_chain_kernel,
        out_shape=jax.ShapeDtypeStruct((Mp, n_out), jnp.float32),
        grid_spec=pltpu.PrefetchScalarGridSpec(
            num_scalar_prefetch=0,
            grid=(1,),
            in_specs=[pl.BlockSpec(a.shape, lambda i: (0, 0)) for a in args],
            out_specs=pl.BlockSpec((Mp, n_out), lambda i: (0, 0)),
        ),
    )(*args)
    return out[:M]


# -----------------------------------------------------------------------------
# Full Nvidia forward
# -----------------------------------------------------------------------------
def nvidia_forward(x_nchw, params):
    x = jnp.transpose(x_nchw, (1, 0, 2, 3)).astype(jnp.float32)   # NCHW -> CNHW
    x = conv_bn_elu(x, params['c1_w'], params['c1_b'], None, stride=2)
    x = conv_bn_elu(x, params['c2_w'], params['c2_b'], params['bn2'], stride=2)
    x = conv_bn_elu(x, params['c3_w'], params['c3_b'], params['bn3'], stride=2)
    x = conv_bn_elu(x, params['c4_w'], params['c4_b'], params['bn4'], stride=1)
    x = conv_bn_elu(x, params['c5_w'], params['c5_b'], params['bn5'], stride=1)
    # TODO(synk): Dropout(p=0.4) is identity (inference mode).
    c, n, h, w = x.shape
    x = jnp.transpose(x, (1, 0, 2, 3)).reshape(n, c * h * w)  # torch NCHW flatten
    return fc_chain(
        x,
        [params['fc1_w'], params['fc2_w'], params['fc3_w'], params['fc4_w']],
        [params['fc1_b'], params['fc2_b'], params['fc3_b'], params['fc4_b']])


# -----------------------------------------------------------------------------
# Plain-JAX reference (same bf16-operand / f32-accumulate arithmetic)
# -----------------------------------------------------------------------------
def _ref_conv(x, w, b, stride):
    y = jax.lax.conv_general_dilated(
        x.astype(jnp.bfloat16), w.astype(jnp.bfloat16), (stride, stride), 'VALID',
        dimension_numbers=('NCHW', 'OIHW', 'NCHW'),
        preferred_element_type=jnp.float32)
    return y + b.reshape(1, -1, 1, 1)


def _ref_bn(x, bn):
    gamma, beta, mean, var, eps = bn
    scale = gamma / jnp.sqrt(var + eps)
    return (x - mean.reshape(1, -1, 1, 1)) * scale.reshape(1, -1, 1, 1) \
        + beta.reshape(1, -1, 1, 1)


def _ref_linear(x, w, b):
    y = jnp.dot(x.astype(jnp.bfloat16), jnp.transpose(w).astype(jnp.bfloat16),
                preferred_element_type=jnp.float32)
    return y + b


def nvidia_reference(x, p):
    x = _elu(_ref_conv(x, p['c1_w'], p['c1_b'], 2))
    x = _elu(_ref_bn(_ref_conv(x, p['c2_w'], p['c2_b'], 2), p['bn2']))
    x = _elu(_ref_bn(_ref_conv(x, p['c3_w'], p['c3_b'], 2), p['bn3']))
    x = _elu(_ref_bn(_ref_conv(x, p['c4_w'], p['c4_b'], 1), p['bn4']))
    x = _elu(_ref_bn(_ref_conv(x, p['c5_w'], p['c5_b'], 1), p['bn5']))
    x = x.reshape(x.shape[0], -1)
    x = _elu(_ref_linear(x, p['fc1_w'], p['fc1_b']))
    x = _elu(_ref_linear(x, p['fc2_w'], p['fc2_b']))
    x = _elu(_ref_linear(x, p['fc3_w'], p['fc3_b']))
    x = _elu(_ref_linear(x, p['fc4_w'], p['fc4_b']))
    return x


# -----------------------------------------------------------------------------
if __name__ == "__main__":
    W_IN, H_IN = 200, 66
    BATCH = 2
    EPS = 1e-5

    # Track output spatial size like the PyTorch module
    w, h = W_IN, H_IN
    w, h = calc_out_size(w, h, 5, 0, 2)   # conv1
    w, h = calc_out_size(w, h, 5, 0, 2)   # conv2
    w, h = calc_out_size(w, h, 5, 0, 2)   # conv3
    w, h = calc_out_size(w, h, 3, 0, 1)   # conv4
    w, h = calc_out_size(w, h, 3, 0, 1)   # conv5
    FLAT = w * h * 64                     # 18 * 1 * 64 = 1152

    key = jax.random.PRNGKey(0)
    keys = iter(jax.random.split(key, 40))

    def conv_w(cout, cin, k):
        return 0.05 * jax.random.normal(next(keys), (cout, cin, k, k), jnp.float32)

    def vec(n, lo=0.0, hi=0.1):
        return jax.random.uniform(next(keys), (n,), jnp.float32, lo, hi)

    def bn_params(c):
        gamma = jax.random.uniform(next(keys), (c,), jnp.float32, 0.5, 1.5)
        beta = vec(c, -0.1, 0.1)
        mean = vec(c, -0.1, 0.1)
        var = jax.random.uniform(next(keys), (c,), jnp.float32, 0.5, 1.5)
        return (gamma, beta, mean, var, EPS)

    def lin_w(out_f, in_f):
        return (1.0 / jnp.sqrt(jnp.float32(in_f))) * \
            jax.random.normal(next(keys), (out_f, in_f), jnp.float32)

    params = {
        'c1_w': conv_w(24, 3, 5),  'c1_b': vec(24),
        'c2_w': conv_w(36, 24, 5), 'c2_b': vec(36), 'bn2': bn_params(36),
        'c3_w': conv_w(48, 36, 5), 'c3_b': vec(48), 'bn3': bn_params(48),
        'c4_w': conv_w(64, 48, 3), 'c4_b': vec(64), 'bn4': bn_params(64),
        'c5_w': conv_w(64, 64, 3), 'c5_b': vec(64), 'bn5': bn_params(64),
        'fc1_w': lin_w(100, FLAT), 'fc1_b': vec(100),
        'fc2_w': lin_w(50, 100),   'fc2_b': vec(50),
        'fc3_w': lin_w(10, 50),    'fc3_b': vec(10),
        'fc4_w': lin_w(1, 10),     'fc4_b': vec(1),
    }

    x = jax.random.normal(next(keys), (BATCH, 3, H_IN, W_IN), jnp.float32)

    fwd = jax.jit(nvidia_forward)
    out = jax.block_until_ready(fwd(x, params))
    assert out.shape == (BATCH, 1), out.shape

    ref = jax.block_until_ready(jax.jit(nvidia_reference)(x, params))
    if not bool(jnp.allclose(out, ref, rtol=5e-3, atol=5e-3)):
        raise AssertionError(
            f"Pallas output mismatch: {out} vs {ref}, "
            f"max abs diff {float(jnp.max(jnp.abs(out - ref)))}")

    print("KERNEL_OK")
</pallas_src>

<mosaic_0001>
module attributes {stable_mosaic.version = 11 : i64} {
  func.func @_conv_affine_elu_kernel(%arg0: i32, %arg1: memref<24x75xbf16, #tpu.memory_space<vmem>>, %arg2: memref<75x1024xbf16, #tpu.memory_space<vmem>>, %arg3: memref<24x1xf32, #tpu.memory_space<vmem>>, %arg4: memref<24x1xf32, #tpu.memory_space<vmem>>, %arg5: memref<24x1024xf32, #tpu.memory_space<vmem>>) attributes {dimension_semantics = [#tpu.dimension_semantics<parallel>], iteration_bounds = array<i64: 6>, scalar_prefetch = 0 : i64, scratch_operands = 0 : i64, tpu.core_type = #tpu.core_type<tc>, window_params = [{pipeline_mode = #tpu.pipeline_mode<synchronous>, transform_indices = @transform_0, window_bounds = array<i64: 24, 75>}, {transform_indices = @transform_1, window_bounds = array<i64: 75, 1024>}, {pipeline_mode = #tpu.pipeline_mode<synchronous>, transform_indices = @transform_2, window_bounds = array<i64: 24, 1>}, {pipeline_mode = #tpu.pipeline_mode<synchronous>, transform_indices = @transform_3, window_bounds = array<i64: 24, 1>}, {transform_indices = @transform_4, window_bounds = array<i64: 24, 1024>}]} {
    %c0 = arith.constant 0 : index
    %c0_0 = arith.constant 0 : index
    %0 = vector.load %arg1[%c0, %c0_0] : memref<24x75xbf16, #tpu.memory_space<vmem>>, vector<24x75xbf16>
    %c0_1 = arith.constant 0 : index
    %c0_2 = arith.constant 0 : index
    %1 = vector.load %arg2[%c0_1, %c0_2] : memref<75x1024xbf16, #tpu.memory_space<vmem>>, vector<75x1024xbf16>
    %cst = arith.constant dense<0.000000e+00> : vector<24x1024xf32>
    %2 = tpu.matmul %0, %1, %cst {dimension_numbers = #tpu.dot_dimension_numbers<[1], [0], [0], [1], [0, 0, 1, 1], [], []>} : vector<24x75xbf16>, vector<75x1024xbf16>, vector<24x1024xf32> -> vector<24x1024xf32>
    %c0_3 = arith.constant 0 : index
    %c0_4 = arith.constant 0 : index
    %3 = vector.load %arg3[%c0_3, %c0_4] : memref<24x1xf32, #tpu.memory_space<vmem>>, vector<24x1xf32>
    %4 = vector.broadcast %3 : vector<24x1xf32> to vector<24x1024xf32>
    %5 = arith.mulf %2, %4 : vector<24x1024xf32>
    %c0_5 = arith.constant 0 : index
    %c0_6 = arith.constant 0 : index
    %6 = vector.load %arg4[%c0_5, %c0_6] : memref<24x1xf32, #tpu.memory_space<vmem>>, vector<24x1xf32>
    %7 = vector.broadcast %6 : vector<24x1xf32> to vector<24x1024xf32>
    %8 = arith.addf %5, %7 : vector<24x1024xf32>
    %cst_7 = arith.constant 0.000000e+00 : f32
    %9 = vector.broadcast %cst_7 : f32 to vector<24x1024xf32>
    %10 = arith.cmpf ogt, %8, %9 : vector<24x1024xf32>
    %cst_8 = arith.constant 0.000000e+00 : f32
    %11 = vector.broadcast %cst_8 : f32 to vector<24x1024xf32>
    %12 = arith.minimumf %8, %11 : vector<24x1024xf32>
    %13 = math.exp %12 : vector<24x1024xf32>
    %cst_9 = arith.constant 1.000000e+00 : f32
    %14 = vector.broadcast %cst_9 : f32 to vector<24x1024xf32>
    %15 = arith.subf %13, %14 : vector<24x1024xf32>
    %16 = arith.select %10, %8, %15 : vector<24x1024xi1>, vector<24x1024xf32>
    %c0_10 = arith.constant 0 : index
    %c0_11 = arith.constant 0 : index
    %17 = vector.load %arg5[%c0_10, %c0_11] : memref<24x1024xf32, #tpu.memory_space<vmem>>, vector<24x1024xf32>
    tpu.vector_store %arg5[%c0_10, %c0_11], %16 {strides = array<i32>} : memref<24x1024xf32, #tpu.memory_space<vmem>>, vector<24x1024xf32>,
    return
  }
  func.func @transform_0(%arg0: i32) -> (i32, i32) {
    %c0_i32 = arith.constant 0 : i32
    %c0_i32_0 = arith.constant 0 : i32
    %c0_i32_1 = arith.constant 0 : i32
    return %c0_i32, %c0_i32_0 : i32, i32
  }
  func.func @transform_1(%arg0: i32) -> (i32, i32) {
    %c0_i32 = arith.constant 0 : i32
    %c0_i32_0 = arith.constant 0 : i32
    return %c0_i32, %arg0 : i32, i32
  }
  func.func @transform_2(%arg0: i32) -> (i32, i32) {
    %c0_i32 = arith.constant 0 : i32
    %c0_i32_0 = arith.constant 0 : i32
    %c0_i32_1 = arith.constant 0 : i32
    return %c0_i32, %c0_i32_0 : i32, i32
  }
  func.func @transform_3(%arg0: i32) -> (i32, i32) {
    %c0_i32 = arith.constant 0 : i32
    %c0_i32_0 = arith.constant 0 : i32
    %c0_i32_1 = arith.constant 0 : i32
    return %c0_i32, %c0_i32_0 : i32, i32
  }
  func.func @transform_4(%arg0: i32) -> (i32, i32) {
    %c0_i32 = arith.constant 0 : i32
    %c0_i32_0 = arith.constant 0 : i32
    return %c0_i32, %arg0 : i32, i32
  }
}

module attributes {stable_mosaic.version = 11 : i64} {
  func.func @_conv_affine_elu_kernel(%arg0: i32, %arg1: memref<36x600xbf16, #tpu.memory_space<vmem>>, %arg2: memref<600x1024xbf16, #tpu.memory_space<vmem>>, %arg3: memref<36x1xf32, #tpu.memory_space<vmem>>, %arg4: memref<36x1xf32, #tpu.memory_space<vmem>>, %arg5: memref<36x1024xf32, #tpu.memory_space<vmem>>) attributes {dimension_semantics = [#tpu.dimension_semantics<parallel>], iteration_bounds = array<i64: 2>, scalar_prefetch = 0 : i64, scratch_operands = 0 : i64, tpu.core_type = #tpu.core_type<tc>, window_params = [{pipeline_mode = #tpu.pipeline_mode<synchronous>, transform_indices = @transform_0, window_bounds = array<i64: 36, 600>}, {transform_indices = @transform_1, window_bounds = array<i64: 600, 1024>}, {pipeline_mode = #tpu.pipeline_mode<synchronous>, transform_indices = @transform_2, window_bounds = array<i64: 36, 1>}, {pipeline_mode = #tpu.pipeline_mode<synchronous>, transform_indices = @transform_3, window_bounds = array<i64: 36, 1>}, {transform_indices = @transform_4, window_bounds = array<i64: 36, 1024>}]} {
    %c0 = arith.constant 0 : index
    %c0_0 = arith.constant 0 : index
    %0 = vector.load %arg1[%c0, %c0_0] : memref<36x600xbf16, #tpu.memory_space<vmem>>, vector<36x600xbf16>
    %c0_1 = arith.constant 0 : index
    %c0_2 = arith.constant 0 : index
    %1 = vector.load %arg2[%c0_1, %c0_2] : memref<600x1024xbf16, #tpu.memory_space<vmem>>, vector<600x1024xbf16>
    %cst = arith.constant dense<0.000000e+00> : vector<36x1024xf32>
    %2 = tpu.matmul %0, %1, %cst {dimension_numbers = #tpu.dot_dimension_numbers<[1], [0], [0], [1], [0, 0, 1, 1], [], []>} : vector<36x600xbf16>, vector<600x1024xbf16>, vector<36x1024xf32> -> vector<36x1024xf32>
    %c0_3 = arith.constant 0 : index
    %c0_4 = arith.constant 0 : index
    %3 = vector.load %arg3[%c0_3, %c0_4] : memref<36x1xf32, #tpu.memory_space<vmem>>, vector<36x1xf32>
    %4 = vector.broadcast %3 : vector<36x1xf32> to vector<36x1024xf32>
    %5 = arith.mulf %2, %4 : vector<36x1024xf32>
    %c0_5 = arith.constant 0 : index
    %c0_6 = arith.constant 0 : index
    %6 = vector.load %arg4[%c0_5, %c0_6] : memref<36x1xf32, #tpu.memory_space<vmem>>, vector<36x1xf32>
    %7 = vector.broadcast %6 : vector<36x1xf32> to vector<36x1024xf32>
    %8 = arith.addf %5, %7 : vector<36x1024xf32>
    %cst_7 = arith.constant 0.000000e+00 : f32
    %9 = vector.broadcast %cst_7 : f32 to vector<36x1024xf32>
    %10 = arith.cmpf ogt, %8, %9 : vector<36x1024xf32>
    %cst_8 = arith.constant 0.000000e+00 : f32
    %11 = vector.broadcast %cst_8 : f32 to vector<36x1024xf32>
    %12 = arith.minimumf %8, %11 : vector<36x1024xf32>
    %13 = math.exp %12 : vector<36x1024xf32>
    %cst_9 = arith.constant 1.000000e+00 : f32
    %14 = vector.broadcast %cst_9 : f32 to vector<36x1024xf32>
    %15 = arith.subf %13, %14 : vector<36x1024xf32>
    %16 = arith.select %10, %8, %15 : vector<36x1024xi1>, vector<36x1024xf32>
    %c0_10 = arith.constant 0 : index
    %c0_11 = arith.constant 0 : index
    %17 = vector.load %arg5[%c0_10, %c0_11] : memref<36x1024xf32, #tpu.memory_space<vmem>>, vector<36x1024xf32>
    tpu.vector_store %arg5[%c0_10, %c0_11], %16 {strides = array<i32>} : memref<36x1024xf32, #tpu.memory_space<vmem>>, vector<36x1024xf32>,
    return
  }
  func.func @transform_0(%arg0: i32) -> (i32, i32) {
    %c0_i32 = arith.constant 0 : i32
    %c0_i32_0 = arith.constant 0 : i32
    %c0_i32_1 = arith.constant 0 : i32
    return %c0_i32, %c0_i32_0 : i32, i32
  }
  func.func @transform_1(%arg0: i32) -> (i32, i32) {
    %c0_i32 = arith.constant 0 : i32
    %c0_i32_0 = arith.constant 0 : i32
    return %c0_i32, %arg0 : i32, i32
  }
  func.func @transform_2(%arg0: i32) -> (i32, i32) {
    %c0_i32 = arith.constant 0 : i32
    %c0_i32_0 = arith.constant 0 : i32
    %c0_i32_1 = arith.constant 0 : i32
    return %c0_i32, %c0_i32_0 : i32, i32
  }
  func.func @transform_3(%arg0: i32) -> (i32, i32) {
    %c0_i32 = arith.constant 0 : i32
    %c0_i32_0 = arith.constant 0 : i32
    %c0_i32_1 = arith.constant 0 : i32
    return %c0_i32, %c0_i32_0 : i32, i32
  }
  func.func @transform_4(%arg0: i32) -> (i32, i32) {
    %c0_i32 = arith.constant 0 : i32
    %c0_i32_0 = arith.constant 0 : i32
    return %c0_i32, %arg0 : i32, i32
  }
}

module attributes {stable_mosaic.version = 11 : i64} {
  func.func @_conv_affine_elu_kernel(%arg0: i32, %arg1: memref<48x900xbf16, #tpu.memory_space<vmem>>, %arg2: memref<900x220xbf16, #tpu.memory_space<vmem>>, %arg3: memref<48x1xf32, #tpu.memory_space<vmem>>, %arg4: memref<48x1xf32, #tpu.memory_space<vmem>>, %arg5: memref<48x220xf32, #tpu.memory_space<vmem>>) attributes {dimension_semantics = [#tpu.dimension_semantics<parallel>], iteration_bounds = array<i64: 1>, scalar_prefetch = 0 : i64, scratch_operands = 0 : i64, tpu.core_type = #tpu.core_type<tc>, window_params = [{pipeline_mode = #tpu.pipeline_mode<synchronous>, transform_indices = @transform_0, window_bounds = array<i64: 48, 900>}, {transform_indices = @transform_1, window_bounds = array<i64: 900, 220>}, {pipeline_mode = #tpu.pipeline_mode<synchronous>, transform_indices = @transform_2, window_bounds = array<i64: 48, 1>}, {pipeline_mode = #tpu.pipeline_mode<synchronous>, transform_indices = @transform_3, window_bounds = array<i64: 48, 1>}, {transform_indices = @transform_4, window_bounds = array<i64: 48, 220>}]} {
    %c0 = arith.constant 0 : index
    %c0_0 = arith.constant 0 : index
    %0 = vector.load %arg1[%c0, %c0_0] : memref<48x900xbf16, #tpu.memory_space<vmem>>, vector<48x900xbf16>
    %c0_1 = arith.constant 0 : index
    %c0_2 = arith.constant 0 : index
    %1 = vector.load %arg2[%c0_1, %c0_2] : memref<900x220xbf16, #tpu.memory_space<vmem>>, vector<900x220xbf16>
    %cst = arith.constant dense<0.000000e+00> : vector<48x220xf32>
    %2 = tpu.matmul %0, %1, %cst {dimension_numbers = #tpu.dot_dimension_numbers<[1], [0], [0], [1], [0, 0, 1, 1], [], []>} : vector<48x900xbf16>, vector<900x220xbf16>, vector<48x220xf32> -> vector<48x220xf32>
    %c0_3 = arith.constant 0 : index
    %c0_4 = arith.constant 0 : index
    %3 = vector.load %arg3[%c0_3, %c0_4] : memref<48x1xf32, #tpu.memory_space<vmem>>, vector<48x1xf32>
    %4 = vector.broadcast %3 : vector<48x1xf32> to vector<48x220xf32>
    %5 = arith.mulf %2, %4 : vector<48x220xf32>
    %c0_5 = arith.constant 0 : index
    %c0_6 = arith.constant 0 : index
    %6 = vector.load %arg4[%c0_5, %c0_6] : memref<48x1xf32, #tpu.memory_space<vmem>>, vector<48x1xf32>
    %7 = vector.broadcast %6 : vector<48x1xf32> to vector<48x220xf32>
    %8 = arith.addf %5, %7 : vector<48x220xf32>
    %cst_7 = arith.constant 0.000000e+00 : f32
    %9 = vector.broadcast %cst_7 : f32 to vector<48x220xf32>
    %10 = arith.cmpf ogt, %8, %9 : vector<48x220xf32>
    %cst_8 = arith.constant 0.000000e+00 : f32
    %11 = vector.broadcast %cst_8 : f32 to vector<48x220xf32>
    %12 = arith.minimumf %8, %11 : vector<48x220xf32>
    %13 = math.exp %12 : vector<48x220xf32>
    %cst_9 = arith.constant 1.000000e+00 : f32
    %14 = vector.broadcast %cst_9 : f32 to vector<48x220xf32>
    %15 = arith.subf %13, %14 : vector<48x220xf32>
    %16 = arith.select %10, %8, %15 : vector<48x220xi1>, vector<48x220xf32>
    %c0_10 = arith.constant 0 : index
    %c0_11 = arith.constant 0 : index
    %17 = vector.load %arg5[%c0_10, %c0_11] : memref<48x220xf32, #tpu.memory_space<vmem>>, vector<48x220xf32>
    tpu.vector_store %arg5[%c0_10, %c0_11], %16 {strides = array<i32>} : memref<48x220xf32, #tpu.memory_space<vmem>>, vector<48x220xf32>,
    return
  }
  func.func @transform_0(%arg0: i32) -> (i32, i32) {
    %c0_i32 = arith.constant 0 : i32
    %c0_i32_0 = arith.constant 0 : i32
    %c0_i32_1 = arith.constant 0 : i32
    return %c0_i32, %c0_i32_0 : i32, i32
  }
  func.func @transform_1(%arg0: i32) -> (i32, i32) {
    %c0_i32 = arith.constant 0 : i32
    %c0_i32_0 = arith.constant 0 : i32
    return %c0_i32, %arg0 : i32, i32
  }
  func.func @transform_2(%arg0: i32) -> (i32, i32) {
    %c0_i32 = arith.constant 0 : i32
    %c0_i32_0 = arith.constant 0 : i32
    %c0_i32_1 = arith.constant 0 : i32
    return %c0_i32, %c0_i32_0 : i32, i32
  }
  func.func @transform_3(%arg0: i32) -> (i32, i32) {
    %c0_i32 = arith.constant 0 : i32
    %c0_i32_0 = arith.constant 0 : i32
    %c0_i32_1 = arith.constant 0 : i32
    return %c0_i32, %c0_i32_0 : i32, i32
  }
  func.func @transform_4(%arg0: i32) -> (i32, i32) {
    %c0_i32 = arith.constant 0 : i32
    %c0_i32_0 = arith.constant 0 : i32
    return %c0_i32, %arg0 : i32, i32
  }
}

module attributes {stable_mosaic.version = 11 : i64} {
  func.func @_conv_affine_elu_kernel(%arg0: i32, %arg1: memref<64x432xbf16, #tpu.memory_space<vmem>>, %arg2: memref<432x120xbf16, #tpu.memory_space<vmem>>, %arg3: memref<64x1xf32, #tpu.memory_space<vmem>>, %arg4: memref<64x1xf32, #tpu.memory_space<vmem>>, %arg5: memref<64x120xf32, #tpu.memory_space<vmem>>) attributes {dimension_semantics = [#tpu.dimension_semantics<parallel>], iteration_bounds = array<i64: 1>, scalar_prefetch = 0 : i64, scratch_operands = 0 : i64, tpu.core_type = #tpu.core_type<tc>, window_params = [{pipeline_mode = #tpu.pipeline_mode<synchronous>, transform_indices = @transform_0, window_bounds = array<i64: 64, 432>}, {transform_indices = @transform_1, window_bounds = array<i64: 432, 120>}, {pipeline_mode = #tpu.pipeline_mode<synchronous>, transform_indices = @transform_2, window_bounds = array<i64: 64, 1>}, {pipeline_mode = #tpu.pipeline_mode<synchronous>, transform_indices = @transform_3, window_bounds = array<i64: 64, 1>}, {transform_indices = @transform_4, window_bounds = array<i64: 64, 120>}]} {
    %c0 = arith.constant 0 : index
    %c0_0 = arith.constant 0 : index
    %0 = vector.load %arg1[%c0, %c0_0] : memref<64x432xbf16, #tpu.memory_space<vmem>>, vector<64x432xbf16>
    %c0_1 = arith.constant 0 : index
    %c0_2 = arith.constant 0 : index
    %1 = vector.load %arg2[%c0_1, %c0_2] : memref<432x120xbf16, #tpu.memory_space<vmem>>, vector<432x120xbf16>
    %cst = arith.constant dense<0.000000e+00> : vector<64x120xf32>
    %2 = tpu.matmul %0, %1, %cst {dimension_numbers = #tpu.dot_dimension_numbers<[1], [0], [0], [1], [0, 0, 1, 1], [], []>} : vector<64x432xbf16>, vector<432x120xbf16>, vector<64x120xf32> -> vector<64x120xf32>
    %c0_3 = arith.constant 0 : index
    %c0_4 = arith.constant 0 : index
    %3 = vector.load %arg3[%c0_3, %c0_4] : memref<64x1xf32, #tpu.memory_space<vmem>>, vector<64x1xf32>
    %4 = vector.broadcast %3 : vector<64x1xf32> to vector<64x120xf32>
    %5 = arith.mulf %2, %4 : vector<64x120xf32>
    %c0_5 = arith.constant 0 : index
    %c0_6 = arith.constant 0 : index
    %6 = vector.load %arg4[%c0_5, %c0_6] : memref<64x1xf32, #tpu.memory_space<vmem>>, vector<64x1xf32>
    %7 = vector.broadcast %6 : vector<64x1xf32> to vector<64x120xf32>
    %8 = arith.addf %5, %7 : vector<64x120xf32>
    %cst_7 = arith.constant 0.000000e+00 : f32
    %9 = vector.broadcast %cst_7 : f32 to vector<64x120xf32>
    %10 = arith.cmpf ogt, %8, %9 : vector<64x120xf32>
    %cst_8 = arith.constant 0.000000e+00 : f32
    %11 = vector.broadcast %cst_8 : f32 to vector<64x120xf32>
    %12 = arith.minimumf %8, %11 : vector<64x120xf32>
    %13 = math.exp %12 : vector<64x120xf32>
    %cst_9 = arith.constant 1.000000e+00 : f32
    %14 = vector.broadcast %cst_9 : f32 to vector<64x120xf32>
    %15 = arith.subf %13, %14 : vector<64x120xf32>
    %16 = arith.select %10, %8, %15 : vector<64x120xi1>, vector<64x120xf32>
    %c0_10 = arith.constant 0 : index
    %c0_11 = arith.constant 0 : index
    %17 = vector.load %arg5[%c0_10, %c0_11] : memref<64x120xf32, #tpu.memory_space<vmem>>, vector<64x120xf32>
    tpu.vector_store %arg5[%c0_10, %c0_11], %16 {strides = array<i32>} : memref<64x120xf32, #tpu.memory_space<vmem>>, vector<64x120xf32>,
    return
  }
  func.func @transform_0(%arg0: i32) -> (i32, i32) {
    %c0_i32 = arith.constant 0 : i32
    %c0_i32_0 = arith.constant 0 : i32
    %c0_i32_1 = arith.constant 0 : i32
    return %c0_i32, %c0_i32_0 : i32, i32
  }
  func.func @transform_1(%arg0: i32) -> (i32, i32) {
    %c0_i32 = arith.constant 0 : i32
    %c0_i32_0 = arith.constant 0 : i32
    return %c0_i32, %arg0 : i32, i32
  }
  func.func @transform_2(%arg0: i32) -> (i32, i32) {
    %c0_i32 = arith.constant 0 : i32
    %c0_i32_0 = arith.constant 0 : i32
    %c0_i32_1 = arith.constant 0 : i32
    return %c0_i32, %c0_i32_0 : i32, i32
  }
  func.func @transform_3(%arg0: i32) -> (i32, i32) {
    %c0_i32 = arith.constant 0 : i32
    %c0_i32_0 = arith.constant 0 : i32
    %c0_i32_1 = arith.constant 0 : i32
    return %c0_i32, %c0_i32_0 : i32, i32
  }
  func.func @transform_4(%arg0: i32) -> (i32, i32) {
    %c0_i32 = arith.constant 0 : i32
    %c0_i32_0 = arith.constant 0 : i32
    return %c0_i32, %arg0 : i32, i32
  }
}

module attributes {stable_mosaic.version = 11 : i64} {
  func.func @_conv_affine_elu_kernel(%arg0: i32, %arg1: memref<64x576xbf16, #tpu.memory_space<vmem>>, %arg2: memref<576x36xbf16, #tpu.memory_space<vmem>>, %arg3: memref<64x1xf32, #tpu.memory_space<vmem>>, %arg4: memref<64x1xf32, #tpu.memory_space<vmem>>, %arg5: memref<64x36xf32, #tpu.memory_space<vmem>>) attributes {dimension_semantics = [#tpu.dimension_semantics<parallel>], iteration_bounds = array<i64: 1>, scalar_prefetch = 0 : i64, scratch_operands = 0 : i64, tpu.core_type = #tpu.core_type<tc>, window_params = [{pipeline_mode = #tpu.pipeline_mode<synchronous>, transform_indices = @transform_0, window_bounds = array<i64: 64, 576>}, {transform_indices = @transform_1, window_bounds = array<i64: 576, 36>}, {pipeline_mode = #tpu.pipeline_mode<synchronous>, transform_indices = @transform_2, window_bounds = array<i64: 64, 1>}, {pipeline_mode = #tpu.pipeline_mode<synchronous>, transform_indices = @transform_3, window_bounds = array<i64: 64, 1>}, {transform_indices = @transform_4, window_bounds = array<i64: 64, 36>}]} {
    %c0 = arith.constant 0 : index
    %c0_0 = arith.constant 0 : index
    %0 = vector.load %arg1[%c0, %c0_0] : memref<64x576xbf16, #tpu.memory_space<vmem>>, vector<64x576xbf16>
    %c0_1 = arith.constant 0 : index
    %c0_2 = arith.constant 0 : index
    %1 = vector.load %arg2[%c0_1, %c0_2] : memref<576x36xbf16, #tpu.memory_space<vmem>>, vector<576x36xbf16>
    %cst = arith.constant dense<0.000000e+00> : vector<64x36xf32>
    %2 = tpu.matmul %0, %1, %cst {dimension_numbers = #tpu.dot_dimension_numbers<[1], [0], [0], [1], [0, 0, 1, 1], [], []>} : vector<64x576xbf16>, vector<576x36xbf16>, vector<64x36xf32> -> vector<64x36xf32>
    %c0_3 = arith.constant 0 : index
    %c0_4 = arith.constant 0 : index
    %3 = vector.load %arg3[%c0_3, %c0_4] : memref<64x1xf32, #tpu.memory_space<vmem>>, vector<64x1xf32>
    %4 = vector.broadcast %3 : vector<64x1xf32> to vector<64x36xf32>
    %5 = arith.mulf %2, %4 : vector<64x36xf32>
    %c0_5 = arith.constant 0 : index
    %c0_6 = arith.constant 0 : index
    %6 = vector.load %arg4[%c0_5, %c0_6] : memref<64x1xf32, #tpu.memory_space<vmem>>, vector<64x1xf32>
    %7 = vector.broadcast %6 : vector<64x1xf32> to vector<64x36xf32>
    %8 = arith.addf %5, %7 : vector<64x36xf32>
    %cst_7 = arith.constant 0.000000e+00 : f32
    %9 = vector.broadcast %cst_7 : f32 to vector<64x36xf32>
    %10 = arith.cmpf ogt, %8, %9 : vector<64x36xf32>
    %cst_8 = arith.constant 0.000000e+00 : f32
    %11 = vector.broadcast %cst_8 : f32 to vector<64x36xf32>
    %12 = arith.minimumf %8, %11 : vector<64x36xf32>
    %13 = math.exp %12 : vector<64x36xf32>
    %cst_9 = arith.constant 1.000000e+00 : f32
    %14 = vector.broadcast %cst_9 : f32 to vector<64x36xf32>
    %15 = arith.subf %13, %14 : vector<64x36xf32>
    %16 = arith.select %10, %8, %15 : vector<64x36xi1>, vector<64x36xf32>
    %c0_10 = arith.constant 0 : index
    %c0_11 = arith.constant 0 : index
    %17 = vector.load %arg5[%c0_10, %c0_11] : memref<64x36xf32, #tpu.memory_space<vmem>>, vector<64x36xf32>
    tpu.vector_store %arg5[%c0_10, %c0_11], %16 {strides = array<i32>} : memref<64x36xf32, #tpu.memory_space<vmem>>, vector<64x36xf32>,
    return
  }
  func.func @transform_0(%arg0: i32) -> (i32, i32) {
    %c0_i32 = arith.constant 0 : i32
    %c0_i32_0 = arith.constant 0 : i32
    %c0_i32_1 = arith.constant 0 : i32
    return %c0_i32, %c0_i32_0 : i32, i32
  }
  func.func @transform_1(%arg0: i32) -> (i32, i32) {
    %c0_i32 = arith.constant 0 : i32
    %c0_i32_0 = arith.constant 0 : i32
    return %c0_i32, %arg0 : i32, i32
  }
  func.func @transform_2(%arg0: i32) -> (i32, i32) {
    %c0_i32 = arith.constant 0 : i32
    %c0_i32_0 = arith.constant 0 : i32
    %c0_i32_1 = arith.constant 0 : i32
    return %c0_i32, %c0_i32_0 : i32, i32
  }
  func.func @transform_3(%arg0: i32) -> (i32, i32) {
    %c0_i32 = arith.constant 0 : i32
    %c0_i32_0 = arith.constant 0 : i32
    %c0_i32_1 = arith.constant 0 : i32
    return %c0_i32, %c0_i32_0 : i32, i32
  }
  func.func @transform_4(%arg0: i32) -> (i32, i32) {
    %c0_i32 = arith.constant 0 : i32
    %c0_i32_0 = arith.constant 0 : i32
    return %c0_i32, %arg0 : i32, i32
  }
}

module attributes {stable_mosaic.version = 11 : i64} {
  func.func @_fc_chain_kernel(%arg0: i32, %arg1: memref<8x1152xf32, #tpu.memory_space<vmem>>, %arg2: memref<1152x100xbf16, #tpu.memory_space<vmem>>, %arg3: memref<1x100xf32, #tpu.memory_space<vmem>>, %arg4: memref<100x50xbf16, #tpu.memory_space<vmem>>, %arg5: memref<1x50xf32, #tpu.memory_space<vmem>>, %arg6: memref<50x10xbf16, #tpu.memory_space<vmem>>, %arg7: memref<1x10xf32, #tpu.memory_space<vmem>>, %arg8: memref<10x1xbf16, #tpu.memory_space<vmem>>, %arg9: memref<1x1xf32, #tpu.memory_space<vmem>>, %arg10: memref<8x1xf32, #tpu.memory_space<vmem>>) attributes {dimension_semantics = [#tpu.dimension_semantics<arbitrary>], iteration_bounds = array<i64: 1>, scalar_prefetch = 0 : i64, scratch_operands = 0 : i64, tpu.core_type = #tpu.core_type<tc>, window_params = [{pipeline_mode = #tpu.pipeline_mode<synchronous>, transform_indices = @transform_0, window_bounds = array<i64: 8, 1152>}, {pipeline_mode = #tpu.pipeline_mode<synchronous>, transform_indices = @transform_1, window_bounds = array<i64: 1152, 100>}, {pipeline_mode = #tpu.pipeline_mode<synchronous>, transform_indices = @transform_2, window_bounds = array<i64: 1, 100>}, {pipeline_mode = #tpu.pipeline_mode<synchronous>, transform_indices = @transform_3, window_bounds = array<i64: 100, 50>}, {pipeline_mode = #tpu.pipeline_mode<synchronous>, transform_indices = @transform_4, window_bounds = array<i64: 1, 50>}, {pipeline_mode = #tpu.pipeline_mode<synchronous>, transform_indices = @transform_5, window_bounds = array<i64: 50, 10>}, {pipeline_mode = #tpu.pipeline_mode<synchronous>, transform_indices = @transform_6, window_bounds = array<i64: 1, 10>}, {pipeline_mode = #tpu.pipeline_mode<synchronous>, transform_indices = @transform_7, window_bounds = array<i64: 10, 1>}, {pipeline_mode = #tpu.pipeline_mode<synchronous>, transform_indices = @transform_8, window_bounds = array<i64: 1, 1>}, {pipeline_mode = #tpu.pipeline_mode<synchronous>, transform_indices = @transform_9, window_bounds = array<i64: 8, 1>}]} {
    %c0 = arith.constant 0 : index
    %c0_0 = arith.constant 0 : index
    %0 = vector.load %arg1[%c0, %c0_0] : memref<8x1152xf32, #tpu.memory_space<vmem>>, vector<8x1152xf32>
    %1 = arith.truncf %0 : vector<8x1152xf32> to vector<8x1152xbf16>
    %c0_1 = arith.constant 0 : index
    %c0_2 = arith.constant 0 : index
    %2 = vector.load %arg2[%c0_1, %c0_2] : memref<1152x100xbf16, #tpu.memory_space<vmem>>, vector<1152x100xbf16>
    %cst = arith.constant dense<0.000000e+00> : vector<8x100xf32>
    %3 = tpu.matmul %1, %2, %cst {dimension_numbers = #tpu.dot_dimension_numbers<[1], [0], [0], [1], [0, 0, 1, 1], [], []>} : vector<8x1152xbf16>, vector<1152x100xbf16>, vector<8x100xf32> -> vector<8x100xf32>
    %c0_3 = arith.constant 0 : index
    %c0_4 = arith.constant 0 : index
    %4 = vector.load %arg3[%c0_3, %c0_4] : memref<1x100xf32, #tpu.memory_space<vmem>>, vector<1x100xf32>
    %5 = vector.broadcast %4 : vector<1x100xf32> to vector<8x100xf32>
    %6 = arith.addf %3, %5 : vector<8x100xf32>
    %cst_5 = arith.constant 0.000000e+00 : f32
    %7 = vector.broadcast %cst_5 : f32 to vector<8x100xf32>
    %8 = arith.cmpf ogt, %6, %7 : vector<8x100xf32>
    %cst_6 = arith.constant 0.000000e+00 : f32
    %9 = vector.broadcast %cst_6 : f32 to vector<8x100xf32>
    %10 = arith.minimumf %6, %9 : vector<8x100xf32>
    %11 = math.exp %10 : vector<8x100xf32>
    %cst_7 = arith.constant 1.000000e+00 : f32
    %12 = vector.broadcast %cst_7 : f32 to vector<8x100xf32>
    %13 = arith.subf %11, %12 : vector<8x100xf32>
    %14 = arith.select %8, %6, %13 : vector<8x100xi1>, vector<8x100xf32>
    %15 = arith.truncf %14 : vector<8x100xf32> to vector<8x100xbf16>
    %c0_8 = arith.constant 0 : index
    %c0_9 = arith.constant 0 : index
    %16 = vector.load %arg4[%c0_8, %c0_9] : memref<100x50xbf16, #tpu.memory_space<vmem>>, vector<100x50xbf16>
    %cst_10 = arith.constant dense<0.000000e+00> : vector<8x50xf32>
    %17 = tpu.matmul %15, %16, %cst_10 {dimension_numbers = #tpu.dot_dimension_numbers<[1], [0], [0], [1], [0, 0, 1, 1], [], []>} : vector<8x100xbf16>, vector<100x50xbf16>, vector<8x50xf32> -> vector<8x50xf32>
    %c0_11 = arith.constant 0 : index
    %c0_12 = arith.constant 0 : index
    %18 = vector.load %arg5[%c0_11, %c0_12] : memref<1x50xf32, #tpu.memory_space<vmem>>, vector<1x50xf32>
    %19 = vector.broadcast %18 : vector<1x50xf32> to vector<8x50xf32>
    %20 = arith.addf %17, %19 : vector<8x50xf32>
    %cst_13 = arith.constant 0.000000e+00 : f32
    %21 = vector.broadcast %cst_13 : f32 to vector<8x50xf32>
    %22 = arith.cmpf ogt, %20, %21 : vector<8x50xf32>
    %cst_14 = arith.constant 0.000000e+00 : f32
    %23 = vector.broadcast %cst_14 : f32 to vector<8x50xf32>
    %24 = arith.minimumf %20, %23 : vector<8x50xf32>
    %25 = math.exp %24 : vector<8x50xf32>
    %cst_15 = arith.constant 1.000000e+00 : f32
    %26 = vector.broadcast %cst_15 : f32 to vector<8x50xf32>
    %27 = arith.subf %25, %26 : vector<8x50xf32>
    %28 = arith.select %22, %20, %27 : vector<8x50xi1>, vector<8x50xf32>
    %29 = arith.truncf %28 : vector<8x50xf32> to vector<8x50xbf16>
    %c0_16 = arith.constant 0 : index
    %c0_17 = arith.constant 0 : index
    %30 = vector.load %arg6[%c0_16, %c0_17] : memref<50x10xbf16, #tpu.memory_space<vmem>>, vector<50x10xbf16>
    %cst_18 = arith.constant dense<0.000000e+00> : vector<8x10xf32>
    %31 = tpu.matmul %29, %30, %cst_18 {dimension_numbers = #tpu.dot_dimension_numbers<[1], [0], [0], [1], [0, 0, 1, 1], [], []>} : vector<8x50xbf16>, vector<50x10xbf16>, vector<8x10xf32> -> vector<8x10xf32>
    %c0_19 = arith.constant 0 : index
    %c0_20 = arith.constant 0 : index
    %32 = vector.load %arg7[%c0_19, %c0_20] : memref<1x10xf32, #tpu.memory_space<vmem>>, vector<1x10xf32>
    %33 = vector.broadcast %32 : vector<1x10xf32> to vector<8x10xf32>
    %34 = arith.addf %31, %33 : vector<8x10xf32>
    %cst_21 = arith.constant 0.000000e+00 : f32
    %35 = vector.broadcast %cst_21 : f32 to vector<8x10xf32>
    %36 = arith.cmpf ogt, %34, %35 : vector<8x10xf32>
    %cst_22 = arith.constant 0.000000e+00 : f32
    %37 = vector.broadcast %cst_22 : f32 to vector<8x10xf32>
    %38 = arith.minimumf %34, %37 : vector<8x10xf32>
    %39 = math.exp %38 : vector<8x10xf32>
    %cst_23 = arith.constant 1.000000e+00 : f32
    %40 = vector.broadcast %cst_23 : f32 to vector<8x10xf32>
    %41 = arith.subf %39, %40 : vector<8x10xf32>
    %42 = arith.select %36, %34, %41 : vector<8x10xi1>, vector<8x10xf32>
    %43 = arith.truncf %42 : vector<8x10xf32> to vector<8x10xbf16>
    %c0_24 = arith.constant 0 : index
    %c0_25 = arith.constant 0 : index
    %44 = vector.load %arg8[%c0_24, %c0_25] : memref<10x1xbf16, #tpu.memory_space<vmem>>, vector<10x1xbf16>
    %cst_26 = arith.constant dense<0.000000e+00> : vector<8x1xf32>
    %45 = tpu.matmul %43, %44, %cst_26 {dimension_numbers = #tpu.dot_dimension_numbers<[1], [0], [0], [1], [0, 0, 1, 1], [], []>} : vector<8x10xbf16>, vector<10x1xbf16>, vector<8x1xf32> -> vector<8x1xf32>
    %c0_27 = arith.constant 0 : index
    %c0_28 = arith.constant 0 : index
    %46 = vector.load %arg9[%c0_27, %c0_28] : memref<1x1xf32, #tpu.memory_space<vmem>>, vector<1x1xf32>
    %47 = vector.broadcast %46 : vector<1x1xf32> to vector<8x1xf32>
    %48 = arith.addf %45, %47 : vector<8x1xf32>
    %cst_29 = arith.constant 0.000000e+00 : f32
    %49 = vector.broadcast %cst_29 : f32 to vector<8x1xf32>
    %50 = arith.cmpf ogt, %48, %49 : vector<8x1xf32>
    %cst_30 = arith.constant 0.000000e+00 : f32
    %51 = vector.broadcast %cst_30 : f32 to vector<8x1xf32>
    %52 = arith.minimumf %48, %51 : vector<8x1xf32>
    %53 = math.exp %52 : vector<8x1xf32>
    %cst_31 = arith.constant 1.000000e+00 : f32
    %54 = vector.broadcast %cst_31 : f32 to vector<8x1xf32>
    %55 = arith.subf %53, %54 : vector<8x1xf32>
    %56 = arith.select %50, %48, %55 : vector<8x1xi1>, vector<8x1xf32>
    %c0_32 = arith.constant 0 : index
    %c0_33 = arith.constant 0 : index
    %57 = vector.load %arg10[%c0_32, %c0_33] : memref<8x1xf32, #tpu.memory_space<vmem>>, vector<8x1xf32>
    tpu.vector_store %arg10[%c0_32, %c0_33], %56 {strides = array<i32>} : memref<8x1xf32, #tpu.memory_space<vmem>>, vector<8x1xf32>,
    return
  }
  func.func @transform_0(%arg0: i32) -> (i32, i32) {
    %c0_i32 = arith.constant 0 : i32
    %c0_i32_0 = arith.constant 0 : i32
    %c0_i32_1 = arith.constant 0 : i32
    return %c0_i32, %c0_i32_0 : i32, i32
  }
  func.func @transform_1(%arg0: i32) -> (i32, i32) {
    %c0_i32 = arith.constant 0 : i32
    %c0_i32_0 = arith.constant 0 : i32
    %c0_i32_1 = arith.constant 0 : i32
    return %c0_i32, %c0_i32_0 : i32, i32
  }
  func.func @transform_2(%arg0: i32) -> (i32, i32) {
    %c0_i32 = arith.constant 0 : i32
    %c0_i32_0 = arith.constant 0 : i32
    %c0_i32_1 = arith.constant 0 : i32
    return %c0_i32, %c0_i32_0 : i32, i32
  }
  func.func @transform_3(%arg0: i32) -> (i32, i32) {
    %c0_i32 = arith.constant 0 : i32
    %c0_i32_0 = arith.constant 0 : i32
    %c0_i32_1 = arith.constant 0 : i32
    return %c0_i32, %c0_i32_0 : i32, i32
  }
  func.func @transform_4(%arg0: i32) -> (i32, i32) {
    %c0_i32 = arith.constant 0 : i32
    %c0_i32_0 = arith.constant 0 : i32
    %c0_i32_1 = arith.constant 0 : i32
    return %c0_i32, %c0_i32_0 : i32, i32
  }
  func.func @transform_5(%arg0: i32) -> (i32, i32) {
    %c0_i32 = arith.constant 0 : i32
    %c0_i32_0 = arith.constant 0 : i32
    %c0_i32_1 = arith.constant 0 : i32
    return %c0_i32, %c0_i32_0 : i32, i32
  }
  func.func @transform_6(%arg0: i32) -> (i32, i32) {
    %c0_i32 = arith.constant 0 : i32
    %c0_i32_0 = arith.constant 0 : i32
    %c0_i32_1 = arith.constant 0 : i32
    return %c0_i32, %c0_i32_0 : i32, i32
  }
  func.func @transform_7(%arg0: i32) -> (i32, i32) {
    %c0_i32 = arith.constant 0 : i32
    %c0_i32_0 = arith.constant 0 : i32
    %c0_i32_1 = arith.constant 0 : i32
    return %c0_i32, %c0_i32_0 : i32, i32
  }
  func.func @transform_8(%arg0: i32) -> (i32, i32) {
    %c0_i32 = arith.constant 0 : i32
    %c0_i32_0 = arith.constant 0 : i32
    %c0_i32_1 = arith.constant 0 : i32
    return %c0_i32, %c0_i32_0 : i32, i32
  }
  func.func @transform_9(%arg0: i32) -> (i32, i32) {
    %c0_i32 = arith.constant 0 : i32
    %c0_i32_0 = arith.constant 0 : i32
    %c0_i32_1 = arith.constant 0 : i32
    return %c0_i32, %c0_i32_0 : i32, i32
  }
}

</mosaic_0001>

<llo_original>
// kernel: nvidia_forward.6
$region0: #{nvidia_forward.6}
  #allocation0 [shape = 'u32[]', space=smem, size = 0x4, offset = 0x4, fixed_abs, tag = 'smem constant byte address 0x4 - core index']
  #allocation1 [shape = 'u32[144,128]{1,0:T(1,128)}', space=vmem, size = 0x12000, scoped, tag = 'internal scratch']
  %s0 = inlined_call_operand.vmem [shape: bf16[24,75], index: 0, kind: input, shape index: {}]
  %s1 = inlined_call_operand.vmem [shape: bf16[75,6076], index: 1, kind: input, shape index: {}]
  %s2 = inlined_call_operand.vmem [shape: f32[24,1], index: 2, kind: input, shape index: {}]
  %s3 = inlined_call_operand.vmem [shape: f32[24,1], index: 3, kind: input, shape index: {}]
  %s4 = inlined_call_operand.vmem [shape: f32[24,6076], index: 4, kind: output, shape index: {}]
  %s5 = sld [smem:[#allocation0]]
  $region91: #{nvidia_forward.6} parent=0
    _
  %s7 = ssub.s32 1, %s5
  %s8 = scalar_select 0, %s7, %s5
  $region1: #{nvidia_forward.6} parent=0
    #allocation2 [shape = 'u8[327680]{0}', space=vmem, size = 0x50000, scoped, tag = 'input window, operand 1']
    #allocation3 [shape = 'u8[196608]{0}', space=vmem, size = 0x30000, scoped, tag = 'output window, operand 0']
    loop: start=0, step=1, limit=8
    $region2: #{nvidia_forward.6} parent=1 // loop_pre_header
      _
    $region3: #{nvidia_forward.6} parent=1 // loop_header
      %s10 = sphi 0, %s14
      %p11 = scmp.ge.s32.totalorder %s10, 8
      %s18 = sphi 0, %s18
      %s20 = sphi 0, %s18
      %s21 = sphi 0, %s20
      %s35 = sphi 0, %s21
      %s41 = sphi 0, %s43
      %s44 = sphi 0, %s41
      %s45 = sphi 0, %s44
      %s61 = sphi 0, %s45
      %s65 = sphi 0, %s65
      %s67 = sphi 0, %s65
      %s68 = sphi 0, %s67
      %s82 = sphi 0, %s68
      %s86 = sphi 0, %s86
      %s88 = sphi 0, %s86
      %s89 = sphi 0, %s88
      %s103 = sphi 0, %s89
      %s109 = sphi 0, %s111
      %s112 = sphi 0, %s109
      %s113 = sphi 0, %s112
      %s129 = sphi 0, %s113
    $region4: #{nvidia_forward.6} parent=1 // loop_header_branch
      %13 = sbr.rel (%p11) target = $region8
    $region5: #{nvidia_forward.6} parent=1 // loop_body
      %s15 = ssub.s32 %s10, 1
      %s16 = ssub.s32 %s10, 2
      %s17 = sadd.s32 %s10, 1
      %s19 = sadd.s32 %s18, 1
      %p22 = scmp.eq.s32.totalorder %s10, 5
      %p23 = scmp.ne.s32.totalorder %s18, %s20
      %p24 = scmp.eq.s32.totalorder %s10, 0
      %p25 = por %p23, %p24
      %p26 = scmp.ne.s32.totalorder %s18, %s20
      %p27 = scmp.eq.s32.totalorder %s15, 5
      %p28 = por %p26, %p27
      %p29 = scmp.ne.s32.totalorder %s20, %s21
      %p30 = scmp.eq.s32.totalorder %s15, 0
      %p31 = por %p29, %p30
      %p32 = scmp.ne.s32.totalorder %s20, %s21
      %p33 = scmp.eq.s32.totalorder %s16, 5
      %p34 = por %p32, %p33
      %p36 = scmp.ne.s32.totalorder %s21, %s35
      %p37 = scmp.eq.s32.totalorder %s16, 0
      %p38 = por %p36, %p37
      %s39 = ssub.s32 %s10, %s17
      %p40 = scmp.eq.s32.totalorder %s39, 0
      %s42 = sadd.s32 %s41, 1
      %s43 = scalar_select %p40, %s41, %s42
      %p46 = pneg %p40
      %p47 = scmp.eq.s32.totalorder %s10, 5
      %p48 = por %p46, %p47
      %p49 = scmp.ne.s32.totalorder %s41, %s44
      %p50 = scmp.eq.s32.totalorder %s10, 0
      %p51 = por %p49, %p50
      %p52 = scmp.ne.s32.totalorder %s41, %s44
      %p53 = scmp.eq.s32.totalorder %s15, 5
      %p54 = por %p52, %p53
      %p55 = scmp.ne.s32.totalorder %s44, %s45
      %p56 = scmp.eq.s32.totalorder %s15, 0
      %p57 = por %p55, %p56
      %p58 = scmp.ne.s32.totalorder %s44, %s45
      %p59 = scmp.eq.s32.totalorder %s16, 5
      %p60 = por %p58, %p59
      %p62 = scmp.ne.s32.totalorder %s45, %s61
      %p63 = scmp.eq.s32.totalorder %s16, 0
      %p64 = por %p62, %p63
      %s66 = sadd.s32 %s65, 1
      %p69 = scmp.eq.s32.totalorder %s10, 5
      %p70 = scmp.ne.s32.totalorder %s65, %s67
      %p71 = scmp.eq.s32.totalorder %s10, 0
      %p72 = por %p70, %p71
      %p73 = scmp.ne.s32.totalorder %s65, %s67
      %p74 = scmp.eq.s32.totalorder %s15, 5
      %p75 = por %p73, %p74
      %p76 = scmp.ne.s32.totalorder %s67, %s68
      %p77 = scmp.eq.s32.totalorder %s15, 0
      %p78 = por %p76, %p77
      %p79 = scmp.ne.s32.totalorder %s67, %s68
      %p80 = scmp.eq.s32.totalorder %s16, 5
      %p81 = por %p79, %p80
      %p83 = scmp.ne.s32.totalorder %s68, %s82
      %p84 = scmp.eq.s32.totalorder %s16, 0
      %p85 = por %p83, %p84
      %s87 = sadd.s32 %s86, 1
      %p90 = scmp.eq.s32.totalorder %s10, 5
      %p91 = scmp.ne.s32.totalorder %s86, %s88
      %p92 = scmp.eq.s32.totalorder %s10, 0
      %p93 = por %p91, %p92
      %p94 = scmp.ne.s32.totalorder %s86, %s88
      %p95 = scmp.eq.s32.totalorder %s15, 5
      %p96 = por %p94, %p95
      %p97 = scmp.ne.s32.totalorder %s88, %s89
      %p98 = scmp.eq.s32.totalorder %s15, 0
      %p99 = por %p97, %p98
      %p100 = scmp.ne.s32.totalorder %s88, %s89
      %p101 = scmp.eq.s32.totalorder %s16, 5
      %p102 = por %p100, %p101
      %p104 = scmp.ne.s32.totalorder %s89, %s103
      %p105 = scmp.eq.s32.totalorder %s16, 0
      %p106 = por %p104, %p105
      %s107 = ssub.s32 %s10, %s17
      %p108 = scmp.eq.s32.totalorder %s107, 0
      %s110 = sadd.s32 %s109, 1
      %s111 = scalar_select %p108, %s109, %s110
      %p114 = pneg %p108
      %p115 = scmp.eq.s32.totalorder %s10, 5
      %p116 = por %p114, %p115
      %p117 = scmp.ne.s32.totalorder %s109, %s112
      %p118 = scmp.eq.s32.totalorder %s10, 0
      %p119 = por %p117, %p118
      %p120 = scmp.ne.s32.totalorder %s109, %s112
      %p121 = scmp.eq.s32.totalorder %s15, 5
      %p122 = por %p120, %p121
      %p123 = scmp.ne.s32.totalorder %s112, %s113
      %p124 = scmp.eq.s32.totalorder %s15, 0
      %p125 = por %p123, %p124
      %p126 = scmp.ne.s32.totalorder %s112, %s113
      %p127 = scmp.eq.s32.totalorder %s16, 5
      %p128 = por %p126, %p127
      %p130 = scmp.ne.s32.totalorder %s113, %s129
      %p131 = scmp.eq.s32.totalorder %s16, 0
      %p132 = por %p130, %p131
      %p133 = scmp.le.s32.totalorder 1, %s10
      %p134 = scmp.lt.s32.totalorder %s10, 7
      %p135 = pnand %p133, %p134
      %p136 = pneg %p135
      // Predicated region
      $region9: #{nvidia_forward.6} parent=5 // pred_check
        _
      $region10: #{nvidia_forward.6} parent=5 // pred_check_branch
        %138 = sbr.rel (%p135) target = $region12
      $region11: #{nvidia_forward.6} parent=5 // pred_region
        %s139 = ssub.s32 %s10, 1
        // Predicated region
        $region13: #{nvidia_forward.6} parent=11 // pred_check
          %p140 = pneg %p31
        $region14: #{nvidia_forward.6} parent=11 // pred_check_branch
          %142 = sbr.rel (%p140) target = $region16
        $region15: #{nvidia_forward.6} parent=11 // pred_region
          _
        $region16: #{nvidia_forward.6} parent=11 // pred_fallthru
          _
        // Predicated region
        $region17: #{nvidia_forward.6} parent=11 // pred_check
          %p143 = pneg %p78
        $region18: #{nvidia_forward.6} parent=11 // pred_check_branch
          %145 = sbr.rel (%p143) target = $region20
        $region19: #{nvidia_forward.6} parent=11 // pred_region
          _
        $region20: #{nvidia_forward.6} parent=11 // pred_fallthru
          _
        // Predicated region
        $region21: #{nvidia_forward.6} parent=11 // pred_check
          %p146 = pneg %p99
        $region22: #{nvidia_forward.6} parent=11 // pred_check_branch
          %148 = sbr.rel (%p146) target = $region24
        $region23: #{nvidia_forward.6} parent=11 // pred_region
          _
        $region24: #{nvidia_forward.6} parent=11 // pred_fallthru
          _
      $region12: #{nvidia_forward.6} parent=5 // pred_fallthru
        _
      %p149 = scmp.lt.s32.totalorder %s10, 6
      // Predicated region
      $region25: #{nvidia_forward.6} parent=5 // pred_check
        %p150 = pneg %p149
      $region26: #{nvidia_forward.6} parent=5 // pred_check_branch
        %152 = sbr.rel (%p150) target = $region28
      $region27: #{nvidia_forward.6} parent=5 // pred_region
        // Predicated region
        $region29: #{nvidia_forward.6} parent=27 // pred_check
          %p153 = pneg %p51
        $region30: #{nvidia_forward.6} parent=27 // pred_check_branch
          %155 = sbr.rel (%p153) target = $region32
        $region31: #{nvidia_forward.6} parent=27 // pred_region
          %s156 = sand.u32 %s41, 1
          %s157 = sand.u32 %s41, 1
          %s158 = smul.addr %s157, 320
          %s159 = scalar_lea.vmem [#allocation2], %s158
          %s160 = smul.u32 8, %s10
          %s161 = smul.addr %s160, 4
          %s162 = scalar_lea.vmem %s1, %s161
          // Predicated region
          $region33: #{nvidia_forward.6} parent=31 // pred_check
            _
          $region34: #{nvidia_forward.6} parent=31 // pred_check_branch
            %164 = sbr.rel (0) target = $region36
          $region35: #{nvidia_forward.6} parent=31 // pred_region
            // Predicated region
            $region37: #{nvidia_forward.6} parent=35 // pred_check
              _
            $region38: #{nvidia_forward.6} parent=35 // pred_check_branch
              %166 = sbr.rel (0) target = $region40
            $region39: #{nvidia_forward.6} parent=35 // pred_region
              loop: start=0, step=1, limit=1
              $region41: #{nvidia_forward.6} parent=39 // loop_pre_header
                _
              $region42: #{nvidia_forward.6} parent=39 // loop_header
                %s168 = sphi 0, %s172
                %p169 = scmp.ge.s32.totalorder %s168, 1
                %s173 = sphi %s162, %s162
                %s174 = sphi %s159, %s159
              $region43: #{nvidia_forward.6} parent=39 // loop_header_branch
                %171 = sbr.rel (%p169) target = $region47
              $region44: #{nvidia_forward.6} parent=39 // loop_body
                %v175 = vld [vmem:[%s173] sm:$0xff]
                %176 = vst [vmem:[%s174] sm:$0xff] %v175
                %v177 = vld [vmem:[%s173 + $0x8] sm:$0xff]
                %178 = vst [vmem:[%s174 + $0x8] sm:$0xff] %v177
                %v179 = vld [vmem:[%s173 + $0x10] sm:$0xff]
                %180 = vst [vmem:[%s174 + $0x10] sm:$0xff] %v179
                %v181 = vld [vmem:[%s173 + $0x18] sm:$0xff]
                %182 = vst [vmem:[%s174 + $0x18] sm:$0xff] %v181
                %v183 = vld [vmem:[%s173 + $0xc0] sm:$0xff]
                %184 = vst [vmem:[%s174 + $0x20] sm:$0xff] %v183
                %v185 = vld [vmem:[%s173 + $0xc8] sm:$0xff]
                %186 = vst [vmem:[%s174 + $0x28] sm:$0xff] %v185
                %v187 = vld [vmem:[%s173 + $0xd0] sm:$0xff]
                %188 = vst [vmem:[%s174 + $0x30] sm:$0xff] %v187
                %v189 = vld [vmem:[%s173 + $0xd8] sm:$0xff]
                %190 = vst [vmem:[%s174 + $0x38] sm:$0xff] %v189
                %v191 = vld [vmem:[%s173 + $0x180] sm:$0xff]
                %192 = vst [vmem:[%s174 + $0x40] sm:$0xff] %v191
                %v193 = vld [vmem:[%s173 + $0x188] sm:$0xff]
                %194 = vst [vmem:[%s174 + $0x48] sm:$0xff] %v193
                %v195 = vld [vmem:[%s173 + $0x190] sm:$0xff]
                %196 = vst [vmem:[%s174 + $0x50] sm:$0xff] %v195
                %v197 = vld [vmem:[%s173 + $0x198] sm:$0xff]
                %198 = vst [vmem:[%s174 + $0x58] sm:$0xff] %v197
                %v199 = vld [vmem:[%s173 + $0x240] sm:$0xff]
                %200 = vst [vmem:[%s174 + $0x60] sm:$0xff] %v199
                %v201 = vld [vmem:[%s173 + $0x248] sm:$0xff]
                %202 = vst [vmem:[%s174 + $0x68] sm:$0xff] %v201
                %v203 = vld [vmem:[%s173 + $0x250] sm:$0xff]
                %204 = vst [vmem:[%s174 + $0x70] sm:$0xff] %v203
                %v205 = vld [vmem:[%s173 + $0x258] sm:$0xff]
                %206 = vst [vmem:[%s174 + $0x78] sm:$0xff] %v205
                %v207 = vld [vmem:[%s173 + $0x300] sm:$0xff]
                %208 = vst [vmem:[%s174 + $0x80] sm:$0xff] %v207
                %v209 = vld [vmem:[%s173 + $0x308] sm:$0xff]
                %210 = vst [vmem:[%s174 + $0x88] sm:$0xff] %v209
                %v211 = vld [vmem:[%s173 + $0x310] sm:$0xff]
                %212 = vst [vmem:[%s174 + $0x90] sm:$0xff] %v211
                %v213 = vld [vmem:[%s173 + $0x318] sm:$0xff]
                %214 = vst [vmem:[%s174 + $0x98] sm:$0xff] %v213
                %v215 = vld [vmem:[%s173 + $0x3c0] sm:$0xff]
                %216 = vst [vmem:[%s174 + $0xa0] sm:$0xff] %v215
                %v217 = vld [vmem:[%s173 + $0x3c8] sm:$0xff]
                %218 = vst [vmem:[%s174 + $0xa8] sm:$0xff] %v217
                %v219 = vld [vmem:[%s173 + $0x3d0] sm:$0xff]
                %220 = vst [vmem:[%s174 + $0xb0] sm:$0xff] %v219
                %v221 = vld [vmem:[%s173 + $0x3d8] sm:$0xff]
                %222 = vst [vmem:[%s174 + $0xb8] sm:$0xff] %v221
                %v223 = vld [vmem:[%s173 + $0x480] sm:$0xff]
                %224 = vst [vmem:[%s174 + $0xc0] sm:$0xff] %v223
                %v225 = vld [vmem:[%s173 + $0x488] sm:$0xff]
                %226 = vst [vmem:[%s174 + $0xc8] sm:$0xff] %v225
                %v227 = vld [vmem:[%s173 + $0x490] sm:$0xff]
                %228 = vst [vmem:[%s174 + $0xd0] sm:$0xff] %v227
                %v229 = vld [vmem:[%s173 + $0x498] sm:$0xff]
                %230 = vst [vmem:[%s174 + $0xd8] sm:$0xff] %v229
                %v231 = vld [vmem:[%s173 + $0x540] sm:$0xff]
                %232 = vst [vmem:[%s174 + $0xe0] sm:$0xff] %v231
                %v233 = vld [vmem:[%s173 + $0x548] sm:$0xff]
                %234 = vst [vmem:[%s174 + $0xe8] sm:$0xff] %v233
                %v235 = vld [vmem:[%s173 + $0x550] sm:$0xff]
                %236 = vst [vmem:[%s174 + $0xf0] sm:$0xff] %v235
                %v237 = vld [vmem:[%s173 + $0x558] sm:$0xff]
                %238 = vst [vmem:[%s174 + $0xf8] sm:$0xff] %v237
                %v239 = vld [vmem:[%s173 + $0x600] sm:$0xff]
                %240 = vst [vmem:[%s174 + $0x100] sm:$0xff] %v239
                %v241 = vld [vmem:[%s173 + $0x608] sm:$0xff]
                %242 = vst [vmem:[%s174 + $0x108] sm:$0xff] %v241
                %v243 = vld [vmem:[%s173 + $0x610] sm:$0xff]
                %244 = vst [vmem:[%s174 + $0x110] sm:$0xff] %v243
                %v245 = vld [vmem:[%s173 + $0x618] sm:$0xff]
                %246 = vst [vmem:[%s174 + $0x118] sm:$0xff] %v245
                %v247 = vld [vmem:[%s173 + $0x6c0] sm:$0xff]
                %248 = vst [vmem:[%s174 + $0x120] sm:$0xff] %v247
                %v249 = vld [vmem:[%s173 + $0x6c8] sm:$0xff]
                %250 = vst [vmem:[%s174 + $0x128] sm:$0xff] %v249
                %v251 = vld [vmem:[%s173 + $0x6d0] sm:$0xff]
                %252 = vst [vmem:[%s174 + $0x130] sm:$0xff] %v251
                %v253 = vld [vmem:[%s173 + $0x6d8] sm:$0xff]
                %254 = vst [vmem:[%s174 + $0x138] sm:$0xff] %v253
              $region45: #{nvidia_forward.6} parent=39 // loop_footer
                %s172 = sadd.s32 1, %s168
              $region46: #{nvidia_forward.6} parent=39 // loop_footer_branch
                %167 = sbr.rel target = $region42
              $region47: #{nvidia_forward.6} parent=39 // loop_exit
                _
            $region40: #{nvidia_forward.6} parent=35 // pred_fallthru
              _
            // Predicated region
            $region48: #{nvidia_forward.6} parent=35 // pred_check
              _
            $region49: #{nvidia_forward.6} parent=35 // pred_check_branch
              %256 = sbr.rel target = $region51
            $region50: #{nvidia_forward.6} parent=35 // pred_region
              _
            $region51: #{nvidia_forward.6} parent=35 // pred_fallthru
              _
          $region36: #{nvidia_forward.6} parent=31 // pred_fallthru
            _
          %257 = vnop
        $region32: #{nvidia_forward.6} parent=27 // pred_fallthru
          _
      $region28: #{nvidia_forward.6} parent=5 // pred_fallthru
        _
      %p258 = scmp.le.s32.totalorder 1, %s10
      %p259 = scmp.lt.s32.totalorder %s10, 7
      %p260 = pnand %p258, %p259
      %p261 = pneg %p260
      // Predicated region
      $region52: #{nvidia_forward.6} parent=5 // pred_check
        _
      $region53: #{nvidia_forward.6} parent=5 // pred_check_branch
        %263 = sbr.rel (%p260) target = $region55
      $region54: #{nvidia_forward.6} parent=5 // pred_region
        %s264 = ssub.s32 %s10, 1
        %s265 = sand.u32 %s44, 1
        %s266 = sand.u32 %s44, 1
        %s267 = smul.addr %s266, 320
        %s268 = scalar_lea.vmem [#allocation2], %s267
        // Predicated region
        $region56: #{nvidia_forward.6} parent=54 // pred_check
          %p269 = pneg %p57
        $region57: #{nvidia_forward.6} parent=54 // pred_check_branch
          %271 = sbr.rel (%p269) target = $region59
        $region58: #{nvidia_forward.6} parent=54 // pred_region
          _
        $region59: #{nvidia_forward.6} parent=54 // pred_fallthru
          _
        %p272 = pneg %p31
        %p273 = pneg %p28
        %s274 = sand.u32 %s44, 1
        %s275 = sand.u32 %s44, 1
        %s276 = smul.addr %s275, 320
        %s277 = scalar_lea.vmem [#allocation2], %s276
        %p278 = pneg %p57
        %p279 = pneg %p54
        %p280 = pneg %p78
        %p281 = pneg %p75
        %p282 = pneg %p99
        %p283 = pneg %p96
        %p284 = pneg %p125
        %p285 = pneg %p122
        %s286 = sand.u32 %s112, 1
        %s287 = sand.u32 %s112, 1
        %s288 = smul.addr %s287, 192
        %s289 = scalar_lea.vmem [#allocation3], %s288
        %s290 = smul.u32 8, %s15
        %s291 = smul.u32 8, %s15
        %v293 = vld [vmem:[%s0] sm:$0xf]
        %v294 = vld [vmem:[%s0 + $0x4] sm:$0xf]
        %v295 = vld [vmem:[%s0 + $0x8] sm:$0xf]
        %v296 = vld [vmem:[%s268] sm:$0xff]
        %v297 = vld [vmem:[%s268 + $0x8] sm:$0xff]
        %v298 = vld [vmem:[%s268 + $0x10] sm:$0xff]
        %v299 = vld [vmem:[%s268 + $0x18] sm:$0xff]
        %v300 = vld [vmem:[%s268 + $0x20] sm:$0xff]
        %v301 = vld [vmem:[%s268 + $0x28] sm:$0xff]
        %v302 = vld [vmem:[%s268 + $0x30] sm:$0xff]
        %v303 = vld [vmem:[%s268 + $0x38] sm:$0xff]
        %v304 = vld [vmem:[%s268 + $0x40] sm:$0xff]
        %v305 = vld [vmem:[%s268 + $0x48] sm:$0xff]
        %v306 = vld [vmem:[%s268 + $0x50] sm:$0xff]
        %v307 = vld [vmem:[%s268 + $0x58] sm:$0xff]
        %v308 = vld [vmem:[%s268 + $0x60] sm:$0xff]
        %v309 = vld [vmem:[%s268 + $0x68] sm:$0xff]
        %v310 = vld [vmem:[%s268 + $0x70] sm:$0xff]
        %v311 = vld [vmem:[%s268 + $0x78] sm:$0xff]
        %v312 = vld [vmem:[%s268 + $0x80] sm:$0xff]
        %v313 = vld [vmem:[%s268 + $0x88] sm:$0xff]
        %v314 = vld [vmem:[%s268 + $0x90] sm:$0xff]
        %v315 = vld [vmem:[%s268 + $0x98] sm:$0xff]
        %v316 = vld [vmem:[%s268 + $0xa0] sm:$0xff]
        %v317 = vld [vmem:[%s268 + $0xa8] sm:$0xff]
        %v318 = vld [vmem:[%s268 + $0xb0] sm:$0xff]
        %v319 = vld [vmem:[%s268 + $0xb8] sm:$0xff]
        %v320 = vld [vmem:[%s268 + $0xc0] sm:$0xff]
        %v321 = vld [vmem:[%s268 + $0xc8] sm:$0xff]
        %v322 = vld [vmem:[%s268 + $0xd0] sm:$0xff]
        %v323 = vld [vmem:[%s268 + $0xd8] sm:$0xff]
        %v324 = vld [vmem:[%s268 + $0xe0] sm:$0xff]
        %v325 = vld [vmem:[%s268 + $0xe8] sm:$0xff]
        %v326 = vld [vmem:[%s268 + $0xf0] sm:$0xff]
        %v327 = vld [vmem:[%s268 + $0xf8] sm:$0xff]
        %v328 = vld [vmem:[%s268 + $0x100] sm:$0xff]
        %v329 = vld [vmem:[%s268 + $0x108] sm:$0xff]
        %v330 = vld [vmem:[%s268 + $0x110] sm:$0xff]
        %v331 = vld [vmem:[%s268 + $0x118] sm:$0xff]
        %v332 = vld [vmem:[%s268 + $0x120] sm:$0x33]
        %v333 = vld [vmem:[%s268 + $0x128] sm:$0x33]
        %v334 = vld [vmem:[%s268 + $0x130] sm:$0x33]
        %v335 = vld [vmem:[%s268 + $0x138] sm:$0x33]
        %v339 = vunpack.c.l.b16 %v293
        %v340 = vunpack.c.l.b16 %v294
        %v341 = vunpack.c.l.b16 %v295
        %v342 = vpack.c.b16 %v340, %v339
        %v343 = vpack.c.b16 %v341, %v341
        %v384 = vunpack.c.l.b16 %v296
        %v385 = vunpack.c.h.b16 %v296
        %v386 = vunpack.c.l.b16 %v297
        %v387 = vunpack.c.h.b16 %v297
        %v388 = vunpack.c.l.b16 %v298
        %v389 = vunpack.c.h.b16 %v298
        %v390 = vunpack.c.l.b16 %v299
        %v391 = vunpack.c.h.b16 %v299
        %v392 = vunpack.c.l.b16 %v300
        %v393 = vunpack.c.h.b16 %v300
        %v394 = vunpack.c.l.b16 %v301
        %v395 = vunpack.c.h.b16 %v301
        %v396 = vunpack.c.l.b16 %v302
        %v397 = vunpack.c.h.b16 %v302
        %v398 = vunpack.c.l.b16 %v303
        %v399 = vunpack.c.h.b16 %v303
        %v400 = vunpack.c.l.b16 %v304
        %v401 = vunpack.c.h.b16 %v304
        %v402 = vunpack.c.l.b16 %v305
        %v403 = vunpack.c.h.b16 %v305
        %v404 = vunpack.c.l.b16 %v306
        %v405 = vunpack.c.h.b16 %v306
        %v406 = vunpack.c.l.b16 %v307
        %v407 = vunpack.c.h.b16 %v307
        %v408 = vunpack.c.l.b16 %v308
        %v409 = vunpack.c.h.b16 %v308
        %v410 = vunpack.c.l.b16 %v309
        %v411 = vunpack.c.h.b16 %v309
        %v412 = vunpack.c.l.b16 %v310
        %v413 = vunpack.c.h.b16 %v310
        %v414 = vunpack.c.l.b16 %v311
        %v415 = vunpack.c.h.b16 %v311
        %v416 = vunpack.c.l.b16 %v312
        %v417 = vunpack.c.h.b16 %v312
        %v418 = vunpack.c.l.b16 %v313
        %v419 = vunpack.c.h.b16 %v313
        %v420 = vunpack.c.l.b16 %v314
        %v421 = vunpack.c.h.b16 %v314
        %v422 = vunpack.c.l.b16 %v315
        %v423 = vunpack.c.h.b16 %v315
        %v424 = vunpack.c.l.b16 %v316
        %v425 = vunpack.c.h.b16 %v316
        %v426 = vunpack.c.l.b16 %v317
        %v427 = vunpack.c.h.b16 %v317
        %v428 = vunpack.c.l.b16 %v318
        %v429 = vunpack.c.h.b16 %v318
        %v430 = vunpack.c.l.b16 %v319
        %v431 = vunpack.c.h.b16 %v319
        %v432 = vunpack.c.l.b16 %v320
        %v433 = vunpack.c.h.b16 %v320
        %v434 = vunpack.c.l.b16 %v321
        %v435 = vunpack.c.h.b16 %v321
        %v436 = vunpack.c.l.b16 %v322
        %v437 = vunpack.c.h.b16 %v322
        %v438 = vunpack.c.l.b16 %v323
        %v439 = vunpack.c.h.b16 %v323
        %v440 = vunpack.c.l.b16 %v324
        %v441 = vunpack.c.h.b16 %v324
        %v442 = vunpack.c.l.b16 %v325
        %v443 = vunpack.c.h.b16 %v325
        %v444 = vunpack.c.l.b16 %v326
        %v445 = vunpack.c.h.b16 %v326
        %v446 = vunpack.c.l.b16 %v327
        %v447 = vunpack.c.h.b16 %v327
        %v448 = vunpack.c.l.b16 %v328
        %v449 = vunpack.c.h.b16 %v328
        %v450 = vunpack.c.l.b16 %v329
        %v451 = vunpack.c.h.b16 %v329
        %v452 = vunpack.c.l.b16 %v330
        %v453 = vunpack.c.h.b16 %v330
        %v454 = vunpack.c.l.b16 %v331
        %v455 = vunpack.c.h.b16 %v331
        %v456 = vunpack.c.l.b16 %v332
        %v457 = vunpack.c.h.b16 %v332
        %v458 = vunpack.c.l.b16 %v333
        %v459 = vunpack.c.h.b16 %v333
        %v460 = vunpack.c.l.b16 %v334
        %v461 = vunpack.c.h.b16 %v334
        %v462 = vunpack.c.l.b16 %v335
        %v463 = vunpack.c.h.b16 %v335
        %v464 = vpack.c.b16 %v392, %v384
        %v465 = vpack.c.b16 %v393, %v385
        %v466 = vpack.c.b16 %v394, %v386
        %v467 = vpack.c.b16 %v395, %v387
        %v468 = vpack.c.b16 %v396, %v388
        %v469 = vpack.c.b16 %v397, %v389
        %v470 = vpack.c.b16 %v398, %v390
        %v471 = vpack.c.b16 %v399, %v391
        %v472 = vpack.c.b16 %v408, %v400
        %v473 = vpack.c.b16 %v409, %v401
        %v474 = vpack.c.b16 %v410, %v402
        %v475 = vpack.c.b16 %v411, %v403
        %v476 = vpack.c.b16 %v412, %v404
        %v477 = vpack.c.b16 %v413, %v405
        %v478 = vpack.c.b16 %v414, %v406
        %v479 = vpack.c.b16 %v415, %v407
        %v480 = vpack.c.b16 %v424, %v416
        %v481 = vpack.c.b16 %v425, %v417
        %v482 = vpack.c.b16 %v426, %v418
        %v483 = vpack.c.b16 %v427, %v419
        %v484 = vpack.c.b16 %v428, %v420
        %v485 = vpack.c.b16 %v429, %v421
        %v486 = vpack.c.b16 %v430, %v422
        %v487 = vpack.c.b16 %v431, %v423
        %v488 = vpack.c.b16 %v440, %v432
        %v489 = vpack.c.b16 %v441, %v433
        %v490 = vpack.c.b16 %v442, %v434
        %v491 = vpack.c.b16 %v443, %v435
        %v492 = vpack.c.b16 %v444, %v436
        %v493 = vpack.c.b16 %v445, %v437
        %v494 = vpack.c.b16 %v446, %v438
        %v495 = vpack.c.b16 %v447, %v439
        %v496 = vpack.c.b16 %v456, %v448
        %v497 = vpack.c.b16 %v457, %v449
        %v498 = vpack.c.b16 %v458, %v450
        %v499 = vpack.c.b16 %v459, %v451
        %v500 = vpack.c.b16 %v460, %v452
        %v501 = vpack.c.b16 %v461, %v453
        %v502 = vpack.c.b16 %v462, %v454
        %v503 = vpack.c.b16 %v463, %v455
        %vm536 = vcmask 613376
        %v538 = vsel %vm536, %v342, 0
        %v541 = vsel %vm536, %v343, 0
        %vm543 = vcmask 1044480
        %vm544 = vcmask 1045504
        %v545 = vsel %vm543, 4294967295, 65535
        %v546 = vsel %vm544, %v545, 0
        %v548 = vand.u32 %v496, %v546
        %v551 = vand.u32 %v497, %v546
        %v554 = vand.u32 %v498, %v546
        %v557 = vand.u32 %v499, %v546
        %v560 = vand.u32 %v500, %v546
        %v563 = vand.u32 %v501, %v546
        %v566 = vand.u32 %v502, %v546
        %v569 = vand.u32 %v503, %v546
        %571 = vmatprep.subr.bf16.mxu0 0
        %572 = vmatpush1.bf16.msra.mxu0 0
        %573 = vmatprep.subr.bf16.mxu0 0
        %574 = vmatpush1.bf16.msra.mxu0 0
        %575 = vmatprep.subr.bf16.mxu0 0
        %576 = vmatpush1.bf16.msra.mxu0 0
        %577 = vmatprep.subr.bf16.mxu0 %v551
        %578 = vmatpush1.bf16.msra.mxu0 %v548
        %579 = vmatprep.subr.bf16.mxu0 %v489
        %580 = vmatpush1.bf16.msra.mxu0 %v488
        %581 = vmatprep.subr.bf16.mxu0 %v481
        %582 = vmatpush1.bf16.msra.mxu0 %v480
        %583 = vmatprep.subr.bf16.mxu0 %v473
        %584 = vmatpush1.bf16.msra.mxu0 %v472
        %585 = vmatprep.subr.bf16.mxu0 %v465
        %586 = vmatpush1.bf16.msra.mxu0 %v464
        %587 = vmatprep.subr.bf16.mxu0 0
        %588 = vmatpush2.bf16.msra.mxu0 0
        %589 = vmatprep.subr.bf16.mxu0 0
        %590 = vmatpush2.bf16.msra.mxu0 0
        %591 = vmatprep.subr.bf16.mxu0 0
        %592 = vmatpush2.bf16.msra.mxu0 0
        %593 = vmatprep.subr.bf16.mxu0 0
        %594 = vmatpush2.bf16.msra.mxu0 0
        %595 = vmatprep.subr.bf16.mxu0 0
        %596 = vmatpush2.bf16.msra.mxu0 0
        %597 = vmatprep.subr.bf16.mxu0 0
        %598 = vmatpush2.bf16.msra.mxu0 0
        %599 = vmatprep.subr.bf16.mxu0 0
        %600 = vmatpush2.bf16.msra.mxu0 0
        %601 = vmatprep.subr.bf16.mxu0 0
        %602 = vmatpush2.bf16.msra.mxu0 0
        %603 = vmatprep.mubr.bf16.mxu0 0
        %604 = vmatmul.mubr.bf16.gmra.mxu0 %v538
        %v605 = vpop.f32.mrf.mxu0
        %v606 = vadd.f32 0.0, %v605
        %v607 = vpop.f32.mrf.mxu0
        %v608 = vadd.f32 0.0, %v607
        %v609 = vpop.f32.mrf.mxu0
        %v610 = vadd.f32 0.0, %v609
        %v611 = vpop.f32.mrf.mxu0
        %v612 = vadd.f32 0.0, %v611
        %613 = vmatprep.mubr.bf16.mxu0 0
        %614 = vmatmul.mubr.bf16.gmra.mxu0 %v541
        %v615 = vpop.f32.mrf.mxu0
        %v616 = vadd.f32 0.0, %v615
        %v617 = vpop.f32.mrf.mxu0
        %v618 = vadd.f32 0.0, %v617
        %v619 = vpop.f32.mrf.mxu0
        %v620 = vpop.f32.mrf.mxu0
        %621 = vdwg.mxu0
        %622 = vmatprep.subr.bf16.mxu0 0
        %623 = vmatpush1.bf16.msra.mxu0 0
        %624 = vmatprep.subr.bf16.mxu0 0
        %625 = vmatpush1.bf16.msra.mxu0 0
        %626 = vmatprep.subr.bf16.mxu0 0
        %627 = vmatpush1.bf16.msra.mxu0 0
        %628 = vmatprep.subr.bf16.mxu0 %v557
        %629 = vmatpush1.bf16.msra.mxu0 %v554
        %630 = vmatprep.subr.bf16.mxu0 %v491
        %631 = vmatpush1.bf16.msra.mxu0 %v490
        %632 = vmatprep.subr.bf16.mxu0 %v483
        %633 = vmatpush1.bf16.msra.mxu0 %v482
        %634 = vmatprep.subr.bf16.mxu0 %v475
        %635 = vmatpush1.bf16.msra.mxu0 %v474
        %636 = vmatprep.subr.bf16.mxu0 %v467
        %637 = vmatpush1.bf16.msra.mxu0 %v466
        %638 = vmatprep.subr.bf16.mxu0 0
        %639 = vmatpush2.bf16.msra.mxu0 0
        %640 = vmatprep.subr.bf16.mxu0 0
        %641 = vmatpush2.bf16.msra.mxu0 0
        %642 = vmatprep.subr.bf16.mxu0 0
        %643 = vmatpush2.bf16.msra.mxu0 0
        %644 = vmatprep.subr.bf16.mxu0 0
        %645 = vmatpush2.bf16.msra.mxu0 0
        %646 = vmatprep.subr.bf16.mxu0 0
        %647 = vmatpush2.bf16.msra.mxu0 0
        %648 = vmatprep.subr.bf16.mxu0 0
        %649 = vmatpush2.bf16.msra.mxu0 0
        %650 = vmatprep.subr.bf16.mxu0 0
        %651 = vmatpush2.bf16.msra.mxu0 0
        %652 = vmatprep.subr.bf16.mxu0 0
        %653 = vmatpush2.bf16.msra.mxu0 0
        %654 = vmatprep.mubr.bf16.mxu0 0
        %655 = vmatmul.mubr.bf16.gmra.mxu0 %v538
        %v656 = vpop.f32.mrf.mxu0
        %v657 = vadd.f32 0.0, %v656
        %v658 = vpop.f32.mrf.mxu0
        %v659 = vadd.f32 0.0, %v658
        %v660 = vpop.f32.mrf.mxu0
        %v661 = vadd.f32 0.0, %v660
        %v662 = vpop.f32.mrf.mxu0
        %v663 = vadd.f32 0.0, %v662
        %664 = vmatprep.mubr.bf16.mxu0 0
        %665 = vmatmul.mubr.bf16.gmra.mxu0 %v541
        %v666 = vpop.f32.mrf.mxu0
        %v667 = vadd.f32 0.0, %v666
        %v668 = vpop.f32.mrf.mxu0
        %v669 = vadd.f32 0.0, %v668
        %v670 = vpop.f32.mrf.mxu0
        %v671 = vpop.f32.mrf.mxu0
        %672 = vdwg.mxu0
        %673 = vmatprep.subr.bf16.mxu0 0
        %674 = vmatpush1.bf16.msra.mxu0 0
        %675 = vmatprep.subr.bf16.mxu0 0
        %676 = vmatpush1.bf16.msra.mxu0 0
        %677 = vmatprep.subr.bf16.mxu0 0
        %678 = vmatpush1.bf16.msra.mxu0 0
        %679 = vmatprep.subr.bf16.mxu0 %v563
        %680 = vmatpush1.bf16.msra.mxu0 %v560
        %681 = vmatprep.subr.bf16.mxu0 %v493
        %682 = vmatpush1.bf16.msra.mxu0 %v492
        %683 = vmatprep.subr.bf16.mxu0 %v485
        %684 = vmatpush1.bf16.msra.mxu0 %v484
        %685 = vmatprep.subr.bf16.mxu0 %v477
        %686 = vmatpush1.bf16.msra.mxu0 %v476
        %687 = vmatprep.subr.bf16.mxu0 %v469
        %688 = vmatpush1.bf16.msra.mxu0 %v468
        %689 = vmatprep.subr.bf16.mxu0 0
        %690 = vmatpush2.bf16.msra.mxu0 0
        %691 = vmatprep.subr.bf16.mxu0 0
        %692 = vmatpush2.bf16.msra.mxu0 0
        %693 = vmatprep.subr.bf16.mxu0 0
        %694 = vmatpush2.bf16.msra.mxu0 0
        %695 = vmatprep.subr.bf16.mxu0 0
        %696 = vmatpush2.bf16.msra.mxu0 0
        %697 = vmatprep.subr.bf16.mxu0 0
        %698 = vmatpush2.bf16.msra.mxu0 0
        %699 = vmatprep.subr.bf16.mxu0 0
        %700 = vmatpush2.bf16.msra.mxu0 0
        %701 = vmatprep.subr.bf16.mxu0 0
        %702 = vmatpush2.bf16.msra.mxu0 0
        %703 = vmatprep.subr.bf16.mxu0 0
        %704 = vmatpush2.bf16.msra.mxu0 0
        %705 = vmatprep.mubr.bf16.mxu0 0
        %706 = vmatmul.mubr.bf16.gmra.mxu0 %v538
        %v707 = vpop.f32.mrf.mxu0
        %v708 = vadd.f32 0.0, %v707
        %v709 = vpop.f32.mrf.mxu0
        %v710 = vadd.f32 0.0, %v709
        %v711 = vpop.f32.mrf.mxu0
        %v712 = vadd.f32 0.0, %v711
        %v713 = vpop.f32.mrf.mxu0
        %v714 = vadd.f32 0.0, %v713
        %715 = vmatprep.mubr.bf16.mxu0 0
        %716 = vmatmul.mubr.bf16.gmra.mxu0 %v541
        %v717 = vpop.f32.mrf.mxu0
        %v718 = vadd.f32 0.0, %v717
        %v719 = vpop.f32.mrf.mxu0
        %v720 = vadd.f32 0.0, %v719
        %v721 = vpop.f32.mrf.mxu0
        %v722 = vpop.f32.mrf.mxu0
        %723 = vdwg.mxu0
        %724 = vmatprep.subr.bf16.mxu0 0
        %725 = vmatpush1.bf16.msra.mxu0 0
        %726 = vmatprep.subr.bf16.mxu0 0
        %727 = vmatpush1.bf16.msra.mxu0 0
        %728 = vmatprep.subr.bf16.mxu0 0
        %729 = vmatpush1.bf16.msra.mxu0 0
        %730 = vmatprep.subr.bf16.mxu0 %v569
        %731 = vmatpush1.bf16.msra.mxu0 %v566
        %732 = vmatprep.subr.bf16.mxu0 %v495
        %733 = vmatpush1.bf16.msra.mxu0 %v494
        %734 = vmatprep.subr.bf16.mxu0 %v487
        %735 = vmatpush1.bf16.msra.mxu0 %v486
        %736 = vmatprep.subr.bf16.mxu0 %v479
        %737 = vmatpush1.bf16.msra.mxu0 %v478
        %738 = vmatprep.subr.bf16.mxu0 %v471
        %739 = vmatpush1.bf16.msra.mxu0 %v470
        %740 = vmatprep.subr.bf16.mxu0 0
        %741 = vmatpush2.bf16.msra.mxu0 0
        %742 = vmatprep.subr.bf16.mxu0 0
        %743 = vmatpush2.bf16.msra.mxu0 0
        %744 = vmatprep.subr.bf16.mxu0 0
        %745 = vmatpush2.bf16.msra.mxu0 0
        %746 = vmatprep.subr.bf16.mxu0 0
        %747 = vmatpush2.bf16.msra.mxu0 0
        %748 = vmatprep.subr.bf16.mxu0 0
        %749 = vmatpush2.bf16.msra.mxu0 0
        %750 = vmatprep.subr.bf16.mxu0 0
        %751 = vmatpush2.bf16.msra.mxu0 0
        %752 = vmatprep.subr.bf16.mxu0 0
        %753 = vmatpush2.bf16.msra.mxu0 0
        %754 = vmatprep.subr.bf16.mxu0 0
        %755 = vmatpush2.bf16.msra.mxu0 0
        %756 = vmatprep.mubr.bf16.mxu0 0
        %757 = vmatmul.mubr.bf16.gmra.mxu0 %v538
        %v758 = vpop.f32.mrf.mxu0
        %v759 = vadd.f32 0.0, %v758
        %v760 = vpop.f32.mrf.mxu0
        %v761 = vadd.f32 0.0, %v760
        %v762 = vpop.f32.mrf.mxu0
        %v763 = vadd.f32 0.0, %v762
        %v764 = vpop.f32.mrf.mxu0
        %v765 = vadd.f32 0.0, %v764
        %766 = vmatprep.mubr.bf16.mxu0 0
        %767 = vmatmul.mubr.bf16.gmra.mxu0 %v541
        %v768 = vpop.f32.mrf.mxu0
        %v769 = vadd.f32 0.0, %v768
        %v770 = vpop.f32.mrf.mxu0
        %v771 = vadd.f32 0.0, %v770
        %v772 = vpop.f32.mrf.mxu0
        %v773 = vpop.f32.mrf.mxu0
        %774 = vdwg.mxu0
        %v775 = vld [vmem:[%s2] sm:$0xff]
        %v776 = vld [vmem:[%s2 + $0x8] sm:$0xff]
        %v777 = vld [vmem:[%s2 + $0x10] sm:$0xff]
        %779 = vset.pattern.permute.xlu0 0
        %780 = vperm.xlu0 %779, %v775
        %v781 = vpop.permute.xlu0 %780
        %784 = vset.pattern.permute.xlu0 0
        %785 = vperm.xlu0 %784, %v776
        %v786 = vpop.permute.xlu0 %785
        %789 = vset.pattern.permute.xlu0 0
        %790 = vperm.xlu0 %789, %v777
        %v791 = vpop.permute.xlu0 %790
        %v793 = vmul.f32 %v606, %v781
        %v794 = vmul.f32 %v608, %v781
        %v795 = vmul.f32 %v657, %v781
        %v796 = vmul.f32 %v659, %v781
        %v797 = vmul.f32 %v708, %v781
        %v798 = vmul.f32 %v710, %v781
        %v799 = vmul.f32 %v759, %v781
        %v800 = vmul.f32 %v761, %v781
        %v801 = vmul.f32 %v610, %v786
        %v802 = vmul.f32 %v612, %v786
        %v803 = vmul.f32 %v661, %v786
        %v804 = vmul.f32 %v663, %v786
        %v805 = vmul.f32 %v712, %v786
        %v806 = vmul.f32 %v714, %v786
        %v807 = vmul.f32 %v763, %v786
        %v808 = vmul.f32 %v765, %v786
        %v809 = vmul.f32 %v616, %v791
        %v810 = vmul.f32 %v618, %v791
        %v811 = vmul.f32 %v667, %v791
        %v812 = vmul.f32 %v669, %v791
        %v813 = vmul.f32 %v718, %v791
        %v814 = vmul.f32 %v720, %v791
        %v815 = vmul.f32 %v769, %v791
        %v816 = vmul.f32 %v771, %v791
        %v817 = vld [vmem:[%s3] sm:$0xff]
        %v818 = vld [vmem:[%s3 + $0x8] sm:$0xff]
        %v819 = vld [vmem:[%s3 + $0x10] sm:$0xff]
        %821 = vset.pattern.permute.xlu0 0
        %822 = vperm.xlu0 %821, %v817
        %v823 = vpop.permute.xlu0 %822
        %826 = vset.pattern.permute.xlu0 0
        %827 = vperm.xlu0 %826, %v818
        %v828 = vpop.permute.xlu0 %827
        %831 = vset.pattern.permute.xlu0 0
        %832 = vperm.xlu0 %831, %v819
        %v833 = vpop.permute.xlu0 %832
        %v835 = vadd.f32 %v793, %v823
        %v836 = vadd.f32 %v794, %v823
        %v837 = vadd.f32 %v795, %v823
        %v838 = vadd.f32 %v796, %v823
        %v839 = vadd.f32 %v797, %v823
        %v840 = vadd.f32 %v798, %v823
        %v841 = vadd.f32 %v799, %v823
        %v842 = vadd.f32 %v800, %v823
        %v843 = vadd.f32 %v801, %v828
        %v844 = vadd.f32 %v802, %v828
        %v845 = vadd.f32 %v803, %v828
        %v846 = vadd.f32 %v804, %v828
        %v847 = vadd.f32 %v805, %v828
        %v848 = vadd.f32 %v806, %v828
        %v849 = vadd.f32 %v807, %v828
        %v850 = vadd.f32 %v808, %v828
        %v851 = vadd.f32 %v809, %v833
        %v852 = vadd.f32 %v810, %v833
        %v853 = vadd.f32 %v811, %v833
        %v854 = vadd.f32 %v812, %v833
        %v855 = vadd.f32 %v813, %v833
        %v856 = vadd.f32 %v814, %v833
        %v857 = vadd.f32 %v815, %v833
        %v858 = vadd.f32 %v816, %v833
        %vm859 = vcmp.gt.f32.partialorder %v835, 0.0
        %vm860 = vcmp.gt.f32.partialorder %v836, 0.0
        %vm861 = vcmp.gt.f32.partialorder %v837, 0.0
        %vm862 = vcmp.gt.f32.partialorder %v838, 0.0
        %vm863 = vcmp.gt.f32.partialorder %v839, 0.0
        %vm864 = vcmp.gt.f32.partialorder %v840, 0.0
        %vm865 = vcmp.gt.f32.partialorder %v841, 0.0
        %vm866 = vcmp.gt.f32.partialorder %v842, 0.0
        %vm867 = vcmp.gt.f32.partialorder %v843, 0.0
        %vm868 = vcmp.gt.f32.partialorder %v844, 0.0
        %vm869 = vcmp.gt.f32.partialorder %v845, 0.0
        %vm870 = vcmp.gt.f32.partialorder %v846, 0.0
        %vm871 = vcmp.gt.f32.partialorder %v847, 0.0
        %vm872 = vcmp.gt.f32.partialorder %v848, 0.0
        %vm873 = vcmp.gt.f32.partialorder %v849, 0.0
        %vm874 = vcmp.gt.f32.partialorder %v850, 0.0
        %vm875 = vcmp.gt.f32.partialorder %v851, 0.0
        %vm876 = vcmp.gt.f32.partialorder %v852, 0.0
        %vm877 = vcmp.gt.f32.partialorder %v853, 0.0
        %vm878 = vcmp.gt.f32.partialorder %v854, 0.0
        %vm879 = vcmp.gt.f32.partialorder %v855, 0.0
        %vm880 = vcmp.gt.f32.partialorder %v856, 0.0
        %vm881 = vcmp.gt.f32.partialorder %v857, 0.0
        %vm882 = vcmp.gt.f32.partialorder %v858, 0.0
        %v883 = vmin.f32 %v835, 0.0
        %v884 = vmin.f32 %v836, 0.0
        %v885 = vmin.f32 %v837, 0.0
        %v886 = vmin.f32 %v838, 0.0
        %v887 = vmin.f32 %v839, 0.0
        %v888 = vmin.f32 %v840, 0.0
        %v889 = vmin.f32 %v841, 0.0
        %v890 = vmin.f32 %v842, 0.0
        %v891 = vmin.f32 %v843, 0.0
        %v892 = vmin.f32 %v844, 0.0
        %v893 = vmin.f32 %v845, 0.0
        %v894 = vmin.f32 %v846, 0.0
        %v895 = vmin.f32 %v847, 0.0
        %v896 = vmin.f32 %v848, 0.0
        %v897 = vmin.f32 %v849, 0.0
        %v898 = vmin.f32 %v850, 0.0
        %v899 = vmin.f32 %v851, 0.0
        %v900 = vmin.f32 %v852, 0.0
        %v901 = vmin.f32 %v853, 0.0
        %v902 = vmin.f32 %v854, 0.0
        %v903 = vmin.f32 %v855, 0.0
        %v904 = vmin.f32 %v856, 0.0
        %v905 = vmin.f32 %v857, 0.0
        %v906 = vmin.f32 %v858, 0.0
        %v907 = vmul.f32 %v883, 1.442695
        %v908 = vpow.pop %v907
        %v909 = vmul.f32 %v884, 1.442695
        %v910 = vpow.pop %v909
        %v911 = vmul.f32 %v885, 1.442695
        %v912 = vpow.pop %v911
        %v913 = vmul.f32 %v886, 1.442695
        %v914 = vpow.pop %v913
        %v915 = vmul.f32 %v887, 1.442695
        %v916 = vpow.pop %v915
        %v917 = vmul.f32 %v888, 1.442695
        %v918 = vpow.pop %v917
        %v919 = vmul.f32 %v889, 1.442695
        %v920 = vpow.pop %v919
        %v921 = vmul.f32 %v890, 1.442695
        %v922 = vpow.pop %v921
        %v923 = vmul.f32 %v891, 1.442695
        %v924 = vpow.pop %v923
        %v925 = vmul.f32 %v892, 1.442695
        %v926 = vpow.pop %v925
        %v927 = vmul.f32 %v893, 1.442695
        %v928 = vpow.pop %v927
        %v929 = vmul.f32 %v894, 1.442695
        %v930 = vpow.pop %v929
        %v931 = vmul.f32 %v895, 1.442695
        %v932 = vpow.pop %v931
        %v933 = vmul.f32 %v896, 1.442695
        %v934 = vpow.pop %v933
        %v935 = vmul.f32 %v897, 1.442695
        %v936 = vpow.pop %v935
        %v937 = vmul.f32 %v898, 1.442695
        %v938 = vpow.pop %v937
        %v939 = vmul.f32 %v899, 1.442695
        %v940 = vpow.pop %v939
        %v941 = vmul.f32 %v900, 1.442695
        %v942 = vpow.pop %v941
        %v943 = vmul.f32 %v901, 1.442695
        %v944 = vpow.pop %v943
        %v945 = vmul.f32 %v902, 1.442695
        %v946 = vpow.pop %v945
        %v947 = vmul.f32 %v903, 1.442695
        %v948 = vpow.pop %v947
        %v949 = vmul.f32 %v904, 1.442695
        %v950 = vpow.pop %v949
        %v951 = vmul.f32 %v905, 1.442695
        %v952 = vpow.pop %v951
        %v953 = vmul.f32 %v906, 1.442695
        %v954 = vpow.pop %v953
        %v955 = vsub.f32 %v908, 1.0
        %v956 = vsub.f32 %v910, 1.0
        %v957 = vsub.f32 %v912, 1.0
        %v958 = vsub.f32 %v914, 1.0
        %v959 = vsub.f32 %v916, 1.0
        %v960 = vsub.f32 %v918, 1.0
        %v961 = vsub.f32 %v920, 1.0
        %v962 = vsub.f32 %v922, 1.0
        %v963 = vsub.f32 %v924, 1.0
        %v964 = vsub.f32 %v926, 1.0
        %v965 = vsub.f32 %v928, 1.0
        %v966 = vsub.f32 %v930, 1.0
        %v967 = vsub.f32 %v932, 1.0
        %v968 = vsub.f32 %v934, 1.0
        %v969 = vsub.f32 %v936, 1.0
        %v970 = vsub.f32 %v938, 1.0
        %v971 = vsub.f32 %v940, 1.0
        %v972 = vsub.f32 %v942, 1.0
        %v973 = vsub.f32 %v944, 1.0
        %v974 = vsub.f32 %v946, 1.0
        %v975 = vsub.f32 %v948, 1.0
        %v976 = vsub.f32 %v950, 1.0
        %v977 = vsub.f32 %v952, 1.0
        %v978 = vsub.f32 %v954, 1.0
        %v979 = vsel %vm859, %v835, %v955
        %v980 = vsel %vm860, %v836, %v956
        %v981 = vsel %vm861, %v837, %v957
        %v982 = vsel %vm862, %v838, %v958
        %v983 = vsel %vm863, %v839, %v959
        %v984 = vsel %vm864, %v840, %v960
        %v985 = vsel %vm865, %v841, %v961
        %v986 = vsel %vm866, %v842, %v962
        %v987 = vsel %vm867, %v843, %v963
        %v988 = vsel %vm868, %v844, %v964
        %v989 = vsel %vm869, %v845, %v965
        %v990 = vsel %vm870, %v846, %v966
        %v991 = vsel %vm871, %v847, %v967
        %v992 = vsel %vm872, %v848, %v968
        %v993 = vsel %vm873, %v849, %v969
        %v994 = vsel %vm874, %v850, %v970
        %v995 = vsel %vm875, %v851, %v971
        %v996 = vsel %vm876, %v852, %v972
        %v997 = vsel %vm877, %v853, %v973
        %v998 = vsel %vm878, %v854, %v974
        %v999 = vsel %vm879, %v855, %v975
        %v1000 = vsel %vm880, %v856, %v976
        %v1001 = vsel %vm881, %v857, %v977
        %v1002 = vsel %vm882, %v858, %v978
        %1003 = vst [vmem:[%s289] sm:$0xff] %v979
        %1004 = vst [vmem:[%s289 + $0x8] sm:$0xff] %v980
        %1005 = vst [vmem:[%s289 + $0x10] sm:$0xff] %v981
        %1006 = vst [vmem:[%s289 + $0x18] sm:$0xff] %v982
        %1007 = vst [vmem:[%s289 + $0x20] sm:$0xff] %v983
        %1008 = vst [vmem:[%s289 + $0x28] sm:$0xff] %v984
        %1009 = vst [vmem:[%s289 + $0x30] sm:$0xff] %v985
        %1010 = vst [vmem:[%s289 + $0x38] sm:$0xff] %v986
        %1011 = vst [vmem:[%s289 + $0x40] sm:$0xff] %v987
        %1012 = vst [vmem:[%s289 + $0x48] sm:$0xff] %v988
        %1013 = vst [vmem:[%s289 + $0x50] sm:$0xff] %v989
        %1014 = vst [vmem:[%s289 + $0x58] sm:$0xff] %v990
        %1015 = vst [vmem:[%s289 + $0x60] sm:$0xff] %v991
        %1016 = vst [vmem:[%s289 + $0x68] sm:$0xff] %v992
        %1017 = vst [vmem:[%s289 + $0x70] sm:$0xff] %v993
        %1018 = vst [vmem:[%s289 + $0x78] sm:$0xff] %v994
        %1019 = vst [vmem:[%s289 + $0x80] sm:$0xff] %v995
        %1020 = vst [vmem:[%s289 + $0x88] sm:$0xff] %v996
        %1021 = vst [vmem:[%s289 + $0x90] sm:$0xff] %v997
        %1022 = vst [vmem:[%s289 + $0x98] sm:$0xff] %v998
        %1023 = vst [vmem:[%s289 + $0xa0] sm:$0xff] %v999
        %1024 = vst [vmem:[%s289 + $0xa8] sm:$0xff] %v1000
        %1025 = vst [vmem:[%s289 + $0xb0] sm:$0xff] %v1001
        %1026 = vst [vmem:[%s289 + $0xb8] sm:$0xff] %v1002
        %s1027 = sand.u32 %s112, 1
        %s1028 = sand.u32 %s112, 1
        %s1029 = smul.addr %s1028, 192
        %s1030 = scalar_lea.vmem [#allocation3], %s1029
        // Predicated region
        $region60: #{nvidia_forward.6} parent=54 // pred_check
          %p1031 = pneg %p122
        $region61: #{nvidia_forward.6} parent=54 // pred_check_branch
          %1033 = sbr.rel (%p1031) target = $region63
        $region62: #{nvidia_forward.6} parent=54 // pred_region
          %s1034 = smul.u32 8, %s15
          %s1035 = smul.addr %s1034, 8
          %s1036 = scalar_lea.vmem %s4, %s1035
          // Predicated region
          $region64: #{nvidia_forward.6} parent=62 // pred_check
            _
          $region65: #{nvidia_forward.6} parent=62 // pred_check_branch
            %1038 = sbr.rel (0) target = $region67
          $region66: #{nvidia_forward.6} parent=62 // pred_region
            // Predicated region
            $region68: #{nvidia_forward.6} parent=66 // pred_check
              _
            $region69: #{nvidia_forward.6} parent=66 // pred_check_branch
              %1040 = sbr.rel (0) target = $region71
            $region70: #{nvidia_forward.6} parent=66 // pred_region
              loop: start=0, step=1, limit=1
              $region72: #{nvidia_forward.6} parent=70 // loop_pre_header
                _
              $region73: #{nvidia_forward.6} parent=70 // loop_header
                %s1042 = sphi 0, %s1046
                %p1043 = scmp.ge.s32.totalorder %s1042, 1
                %s1047 = sphi %s1030, %s1030
                %s1048 = sphi %s1036, %s1036
              $region74: #{nvidia_forward.6} parent=70 // loop_header_branch
                %1045 = sbr.rel (%p1043) target = $region78
              $region75: #{nvidia_forward.6} parent=70 // loop_body
                %v1049 = vld [vmem:[%s1047] sm:$0xff]
                %1050 = vst [vmem:[%s1048] sm:$0xff] %v1049
                %v1051 = vld [vmem:[%s1047 + $0x8] sm:$0xff]
                %1052 = vst [vmem:[%s1048 + $0x8] sm:$0xff] %v1051
                %v1053 = vld [vmem:[%s1047 + $0x10] sm:$0xff]
                %1054 = vst [vmem:[%s1048 + $0x10] sm:$0xff] %v1053
                %v1055 = vld [vmem:[%s1047 + $0x18] sm:$0xff]
                %1056 = vst [vmem:[%s1048 + $0x18] sm:$0xff] %v1055
                %v1057 = vld [vmem:[%s1047 + $0x20] sm:$0xff]
                %1058 = vst [vmem:[%s1048 + $0x20] sm:$0xff] %v1057
                %v1059 = vld [vmem:[%s1047 + $0x28] sm:$0xff]
                %1060 = vst [vmem:[%s1048 + $0x28] sm:$0xff] %v1059
                %v1061 = vld [vmem:[%s1047 + $0x30] sm:$0xff]
                %1062 = vst [vmem:[%s1048 + $0x30] sm:$0xff] %v1061
                %v1063 = vld [vmem:[%s1047 + $0x38] sm:$0xff]
                %1064 = vst [vmem:[%s1048 + $0x38] sm:$0xff] %v1063
                %v1065 = vld [vmem:[%s1047 + $0x40] sm:$0xff]
                %1066 = vst [vmem:[%s1048 + $0x180] sm:$0xff] %v1065
                %v1067 = vld [vmem:[%s1047 + $0x48] sm:$0xff]
                %1068 = vst [vmem:[%s1048 + $0x188] sm:$0xff] %v1067
                %v1069 = vld [vmem:[%s1047 + $0x50] sm:$0xff]
                %1070 = vst [vmem:[%s1048 + $0x190] sm:$0xff] %v1069
                %v1071 = vld [vmem:[%s1047 + $0x58] sm:$0xff]
                %1072 = vst [vmem:[%s1048 + $0x198] sm:$0xff] %v1071
                %v1073 = vld [vmem:[%s1047 + $0x60] sm:$0xff]
                %1074 = vst [vmem:[%s1048 + $0x1a0] sm:$0xff] %v1073
                %v1075 = vld [vmem:[%s1047 + $0x68] sm:$0xff]
                %1076 = vst [vmem:[%s1048 + $0x1a8] sm:$0xff] %v1075
                %v1077 = vld [vmem:[%s1047 + $0x70] sm:$0xff]
                %1078 = vst [vmem:[%s1048 + $0x1b0] sm:$0xff] %v1077
                %v1079 = vld [vmem:[%s1047 + $0x78] sm:$0xff]
                %1080 = vst [vmem:[%s1048 + $0x1b8] sm:$0xff] %v1079
                %v1081 = vld [vmem:[%s1047 + $0x80] sm:$0xff]
                %1082 = vst [vmem:[%s1048 + $0x300] sm:$0xff] %v1081
                %v1083 = vld [vmem:[%s1047 + $0x88] sm:$0xff]
                %1084 = vst [vmem:[%s1048 + $0x308] sm:$0xff] %v1083
                %v1085 = vld [vmem:[%s1047 + $0x90] sm:$0xff]
                %1086 = vst [vmem:[%s1048 + $0x310] sm:$0xff] %v1085
                %v1087 = vld [vmem:[%s1047 + $0x98] sm:$0xff]
                %1088 = vst [vmem:[%s1048 + $0x318] sm:$0xff] %v1087
                %v1089 = vld [vmem:[%s1047 + $0xa0] sm:$0xff]
                %1090 = vst [vmem:[%s1048 + $0x320] sm:$0xff] %v1089
                %v1091 = vld [vmem:[%s1047 + $0xa8] sm:$0xff]
                %1092 = vst [vmem:[%s1048 + $0x328] sm:$0xff] %v1091
                %v1093 = vld [vmem:[%s1047 + $0xb0] sm:$0xff]
                %1094 = vst [vmem:[%s1048 + $0x330] sm:$0xff] %v1093
                %v1095 = vld [vmem:[%s1047 + $0xb8] sm:$0xff]
                %1096 = vst [vmem:[%s1048 + $0x338] sm:$0xff] %v1095
              $region76: #{nvidia_forward.6} parent=70 // loop_footer
                %s1046 = sadd.s32 1, %s1042
              $region77: #{nvidia_forward.6} parent=70 // loop_footer_branch
                %1041 = sbr.rel target = $region73
              $region78: #{nvidia_forward.6} parent=70 // loop_exit
                _
            $region71: #{nvidia_forward.6} parent=66 // pred_fallthru
              _
            // Predicated region
            $region79: #{nvidia_forward.6} parent=66 // pred_check
              _
            $region80: #{nvidia_forward.6} parent=66 // pred_check_branch
              %1098 = sbr.rel target = $region82
            $region81: #{nvidia_forward.6} parent=66 // pred_region
              _
            $region82: #{nvidia_forward.6} parent=66 // pred_fallthru
              _
          $region67: #{nvidia_forward.6} parent=62 // pred_fallthru
            _
          %1099 = vnop
        $region63: #{nvidia_forward.6} parent=54 // pred_fallthru
          _
      $region55: #{nvidia_forward.6} parent=5 // pred_fallthru
        _
      %p1100 = scmp.le.s32.totalorder 2, %s10
      // Predicated region
      $region83: #{nvidia_forward.6} parent=5 // pred_check
        %p1101 = pneg %p1100
      $region84: #{nvidia_forward.6} parent=5 // pred_check_branch
        %1103 = sbr.rel (%p1101) target = $region86
      $region85: #{nvidia_forward.6} parent=5 // pred_region
        %s1104 = ssub.s32 %s10, 2
        // Predicated region
        $region87: #{nvidia_forward.6} parent=85 // pred_check
          %p1105 = pneg %p128
        $region88: #{nvidia_forward.6} parent=85 // pred_check_branch
          %1107 = sbr.rel (%p1105) target = $region90
        $region89: #{nvidia_forward.6} parent=85 // pred_region
          %s1108 = sand.u32 %s113, 1
          %s1109 = sand.u32 %s113, 1
          %s1110 = smul.addr %s1109, 192
          %s1111 = scalar_lea.vmem [#allocation3], %s1110
        $region90: #{nvidia_forward.6} parent=85 // pred_fallthru
          _
      $region86: #{nvidia_forward.6} parent=5 // pred_fallthru
        _
    $region6: #{nvidia_forward.6} parent=1 // loop_footer
      %s14 = sadd.s32 1, %s10
    $region7: #{nvidia_forward.6} parent=1 // loop_footer_branch
      %9 = sbr.rel target = $region3
    $region8: #{nvidia_forward.6} parent=1 // loop_exit
      _

// kernel: nvidia_forward.7
$region0: #{nvidia_forward.7}
  #allocation0 [shape = 'u32[]', space=smem, size = 0x4, offset = 0x4, fixed_abs, tag = 'smem constant byte address 0x4 - core index']
  #allocation1 [shape = 'u32[144,128]{1,0:T(1,128)}', space=vmem, size = 0x12000, scoped, tag = 'internal scratch']
  %s0 = inlined_call_operand.vmem [shape: bf16[36,600], index: 0, kind: input, shape index: {}]
  %s1 = inlined_call_operand.vmem [shape: bf16[600,1316], index: 1, kind: input, shape index: {}]
  %s2 = inlined_call_operand.vmem [shape: f32[36,1], index: 2, kind: input, shape index: {}]
  %s3 = inlined_call_operand.vmem [shape: f32[36,1], index: 3, kind: input, shape index: {}]
  %s4 = inlined_call_operand.vmem [shape: f32[36,1316], index: 4, kind: output, shape index: {}]
  %s5 = sld [smem:[#allocation0]]
  $region163: #{nvidia_forward.7} parent=0
    _
  %s7 = ssub.s32 1, %s5
  %s8 = scalar_select 0, %s7, %s5
  $region1: #{nvidia_forward.7} parent=0
    #allocation2 [shape = 'u8[2457600]{0}', space=vmem, size = 0x258000, scoped, tag = 'input window, operand 1']
    #allocation3 [shape = 'u8[327680]{0}', space=vmem, size = 0x50000, scoped, tag = 'output window, operand 0']
    loop: start=0, step=1, limit=4
    $region2: #{nvidia_forward.7} parent=1 // loop_pre_header
      _
    $region3: #{nvidia_forward.7} parent=1 // loop_header
      %s10 = sphi 0, %s14
      %p11 = scmp.ge.s32.totalorder %s10, 4
      %s18 = sphi 0, %s18
      %s20 = sphi 0, %s18
      %s21 = sphi 0, %s20
      %s35 = sphi 0, %s21
      %s41 = sphi 0, %s43
      %s44 = sphi 0, %s41
      %s45 = sphi 0, %s44
      %s61 = sphi 0, %s45
      %s65 = sphi 0, %s65
      %s67 = sphi 0, %s65
      %s68 = sphi 0, %s67
      %s82 = sphi 0, %s68
      %s86 = sphi 0, %s86
      %s88 = sphi 0, %s86
      %s89 = sphi 0, %s88
      %s103 = sphi 0, %s89
      %s109 = sphi 0, %s111
      %s112 = sphi 0, %s109
      %s113 = sphi 0, %s112
      %s129 = sphi 0, %s113
    $region4: #{nvidia_forward.7} parent=1 // loop_header_branch
      %13 = sbr.rel (%p11) target = $region8
    $region5: #{nvidia_forward.7} parent=1 // loop_body
      %s15 = ssub.s32 %s10, 1
      %s16 = ssub.s32 %s10, 2
      %s17 = sadd.s32 %s10, 1
      %s19 = sadd.s32 %s18, 1
      %p22 = scmp.eq.s32.totalorder %s10, 1
      %p23 = scmp.ne.s32.totalorder %s18, %s20
      %p24 = scmp.eq.s32.totalorder %s10, 0
      %p25 = por %p23, %p24
      %p26 = scmp.ne.s32.totalorder %s18, %s20
      %p27 = scmp.eq.s32.totalorder %s15, 1
      %p28 = por %p26, %p27
      %p29 = scmp.ne.s32.totalorder %s20, %s21
      %p30 = scmp.eq.s32.totalorder %s15, 0
      %p31 = por %p29, %p30
      %p32 = scmp.ne.s32.totalorder %s20, %s21
      %p33 = scmp.eq.s32.totalorder %s16, 1
      %p34 = por %p32, %p33
      %p36 = scmp.ne.s32.totalorder %s21, %s35
      %p37 = scmp.eq.s32.totalorder %s16, 0
      %p38 = por %p36, %p37
      %s39 = ssub.s32 %s10, %s17
      %p40 = scmp.eq.s32.totalorder %s39, 0
      %s42 = sadd.s32 %s41, 1
      %s43 = scalar_select %p40, %s41, %s42
      %p46 = pneg %p40
      %p47 = scmp.eq.s32.totalorder %s10, 1
      %p48 = por %p46, %p47
      %p49 = scmp.ne.s32.totalorder %s41, %s44
      %p50 = scmp.eq.s32.totalorder %s10, 0
      %p51 = por %p49, %p50
      %p52 = scmp.ne.s32.totalorder %s41, %s44
      %p53 = scmp.eq.s32.totalorder %s15, 1
      %p54 = por %p52, %p53
      %p55 = scmp.ne.s32.totalorder %s44, %s45
      %p56 = scmp.eq.s32.totalorder %s15, 0
      %p57 = por %p55, %p56
      %p58 = scmp.ne.s32.totalorder %s44, %s45
      %p59 = scmp.eq.s32.totalorder %s16, 1
      %p60 = por %p58, %p59
      %p62 = scmp.ne.s32.totalorder %s45, %s61
      %p63 = scmp.eq.s32.totalorder %s16, 0
      %p64 = por %p62, %p63
      %s66 = sadd.s32 %s65, 1
      %p69 = scmp.eq.s32.totalorder %s10, 1
      %p70 = scmp.ne.s32.totalorder %s65, %s67
      %p71 = scmp.eq.s32.totalorder %s10, 0
      %p72 = por %p70, %p71
      %p73 = scmp.ne.s32.totalorder %s65, %s67
      %p74 = scmp.eq.s32.totalorder %s15, 1
      %p75 = por %p73, %p74
      %p76 = scmp.ne.s32.totalorder %s67, %s68
      %p77 = scmp.eq.s32.totalorder %s15, 0
      %p78 = por %p76, %p77
      %p79 = scmp.ne.s32.totalorder %s67, %s68
      %p80 = scmp.eq.s32.totalorder %s16, 1
      %p81 = por %p79, %p80
      %p83 = scmp.ne.s32.totalorder %s68, %s82
      %p84 = scmp.eq.s32.totalorder %s16, 0
      %p85 = por %p83, %p84
      %s87 = sadd.s32 %s86, 1
      %p90 = scmp.eq.s32.totalorder %s10, 1
      %p91 = scmp.ne.s32.totalorder %s86, %s88
      %p92 = scmp.eq.s32.totalorder %s10, 0
      %p93 = por %p91, %p92
      %p94 = scmp.ne.s32.totalorder %s86, %s88
      %p95 = scmp.eq.s32.totalorder %s15, 1
      %p96 = por %p94, %p95
      %p97 = scmp.ne.s32.totalorder %s88, %s89
      %p98 = scmp.eq.s32.totalorder %s15, 0
      %p99 = por %p97, %p98
      %p100 = scmp.ne.s32.totalorder %s88, %s89
      %p101 = scmp.eq.s32.totalorder %s16, 1
      %p102 = por %p100, %p101
      %p104 = scmp.ne.s32.totalorder %s89, %s103
      %p105 = scmp.eq.s32.totalorder %s16, 0
      %p106 = por %p104, %p105
      %s107 = ssub.s32 %s10, %s17
      %p108 = scmp.eq.s32.totalorder %s107, 0
      %s110 = sadd.s32 %s109, 1
      %s111 = scalar_select %p108, %s109, %s110
      %p114 = pneg %p108
      %p115 = scmp.eq.s32.totalorder %s10, 1
      %p116 = por %p114, %p115
      %p117 = scmp.ne.s32.totalorder %s109, %s112
      %p118 = scmp.eq.s32.totalorder %s10, 0
      %p119 = por %p117, %p118
      %p120 = scmp.ne.s32.totalorder %s109, %s112
      %p121 = scmp.eq.s32.totalorder %s15, 1
      %p122 = por %p120, %p121
      %p123 = scmp.ne.s32.totalorder %s112, %s113
      %p124 = scmp.eq.s32.totalorder %s15, 0
      %p125 = por %p123, %p124
      %p126 = scmp.ne.s32.totalorder %s112, %s113
      %p127 = scmp.eq.s32.totalorder %s16, 1
      %p128 = por %p126, %p127
      %p130 = scmp.ne.s32.totalorder %s113, %s129
      %p131 = scmp.eq.s32.totalorder %s16, 0
      %p132 = por %p130, %p131
      %p133 = scmp.le.s32.totalorder 1, %s10
      %p134 = scmp.lt.s32.totalorder %s10, 3
      %p135 = pnand %p133, %p134
      %p136 = pneg %p135
      // Predicated region
      $region9: #{nvidia_forward.7} parent=5 // pred_check
        _
      $region10: #{nvidia_forward.7} parent=5 // pred_check_branch
        %138 = sbr.rel (%p135) target = $region12
      $region11: #{nvidia_forward.7} parent=5 // pred_region
        %s139 = ssub.s32 %s10, 1
        // Predicated region
        $region13: #{nvidia_forward.7} parent=11 // pred_check
          %p140 = pneg %p31
        $region14: #{nvidia_forward.7} parent=11 // pred_check_branch
          %142 = sbr.rel (%p140) target = $region16
        $region15: #{nvidia_forward.7} parent=11 // pred_region
          _
        $region16: #{nvidia_forward.7} parent=11 // pred_fallthru
          _
        // Predicated region
        $region17: #{nvidia_forward.7} parent=11 // pred_check
          %p143 = pneg %p78
        $region18: #{nvidia_forward.7} parent=11 // pred_check_branch
          %145 = sbr.rel (%p143) target = $region20
        $region19: #{nvidia_forward.7} parent=11 // pred_region
          _
        $region20: #{nvidia_forward.7} parent=11 // pred_fallthru
          _
        // Predicated region
        $region21: #{nvidia_forward.7} parent=11 // pred_check
          %p146 = pneg %p99
        $region22: #{nvidia_forward.7} parent=11 // pred_check_branch
          %148 = sbr.rel (%p146) target = $region24
        $region23: #{nvidia_forward.7} parent=11 // pred_region
          _
        $region24: #{nvidia_forward.7} parent=11 // pred_fallthru
          _
      $region12: #{nvidia_forward.7} parent=5 // pred_fallthru
        _
      %p149 = scmp.lt.s32.totalorder %s10, 2
      // Predicated region
      $region25: #{nvidia_forward.7} parent=5 // pred_check
        %p150 = pneg %p149
      $region26: #{nvidia_forward.7} parent=5 // pred_check_branch
        %152 = sbr.rel (%p150) target = $region28
      $region27: #{nvidia_forward.7} parent=5 // pred_region
        // Predicated region
        $region29: #{nvidia_forward.7} parent=27 // pred_check
          %p153 = pneg %p51
        $region30: #{nvidia_forward.7} parent=27 // pred_check_branch
          %155 = sbr.rel (%p153) target = $region32
        $region31: #{nvidia_forward.7} parent=27 // pred_region
          %s156 = sand.u32 %s41, 1
          %s157 = sand.u32 %s41, 1
          %s158 = smul.addr %s157, 2400
          %s159 = scalar_lea.vmem [#allocation2], %s158
          %s160 = smul.u32 8, %s10
          %s161 = ssub.s32 11, %s160
          %p162 = scmp.lt.s32.totalorder %s161, 8
          %s163 = scalar_select %p162, %s161, 8
          %s164 = smul.u32 4800, %s163
          %p165 = scmp.ne.s32.totalorder 0, %s164
          %s166 = smul.addr %s160, 4
          %s167 = scalar_lea.vmem %s1, %s166
          %s168 = smul.u32 %s163, 4
          // Predicated region
          $region33: #{nvidia_forward.7} parent=31 // pred_check
            %p169 = pneg %p165
          $region34: #{nvidia_forward.7} parent=31 // pred_check_branch
            %171 = sbr.rel (%p169) target = $region36
          $region35: #{nvidia_forward.7} parent=31 // pred_region
            %p172 = scmp.lt.u32.totalorder %s168, 8
            %p173 = pneg %p172
            // Predicated region
            $region37: #{nvidia_forward.7} parent=35 // pred_check
              _
            $region38: #{nvidia_forward.7} parent=35 // pred_check_branch
              %175 = sbr.rel (%p172) target = $region40
            $region39: #{nvidia_forward.7} parent=35 // pred_region
              %s339 = sand.u32 %s168, 7
              %p340 = scmp.eq.s32.totalorder %s339, 0
              // Predicated region
              $region52: #{nvidia_forward.7} parent=39 // pred_check
                %p341 = pneg %p340
              $region53: #{nvidia_forward.7} parent=39 // pred_check_branch
                %343 = sbr.rel (%p341) target = $region55
              $region54: #{nvidia_forward.7} parent=39 // pred_region
                %s344 = sshrl.u32 %s168, 3
                // While loop
                $region56: #{nvidia_forward.7} parent=54 // loop_pre_header
                  _
                $region57: #{nvidia_forward.7} parent=54 // loop_header
                  %s348 = sphi 0, %s350
                  %p349 = scmp.ge.s32.totalorder %s348, %s344
                  %s353 = sphi 0, %s508
                  %s354 = sphi %s167, %s511
                  %s355 = sphi %s159, %s512
                $region58: #{nvidia_forward.7} parent=54 // loop_header_branch
                  %352 = sbr.rel (%p349) target = $region62
                $region59: #{nvidia_forward.7} parent=54 // loop_body
                  %v356 = vld [vmem:[%s354] sm:$0xff]
                  %357 = vst [vmem:[%s355] sm:$0xff] %v356
                  %v358 = vld [vmem:[%s354 + $0x2c] sm:$0xff]
                  %359 = vst [vmem:[%s355 + $0x20] sm:$0xff] %v358
                  %v360 = vld [vmem:[%s354 + $0x58] sm:$0xff]
                  %361 = vst [vmem:[%s355 + $0x40] sm:$0xff] %v360
                  %v362 = vld [vmem:[%s354 + $0x84] sm:$0xff]
                  %363 = vst [vmem:[%s355 + $0x60] sm:$0xff] %v362
                  %v364 = vld [vmem:[%s354 + $0xb0] sm:$0xff]
                  %365 = vst [vmem:[%s355 + $0x80] sm:$0xff] %v364
                  %v366 = vld [vmem:[%s354 + $0xdc] sm:$0xff]
                  %367 = vst [vmem:[%s355 + $0xa0] sm:$0xff] %v366
                  %v368 = vld [vmem:[%s354 + $0x108] sm:$0xff]
                  %369 = vst [vmem:[%s355 + $0xc0] sm:$0xff] %v368
                  %v370 = vld [vmem:[%s354 + $0x134] sm:$0xff]
                  %371 = vst [vmem:[%s355 + $0xe0] sm:$0xff] %v370
                  %v372 = vld [vmem:[%s354 + $0x160] sm:$0xff]
                  %373 = vst [vmem:[%s355 + $0x100] sm:$0xff] %v372
                  %v374 = vld [vmem:[%s354 + $0x18c] sm:$0xff]
                  %375 = vst [vmem:[%s355 + $0x120] sm:$0xff] %v374
                  %v376 = vld [vmem:[%s354 + $0x1b8] sm:$0xff]
                  %377 = vst [vmem:[%s355 + $0x140] sm:$0xff] %v376
                  %v378 = vld [vmem:[%s354 + $0x1e4] sm:$0xff]
                  %379 = vst [vmem:[%s355 + $0x160] sm:$0xff] %v378
                  %v380 = vld [vmem:[%s354 + $0x210] sm:$0xff]
                  %381 = vst [vmem:[%s355 + $0x180] sm:$0xff] %v380
                  %v382 = vld [vmem:[%s354 + $0x23c] sm:$0xff]
                  %383 = vst [vmem:[%s355 + $0x1a0] sm:$0xff] %v382
                  %v384 = vld [vmem:[%s354 + $0x268] sm:$0xff]
                  %385 = vst [vmem:[%s355 + $0x1c0] sm:$0xff] %v384
                  %v386 = vld [vmem:[%s354 + $0x294] sm:$0xff]
                  %387 = vst [vmem:[%s355 + $0x1e0] sm:$0xff] %v386
                  %v388 = vld [vmem:[%s354 + $0x2c0] sm:$0xff]
                  %389 = vst [vmem:[%s355 + $0x200] sm:$0xff] %v388
                  %v390 = vld [vmem:[%s354 + $0x2ec] sm:$0xff]
                  %391 = vst [vmem:[%s355 + $0x220] sm:$0xff] %v390
                  %v392 = vld [vmem:[%s354 + $0x318] sm:$0xff]
                  %393 = vst [vmem:[%s355 + $0x240] sm:$0xff] %v392
                  %v394 = vld [vmem:[%s354 + $0x344] sm:$0xff]
                  %395 = vst [vmem:[%s355 + $0x260] sm:$0xff] %v394
                  %v396 = vld [vmem:[%s354 + $0x370] sm:$0xff]
                  %397 = vst [vmem:[%s355 + $0x280] sm:$0xff] %v396
                  %v398 = vld [vmem:[%s354 + $0x39c] sm:$0xff]
                  %399 = vst [vmem:[%s355 + $0x2a0] sm:$0xff] %v398
                  %v400 = vld [vmem:[%s354 + $0x3c8] sm:$0xff]
                  %401 = vst [vmem:[%s355 + $0x2c0] sm:$0xff] %v400
                  %v402 = vld [vmem:[%s354 + $0x3f4] sm:$0xff]
                  %403 = vst [vmem:[%s355 + $0x2e0] sm:$0xff] %v402
                  %v404 = vld [vmem:[%s354 + $0x420] sm:$0xff]
                  %405 = vst [vmem:[%s355 + $0x300] sm:$0xff] %v404
                  %v406 = vld [vmem:[%s354 + $0x44c] sm:$0xff]
                  %407 = vst [vmem:[%s355 + $0x320] sm:$0xff] %v406
                  %v408 = vld [vmem:[%s354 + $0x478] sm:$0xff]
                  %409 = vst [vmem:[%s355 + $0x340] sm:$0xff] %v408
                  %v410 = vld [vmem:[%s354 + $0x4a4] sm:$0xff]
                  %411 = vst [vmem:[%s355 + $0x360] sm:$0xff] %v410
                  %v412 = vld [vmem:[%s354 + $0x4d0] sm:$0xff]
                  %413 = vst [vmem:[%s355 + $0x380] sm:$0xff] %v412
                  %v414 = vld [vmem:[%s354 + $0x4fc] sm:$0xff]
                  %415 = vst [vmem:[%s355 + $0x3a0] sm:$0xff] %v414
                  %v416 = vld [vmem:[%s354 + $0x528] sm:$0xff]
                  %417 = vst [vmem:[%s355 + $0x3c0] sm:$0xff] %v416
                  %v418 = vld [vmem:[%s354 + $0x554] sm:$0xff]
                  %419 = vst [vmem:[%s355 + $0x3e0] sm:$0xff] %v418
                  %v420 = vld [vmem:[%s354 + $0x580] sm:$0xff]
                  %421 = vst [vmem:[%s355 + $0x400] sm:$0xff] %v420
                  %v422 = vld [vmem:[%s354 + $0x5ac] sm:$0xff]
                  %423 = vst [vmem:[%s355 + $0x420] sm:$0xff] %v422
                  %v424 = vld [vmem:[%s354 + $0x5d8] sm:$0xff]
                  %425 = vst [vmem:[%s355 + $0x440] sm:$0xff] %v424
                  %v426 = vld [vmem:[%s354 + $0x604] sm:$0xff]
                  %427 = vst [vmem:[%s355 + $0x460] sm:$0xff] %v426
                  %v428 = vld [vmem:[%s354 + $0x630] sm:$0xff]
                  %429 = vst [vmem:[%s355 + $0x480] sm:$0xff] %v428
                  %v430 = vld [vmem:[%s354 + $0x65c] sm:$0xff]
                  %431 = vst [vmem:[%s355 + $0x4a0] sm:$0xff] %v430
                  %v432 = vld [vmem:[%s354 + $0x688] sm:$0xff]
                  %433 = vst [vmem:[%s355 + $0x4c0] sm:$0xff] %v432
                  %v434 = vld [vmem:[%s354 + $0x6b4] sm:$0xff]
                  %435 = vst [vmem:[%s355 + $0x4e0] sm:$0xff] %v434
                  %v436 = vld [vmem:[%s354 + $0x6e0] sm:$0xff]
                  %437 = vst [vmem:[%s355 + $0x500] sm:$0xff] %v436
                  %v438 = vld [vmem:[%s354 + $0x70c] sm:$0xff]
                  %439 = vst [vmem:[%s355 + $0x520] sm:$0xff] %v438
                  %v440 = vld [vmem:[%s354 + $0x738] sm:$0xff]
                  %441 = vst [vmem:[%s355 + $0x540] sm:$0xff] %v440
                  %v442 = vld [vmem:[%s354 + $0x764] sm:$0xff]
                  %443 = vst [vmem:[%s355 + $0x560] sm:$0xff] %v442
                  %v444 = vld [vmem:[%s354 + $0x790] sm:$0xff]
                  %445 = vst [vmem:[%s355 + $0x580] sm:$0xff] %v444
                  %v446 = vld [vmem:[%s354 + $0x7bc] sm:$0xff]
                  %447 = vst [vmem:[%s355 + $0x5a0] sm:$0xff] %v446
                  %v448 = vld [vmem:[%s354 + $0x7e8] sm:$0xff]
                  %449 = vst [vmem:[%s355 + $0x5c0] sm:$0xff] %v448
                  %v450 = vld [vmem:[%s354 + $0x814] sm:$0xff]
                  %451 = vst [vmem:[%s355 + $0x5e0] sm:$0xff] %v450
                  %v452 = vld [vmem:[%s354 + $0x840] sm:$0xff]
                  %453 = vst [vmem:[%s355 + $0x600] sm:$0xff] %v452
                  %v454 = vld [vmem:[%s354 + $0x86c] sm:$0xff]
                  %455 = vst [vmem:[%s355 + $0x620] sm:$0xff] %v454
                  %v456 = vld [vmem:[%s354 + $0x898] sm:$0xff]
                  %457 = vst [vmem:[%s355 + $0x640] sm:$0xff] %v456
                  %v458 = vld [vmem:[%s354 + $0x8c4] sm:$0xff]
                  %459 = vst [vmem:[%s355 + $0x660] sm:$0xff] %v458
                  %v460 = vld [vmem:[%s354 + $0x8f0] sm:$0xff]
                  %461 = vst [vmem:[%s355 + $0x680] sm:$0xff] %v460
                  %v462 = vld [vmem:[%s354 + $0x91c] sm:$0xff]
                  %463 = vst [vmem:[%s355 + $0x6a0] sm:$0xff] %v462
                  %v464 = vld [vmem:[%s354 + $0x948] sm:$0xff]
                  %465 = vst [vmem:[%s355 + $0x6c0] sm:$0xff] %v464
                  %v466 = vld [vmem:[%s354 + $0x974] sm:$0xff]
                  %467 = vst [vmem:[%s355 + $0x6e0] sm:$0xff] %v466
                  %v468 = vld [vmem:[%s354 + $0x9a0] sm:$0xff]
                  %469 = vst [vmem:[%s355 + $0x700] sm:$0xff] %v468
                  %v470 = vld [vmem:[%s354 + $0x9cc] sm:$0xff]
                  %471 = vst [vmem:[%s355 + $0x720] sm:$0xff] %v470
                  %v472 = vld [vmem:[%s354 + $0x9f8] sm:$0xff]
                  %473 = vst [vmem:[%s355 + $0x740] sm:$0xff] %v472
                  %v474 = vld [vmem:[%s354 + $0xa24] sm:$0xff]
                  %475 = vst [vmem:[%s355 + $0x760] sm:$0xff] %v474
                  %v476 = vld [vmem:[%s354 + $0xa50] sm:$0xff]
                  %477 = vst [vmem:[%s355 + $0x780] sm:$0xff] %v476
                  %v478 = vld [vmem:[%s354 + $0xa7c] sm:$0xff]
                  %479 = vst [vmem:[%s355 + $0x7a0] sm:$0xff] %v478
                  %v480 = vld [vmem:[%s354 + $0xaa8] sm:$0xff]
                  %481 = vst [vmem:[%s355 + $0x7c0] sm:$0xff] %v480
                  %v482 = vld [vmem:[%s354 + $0xad4] sm:$0xff]
                  %483 = vst [vmem:[%s355 + $0x7e0] sm:$0xff] %v482
                  %v484 = vld [vmem:[%s354 + $0xb00] sm:$0xff]
                  %485 = vst [vmem:[%s355 + $0x800] sm:$0xff] %v484
                  %v486 = vld [vmem:[%s354 + $0xb2c] sm:$0xff]
                  %487 = vst [vmem:[%s355 + $0x820] sm:$0xff] %v486
                  %v488 = vld [vmem:[%s354 + $0xb58] sm:$0xff]
                  %489 = vst [vmem:[%s355 + $0x840] sm:$0xff] %v488
                  %v490 = vld [vmem:[%s354 + $0xb84] sm:$0xff]
                  %491 = vst [vmem:[%s355 + $0x860] sm:$0xff] %v490
                  %v492 = vld [vmem:[%s354 + $0xbb0] sm:$0xff]
                  %493 = vst [vmem:[%s355 + $0x880] sm:$0xff] %v492
                  %v494 = vld [vmem:[%s354 + $0xbdc] sm:$0xff]
                  %495 = vst [vmem:[%s355 + $0x8a0] sm:$0xff] %v494
                  %v496 = vld [vmem:[%s354 + $0xc08] sm:$0xff]
                  %497 = vst [vmem:[%s355 + $0x8c0] sm:$0xff] %v496
                  %v498 = vld [vmem:[%s354 + $0xc34] sm:$0xff]
                  %499 = vst [vmem:[%s355 + $0x8e0] sm:$0xff] %v498
                  %v500 = vld [vmem:[%s354 + $0xc60] sm:$0xff]
                  %501 = vst [vmem:[%s355 + $0x900] sm:$0xff] %v500
                  %v502 = vld [vmem:[%s354 + $0xc8c] sm:$0xff]
                  %503 = vst [vmem:[%s355 + $0x920] sm:$0xff] %v502
                  %v504 = vld [vmem:[%s354 + $0xcb8] sm:$0xff]
                  %505 = vst [vmem:[%s355 + $0x940] sm:$0xff] %v504
                  %s506 = sadd.s32 1, %s353
                  %p507 = scmp.ge.s32.totalorder %s506, %s344
                  %s508 = scalar_select %p507, 0, %s506
                  %s509 = smul.u32 %s508, 8
                  %s510 = smul.u32 %s508, 8
                  %s511 = scalar_lea.vmem %s167, %s509
                  %s512 = scalar_lea.vmem %s159, %s510 [#allocation2]
                $region60: #{nvidia_forward.7} parent=54 // loop_footer
                  %s350 = sadd.s32 %s348, 1
                $region61: #{nvidia_forward.7} parent=54 // loop_footer_branch
                  %347 = sbr.rel target = $region57
                $region62: #{nvidia_forward.7} parent=54 // loop_exit
                  _
              $region55: #{nvidia_forward.7} parent=39 // pred_fallthru
                _
              %p513 = pneg %p340
              // Predicated region
              $region63: #{nvidia_forward.7} parent=39 // pred_check
                _
              $region64: #{nvidia_forward.7} parent=39 // pred_check_branch
                %515 = sbr.rel (%p340) target = $region66
              $region65: #{nvidia_forward.7} parent=39 // pred_region
                %s516 = sand.u32 %s168, 7
                %s517 = ssub.s32 %s168, %s516
                %s518 = scalar_lea.vmem %s167, %s517
                %s519 = ssub.s32 %s168, %s516
                %s520 = scalar_lea.vmem %s159, %s519 [#allocation2]
                %s521 = sshrl.u32 %s168, 3
                // While loop
                $region67: #{nvidia_forward.7} parent=65 // loop_pre_header
                  _
                $region68: #{nvidia_forward.7} parent=65 // loop_header
                  %s525 = sphi 0, %s527
                  %p526 = scmp.ge.s32.totalorder %s525, %s521
                  %s530 = sphi 0, %s685
                  %s531 = sphi %s167, %s688
                  %s532 = sphi %s159, %s689
                $region69: #{nvidia_forward.7} parent=65 // loop_header_branch
                  %529 = sbr.rel (%p526) target = $region73
                $region70: #{nvidia_forward.7} parent=65 // loop_body
                  %v533 = vld [vmem:[%s531] sm:$0xff]
                  %534 = vst [vmem:[%s532] sm:$0xff] %v533
                  %v535 = vld [vmem:[%s531 + $0x2c] sm:$0xff]
                  %536 = vst [vmem:[%s532 + $0x20] sm:$0xff] %v535
                  %v537 = vld [vmem:[%s531 + $0x58] sm:$0xff]
                  %538 = vst [vmem:[%s532 + $0x40] sm:$0xff] %v537
                  %v539 = vld [vmem:[%s531 + $0x84] sm:$0xff]
                  %540 = vst [vmem:[%s532 + $0x60] sm:$0xff] %v539
                  %v541 = vld [vmem:[%s531 + $0xb0] sm:$0xff]
                  %542 = vst [vmem:[%s532 + $0x80] sm:$0xff] %v541
                  %v543 = vld [vmem:[%s531 + $0xdc] sm:$0xff]
                  %544 = vst [vmem:[%s532 + $0xa0] sm:$0xff] %v543
                  %v545 = vld [vmem:[%s531 + $0x108] sm:$0xff]
                  %546 = vst [vmem:[%s532 + $0xc0] sm:$0xff] %v545
                  %v547 = vld [vmem:[%s531 + $0x134] sm:$0xff]
                  %548 = vst [vmem:[%s532 + $0xe0] sm:$0xff] %v547
                  %v549 = vld [vmem:[%s531 + $0x160] sm:$0xff]
                  %550 = vst [vmem:[%s532 + $0x100] sm:$0xff] %v549
                  %v551 = vld [vmem:[%s531 + $0x18c] sm:$0xff]
                  %552 = vst [vmem:[%s532 + $0x120] sm:$0xff] %v551
                  %v553 = vld [vmem:[%s531 + $0x1b8] sm:$0xff]
                  %554 = vst [vmem:[%s532 + $0x140] sm:$0xff] %v553
                  %v555 = vld [vmem:[%s531 + $0x1e4] sm:$0xff]
                  %556 = vst [vmem:[%s532 + $0x160] sm:$0xff] %v555
                  %v557 = vld [vmem:[%s531 + $0x210] sm:$0xff]
                  %558 = vst [vmem:[%s532 + $0x180] sm:$0xff] %v557
                  %v559 = vld [vmem:[%s531 + $0x23c] sm:$0xff]
                  %560 = vst [vmem:[%s532 + $0x1a0] sm:$0xff] %v559
                  %v561 = vld [vmem:[%s531 + $0x268] sm:$0xff]
                  %562 = vst [vmem:[%s532 + $0x1c0] sm:$0xff] %v561
                  %v563 = vld [vmem:[%s531 + $0x294] sm:$0xff]
                  %564 = vst [vmem:[%s532 + $0x1e0] sm:$0xff] %v563
                  %v565 = vld [vmem:[%s531 + $0x2c0] sm:$0xff]
                  %566 = vst [vmem:[%s532 + $0x200] sm:$0xff] %v565
                  %v567 = vld [vmem:[%s531 + $0x2ec] sm:$0xff]
                  %568 = vst [vmem:[%s532 + $0x220] sm:$0xff] %v567
                  %v569 = vld [vmem:[%s531 + $0x318] sm:$0xff]
                  %570 = vst [vmem:[%s532 + $0x240] sm:$0xff] %v569
                  %v571 = vld [vmem:[%s531 + $0x344] sm:$0xff]
                  %572 = vst [vmem:[%s532 + $0x260] sm:$0xff] %v571
                  %v573 = vld [vmem:[%s531 + $0x370] sm:$0xff]
                  %574 = vst [vmem:[%s532 + $0x280] sm:$0xff] %v573
                  %v575 = vld [vmem:[%s531 + $0x39c] sm:$0xff]
                  %576 = vst [vmem:[%s532 + $0x2a0] sm:$0xff] %v575
                  %v577 = vld [vmem:[%s531 + $0x3c8] sm:$0xff]
                  %578 = vst [vmem:[%s532 + $0x2c0] sm:$0xff] %v577
                  %v579 = vld [vmem:[%s531 + $0x3f4] sm:$0xff]
                  %580 = vst [vmem:[%s532 + $0x2e0] sm:$0xff] %v579
                  %v581 = vld [vmem:[%s531 + $0x420] sm:$0xff]
                  %582 = vst [vmem:[%s532 + $0x300] sm:$0xff] %v581
                  %v583 = vld [vmem:[%s531 + $0x44c] sm:$0xff]
                  %584 = vst [vmem:[%s532 + $0x320] sm:$0xff] %v583
                  %v585 = vld [vmem:[%s531 + $0x478] sm:$0xff]
                  %586 = vst [vmem:[%s532 + $0x340] sm:$0xff] %v585
                  %v587 = vld [vmem:[%s531 + $0x4a4] sm:$0xff]
                  %588 = vst [vmem:[%s532 + $0x360] sm:$0xff] %v587
                  %v589 = vld [vmem:[%s531 + $0x4d0] sm:$0xff]
                  %590 = vst [vmem:[%s532 + $0x380] sm:$0xff] %v589
                  %v591 = vld [vmem:[%s531 + $0x4fc] sm:$0xff]
                  %592 = vst [vmem:[%s532 + $0x3a0] sm:$0xff] %v591
                  %v593 = vld [vmem:[%s531 + $0x528] sm:$0xff]
                  %594 = vst [vmem:[%s532 + $0x3c0] sm:$0xff] %v593
                  %v595 = vld [vmem:[%s531 + $0x554] sm:$0xff]
                  %596 = vst [vmem:[%s532 + $0x3e0] sm:$0xff] %v595
                  %v597 = vld [vmem:[%s531 + $0x580] sm:$0xff]
                  %598 = vst [vmem:[%s532 + $0x400] sm:$0xff] %v597
                  %v599 = vld [vmem:[%s531 + $0x5ac] sm:$0xff]
                  %600 = vst [vmem:[%s532 + $0x420] sm:$0xff] %v599
                  %v601 = vld [vmem:[%s531 + $0x5d8] sm:$0xff]
                  %602 = vst [vmem:[%s532 + $0x440] sm:$0xff] %v601
                  %v603 = vld [vmem:[%s531 + $0x604] sm:$0xff]
                  %604 = vst [vmem:[%s532 + $0x460] sm:$0xff] %v603
                  %v605 = vld [vmem:[%s531 + $0x630] sm:$0xff]
                  %606 = vst [vmem:[%s532 + $0x480] sm:$0xff] %v605
                  %v607 = vld [vmem:[%s531 + $0x65c] sm:$0xff]
                  %608 = vst [vmem:[%s532 + $0x4a0] sm:$0xff] %v607
                  %v609 = vld [vmem:[%s531 + $0x688] sm:$0xff]
                  %610 = vst [vmem:[%s532 + $0x4c0] sm:$0xff] %v609
                  %v611 = vld [vmem:[%s531 + $0x6b4] sm:$0xff]
                  %612 = vst [vmem:[%s532 + $0x4e0] sm:$0xff] %v611
                  %v613 = vld [vmem:[%s531 + $0x6e0] sm:$0xff]
                  %614 = vst [vmem:[%s532 + $0x500] sm:$0xff] %v613
                  %v615 = vld [vmem:[%s531 + $0x70c] sm:$0xff]
                  %616 = vst [vmem:[%s532 + $0x520] sm:$0xff] %v615
                  %v617 = vld [vmem:[%s531 + $0x738] sm:$0xff]
                  %618 = vst [vmem:[%s532 + $0x540] sm:$0xff] %v617
                  %v619 = vld [vmem:[%s531 + $0x764] sm:$0xff]
                  %620 = vst [vmem:[%s532 + $0x560] sm:$0xff] %v619
                  %v621 = vld [vmem:[%s531 + $0x790] sm:$0xff]
                  %622 = vst [vmem:[%s532 + $0x580] sm:$0xff] %v621
                  %v623 = vld [vmem:[%s531 + $0x7bc] sm:$0xff]
                  %624 = vst [vmem:[%s532 + $0x5a0] sm:$0xff] %v623
                  %v625 = vld [vmem:[%s531 + $0x7e8] sm:$0xff]
                  %626 = vst [vmem:[%s532 + $0x5c0] sm:$0xff] %v625
                  %v627 = vld [vmem:[%s531 + $0x814] sm:$0xff]
                  %628 = vst [vmem:[%s532 + $0x5e0] sm:$0xff] %v627
                  %v629 = vld [vmem:[%s531 + $0x840] sm:$0xff]
                  %630 = vst [vmem:[%s532 + $0x600] sm:$0xff] %v629
                  %v631 = vld [vmem:[%s531 + $0x86c] sm:$0xff]
                  %632 = vst [vmem:[%s532 + $0x620] sm:$0xff] %v631
                  %v633 = vld [vmem:[%s531 + $0x898] sm:$0xff]
                  %634 = vst [vmem:[%s532 + $0x640] sm:$0xff] %v633
                  %v635 = vld [vmem:[%s531 + $0x8c4] sm:$0xff]
                  %636 = vst [vmem:[%s532 + $0x660] sm:$0xff] %v635
                  %v637 = vld [vmem:[%s531 + $0x8f0] sm:$0xff]
                  %638 = vst [vmem:[%s532 + $0x680] sm:$0xff] %v637
                  %v639 = vld [vmem:[%s531 + $0x91c] sm:$0xff]
                  %640 = vst [vmem:[%s532 + $0x6a0] sm:$0xff] %v639
                  %v641 = vld [vmem:[%s531 + $0x948] sm:$0xff]
                  %642 = vst [vmem:[%s532 + $0x6c0] sm:$0xff] %v641
                  %v643 = vld [vmem:[%s531 + $0x974] sm:$0xff]
                  %644 = vst [vmem:[%s532 + $0x6e0] sm:$0xff] %v643
                  %v645 = vld [vmem:[%s531 + $0x9a0] sm:$0xff]
                  %646 = vst [vmem:[%s532 + $0x700] sm:$0xff] %v645
                  %v647 = vld [vmem:[%s531 + $0x9cc] sm:$0xff]
                  %648 = vst [vmem:[%s532 + $0x720] sm:$0xff] %v647
                  %v649 = vld [vmem:[%s531 + $0x9f8] sm:$0xff]
                  %650 = vst [vmem:[%s532 + $0x740] sm:$0xff] %v649
                  %v651 = vld [vmem:[%s531 + $0xa24] sm:$0xff]
                  %652 = vst [vmem:[%s532 + $0x760] sm:$0xff] %v651
                  %v653 = vld [vmem:[%s531 + $0xa50] sm:$0xff]
                  %654 = vst [vmem:[%s532 + $0x780] sm:$0xff] %v653
                  %v655 = vld [vmem:[%s531 + $0xa7c] sm:$0xff]
                  %656 = vst [vmem:[%s532 + $0x7a0] sm:$0xff] %v655
                  %v657 = vld [vmem:[%s531 + $0xaa8] sm:$0xff]
                  %658 = vst [vmem:[%s532 + $0x7c0] sm:$0xff] %v657
                  %v659 = vld [vmem:[%s531 + $0xad4] sm:$0xff]
                  %660 = vst [vmem:[%s532 + $0x7e0] sm:$0xff] %v659
                  %v661 = vld [vmem:[%s531 + $0xb00] sm:$0xff]
                  %662 = vst [vmem:[%s532 + $0x800] sm:$0xff] %v661
                  %v663 = vld [vmem:[%s531 + $0xb2c] sm:$0xff]
                  %664 = vst [vmem:[%s532 + $0x820] sm:$0xff] %v663
                  %v665 = vld [vmem:[%s531 + $0xb58] sm:$0xff]
                  %666 = vst [vmem:[%s532 + $0x840] sm:$0xff] %v665
                  %v667 = vld [vmem:[%s531 + $0xb84] sm:$0xff]
                  %668 = vst [vmem:[%s532 + $0x860] sm:$0xff] %v667
                  %v669 = vld [vmem:[%s531 + $0xbb0] sm:$0xff]
                  %670 = vst [vmem:[%s532 + $0x880] sm:$0xff] %v669
                  %v671 = vld [vmem:[%s531 + $0xbdc] sm:$0xff]
                  %672 = vst [vmem:[%s532 + $0x8a0] sm:$0xff] %v671
                  %v673 = vld [vmem:[%s531 + $0xc08] sm:$0xff]
                  %674 = vst [vmem:[%s532 + $0x8c0] sm:$0xff] %v673
                  %v675 = vld [vmem:[%s531 + $0xc34] sm:$0xff]
                  %676 = vst [vmem:[%s532 + $0x8e0] sm:$0xff] %v675
                  %v677 = vld [vmem:[%s531 + $0xc60] sm:$0xff]
                  %678 = vst [vmem:[%s532 + $0x900] sm:$0xff] %v677
                  %v679 = vld [vmem:[%s531 + $0xc8c] sm:$0xff]
                  %680 = vst [vmem:[%s532 + $0x920] sm:$0xff] %v679
                  %v681 = vld [vmem:[%s531 + $0xcb8] sm:$0xff]
                  %682 = vst [vmem:[%s532 + $0x940] sm:$0xff] %v681
                  %s683 = sadd.s32 1, %s530
                  %p684 = scmp.ge.s32.totalorder %s683, %s521
                  %s685 = scalar_select %p684, 0, %s683
                  %s686 = smul.u32 %s685, 8
                  %s687 = smul.u32 %s685, 8
                  %s688 = scalar_lea.vmem %s167, %s686
                  %s689 = scalar_lea.vmem %s159, %s687 [#allocation2]
                $region71: #{nvidia_forward.7} parent=65 // loop_footer
                  %s527 = sadd.s32 %s525, 1
                $region72: #{nvidia_forward.7} parent=65 // loop_footer_branch
                  %524 = sbr.rel target = $region68
                $region73: #{nvidia_forward.7} parent=65 // loop_exit
                  _
                %s690 = sshll.u32 1, %s516
                %s691 = ssub.s32 %s690, 1
                loop: start=0, step=1, limit=1
                $region74: #{nvidia_forward.7} parent=65 // loop_pre_header
                  _
                $region75: #{nvidia_forward.7} parent=65 // loop_header
                  %s693 = sphi 0, %s697
                  %p694 = scmp.ge.s32.totalorder %s693, 1
                  %s698 = sphi %s518, %s518
                  %s699 = sphi %s520, %s520
                $region76: #{nvidia_forward.7} parent=65 // loop_header_branch
                  %696 = sbr.rel (%p694) target = $region80
                $region77: #{nvidia_forward.7} parent=65 // loop_body
                  %v700 = vld [vmem:[%s698] sm:%s691]
                  %701 = vst [vmem:[%s699] sm:%s691] %v700
                  %v702 = vld [vmem:[%s698 + $0x2c] sm:%s691]
                  %703 = vst [vmem:[%s699 + $0x20] sm:%s691] %v702
                  %v704 = vld [vmem:[%s698 + $0x58] sm:%s691]
                  %705 = vst [vmem:[%s699 + $0x40] sm:%s691] %v704
                  %v706 = vld [vmem:[%s698 + $0x84] sm:%s691]
                  %707 = vst [vmem:[%s699 + $0x60] sm:%s691] %v706
                  %v708 = vld [vmem:[%s698 + $0xb0] sm:%s691]
                  %709 = vst [vmem:[%s699 + $0x80] sm:%s691] %v708
                  %v710 = vld [vmem:[%s698 + $0xdc] sm:%s691]
                  %711 = vst [vmem:[%s699 + $0xa0] sm:%s691] %v710
                  %v712 = vld [vmem:[%s698 + $0x108] sm:%s691]
                  %713 = vst [vmem:[%s699 + $0xc0] sm:%s691] %v712
                  %v714 = vld [vmem:[%s698 + $0x134] sm:%s691]
                  %715 = vst [vmem:[%s699 + $0xe0] sm:%s691] %v714
                  %v716 = vld [vmem:[%s698 + $0x160] sm:%s691]
                  %717 = vst [vmem:[%s699 + $0x100] sm:%s691] %v716
                  %v718 = vld [vmem:[%s698 + $0x18c] sm:%s691]
                  %719 = vst [vmem:[%s699 + $0x120] sm:%s691] %v718
                  %v720 = vld [vmem:[%s698 + $0x1b8] sm:%s691]
                  %721 = vst [vmem:[%s699 + $0x140] sm:%s691] %v720
                  %v722 = vld [vmem:[%s698 + $0x1e4] sm:%s691]
                  %723 = vst [vmem:[%s699 + $0x160] sm:%s691] %v722
                  %v724 = vld [vmem:[%s698 + $0x210] sm:%s691]
                  %725 = vst [vmem:[%s699 + $0x180] sm:%s691] %v724
                  %v726 = vld [vmem:[%s698 + $0x23c] sm:%s691]
                  %727 = vst [vmem:[%s699 + $0x1a0] sm:%s691] %v726
                  %v728 = vld [vmem:[%s698 + $0x268] sm:%s691]
                  %729 = vst [vmem:[%s699 + $0x1c0] sm:%s691] %v728
                  %v730 = vld [vmem:[%s698 + $0x294] sm:%s691]
                  %731 = vst [vmem:[%s699 + $0x1e0] sm:%s691] %v730
                  %v732 = vld [vmem:[%s698 + $0x2c0] sm:%s691]
                  %733 = vst [vmem:[%s699 + $0x200] sm:%s691] %v732
                  %v734 = vld [vmem:[%s698 + $0x2ec] sm:%s691]
                  %735 = vst [vmem:[%s699 + $0x220] sm:%s691] %v734
                  %v736 = vld [vmem:[%s698 + $0x318] sm:%s691]
                  %737 = vst [vmem:[%s699 + $0x240] sm:%s691] %v736
                  %v738 = vld [vmem:[%s698 + $0x344] sm:%s691]
                  %739 = vst [vmem:[%s699 + $0x260] sm:%s691] %v738
                  %v740 = vld [vmem:[%s698 + $0x370] sm:%s691]
                  %741 = vst [vmem:[%s699 + $0x280] sm:%s691] %v740
                  %v742 = vld [vmem:[%s698 + $0x39c] sm:%s691]
                  %743 = vst [vmem:[%s699 + $0x2a0] sm:%s691] %v742
                  %v744 = vld [vmem:[%s698 + $0x3c8] sm:%s691]
                  %745 = vst [vmem:[%s699 + $0x2c0] sm:%s691] %v744
                  %v746 = vld [vmem:[%s698 + $0x3f4] sm:%s691]
                  %747 = vst [vmem:[%s699 + $0x2e0] sm:%s691] %v746
                  %v748 = vld [vmem:[%s698 + $0x420] sm:%s691]
                  %749 = vst [vmem:[%s699 + $0x300] sm:%s691] %v748
                  %v750 = vld [vmem:[%s698 + $0x44c] sm:%s691]
                  %751 = vst [vmem:[%s699 + $0x320] sm:%s691] %v750
                  %v752 = vld [vmem:[%s698 + $0x478] sm:%s691]
                  %753 = vst [vmem:[%s699 + $0x340] sm:%s691] %v752
                  %v754 = vld [vmem:[%s698 + $0x4a4] sm:%s691]
                  %755 = vst [vmem:[%s699 + $0x360] sm:%s691] %v754
                  %v756 = vld [vmem:[%s698 + $0x4d0] sm:%s691]
                  %757 = vst [vmem:[%s699 + $0x380] sm:%s691] %v756
                  %v758 = vld [vmem:[%s698 + $0x4fc] sm:%s691]
                  %759 = vst [vmem:[%s699 + $0x3a0] sm:%s691] %v758
                  %v760 = vld [vmem:[%s698 + $0x528] sm:%s691]
                  %761 = vst [vmem:[%s699 + $0x3c0] sm:%s691] %v760
                  %v762 = vld [vmem:[%s698 + $0x554] sm:%s691]
                  %763 = vst [vmem:[%s699 + $0x3e0] sm:%s691] %v762
                  %v764 = vld [vmem:[%s698 + $0x580] sm:%s691]
                  %765 = vst [vmem:[%s699 + $0x400] sm:%s691] %v764
                  %v766 = vld [vmem:[%s698 + $0x5ac] sm:%s691]
                  %767 = vst [vmem:[%s699 + $0x420] sm:%s691] %v766
                  %v768 = vld [vmem:[%s698 + $0x5d8] sm:%s691]
                  %769 = vst [vmem:[%s699 + $0x440] sm:%s691] %v768
                  %v770 = vld [vmem:[%s698 + $0x604] sm:%s691]
                  %771 = vst [vmem:[%s699 + $0x460] sm:%s691] %v770
                  %v772 = vld [vmem:[%s698 + $0x630] sm:%s691]
                  %773 = vst [vmem:[%s699 + $0x480] sm:%s691] %v772
                  %v774 = vld [vmem:[%s698 + $0x65c] sm:%s691]
                  %775 = vst [vmem:[%s699 + $0x4a0] sm:%s691] %v774
                  %v776 = vld [vmem:[%s698 + $0x688] sm:%s691]
                  %777 = vst [vmem:[%s699 + $0x4c0] sm:%s691] %v776
                  %v778 = vld [vmem:[%s698 + $0x6b4] sm:%s691]
                  %779 = vst [vmem:[%s699 + $0x4e0] sm:%s691] %v778
                  %v780 = vld [vmem:[%s698 + $0x6e0] sm:%s691]
                  %781 = vst [vmem:[%s699 + $0x500] sm:%s691] %v780
                  %v782 = vld [vmem:[%s698 + $0x70c] sm:%s691]
                  %783 = vst [vmem:[%s699 + $0x520] sm:%s691] %v782
                  %v784 = vld [vmem:[%s698 + $0x738] sm:%s691]
                  %785 = vst [vmem:[%s699 + $0x540] sm:%s691] %v784
                  %v786 = vld [vmem:[%s698 + $0x764] sm:%s691]
                  %787 = vst [vmem:[%s699 + $0x560] sm:%s691] %v786
                  %v788 = vld [vmem:[%s698 + $0x790] sm:%s691]
                  %789 = vst [vmem:[%s699 + $0x580] sm:%s691] %v788
                  %v790 = vld [vmem:[%s698 + $0x7bc] sm:%s691]
                  %791 = vst [vmem:[%s699 + $0x5a0] sm:%s691] %v790
                  %v792 = vld [vmem:[%s698 + $0x7e8] sm:%s691]
                  %793 = vst [vmem:[%s699 + $0x5c0] sm:%s691] %v792
                  %v794 = vld [vmem:[%s698 + $0x814] sm:%s691]
                  %795 = vst [vmem:[%s699 + $0x5e0] sm:%s691] %v794
                  %v796 = vld [vmem:[%s698 + $0x840] sm:%s691]
                  %797 = vst [vmem:[%s699 + $0x600] sm:%s691] %v796
                  %v798 = vld [vmem:[%s698 + $0x86c] sm:%s691]
                  %799 = vst [vmem:[%s699 + $0x620] sm:%s691] %v798
                  %v800 = vld [vmem:[%s698 + $0x898] sm:%s691]
                  %801 = vst [vmem:[%s699 + $0x640] sm:%s691] %v800
                  %v802 = vld [vmem:[%s698 + $0x8c4] sm:%s691]
                  %803 = vst [vmem:[%s699 + $0x660] sm:%s691] %v802
                  %v804 = vld [vmem:[%s698 + $0x8f0] sm:%s691]
                  %805 = vst [vmem:[%s699 + $0x680] sm:%s691] %v804
                  %v806 = vld [vmem:[%s698 + $0x91c] sm:%s691]
                  %807 = vst [vmem:[%s699 + $0x6a0] sm:%s691] %v806
                  %v808 = vld [vmem:[%s698 + $0x948] sm:%s691]
                  %809 = vst [vmem:[%s699 + $0x6c0] sm:%s691] %v808
                  %v810 = vld [vmem:[%s698 + $0x974] sm:%s691]
                  %811 = vst [vmem:[%s699 + $0x6e0] sm:%s691] %v810
                  %v812 = vld [vmem:[%s698 + $0x9a0] sm:%s691]
                  %813 = vst [vmem:[%s699 + $0x700] sm:%s691] %v812
                  %v814 = vld [vmem:[%s698 + $0x9cc] sm:%s691]
                  %815 = vst [vmem:[%s699 + $0x720] sm:%s691] %v814
                  %v816 = vld [vmem:[%s698 + $0x9f8] sm:%s691]
                  %817 = vst [vmem:[%s699 + $0x740] sm:%s691] %v816
                  %v818 = vld [vmem:[%s698 + $0xa24] sm:%s691]
                  %819 = vst [vmem:[%s699 + $0x760] sm:%s691] %v818
                  %v820 = vld [vmem:[%s698 + $0xa50] sm:%s691]
                  %821 = vst [vmem:[%s699 + $0x780] sm:%s691] %v820
                  %v822 = vld [vmem:[%s698 + $0xa7c] sm:%s691]
                  %823 = vst [vmem:[%s699 + $0x7a0] sm:%s691] %v822
                  %v824 = vld [vmem:[%s698 + $0xaa8] sm:%s691]
                  %825 = vst [vmem:[%s699 + $0x7c0] sm:%s691] %v824
                  %v826 = vld [vmem:[%s698 + $0xad4] sm:%s691]
                  %827 = vst [vmem:[%s699 + $0x7e0] sm:%s691] %v826
                  %v828 = vld [vmem:[%s698 + $0xb00] sm:%s691]
                  %829 = vst [vmem:[%s699 + $0x800] sm:%s691] %v828
                  %v830 = vld [vmem:[%s698 + $0xb2c] sm:%s691]
                  %831 = vst [vmem:[%s699 + $0x820] sm:%s691] %v830
                  %v832 = vld [vmem:[%s698 + $0xb58] sm:%s691]
                  %833 = vst [vmem:[%s699 + $0x840] sm:%s691] %v832
                  %v834 = vld [vmem:[%s698 + $0xb84] sm:%s691]
                  %835 = vst [vmem:[%s699 + $0x860] sm:%s691] %v834
                  %v836 = vld [vmem:[%s698 + $0xbb0] sm:%s691]
                  %837 = vst [vmem:[%s699 + $0x880] sm:%s691] %v836
                  %v838 = vld [vmem:[%s698 + $0xbdc] sm:%s691]
                  %839 = vst [vmem:[%s699 + $0x8a0] sm:%s691] %v838
                  %v840 = vld [vmem:[%s698 + $0xc08] sm:%s691]
                  %841 = vst [vmem:[%s699 + $0x8c0] sm:%s691] %v840
                  %v842 = vld [vmem:[%s698 + $0xc34] sm:%s691]
                  %843 = vst [vmem:[%s699 + $0x8e0] sm:%s691] %v842
                  %v844 = vld [vmem:[%s698 + $0xc60] sm:%s691]
                  %845 = vst [vmem:[%s699 + $0x900] sm:%s691] %v844
                  %v846 = vld [vmem:[%s698 + $0xc8c] sm:%s691]
                  %847 = vst [vmem:[%s699 + $0x920] sm:%s691] %v846
                  %v848 = vld [vmem:[%s698 + $0xcb8] sm:%s691]
                  %849 = vst [vmem:[%s699 + $0x940] sm:%s691] %v848
                $region78: #{nvidia_forward.7} parent=65 // loop_footer
                  %s697 = sadd.s32 1, %s693
                $region79: #{nvidia_forward.7} parent=65 // loop_footer_branch
                  %692 = sbr.rel target = $region75
                $region80: #{nvidia_forward.7} parent=65 // loop_exit
                  _
              $region66: #{nvidia_forward.7} parent=39 // pred_fallthru
                _
            $region40: #{nvidia_forward.7} parent=35 // pred_fallthru
              _
            // Predicated region
            $region41: #{nvidia_forward.7} parent=35 // pred_check
              %p176 = pneg %p172
            $region42: #{nvidia_forward.7} parent=35 // pred_check_branch
              %178 = sbr.rel (%p176) target = $region44
            $region43: #{nvidia_forward.7} parent=35 // pred_region
              %s179 = sshll.u32 1, %s168
              %s180 = ssub.s32 %s179, 1
              loop: start=0, step=1, limit=1
              $region45: #{nvidia_forward.7} parent=43 // loop_pre_header
                _
              $region46: #{nvidia_forward.7} parent=43 // loop_header
                %s182 = sphi 0, %s186
                %p183 = scmp.ge.s32.totalorder %s182, 1
                %s187 = sphi %s167, %s167
                %s188 = sphi %s159, %s159
              $region47: #{nvidia_forward.7} parent=43 // loop_header_branch
                %185 = sbr.rel (%p183) target = $region51
              $region48: #{nvidia_forward.7} parent=43 // loop_body
                %v189 = vld [vmem:[%s187] sm:%s180]
                %190 = vst [vmem:[%s188] sm:%s180] %v189
                %v191 = vld [vmem:[%s187 + $0x2c] sm:%s180]
                %192 = vst [vmem:[%s188 + $0x20] sm:%s180] %v191
                %v193 = vld [vmem:[%s187 + $0x58] sm:%s180]
                %194 = vst [vmem:[%s188 + $0x40] sm:%s180] %v193
                %v195 = vld [vmem:[%s187 + $0x84] sm:%s180]
                %196 = vst [vmem:[%s188 + $0x60] sm:%s180] %v195
                %v197 = vld [vmem:[%s187 + $0xb0] sm:%s180]
                %198 = vst [vmem:[%s188 + $0x80] sm:%s180] %v197
                %v199 = vld [vmem:[%s187 + $0xdc] sm:%s180]
                %200 = vst [vmem:[%s188 + $0xa0] sm:%s180] %v199
                %v201 = vld [vmem:[%s187 + $0x108] sm:%s180]
                %202 = vst [vmem:[%s188 + $0xc0] sm:%s180] %v201
                %v203 = vld [vmem:[%s187 + $0x134] sm:%s180]
                %204 = vst [vmem:[%s188 + $0xe0] sm:%s180] %v203
                %v205 = vld [vmem:[%s187 + $0x160] sm:%s180]
                %206 = vst [vmem:[%s188 + $0x100] sm:%s180] %v205
                %v207 = vld [vmem:[%s187 + $0x18c] sm:%s180]
                %208 = vst [vmem:[%s188 + $0x120] sm:%s180] %v207
                %v209 = vld [vmem:[%s187 + $0x1b8] sm:%s180]
                %210 = vst [vmem:[%s188 + $0x140] sm:%s180] %v209
                %v211 = vld [vmem:[%s187 + $0x1e4] sm:%s180]
                %212 = vst [vmem:[%s188 + $0x160] sm:%s180] %v211
                %v213 = vld [vmem:[%s187 + $0x210] sm:%s180]
                %214 = vst [vmem:[%s188 + $0x180] sm:%s180] %v213
                %v215 = vld [vmem:[%s187 + $0x23c] sm:%s180]
                %216 = vst [vmem:[%s188 + $0x1a0] sm:%s180] %v215
                %v217 = vld [vmem:[%s187 + $0x268] sm:%s180]
                %218 = vst [vmem:[%s188 + $0x1c0] sm:%s180] %v217
                %v219 = vld [vmem:[%s187 + $0x294] sm:%s180]
                %220 = vst [vmem:[%s188 + $0x1e0] sm:%s180] %v219
                %v221 = vld [vmem:[%s187 + $0x2c0] sm:%s180]
                %222 = vst [vmem:[%s188 + $0x200] sm:%s180] %v221
                %v223 = vld [vmem:[%s187 + $0x2ec] sm:%s180]
                %224 = vst [vmem:[%s188 + $0x220] sm:%s180] %v223
                %v225 = vld [vmem:[%s187 + $0x318] sm:%s180]
                %226 = vst [vmem:[%s188 + $0x240] sm:%s180] %v225
                %v227 = vld [vmem:[%s187 + $0x344] sm:%s180]
                %228 = vst [vmem:[%s188 + $0x260] sm:%s180] %v227
                %v229 = vld [vmem:[%s187 + $0x370] sm:%s180]
                %230 = vst [vmem:[%s188 + $0x280] sm:%s180] %v229
                %v231 = vld [vmem:[%s187 + $0x39c] sm:%s180]
                %232 = vst [vmem:[%s188 + $0x2a0] sm:%s180] %v231
                %v233 = vld [vmem:[%s187 + $0x3c8] sm:%s180]
                %234 = vst [vmem:[%s188 + $0x2c0] sm:%s180] %v233
                %v235 = vld [vmem:[%s187 + $0x3f4] sm:%s180]
                %236 = vst [vmem:[%s188 + $0x2e0] sm:%s180] %v235
                %v237 = vld [vmem:[%s187 + $0x420] sm:%s180]
                %238 = vst [vmem:[%s188 + $0x300] sm:%s180] %v237
                %v239 = vld [vmem:[%s187 + $0x44c] sm:%s180]
                %240 = vst [vmem:[%s188 + $0x320] sm:%s180] %v239
                %v241 = vld [vmem:[%s187 + $0x478] sm:%s180]
                %242 = vst [vmem:[%s188 + $0x340] sm:%s180] %v241
                %v243 = vld [vmem:[%s187 + $0x4a4] sm:%s180]
                %244 = vst [vmem:[%s188 + $0x360] sm:%s180] %v243
                %v245 = vld [vmem:[%s187 + $0x4d0] sm:%s180]
                %246 = vst [vmem:[%s188 + $0x380] sm:%s180] %v245
                %v247 = vld [vmem:[%s187 + $0x4fc] sm:%s180]
                %248 = vst [vmem:[%s188 + $0x3a0] sm:%s180] %v247
                %v249 = vld [vmem:[%s187 + $0x528] sm:%s180]
                %250 = vst [vmem:[%s188 + $0x3c0] sm:%s180] %v249
                %v251 = vld [vmem:[%s187 + $0x554] sm:%s180]
                %252 = vst [vmem:[%s188 + $0x3e0] sm:%s180] %v251
                %v253 = vld [vmem:[%s187 + $0x580] sm:%s180]
                %254 = vst [vmem:[%s188 + $0x400] sm:%s180] %v253
                %v255 = vld [vmem:[%s187 + $0x5ac] sm:%s180]
                %256 = vst [vmem:[%s188 + $0x420] sm:%s180] %v255
                %v257 = vld [vmem:[%s187 + $0x5d8] sm:%s180]
                %258 = vst [vmem:[%s188 + $0x440] sm:%s180] %v257
                %v259 = vld [vmem:[%s187 + $0x604] sm:%s180]
                %260 = vst [vmem:[%s188 + $0x460] sm:%s180] %v259
                %v261 = vld [vmem:[%s187 + $0x630] sm:%s180]
                %262 = vst [vmem:[%s188 + $0x480] sm:%s180] %v261
                %v263 = vld [vmem:[%s187 + $0x65c] sm:%s180]
                %264 = vst [vmem:[%s188 + $0x4a0] sm:%s180] %v263
                %v265 = vld [vmem:[%s187 + $0x688] sm:%s180]
                %266 = vst [vmem:[%s188 + $0x4c0] sm:%s180] %v265
                %v267 = vld [vmem:[%s187 + $0x6b4] sm:%s180]
                %268 = vst [vmem:[%s188 + $0x4e0] sm:%s180] %v267
                %v269 = vld [vmem:[%s187 + $0x6e0] sm:%s180]
                %270 = vst [vmem:[%s188 + $0x500] sm:%s180] %v269
                %v271 = vld [vmem:[%s187 + $0x70c] sm:%s180]
                %272 = vst [vmem:[%s188 + $0x520] sm:%s180] %v271
                %v273 = vld [vmem:[%s187 + $0x738] sm:%s180]
                %274 = vst [vmem:[%s188 + $0x540] sm:%s180] %v273
                %v275 = vld [vmem:[%s187 + $0x764] sm:%s180]
                %276 = vst [vmem:[%s188 + $0x560] sm:%s180] %v275
                %v277 = vld [vmem:[%s187 + $0x790] sm:%s180]
                %278 = vst [vmem:[%s188 + $0x580] sm:%s180] %v277
                %v279 = vld [vmem:[%s187 + $0x7bc] sm:%s180]
                %280 = vst [vmem:[%s188 + $0x5a0] sm:%s180] %v279
                %v281 = vld [vmem:[%s187 + $0x7e8] sm:%s180]
                %282 = vst [vmem:[%s188 + $0x5c0] sm:%s180] %v281
                %v283 = vld [vmem:[%s187 + $0x814] sm:%s180]
                %284 = vst [vmem:[%s188 + $0x5e0] sm:%s180] %v283
                %v285 = vld [vmem:[%s187 + $0x840] sm:%s180]
                %286 = vst [vmem:[%s188 + $0x600] sm:%s180] %v285
                %v287 = vld [vmem:[%s187 + $0x86c] sm:%s180]
                %288 = vst [vmem:[%s188 + $0x620] sm:%s180] %v287
                %v289 = vld [vmem:[%s187 + $0x898] sm:%s180]
                %290 = vst [vmem:[%s188 + $0x640] sm:%s180] %v289
                %v291 = vld [vmem:[%s187 + $0x8c4] sm:%s180]
                %292 = vst [vmem:[%s188 + $0x660] sm:%s180] %v291
                %v293 = vld [vmem:[%s187 + $0x8f0] sm:%s180]
                %294 = vst [vmem:[%s188 + $0x680] sm:%s180] %v293
                %v295 = vld [vmem:[%s187 + $0x91c] sm:%s180]
                %296 = vst [vmem:[%s188 + $0x6a0] sm:%s180] %v295
                %v297 = vld [vmem:[%s187 + $0x948] sm:%s180]
                %298 = vst [vmem:[%s188 + $0x6c0] sm:%s180] %v297
                %v299 = vld [vmem:[%s187 + $0x974] sm:%s180]
                %300 = vst [vmem:[%s188 + $0x6e0] sm:%s180] %v299
                %v301 = vld [vmem:[%s187 + $0x9a0] sm:%s180]
                %302 = vst [vmem:[%s188 + $0x700] sm:%s180] %v301
                %v303 = vld [vmem:[%s187 + $0x9cc] sm:%s180]
                %304 = vst [vmem:[%s188 + $0x720] sm:%s180] %v303
                %v305 = vld [vmem:[%s187 + $0x9f8] sm:%s180]
                %306 = vst [vmem:[%s188 + $0x740] sm:%s180] %v305
                %v307 = vld [vmem:[%s187 + $0xa24] sm:%s180]
                %308 = vst [vmem:[%s188 + $0x760] sm:%s180] %v307
                %v309 = vld [vmem:[%s187 + $0xa50] sm:%s180]
                %310 = vst [vmem:[%s188 + $0x780] sm:%s180] %v309
                %v311 = vld [vmem:[%s187 + $0xa7c] sm:%s180]
                %312 = vst [vmem:[%s188 + $0x7a0] sm:%s180] %v311
                %v313 = vld [vmem:[%s187 + $0xaa8] sm:%s180]
                %314 = vst [vmem:[%s188 + $0x7c0] sm:%s180] %v313
                %v315 = vld [vmem:[%s187 + $0xad4] sm:%s180]
                %316 = vst [vmem:[%s188 + $0x7e0] sm:%s180] %v315
                %v317 = vld [vmem:[%s187 + $0xb00] sm:%s180]
                %318 = vst [vmem:[%s188 + $0x800] sm:%s180] %v317
                %v319 = vld [vmem:[%s187 + $0xb2c] sm:%s180]
                %320 = vst [vmem:[%s188 + $0x820] sm:%s180] %v319
                %v321 = vld [vmem:[%s187 + $0xb58] sm:%s180]
                %322 = vst [vmem:[%s188 + $0x840] sm:%s180] %v321
                %v323 = vld [vmem:[%s187 + $0xb84] sm:%s180]
                %324 = vst [vmem:[%s188 + $0x860] sm:%s180] %v323
                %v325 = vld [vmem:[%s187 + $0xbb0] sm:%s180]
                %326 = vst [vmem:[%s188 + $0x880] sm:%s180] %v325
                %v327 = vld [vmem:[%s187 + $0xbdc] sm:%s180]
                %328 = vst [vmem:[%s188 + $0x8a0] sm:%s180] %v327
                %v329 = vld [vmem:[%s187 + $0xc08] sm:%s180]
                %330 = vst [vmem:[%s188 + $0x8c0] sm:%s180] %v329
                %v331 = vld [vmem:[%s187 + $0xc34] sm:%s180]
                %332 = vst [vmem:[%s188 + $0x8e0] sm:%s180] %v331
                %v333 = vld [vmem:[%s187 + $0xc60] sm:%s180]
                %334 = vst [vmem:[%s188 + $0x900] sm:%s180] %v333
                %v335 = vld [vmem:[%s187 + $0xc8c] sm:%s180]
                %336 = vst [vmem:[%s188 + $0x920] sm:%s180] %v335
                %v337 = vld [vmem:[%s187 + $0xcb8] sm:%s180]
                %338 = vst [vmem:[%s188 + $0x940] sm:%s180] %v337
              $region49: #{nvidia_forward.7} parent=43 // loop_footer
                %s186 = sadd.s32 1, %s182
              $region50: #{nvidia_forward.7} parent=43 // loop_footer_branch
                %181 = sbr.rel target = $region46
              $region51: #{nvidia_forward.7} parent=43 // loop_exit
                _
            $region44: #{nvidia_forward.7} parent=35 // pred_fallthru
              _
          $region36: #{nvidia_forward.7} parent=31 // pred_fallthru
            _
          %850 = vnop
        $region32: #{nvidia_forward.7} parent=27 // pred_fallthru
          _
      $region28: #{nvidia_forward.7} parent=5 // pred_fallthru
        _
      %p851 = scmp.le.s32.totalorder 1, %s10
      %p852 = scmp.lt.s32.totalorder %s10, 3
      %p853 = pnand %p851, %p852
      %p854 = pneg %p853
      // Predicated region
      $region81: #{nvidia_forward.7} parent=5 // pred_check
        _
      $region82: #{nvidia_forward.7} parent=5 // pred_check_branch
        %856 = sbr.rel (%p853) target = $region84
      $region83: #{nvidia_forward.7} parent=5 // pred_region
        %s857 = ssub.s32 %s10, 1
        %s858 = sand.u32 %s44, 1
        %s859 = sand.u32 %s44, 1
        %s860 = smul.addr %s859, 2400
        %s861 = scalar_lea.vmem [#allocation2], %s860
        // Predicated region
        $region85: #{nvidia_forward.7} parent=83 // pred_check
          %p862 = pneg %p57
        $region86: #{nvidia_forward.7} parent=83 // pred_check_branch
          %864 = sbr.rel (%p862) target = $region88
        $region87: #{nvidia_forward.7} parent=83 // pred_region
          _
        $region88: #{nvidia_forward.7} parent=83 // pred_fallthru
          _
        %p865 = pneg %p31
        %p866 = pneg %p28
        %s867 = sand.u32 %s44, 1
        %s868 = sand.u32 %s44, 1
        %s869 = smul.addr %s868, 2400
        %s870 = scalar_lea.vmem [#allocation2], %s869
        %p871 = pneg %p57
        %p872 = pneg %p54
        %p873 = pneg %p78
        %p874 = pneg %p75
        %p875 = pneg %p99
        %p876 = pneg %p96
        %p877 = pneg %p125
        %p878 = pneg %p122
        %s879 = sand.u32 %s112, 1
        %s880 = sand.u32 %s112, 1
        %s881 = smul.addr %s880, 320
        %s882 = scalar_lea.vmem [#allocation3], %s881
        %s883 = smul.u32 8, %s15
        %s884 = ssub.s32 11, %s883
        %p885 = scmp.lt.s32.totalorder %s884, 8
        %s886 = scalar_select %p885, %s884, 8
        %s887 = smul.u32 4800, %s886
        %s888 = smul.u32 8, %s15
        %s889 = ssub.s32 11, %s888
        %p890 = scmp.lt.s32.totalorder %s889, 8
        %s891 = scalar_select %p890, %s889, 8
        %s892 = smul.u32 640, %s891
        %v894 = vld [vmem:[%s0] sm:$0xff]
        %v895 = vld [vmem:[%s0 + $0x8] sm:$0xff]
        %v896 = vld [vmem:[%s0 + $0x10] sm:$0xf]
        %v897 = vld [vmem:[%s0 + $0x14] sm:$0xff]
        %v898 = vld [vmem:[%s0 + $0x1c] sm:$0xff]
        %v899 = vld [vmem:[%s0 + $0x24] sm:$0xf]
        %v900 = vld [vmem:[%s0 + $0x28] sm:$0xff]
        %v901 = vld [vmem:[%s0 + $0x30] sm:$0xff]
        %v902 = vld [vmem:[%s0 + $0x38] sm:$0xf]
        %v903 = vld [vmem:[%s0 + $0x3c] sm:$0xff]
        %v904 = vld [vmem:[%s0 + $0x44] sm:$0xff]
        %v905 = vld [vmem:[%s0 + $0x4c] sm:$0xf]
        %v906 = vld [vmem:[%s0 + $0x50] sm:$0x33]
        %v907 = vld [vmem:[%s0 + $0x58] sm:$0x33]
        %v908 = vld [vmem:[%s0 + $0x60] sm:$0x3]
        %v909 = vld [vmem:[%s861] sm:$0xff]
        %v910 = vld [vmem:[%s861 + $0x8] sm:$0xff]
        %v911 = vld [vmem:[%s861 + $0x10] sm:$0xff]
        %v912 = vld [vmem:[%s861 + $0x18] sm:$0xff]
        %v913 = vld [vmem:[%s861 + $0x20] sm:$0xff]
        %v914 = vld [vmem:[%s861 + $0x28] sm:$0xff]
        %v915 = vld [vmem:[%s861 + $0x30] sm:$0xff]
        %v916 = vld [vmem:[%s861 + $0x38] sm:$0xff]
        %v917 = vld [vmem:[%s861 + $0x40] sm:$0xff]
        %v918 = vld [vmem:[%s861 + $0x48] sm:$0xff]
        %v919 = vld [vmem:[%s861 + $0x50] sm:$0xff]
        %v920 = vld [vmem:[%s861 + $0x58] sm:$0xff]
        %v921 = vld [vmem:[%s861 + $0x60] sm:$0xff]
        %v922 = vld [vmem:[%s861 + $0x68] sm:$0xff]
        %v923 = vld [vmem:[%s861 + $0x70] sm:$0xff]
        %v924 = vld [vmem:[%s861 + $0x78] sm:$0xff]
        %v925 = vld [vmem:[%s861 + $0x80] sm:$0xff]
        %v926 = vld [vmem:[%s861 + $0x88] sm:$0xff]
        %v927 = vld [vmem:[%s861 + $0x90] sm:$0xff]
        %v928 = vld [vmem:[%s861 + $0x98] sm:$0xff]
        %v929 = vld [vmem:[%s861 + $0xa0] sm:$0xff]
        %v930 = vld [vmem:[%s861 + $0xa8] sm:$0xff]
        %v931 = vld [vmem:[%s861 + $0xb0] sm:$0xff]
        %v932 = vld [vmem:[%s861 + $0xb8] sm:$0xff]
        %v933 = vld [vmem:[%s861 + $0xc0] sm:$0xff]
        %v934 = vld [vmem:[%s861 + $0xc8] sm:$0xff]
        %v935 = vld [vmem:[%s861 + $0xd0] sm:$0xff]
        %v936 = vld [vmem:[%s861 + $0xd8] sm:$0xff]
        %v937 = vld [vmem:[%s861 + $0xe0] sm:$0xff]
        %v938 = vld [vmem:[%s861 + $0xe8] sm:$0xff]
        %v939 = vld [vmem:[%s861 + $0xf0] sm:$0xff]
        %v940 = vld [vmem:[%s861 + $0xf8] sm:$0xff]
        %v941 = vld [vmem:[%s861 + $0x100] sm:$0xff]
        %v942 = vld [vmem:[%s861 + $0x108] sm:$0xff]
        %v943 = vld [vmem:[%s861 + $0x110] sm:$0xff]
        %v944 = vld [vmem:[%s861 + $0x118] sm:$0xff]
        %v945 = vld [vmem:[%s861 + $0x120] sm:$0xff]
        %v946 = vld [vmem:[%s861 + $0x128] sm:$0xff]
        %v947 = vld [vmem:[%s861 + $0x130] sm:$0xff]
        %v948 = vld [vmem:[%s861 + $0x138] sm:$0xff]
        %v949 = vld [vmem:[%s861 + $0x140] sm:$0xff]
        %v950 = vld [vmem:[%s861 + $0x148] sm:$0xff]
        %v951 = vld [vmem:[%s861 + $0x150] sm:$0xff]
        %v952 = vld [vmem:[%s861 + $0x158] sm:$0xff]
        %v953 = vld [vmem:[%s861 + $0x160] sm:$0xff]
        %v954 = vld [vmem:[%s861 + $0x168] sm:$0xff]
        %v955 = vld [vmem:[%s861 + $0x170] sm:$0xff]
        %v956 = vld [vmem:[%s861 + $0x178] sm:$0xff]
        %v957 = vld [vmem:[%s861 + $0x180] sm:$0xff]
        %v958 = vld [vmem:[%s861 + $0x188] sm:$0xff]
        %v959 = vld [vmem:[%s861 + $0x190] sm:$0xff]
        %v960 = vld [vmem:[%s861 + $0x198] sm:$0xff]
        %v961 = vld [vmem:[%s861 + $0x1a0] sm:$0xff]
        %v962 = vld [vmem:[%s861 + $0x1a8] sm:$0xff]
        %v963 = vld [vmem:[%s861 + $0x1b0] sm:$0xff]
        %v964 = vld [vmem:[%s861 + $0x1b8] sm:$0xff]
        %v965 = vld [vmem:[%s861 + $0x1c0] sm:$0xff]
        %v966 = vld [vmem:[%s861 + $0x1c8] sm:$0xff]
        %v967 = vld [vmem:[%s861 + $0x1d0] sm:$0xff]
        %v968 = vld [vmem:[%s861 + $0x1d8] sm:$0xff]
        %v969 = vld [vmem:[%s861 + $0x1e0] sm:$0xff]
        %v970 = vld [vmem:[%s861 + $0x1e8] sm:$0xff]
        %v971 = vld [vmem:[%s861 + $0x1f0] sm:$0xff]
        %v972 = vld [vmem:[%s861 + $0x1f8] sm:$0xff]
        %v973 = vld [vmem:[%s861 + $0x200] sm:$0xff]
        %v974 = vld [vmem:[%s861 + $0x208] sm:$0xff]
        %v975 = vld [vmem:[%s861 + $0x210] sm:$0xff]
        %v976 = vld [vmem:[%s861 + $0x218] sm:$0xff]
        %v977 = vld [vmem:[%s861 + $0x220] sm:$0xff]
        %v978 = vld [vmem:[%s861 + $0x228] sm:$0xff]
        %v979 = vld [vmem:[%s861 + $0x230] sm:$0xff]
        %v980 = vld [vmem:[%s861 + $0x238] sm:$0xff]
        %v981 = vld [vmem:[%s861 + $0x240] sm:$0xff]
        %v982 = vld [vmem:[%s861 + $0x248] sm:$0xff]
        %v983 = vld [vmem:[%s861 + $0x250] sm:$0xff]
        %v984 = vld [vmem:[%s861 + $0x258] sm:$0xff]
        %v985 = vld [vmem:[%s861 + $0x260] sm:$0xff]
        %v986 = vld [vmem:[%s861 + $0x268] sm:$0xff]
        %v987 = vld [vmem:[%s861 + $0x270] sm:$0xff]
        %v988 = vld [vmem:[%s861 + $0x278] sm:$0xff]
        %v989 = vld [vmem:[%s861 + $0x280] sm:$0xff]
        %v990 = vld [vmem:[%s861 + $0x288] sm:$0xff]
        %v991 = vld [vmem:[%s861 + $0x290] sm:$0xff]
        %v992 = vld [vmem:[%s861 + $0x298] sm:$0xff]
        %v993 = vld [vmem:[%s861 + $0x2a0] sm:$0xff]
        %v994 = vld [vmem:[%s861 + $0x2a8] sm:$0xff]
        %v995 = vld [vmem:[%s861 + $0x2b0] sm:$0xff]
        %v996 = vld [vmem:[%s861 + $0x2b8] sm:$0xff]
        %v997 = vld [vmem:[%s861 + $0x2c0] sm:$0xff]
        %v998 = vld [vmem:[%s861 + $0x2c8] sm:$0xff]
        %v999 = vld [vmem:[%s861 + $0x2d0] sm:$0xff]
        %v1000 = vld [vmem:[%s861 + $0x2d8] sm:$0xff]
        %v1001 = vld [vmem:[%s861 + $0x2e0] sm:$0xff]
        %v1002 = vld [vmem:[%s861 + $0x2e8] sm:$0xff]
        %v1003 = vld [vmem:[%s861 + $0x2f0] sm:$0xff]
        %v1004 = vld [vmem:[%s861 + $0x2f8] sm:$0xff]
        %v1005 = vld [vmem:[%s861 + $0x300] sm:$0xff]
        %v1006 = vld [vmem:[%s861 + $0x308] sm:$0xff]
        %v1007 = vld [vmem:[%s861 + $0x310] sm:$0xff]
        %v1008 = vld [vmem:[%s861 + $0x318] sm:$0xff]
        %v1009 = vld [vmem:[%s861 + $0x320] sm:$0xff]
        %v1010 = vld [vmem:[%s861 + $0x328] sm:$0xff]
        %v1011 = vld [vmem:[%s861 + $0x330] sm:$0xff]
        %v1012 = vld [vmem:[%s861 + $0x338] sm:$0xff]
        %v1013 = vld [vmem:[%s861 + $0x340] sm:$0xff]
        %v1014 = vld [vmem:[%s861 + $0x348] sm:$0xff]
        %v1015 = vld [vmem:[%s861 + $0x350] sm:$0xff]
        %v1016 = vld [vmem:[%s861 + $0x358] sm:$0xff]
        %v1017 = vld [vmem:[%s861 + $0x360] sm:$0xff]
        %v1018 = vld [vmem:[%s861 + $0x368] sm:$0xff]
        %v1019 = vld [vmem:[%s861 + $0x370] sm:$0xff]
        %v1020 = vld [vmem:[%s861 + $0x378] sm:$0xff]
        %v1021 = vld [vmem:[%s861 + $0x380] sm:$0xff]
        %v1022 = vld [vmem:[%s861 + $0x388] sm:$0xff]
        %v1023 = vld [vmem:[%s861 + $0x390] sm:$0xff]
        %v1024 = vld [vmem:[%s861 + $0x398] sm:$0xff]
        %v1025 = vld [vmem:[%s861 + $0x3a0] sm:$0xff]
        %v1026 = vld [vmem:[%s861 + $0x3a8] sm:$0xff]
        %v1027 = vld [vmem:[%s861 + $0x3b0] sm:$0xff]
        %v1028 = vld [vmem:[%s861 + $0x3b8] sm:$0xff]
        %v1029 = vld [vmem:[%s861 + $0x3c0] sm:$0xff]
        %v1030 = vld [vmem:[%s861 + $0x3c8] sm:$0xff]
        %v1031 = vld [vmem:[%s861 + $0x3d0] sm:$0xff]
        %v1032 = vld [vmem:[%s861 + $0x3d8] sm:$0xff]
        %v1033 = vld [vmem:[%s861 + $0x3e0] sm:$0xff]
        %v1034 = vld [vmem:[%s861 + $0x3e8] sm:$0xff]
        %v1035 = vld [vmem:[%s861 + $0x3f0] sm:$0xff]
        %v1036 = vld [vmem:[%s861 + $0x3f8] sm:$0xff]
        %v1037 = vld [vmem:[%s861 + $0x400] sm:$0xff]
        %v1038 = vld [vmem:[%s861 + $0x408] sm:$0xff]
        %v1039 = vld [vmem:[%s861 + $0x410] sm:$0xff]
        %v1040 = vld [vmem:[%s861 + $0x418] sm:$0xff]
        %v1041 = vld [vmem:[%s861 + $0x420] sm:$0xff]
        %v1042 = vld [vmem:[%s861 + $0x428] sm:$0xff]
        %v1043 = vld [vmem:[%s861 + $0x430] sm:$0xff]
        %v1044 = vld [vmem:[%s861 + $0x438] sm:$0xff]
        %v1045 = vld [vmem:[%s861 + $0x440] sm:$0xff]
        %v1046 = vld [vmem:[%s861 + $0x448] sm:$0xff]
        %v1047 = vld [vmem:[%s861 + $0x450] sm:$0xff]
        %v1048 = vld [vmem:[%s861 + $0x458] sm:$0xff]
        %v1049 = vld [vmem:[%s861 + $0x460] sm:$0xff]
        %v1050 = vld [vmem:[%s861 + $0x468] sm:$0xff]
        %v1051 = vld [vmem:[%s861 + $0x470] sm:$0xff]
        %v1052 = vld [vmem:[%s861 + $0x478] sm:$0xff]
        %v1053 = vld [vmem:[%s861 + $0x480] sm:$0xff]
        %v1054 = vld [vmem:[%s861 + $0x488] sm:$0xff]
        %v1055 = vld [vmem:[%s861 + $0x490] sm:$0xff]
        %v1056 = vld [vmem:[%s861 + $0x498] sm:$0xff]
        %v1057 = vld [vmem:[%s861 + $0x4a0] sm:$0xff]
        %v1058 = vld [vmem:[%s861 + $0x4a8] sm:$0xff]
        %v1059 = vld [vmem:[%s861 + $0x4b0] sm:$0xff]
        %v1060 = vld [vmem:[%s861 + $0x4b8] sm:$0xff]
        %v1061 = vld [vmem:[%s861 + $0x4c0] sm:$0xff]
        %v1062 = vld [vmem:[%s861 + $0x4c8] sm:$0xff]
        %v1063 = vld [vmem:[%s861 + $0x4d0] sm:$0xff]
        %v1064 = vld [vmem:[%s861 + $0x4d8] sm:$0xff]
        %v1065 = vld [vmem:[%s861 + $0x4e0] sm:$0xff]
        %v1066 = vld [vmem:[%s861 + $0x4e8] sm:$0xff]
        %v1067 = vld [vmem:[%s861 + $0x4f0] sm:$0xff]
        %v1068 = vld [vmem:[%s861 + $0x4f8] sm:$0xff]
        %v1069 = vld [vmem:[%s861 + $0x500] sm:$0xff]
        %v1070 = vld [vmem:[%s861 + $0x508] sm:$0xff]
        %v1071 = vld [vmem:[%s861 + $0x510] sm:$0xff]
        %v1072 = vld [vmem:[%s861 + $0x518] sm:$0xff]
        %v1073 = vld [vmem:[%s861 + $0x520] sm:$0xff]
        %v1074 = vld [vmem:[%s861 + $0x528] sm:$0xff]
        %v1075 = vld [vmem:[%s861 + $0x530] sm:$0xff]
        %v1076 = vld [vmem:[%s861 + $0x538] sm:$0xff]
        %v1077 = vld [vmem:[%s861 + $0x540] sm:$0xff]
        %v1078 = vld [vmem:[%s861 + $0x548] sm:$0xff]
        %v1079 = vld [vmem:[%s861 + $0x550] sm:$0xff]
        %v1080 = vld [vmem:[%s861 + $0x558] sm:$0xff]
        %v1081 = vld [vmem:[%s861 + $0x560] sm:$0xff]
        %v1082 = vld [vmem:[%s861 + $0x568] sm:$0xff]
        %v1083 = vld [vmem:[%s861 + $0x570] sm:$0xff]
        %v1084 = vld [vmem:[%s861 + $0x578] sm:$0xff]
        %v1085 = vld [vmem:[%s861 + $0x580] sm:$0xff]
        %v1086 = vld [vmem:[%s861 + $0x588] sm:$0xff]
        %v1087 = vld [vmem:[%s861 + $0x590] sm:$0xff]
        %v1088 = vld [vmem:[%s861 + $0x598] sm:$0xff]
        %v1089 = vld [vmem:[%s861 + $0x5a0] sm:$0xff]
        %v1090 = vld [vmem:[%s861 + $0x5a8] sm:$0xff]
        %v1091 = vld [vmem:[%s861 + $0x5b0] sm:$0xff]
        %v1092 = vld [vmem:[%s861 + $0x5b8] sm:$0xff]
        %v1093 = vld [vmem:[%s861 + $0x5c0] sm:$0xff]
        %v1094 = vld [vmem:[%s861 + $0x5c8] sm:$0xff]
        %v1095 = vld [vmem:[%s861 + $0x5d0] sm:$0xff]
        %v1096 = vld [vmem:[%s861 + $0x5d8] sm:$0xff]
        %v1097 = vld [vmem:[%s861 + $0x5e0] sm:$0xff]
        %v1098 = vld [vmem:[%s861 + $0x5e8] sm:$0xff]
        %v1099 = vld [vmem:[%s861 + $0x5f0] sm:$0xff]
        %v1100 = vld [vmem:[%s861 + $0x5f8] sm:$0xff]
        %v1101 = vld [vmem:[%s861 + $0x600] sm:$0xff]
        %v1102 = vld [vmem:[%s861 + $0x608] sm:$0xff]
        %v1103 = vld [vmem:[%s861 + $0x610] sm:$0xff]
        %v1104 = vld [vmem:[%s861 + $0x618] sm:$0xff]
        %v1105 = vld [vmem:[%s861 + $0x620] sm:$0xff]
        %v1106 = vld [vmem:[%s861 + $0x628] sm:$0xff]
        %v1107 = vld [vmem:[%s861 + $0x630] sm:$0xff]
        %v1108 = vld [vmem:[%s861 + $0x638] sm:$0xff]
        %v1109 = vld [vmem:[%s861 + $0x640] sm:$0xff]
        %v1110 = vld [vmem:[%s861 + $0x648] sm:$0xff]
        %v1111 = vld [vmem:[%s861 + $0x650] sm:$0xff]
        %v1112 = vld [vmem:[%s861 + $0x658] sm:$0xff]
        %v1113 = vld [vmem:[%s861 + $0x660] sm:$0xff]
        %v1114 = vld [vmem:[%s861 + $0x668] sm:$0xff]
        %v1115 = vld [vmem:[%s861 + $0x670] sm:$0xff]
        %v1116 = vld [vmem:[%s861 + $0x678] sm:$0xff]
        %v1117 = vld [vmem:[%s861 + $0x680] sm:$0xff]
        %v1118 = vld [vmem:[%s861 + $0x688] sm:$0xff]
        %v1119 = vld [vmem:[%s861 + $0x690] sm:$0xff]
        %v1120 = vld [vmem:[%s861 + $0x698] sm:$0xff]
        %v1121 = vld [vmem:[%s861 + $0x6a0] sm:$0xff]
        %v1122 = vld [vmem:[%s861 + $0x6a8] sm:$0xff]
        %v1123 = vld [vmem:[%s861 + $0x6b0] sm:$0xff]
        %v1124 = vld [vmem:[%s861 + $0x6b8] sm:$0xff]
        %v1125 = vld [vmem:[%s861 + $0x6c0] sm:$0xff]
        %v1126 = vld [vmem:[%s861 + $0x6c8] sm:$0xff]
        %v1127 = vld [vmem:[%s861 + $0x6d0] sm:$0xff]
        %v1128 = vld [vmem:[%s861 + $0x6d8] sm:$0xff]
        %v1129 = vld [vmem:[%s861 + $0x6e0] sm:$0xff]
        %v1130 = vld [vmem:[%s861 + $0x6e8] sm:$0xff]
        %v1131 = vld [vmem:[%s861 + $0x6f0] sm:$0xff]
        %v1132 = vld [vmem:[%s861 + $0x6f8] sm:$0xff]
        %v1133 = vld [vmem:[%s861 + $0x700] sm:$0xff]
        %v1134 = vld [vmem:[%s861 + $0x708] sm:$0xff]
        %v1135 = vld [vmem:[%s861 + $0x710] sm:$0xff]
        %v1136 = vld [vmem:[%s861 + $0x718] sm:$0xff]
        %v1137 = vld [vmem:[%s861 + $0x720] sm:$0xff]
        %v1138 = vld [vmem:[%s861 + $0x728] sm:$0xff]
        %v1139 = vld [vmem:[%s861 + $0x730] sm:$0xff]
        %v1140 = vld [vmem:[%s861 + $0x738] sm:$0xff]
        %v1141 = vld [vmem:[%s861 + $0x740] sm:$0xff]
        %v1142 = vld [vmem:[%s861 + $0x748] sm:$0xff]
        %v1143 = vld [vmem:[%s861 + $0x750] sm:$0xff]
        %v1144 = vld [vmem:[%s861 + $0x758] sm:$0xff]
        %v1145 = vld [vmem:[%s861 + $0x760] sm:$0xff]
        %v1146 = vld [vmem:[%s861 + $0x768] sm:$0xff]
        %v1147 = vld [vmem:[%s861 + $0x770] sm:$0xff]
        %v1148 = vld [vmem:[%s861 + $0x778] sm:$0xff]
        %v1149 = vld [vmem:[%s861 + $0x780] sm:$0xff]
        %v1150 = vld [vmem:[%s861 + $0x788] sm:$0xff]
        %v1151 = vld [vmem:[%s861 + $0x790] sm:$0xff]
        %v1152 = vld [vmem:[%s861 + $0x798] sm:$0xff]
        %v1153 = vld [vmem:[%s861 + $0x7a0] sm:$0xff]
        %v1154 = vld [vmem:[%s861 + $0x7a8] sm:$0xff]
        %v1155 = vld [vmem:[%s861 + $0x7b0] sm:$0xff]
        %v1156 = vld [vmem:[%s861 + $0x7b8] sm:$0xff]
        %v1157 = vld [vmem:[%s861 + $0x7c0] sm:$0xff]
        %v1158 = vld [vmem:[%s861 + $0x7c8] sm:$0xff]
        %v1159 = vld [vmem:[%s861 + $0x7d0] sm:$0xff]
        %v1160 = vld [vmem:[%s861 + $0x7d8] sm:$0xff]
        %v1161 = vld [vmem:[%s861 + $0x7e0] sm:$0xff]
        %v1162 = vld [vmem:[%s861 + $0x7e8] sm:$0xff]
        %v1163 = vld [vmem:[%s861 + $0x7f0] sm:$0xff]
        %v1164 = vld [vmem:[%s861 + $0x7f8] sm:$0xff]
        %v1165 = vld [vmem:[%s861 + $0x800] sm:$0xff]
        %v1166 = vld [vmem:[%s861 + $0x808] sm:$0xff]
        %v1167 = vld [vmem:[%s861 + $0x810] sm:$0xff]
        %v1168 = vld [vmem:[%s861 + $0x818] sm:$0xff]
        %v1169 = vld [vmem:[%s861 + $0x820] sm:$0xff]
        %v1170 = vld [vmem:[%s861 + $0x828] sm:$0xff]
        %v1171 = vld [vmem:[%s861 + $0x830] sm:$0xff]
        %v1172 = vld [vmem:[%s861 + $0x838] sm:$0xff]
        %v1173 = vld [vmem:[%s861 + $0x840] sm:$0xff]
        %v1174 = vld [vmem:[%s861 + $0x848] sm:$0xff]
        %v1175 = vld [vmem:[%s861 + $0x850] sm:$0xff]
        %v1176 = vld [vmem:[%s861 + $0x858] sm:$0xff]
        %v1177 = vld [vmem:[%s861 + $0x860] sm:$0xff]
        %v1178 = vld [vmem:[%s861 + $0x868] sm:$0xff]
        %v1179 = vld [vmem:[%s861 + $0x870] sm:$0xff]
        %v1180 = vld [vmem:[%s861 + $0x878] sm:$0xff]
        %v1181 = vld [vmem:[%s861 + $0x880] sm:$0xff]
        %v1182 = vld [vmem:[%s861 + $0x888] sm:$0xff]
        %v1183 = vld [vmem:[%s861 + $0x890] sm:$0xff]
        %v1184 = vld [vmem:[%s861 + $0x898] sm:$0xff]
        %v1185 = vld [vmem:[%s861 + $0x8a0] sm:$0xff]
        %v1186 = vld [vmem:[%s861 + $0x8a8] sm:$0xff]
        %v1187 = vld [vmem:[%s861 + $0x8b0] sm:$0xff]
        %v1188 = vld [vmem:[%s861 + $0x8b8] sm:$0xff]
        %v1189 = vld [vmem:[%s861 + $0x8c0] sm:$0xff]
        %v1190 = vld [vmem:[%s861 + $0x8c8] sm:$0xff]
        %v1191 = vld [vmem:[%s861 + $0x8d0] sm:$0xff]
        %v1192 = vld [vmem:[%s861 + $0x8d8] sm:$0xff]
        %v1193 = vld [vmem:[%s861 + $0x8e0] sm:$0xff]
        %v1194 = vld [vmem:[%s861 + $0x8e8] sm:$0xff]
        %v1195 = vld [vmem:[%s861 + $0x8f0] sm:$0xff]
        %v1196 = vld [vmem:[%s861 + $0x8f8] sm:$0xff]
        %v1197 = vld [vmem:[%s861 + $0x900] sm:$0xff]
        %v1198 = vld [vmem:[%s861 + $0x908] sm:$0xff]
        %v1199 = vld [vmem:[%s861 + $0x910] sm:$0xff]
        %v1200 = vld [vmem:[%s861 + $0x918] sm:$0xff]
        %v1201 = vld [vmem:[%s861 + $0x920] sm:$0xff]
        %v1202 = vld [vmem:[%s861 + $0x928] sm:$0xff]
        %v1203 = vld [vmem:[%s861 + $0x930] sm:$0xff]
        %v1204 = vld [vmem:[%s861 + $0x938] sm:$0xff]
        %v1205 = vld [vmem:[%s861 + $0x940] sm:$0xff]
        %v1206 = vld [vmem:[%s861 + $0x948] sm:$0xff]
        %v1207 = vld [vmem:[%s861 + $0x950] sm:$0xff]
        %v1208 = vld [vmem:[%s861 + $0x958] sm:$0xff]
        %v1224 = vunpack.c.l.b16 %v894
        %v1225 = vunpack.c.h.b16 %v894
        %v1226 = vunpack.c.l.b16 %v895
        %v1227 = vunpack.c.h.b16 %v895
        %v1228 = vunpack.c.l.b16 %v896
        %v1229 = vunpack.c.l.b16 %v897
        %v1230 = vunpack.c.h.b16 %v897
        %v1231 = vunpack.c.l.b16 %v898
        %v1232 = vunpack.c.h.b16 %v898
        %v1233 = vunpack.c.l.b16 %v899
        %v1234 = vunpack.c.l.b16 %v900
        %v1235 = vunpack.c.h.b16 %v900
        %v1236 = vunpack.c.l.b16 %v901
        %v1237 = vunpack.c.h.b16 %v901
        %v1238 = vunpack.c.l.b16 %v902
        %v1239 = vunpack.c.l.b16 %v903
        %v1240 = vunpack.c.h.b16 %v903
        %v1241 = vunpack.c.l.b16 %v904
        %v1242 = vunpack.c.h.b16 %v904
        %v1243 = vunpack.c.l.b16 %v905
        %v1244 = vunpack.c.l.b16 %v906
        %v1245 = vunpack.c.h.b16 %v906
        %v1246 = vunpack.c.l.b16 %v907
        %v1247 = vunpack.c.h.b16 %v907
        %v1248 = vunpack.c.l.b16 %v908
        %v1249 = vpack.c.b16 %v1229, %v1224
        %v1250 = vpack.c.b16 %v1230, %v1225
        %v1251 = vpack.c.b16 %v1231, %v1226
        %v1252 = vpack.c.b16 %v1232, %v1227
        %v1253 = vpack.c.b16 %v1233, %v1228
        %v1254 = vpack.c.b16 %v1239, %v1234
        %v1255 = vpack.c.b16 %v1240, %v1235
        %v1256 = vpack.c.b16 %v1241, %v1236
        %v1257 = vpack.c.b16 %v1242, %v1237
        %v1258 = vpack.c.b16 %v1243, %v1238
        %v1259 = vpack.c.b16 %v1244, %v1244
        %v1260 = vpack.c.b16 %v1245, %v1245
        %v1261 = vpack.c.b16 %v1246, %v1246
        %v1262 = vpack.c.b16 %v1247, %v1247
        %v1263 = vpack.c.b16 %v1248, %v1248
        %v1576 = vunpack.c.l.b16 %v909
        %v1577 = vunpack.c.h.b16 %v909
        %v1578 = vunpack.c.l.b16 %v910
        %v1579 = vunpack.c.h.b16 %v910
        %v1580 = vunpack.c.l.b16 %v911
        %v1581 = vunpack.c.h.b16 %v911
        %v1582 = vunpack.c.l.b16 %v912
        %v1583 = vunpack.c.h.b16 %v912
        %v1584 = vunpack.c.l.b16 %v913
        %v1585 = vunpack.c.h.b16 %v913
        %v1586 = vunpack.c.l.b16 %v914
        %v1587 = vunpack.c.h.b16 %v914
        %v1588 = vunpack.c.l.b16 %v915
        %v1589 = vunpack.c.h.b16 %v915
        %v1590 = vunpack.c.l.b16 %v916
        %v1591 = vunpack.c.h.b16 %v916
        %v1592 = vunpack.c.l.b16 %v917
        %v1593 = vunpack.c.h.b16 %v917
        %v1594 = vunpack.c.l.b16 %v918
        %v1595 = vunpack.c.h.b16 %v918
        %v1596 = vunpack.c.l.b16 %v919
        %v1597 = vunpack.c.h.b16 %v919
        %v1598 = vunpack.c.l.b16 %v920
        %v1599 = vunpack.c.h.b16 %v920
        %v1600 = vunpack.c.l.b16 %v921
        %v1601 = vunpack.c.h.b16 %v921
        %v1602 = vunpack.c.l.b16 %v922
        %v1603 = vunpack.c.h.b16 %v922
        %v1604 = vunpack.c.l.b16 %v923
        %v1605 = vunpack.c.h.b16 %v923
        %v1606 = vunpack.c.l.b16 %v924
        %v1607 = vunpack.c.h.b16 %v924
        %v1608 = vunpack.c.l.b16 %v925
        %v1609 = vunpack.c.h.b16 %v925
        %v1610 = vunpack.c.l.b16 %v926
        %v1611 = vunpack.c.h.b16 %v926
        %v1612 = vunpack.c.l.b16 %v927
        %v1613 = vunpack.c.h.b16 %v927
        %v1614 = vunpack.c.l.b16 %v928
        %v1615 = vunpack.c.h.b16 %v928
        %v1616 = vunpack.c.l.b16 %v929
        %v1617 = vunpack.c.h.b16 %v929
        %v1618 = vunpack.c.l.b16 %v930
        %v1619 = vunpack.c.h.b16 %v930
        %v1620 = vunpack.c.l.b16 %v931
        %v1621 = vunpack.c.h.b16 %v931
        %v1622 = vunpack.c.l.b16 %v932
        %v1623 = vunpack.c.h.b16 %v932
        %v1624 = vunpack.c.l.b16 %v933
        %v1625 = vunpack.c.h.b16 %v933
        %v1626 = vunpack.c.l.b16 %v934
        %v1627 = vunpack.c.h.b16 %v934
        %v1628 = vunpack.c.l.b16 %v935
        %v1629 = vunpack.c.h.b16 %v935
        %v1630 = vunpack.c.l.b16 %v936
        %v1631 = vunpack.c.h.b16 %v936
        %v1632 = vunpack.c.l.b16 %v937
        %v1633 = vunpack.c.h.b16 %v937
        %v1634 = vunpack.c.l.b16 %v938
        %v1635 = vunpack.c.h.b16 %v938
        %v1636 = vunpack.c.l.b16 %v939
        %v1637 = vunpack.c.h.b16 %v939
        %v1638 = vunpack.c.l.b16 %v940
        %v1639 = vunpack.c.h.b16 %v940
        %v1640 = vunpack.c.l.b16 %v941
        %v1641 = vunpack.c.h.b16 %v941
        %v1642 = vunpack.c.l.b16 %v942
        %v1643 = vunpack.c.h.b16 %v942
        %v1644 = vunpack.c.l.b16 %v943
        %v1645 = vunpack.c.h.b16 %v943
        %v1646 = vunpack.c.l.b16 %v944
        %v1647 = vunpack.c.h.b16 %v944
        %v1648 = vunpack.c.l.b16 %v945
        %v1649 = vunpack.c.h.b16 %v945
        %v1650 = vunpack.c.l.b16 %v946
        %v1651 = vunpack.c.h.b16 %v946
        %v1652 = vunpack.c.l.b16 %v947
        %v1653 = vunpack.c.h.b16 %v947
        %v1654 = vunpack.c.l.b16 %v948
        %v1655 = vunpack.c.h.b16 %v948
        %v1656 = vunpack.c.l.b16 %v949
        %v1657 = vunpack.c.h.b16 %v949
        %v1658 = vunpack.c.l.b16 %v950
        %v1659 = vunpack.c.h.b16 %v950
        %v1660 = vunpack.c.l.b16 %v951
        %v1661 = vunpack.c.h.b16 %v951
        %v1662 = vunpack.c.l.b16 %v952
        %v1663 = vunpack.c.h.b16 %v952
        %v1664 = vunpack.c.l.b16 %v953
        %v1665 = vunpack.c.h.b16 %v953
        %v1666 = vunpack.c.l.b16 %v954
        %v1667 = vunpack.c.h.b16 %v954
        %v1668 = vunpack.c.l.b16 %v955
        %v1669 = vunpack.c.h.b16 %v955
        %v1670 = vunpack.c.l.b16 %v956
        %v1671 = vunpack.c.h.b16 %v956
        %v1672 = vunpack.c.l.b16 %v957
        %v1673 = vunpack.c.h.b16 %v957
        %v1674 = vunpack.c.l.b16 %v958
        %v1675 = vunpack.c.h.b16 %v958
        %v1676 = vunpack.c.l.b16 %v959
        %v1677 = vunpack.c.h.b16 %v959
        %v1678 = vunpack.c.l.b16 %v960
        %v1679 = vunpack.c.h.b16 %v960
        %v1680 = vunpack.c.l.b16 %v961
        %v1681 = vunpack.c.h.b16 %v961
        %v1682 = vunpack.c.l.b16 %v962
        %v1683 = vunpack.c.h.b16 %v962
        %v1684 = vunpack.c.l.b16 %v963
        %v1685 = vunpack.c.h.b16 %v963
        %v1686 = vunpack.c.l.b16 %v964
        %v1687 = vunpack.c.h.b16 %v964
        %v1688 = vunpack.c.l.b16 %v965
        %v1689 = vunpack.c.h.b16 %v965
        %v1690 = vunpack.c.l.b16 %v966
        %v1691 = vunpack.c.h.b16 %v966
        %v1692 = vunpack.c.l.b16 %v967
        %v1693 = vunpack.c.h.b16 %v967
        %v1694 = vunpack.c.l.b16 %v968
        %v1695 = vunpack.c.h.b16 %v968
        %v1696 = vunpack.c.l.b16 %v969
        %v1697 = vunpack.c.h.b16 %v969
        %v1698 = vunpack.c.l.b16 %v970
        %v1699 = vunpack.c.h.b16 %v970
        %v1700 = vunpack.c.l.b16 %v971
        %v1701 = vunpack.c.h.b16 %v971
        %v1702 = vunpack.c.l.b16 %v972
        %v1703 = vunpack.c.h.b16 %v972
        %v1704 = vunpack.c.l.b16 %v973
        %v1705 = vunpack.c.h.b16 %v973
        %v1706 = vunpack.c.l.b16 %v974
        %v1707 = vunpack.c.h.b16 %v974
        %v1708 = vunpack.c.l.b16 %v975
        %v1709 = vunpack.c.h.b16 %v975
        %v1710 = vunpack.c.l.b16 %v976
        %v1711 = vunpack.c.h.b16 %v976
        %v1712 = vunpack.c.l.b16 %v977
        %v1713 = vunpack.c.h.b16 %v977
        %v1714 = vunpack.c.l.b16 %v978
        %v1715 = vunpack.c.h.b16 %v978
        %v1716 = vunpack.c.l.b16 %v979
        %v1717 = vunpack.c.h.b16 %v979
        %v1718 = vunpack.c.l.b16 %v980
        %v1719 = vunpack.c.h.b16 %v980
        %v1720 = vunpack.c.l.b16 %v981
        %v1721 = vunpack.c.h.b16 %v981
        %v1722 = vunpack.c.l.b16 %v982
        %v1723 = vunpack.c.h.b16 %v982
        %v1724 = vunpack.c.l.b16 %v983
        %v1725 = vunpack.c.h.b16 %v983
        %v1726 = vunpack.c.l.b16 %v984
        %v1727 = vunpack.c.h.b16 %v984
        %v1728 = vunpack.c.l.b16 %v985
        %v1729 = vunpack.c.h.b16 %v985
        %v1730 = vunpack.c.l.b16 %v986
        %v1731 = vunpack.c.h.b16 %v986
        %v1732 = vunpack.c.l.b16 %v987
        %v1733 = vunpack.c.h.b16 %v987
        %v1734 = vunpack.c.l.b16 %v988
        %v1735 = vunpack.c.h.b16 %v988
        %v1736 = vunpack.c.l.b16 %v989
        %v1737 = vunpack.c.h.b16 %v989
        %v1738 = vunpack.c.l.b16 %v990
        %v1739 = vunpack.c.h.b16 %v990
        %v1740 = vunpack.c.l.b16 %v991
        %v1741 = vunpack.c.h.b16 %v991
        %v1742 = vunpack.c.l.b16 %v992
        %v1743 = vunpack.c.h.b16 %v992
        %v1744 = vunpack.c.l.b16 %v993
        %v1745 = vunpack.c.h.b16 %v993
        %v1746 = vunpack.c.l.b16 %v994
        %v1747 = vunpack.c.h.b16 %v994
        %v1748 = vunpack.c.l.b16 %v995
        %v1749 = vunpack.c.h.b16 %v995
        %v1750 = vunpack.c.l.b16 %v996
        %v1751 = vunpack.c.h.b16 %v996
        %v1752 = vunpack.c.l.b16 %v997
        %v1753 = vunpack.c.h.b16 %v997
        %v1754 = vunpack.c.l.b16 %v998
        %v1755 = vunpack.c.h.b16 %v998
        %v1756 = vunpack.c.l.b16 %v999
        %v1757 = vunpack.c.h.b16 %v999
        %v1758 = vunpack.c.l.b16 %v1000
        %v1759 = vunpack.c.h.b16 %v1000
        %v1760 = vunpack.c.l.b16 %v1001
        %v1761 = vunpack.c.h.b16 %v1001
        %v1762 = vunpack.c.l.b16 %v1002
        %v1763 = vunpack.c.h.b16 %v1002
        %v1764 = vunpack.c.l.b16 %v1003
        %v1765 = vunpack.c.h.b16 %v1003
        %v1766 = vunpack.c.l.b16 %v1004
        %v1767 = vunpack.c.h.b16 %v1004
        %v1768 = vunpack.c.l.b16 %v1005
        %v1769 = vunpack.c.h.b16 %v1005
        %v1770 = vunpack.c.l.b16 %v1006
        %v1771 = vunpack.c.h.b16 %v1006
        %v1772 = vunpack.c.l.b16 %v1007
        %v1773 = vunpack.c.h.b16 %v1007
        %v1774 = vunpack.c.l.b16 %v1008
        %v1775 = vunpack.c.h.b16 %v1008
        %v1776 = vunpack.c.l.b16 %v1009
        %v1777 = vunpack.c.h.b16 %v1009
        %v1778 = vunpack.c.l.b16 %v1010
        %v1779 = vunpack.c.h.b16 %v1010
        %v1780 = vunpack.c.l.b16 %v1011
        %v1781 = vunpack.c.h.b16 %v1011
        %v1782 = vunpack.c.l.b16 %v1012
        %v1783 = vunpack.c.h.b16 %v1012
        %v1784 = vunpack.c.l.b16 %v1013
        %v1785 = vunpack.c.h.b16 %v1013
        %v1786 = vunpack.c.l.b16 %v1014
        %v1787 = vunpack.c.h.b16 %v1014
        %v1788 = vunpack.c.l.b16 %v1015
        %v1789 = vunpack.c.h.b16 %v1015
        %v1790 = vunpack.c.l.b16 %v1016
        %v1791 = vunpack.c.h.b16 %v1016
        %v1792 = vunpack.c.l.b16 %v1017
        %v1793 = vunpack.c.h.b16 %v1017
        %v1794 = vunpack.c.l.b16 %v1018
        %v1795 = vunpack.c.h.b16 %v1018
        %v1796 = vunpack.c.l.b16 %v1019
        %v1797 = vunpack.c.h.b16 %v1019
        %v1798 = vunpack.c.l.b16 %v1020
        %v1799 = vunpack.c.h.b16 %v1020
        %v1800 = vunpack.c.l.b16 %v1021
        %v1801 = vunpack.c.h.b16 %v1021
        %v1802 = vunpack.c.l.b16 %v1022
        %v1803 = vunpack.c.h.b16 %v1022
        %v1804 = vunpack.c.l.b16 %v1023
        %v1805 = vunpack.c.h.b16 %v1023
        %v1806 = vunpack.c.l.b16 %v1024
        %v1807 = vunpack.c.h.b16 %v1024
        %v1808 = vunpack.c.l.b16 %v1025
        %v1809 = vunpack.c.h.b16 %v1025
        %v1810 = vunpack.c.l.b16 %v1026
        %v1811 = vunpack.c.h.b16 %v1026
        %v1812 = vunpack.c.l.b16 %v1027
        %v1813 = vunpack.c.h.b16 %v1027
        %v1814 = vunpack.c.l.b16 %v1028
        %v1815 = vunpack.c.h.b16 %v1028
        %v1816 = vunpack.c.l.b16 %v1029
        %v1817 = vunpack.c.h.b16 %v1029
        %v1818 = vunpack.c.l.b16 %v1030
        %v1819 = vunpack.c.h.b16 %v1030
        %v1820 = vunpack.c.l.b16 %v1031
        %v1821 = vunpack.c.h.b16 %v1031
        %v1822 = vunpack.c.l.b16 %v1032
        %v1823 = vunpack.c.h.b16 %v1032
        %v1824 = vunpack.c.l.b16 %v1033
        %v1825 = vunpack.c.h.b16 %v1033
        %v1826 = vunpack.c.l.b16 %v1034
        %v1827 = vunpack.c.h.b16 %v1034
        %v1828 = vunpack.c.l.b16 %v1035
        %v1829 = vunpack.c.h.b16 %v1035
        %v1830 = vunpack.c.l.b16 %v1036
        %v1831 = vunpack.c.h.b16 %v1036
        %v1832 = vunpack.c.l.b16 %v1037
        %v1833 = vunpack.c.h.b16 %v1037
        %v1834 = vunpack.c.l.b16 %v1038
        %v1835 = vunpack.c.h.b16 %v1038
        %v1836 = vunpack.c.l.b16 %v1039
        %v1837 = vunpack.c.h.b16 %v1039
        %v1838 = vunpack.c.l.b16 %v1040
        %v1839 = vunpack.c.h.b16 %v1040
        %v1840 = vunpack.c.l.b16 %v1041
        %v1841 = vunpack.c.h.b16 %v1041
        %v1842 = vunpack.c.l.b16 %v1042
        %v1843 = vunpack.c.h.b16 %v1042
        %v1844 = vunpack.c.l.b16 %v1043
        %v1845 = vunpack.c.h.b16 %v1043
        %v1846 = vunpack.c.l.b16 %v1044
        %v1847 = vunpack.c.h.b16 %v1044
        %v1848 = vunpack.c.l.b16 %v1045
        %v1849 = vunpack.c.h.b16 %v1045
        %v1850 = vunpack.c.l.b16 %v1046
        %v1851 = vunpack.c.h.b16 %v1046
        %v1852 = vunpack.c.l.b16 %v1047
        %v1853 = vunpack.c.h.b16 %v1047
        %v1854 = vunpack.c.l.b16 %v1048
        %v1855 = vunpack.c.h.b16 %v1048
        %v1856 = vunpack.c.l.b16 %v1049
        %v1857 = vunpack.c.h.b16 %v1049
        %v1858 = vunpack.c.l.b16 %v1050
        %v1859 = vunpack.c.h.b16 %v1050
        %v1860 = vunpack.c.l.b16 %v1051
        %v1861 = vunpack.c.h.b16 %v1051
        %v1862 = vunpack.c.l.b16 %v1052
        %v1863 = vunpack.c.h.b16 %v1052
        %v1864 = vunpack.c.l.b16 %v1053
        %v1865 = vunpack.c.h.b16 %v1053
        %v1866 = vunpack.c.l.b16 %v1054
        %v1867 = vunpack.c.h.b16 %v1054
        %v1868 = vunpack.c.l.b16 %v1055
        %v1869 = vunpack.c.h.b16 %v1055
        %v1870 = vunpack.c.l.b16 %v1056
        %v1871 = vunpack.c.h.b16 %v1056
        %v1872 = vunpack.c.l.b16 %v1057
        %v1873 = vunpack.c.h.b16 %v1057
        %v1874 = vunpack.c.l.b16 %v1058
        %v1875 = vunpack.c.h.b16 %v1058
        %v1876 = vunpack.c.l.b16 %v1059
        %v1877 = vunpack.c.h.b16 %v1059
        %v1878 = vunpack.c.l.b16 %v1060
        %v1879 = vunpack.c.h.b16 %v1060
        %v1880 = vunpack.c.l.b16 %v1061
        %v1881 = vunpack.c.h.b16 %v1061
        %v1882 = vunpack.c.l.b16 %v1062
        %v1883 = vunpack.c.h.b16 %v1062
        %v1884 = vunpack.c.l.b16 %v1063
        %v1885 = vunpack.c.h.b16 %v1063
        %v1886 = vunpack.c.l.b16 %v1064
        %v1887 = vunpack.c.h.b16 %v1064
        %v1888 = vunpack.c.l.b16 %v1065
        %v1889 = vunpack.c.h.b16 %v1065
        %v1890 = vunpack.c.l.b16 %v1066
        %v1891 = vunpack.c.h.b16 %v1066
        %v1892 = vunpack.c.l.b16 %v1067
        %v1893 = vunpack.c.h.b16 %v1067
        %v1894 = vunpack.c.l.b16 %v1068
        %v1895 = vunpack.c.h.b16 %v1068
        %v1896 = vunpack.c.l.b16 %v1069
        %v1897 = vunpack.c.h.b16 %v1069
        %v1898 = vunpack.c.l.b16 %v1070
        %v1899 = vunpack.c.h.b16 %v1070
        %v1900 = vunpack.c.l.b16 %v1071
        %v1901 = vunpack.c.h.b16 %v1071
        %v1902 = vunpack.c.l.b16 %v1072
        %v1903 = vunpack.c.h.b16 %v1072
        %v1904 = vunpack.c.l.b16 %v1073
        %v1905 = vunpack.c.h.b16 %v1073
        %v1906 = vunpack.c.l.b16 %v1074
        %v1907 = vunpack.c.h.b16 %v1074
        %v1908 = vunpack.c.l.b16 %v1075
        %v1909 = vunpack.c.h.b16 %v1075
        %v1910 = vunpack.c.l.b16 %v1076
        %v1911 = vunpack.c.h.b16 %v1076
        %v1912 = vunpack.c.l.b16 %v1077
        %v1913 = vunpack.c.h.b16 %v1077
        %v1914 = vunpack.c.l.b16 %v1078
        %v1915 = vunpack.c.h.b16 %v1078
        %v1916 = vunpack.c.l.b16 %v1079
        %v1917 = vunpack.c.h.b16 %v1079
        %v1918 = vunpack.c.l.b16 %v1080
        %v1919 = vunpack.c.h.b16 %v1080
        %v1920 = vunpack.c.l.b16 %v1081
        %v1921 = vunpack.c.h.b16 %v1081
        %v1922 = vunpack.c.l.b16 %v1082
        %v1923 = vunpack.c.h.b16 %v1082
        %v1924 = vunpack.c.l.b16 %v1083
        %v1925 = vunpack.c.h.b16 %v1083
        %v1926 = vunpack.c.l.b16 %v1084
        %v1927 = vunpack.c.h.b16 %v1084
        %v1928 = vunpack.c.l.b16 %v1085
        %v1929 = vunpack.c.h.b16 %v1085
        %v1930 = vunpack.c.l.b16 %v1086
        %v1931 = vunpack.c.h.b16 %v1086
        %v1932 = vunpack.c.l.b16 %v1087
        %v1933 = vunpack.c.h.b16 %v1087
        %v1934 = vunpack.c.l.b16 %v1088
        %v1935 = vunpack.c.h.b16 %v1088
        %v1936 = vunpack.c.l.b16 %v1089
        %v1937 = vunpack.c.h.b16 %v1089
        %v1938 = vunpack.c.l.b16 %v1090
        %v1939 = vunpack.c.h.b16 %v1090
        %v1940 = vunpack.c.l.b16 %v1091
        %v1941 = vunpack.c.h.b16 %v1091
        %v1942 = vunpack.c.l.b16 %v1092
        %v1943 = vunpack.c.h.b16 %v1092
        %v1944 = vunpack.c.l.b16 %v1093
        %v1945 = vunpack.c.h.b16 %v1093
        %v1946 = vunpack.c.l.b16 %v1094
        %v1947 = vunpack.c.h.b16 %v1094
        %v1948 = vunpack.c.l.b16 %v1095
        %v1949 = vunpack.c.h.b16 %v1095
        %v1950 = vunpack.c.l.b16 %v1096
        %v1951 = vunpack.c.h.b16 %v1096
        %v1952 = vunpack.c.l.b16 %v1097
        %v1953 = vunpack.c.h.b16 %v1097
        %v1954 = vunpack.c.l.b16 %v1098
        %v1955 = vunpack.c.h.b16 %v1098
        %v1956 = vunpack.c.l.b16 %v1099
        %v1957 = vunpack.c.h.b16 %v1099
        %v1958 = vunpack.c.l.b16 %v1100
        %v1959 = vunpack.c.h.b16 %v1100
        %v1960 = vunpack.c.l.b16 %v1101
        %v1961 = vunpack.c.h.b16 %v1101
        %v1962 = vunpack.c.l.b16 %v1102
        %v1963 = vunpack.c.h.b16 %v1102
        %v1964 = vunpack.c.l.b16 %v1103
        %v1965 = vunpack.c.h.b16 %v1103
        %v1966 = vunpack.c.l.b16 %v1104
        %v1967 = vunpack.c.h.b16 %v1104
        %v1968 = vunpack.c.l.b16 %v1105
        %v1969 = vunpack.c.h.b16 %v1105
        %v1970 = vunpack.c.l.b16 %v1106
        %v1971 = vunpack.c.h.b16 %v1106
        %v1972 = vunpack.c.l.b16 %v1107
        %v1973 = vunpack.c.h.b16 %v1107
        %v1974 = vunpack.c.l.b16 %v1108
        %v1975 = vunpack.c.h.b16 %v1108
        %v1976 = vunpack.c.l.b16 %v1109
        %v1977 = vunpack.c.h.b16 %v1109
        %v1978 = vunpack.c.l.b16 %v1110
        %v1979 = vunpack.c.h.b16 %v1110
        %v1980 = vunpack.c.l.b16 %v1111
        %v1981 = vunpack.c.h.b16 %v1111
        %v1982 = vunpack.c.l.b16 %v1112
        %v1983 = vunpack.c.h.b16 %v1112
        %v1984 = vunpack.c.l.b16 %v1113
        %v1985 = vunpack.c.h.b16 %v1113
        %v1986 = vunpack.c.l.b16 %v1114
        %v1987 = vunpack.c.h.b16 %v1114
        %v1988 = vunpack.c.l.b16 %v1115
        %v1989 = vunpack.c.h.b16 %v1115
        %v1990 = vunpack.c.l.b16 %v1116
        %v1991 = vunpack.c.h.b16 %v1116
        %v1992 = vunpack.c.l.b16 %v1117
        %v1993 = vunpack.c.h.b16 %v1117
        %v1994 = vunpack.c.l.b16 %v1118
        %v1995 = vunpack.c.h.b16 %v1118
        %v1996 = vunpack.c.l.b16 %v1119
        %v1997 = vunpack.c.h.b16 %v1119
        %v1998 = vunpack.c.l.b16 %v1120
        %v1999 = vunpack.c.h.b16 %v1120
        %v2000 = vunpack.c.l.b16 %v1121
        %v2001 = vunpack.c.h.b16 %v1121
        %v2002 = vunpack.c.l.b16 %v1122
        %v2003 = vunpack.c.h.b16 %v1122
        %v2004 = vunpack.c.l.b16 %v1123
        %v2005 = vunpack.c.h.b16 %v1123
        %v2006 = vunpack.c.l.b16 %v1124
        %v2007 = vunpack.c.h.b16 %v1124
        %v2008 = vunpack.c.l.b16 %v1125
        %v2009 = vunpack.c.h.b16 %v1125
        %v2010 = vunpack.c.l.b16 %v1126
        %v2011 = vunpack.c.h.b16 %v1126
        %v2012 = vunpack.c.l.b16 %v1127
        %v2013 = vunpack.c.h.b16 %v1127
        %v2014 = vunpack.c.l.b16 %v1128
        %v2015 = vunpack.c.h.b16 %v1128
        %v2016 = vunpack.c.l.b16 %v1129
        %v2017 = vunpack.c.h.b16 %v1129
        %v2018 = vunpack.c.l.b16 %v1130
        %v2019 = vunpack.c.h.b16 %v1130
        %v2020 = vunpack.c.l.b16 %v1131
        %v2021 = vunpack.c.h.b16 %v1131
        %v2022 = vunpack.c.l.b16 %v1132
        %v2023 = vunpack.c.h.b16 %v1132
        %v2024 = vunpack.c.l.b16 %v1133
        %v2025 = vunpack.c.h.b16 %v1133
        %v2026 = vunpack.c.l.b16 %v1134
        %v2027 = vunpack.c.h.b16 %v1134
        %v2028 = vunpack.c.l.b16 %v1135
        %v2029 = vunpack.c.h.b16 %v1135
        %v2030 = vunpack.c.l.b16 %v1136
        %v2031 = vunpack.c.h.b16 %v1136
        %v2032 = vunpack.c.l.b16 %v1137
        %v2033 = vunpack.c.h.b16 %v1137
        %v2034 = vunpack.c.l.b16 %v1138
        %v2035 = vunpack.c.h.b16 %v1138
        %v2036 = vunpack.c.l.b16 %v1139
        %v2037 = vunpack.c.h.b16 %v1139
        %v2038 = vunpack.c.l.b16 %v1140
        %v2039 = vunpack.c.h.b16 %v1140
        %v2040 = vunpack.c.l.b16 %v1141
        %v2041 = vunpack.c.h.b16 %v1141
        %v2042 = vunpack.c.l.b16 %v1142
        %v2043 = vunpack.c.h.b16 %v1142
        %v2044 = vunpack.c.l.b16 %v1143
        %v2045 = vunpack.c.h.b16 %v1143
        %v2046 = vunpack.c.l.b16 %v1144
        %v2047 = vunpack.c.h.b16 %v1144
        %v2048 = vunpack.c.l.b16 %v1145
        %v2049 = vunpack.c.h.b16 %v1145
        %v2050 = vunpack.c.l.b16 %v1146
        %v2051 = vunpack.c.h.b16 %v1146
        %v2052 = vunpack.c.l.b16 %v1147
        %v2053 = vunpack.c.h.b16 %v1147
        %v2054 = vunpack.c.l.b16 %v1148
        %v2055 = vunpack.c.h.b16 %v1148
        %v2056 = vunpack.c.l.b16 %v1149
        %v2057 = vunpack.c.h.b16 %v1149
        %v2058 = vunpack.c.l.b16 %v1150
        %v2059 = vunpack.c.h.b16 %v1150
        %v2060 = vunpack.c.l.b16 %v1151
        %v2061 = vunpack.c.h.b16 %v1151
        %v2062 = vunpack.c.l.b16 %v1152
        %v2063 = vunpack.c.h.b16 %v1152
        %v2064 = vunpack.c.l.b16 %v1153
        %v2065 = vunpack.c.h.b16 %v1153
        %v2066 = vunpack.c.l.b16 %v1154
        %v2067 = vunpack.c.h.b16 %v1154
        %v2068 = vunpack.c.l.b16 %v1155
        %v2069 = vunpack.c.h.b16 %v1155
        %v2070 = vunpack.c.l.b16 %v1156
        %v2071 = vunpack.c.h.b16 %v1156
        %v2072 = vunpack.c.l.b16 %v1157
        %v2073 = vunpack.c.h.b16 %v1157
        %v2074 = vunpack.c.l.b16 %v1158
        %v2075 = vunpack.c.h.b16 %v1158
        %v2076 = vunpack.c.l.b16 %v1159
        %v2077 = vunpack.c.h.b16 %v1159
        %v2078 = vunpack.c.l.b16 %v1160
        %v2079 = vunpack.c.h.b16 %v1160
        %v2080 = vunpack.c.l.b16 %v1161
        %v2081 = vunpack.c.h.b16 %v1161
        %v2082 = vunpack.c.l.b16 %v1162
        %v2083 = vunpack.c.h.b16 %v1162
        %v2084 = vunpack.c.l.b16 %v1163
        %v2085 = vunpack.c.h.b16 %v1163
        %v2086 = vunpack.c.l.b16 %v1164
        %v2087 = vunpack.c.h.b16 %v1164
        %v2088 = vunpack.c.l.b16 %v1165
        %v2089 = vunpack.c.h.b16 %v1165
        %v2090 = vunpack.c.l.b16 %v1166
        %v2091 = vunpack.c.h.b16 %v1166
        %v2092 = vunpack.c.l.b16 %v1167
        %v2093 = vunpack.c.h.b16 %v1167
        %v2094 = vunpack.c.l.b16 %v1168
        %v2095 = vunpack.c.h.b16 %v1168
        %v2096 = vunpack.c.l.b16 %v1169
        %v2097 = vunpack.c.h.b16 %v1169
        %v2098 = vunpack.c.l.b16 %v1170
        %v2099 = vunpack.c.h.b16 %v1170
        %v2100 = vunpack.c.l.b16 %v1171
        %v2101 = vunpack.c.h.b16 %v1171
        %v2102 = vunpack.c.l.b16 %v1172
        %v2103 = vunpack.c.h.b16 %v1172
        %v2104 = vunpack.c.l.b16 %v1173
        %v2105 = vunpack.c.h.b16 %v1173
        %v2106 = vunpack.c.l.b16 %v1174
        %v2107 = vunpack.c.h.b16 %v1174
        %v2108 = vunpack.c.l.b16 %v1175
        %v2109 = vunpack.c.h.b16 %v1175
        %v2110 = vunpack.c.l.b16 %v1176
        %v2111 = vunpack.c.h.b16 %v1176
        %v2112 = vunpack.c.l.b16 %v1177
        %v2113 = vunpack.c.h.b16 %v1177
        %v2114 = vunpack.c.l.b16 %v1178
        %v2115 = vunpack.c.h.b16 %v1178
        %v2116 = vunpack.c.l.b16 %v1179
        %v2117 = vunpack.c.h.b16 %v1179
        %v2118 = vunpack.c.l.b16 %v1180
        %v2119 = vunpack.c.h.b16 %v1180
        %v2120 = vunpack.c.l.b16 %v1181
        %v2121 = vunpack.c.h.b16 %v1181
        %v2122 = vunpack.c.l.b16 %v1182
        %v2123 = vunpack.c.h.b16 %v1182
        %v2124 = vunpack.c.l.b16 %v1183
        %v2125 = vunpack.c.h.b16 %v1183
        %v2126 = vunpack.c.l.b16 %v1184
        %v2127 = vunpack.c.h.b16 %v1184
        %v2128 = vunpack.c.l.b16 %v1185
        %v2129 = vunpack.c.h.b16 %v1185
        %v2130 = vunpack.c.l.b16 %v1186
        %v2131 = vunpack.c.h.b16 %v1186
        %v2132 = vunpack.c.l.b16 %v1187
        %v2133 = vunpack.c.h.b16 %v1187
        %v2134 = vunpack.c.l.b16 %v1188
        %v2135 = vunpack.c.h.b16 %v1188
        %v2136 = vunpack.c.l.b16 %v1189
        %v2137 = vunpack.c.h.b16 %v1189
        %v2138 = vunpack.c.l.b16 %v1190
        %v2139 = vunpack.c.h.b16 %v1190
        %v2140 = vunpack.c.l.b16 %v1191
        %v2141 = vunpack.c.h.b16 %v1191
        %v2142 = vunpack.c.l.b16 %v1192
        %v2143 = vunpack.c.h.b16 %v1192
        %v2144 = vunpack.c.l.b16 %v1193
        %v2145 = vunpack.c.h.b16 %v1193
        %v2146 = vunpack.c.l.b16 %v1194
        %v2147 = vunpack.c.h.b16 %v1194
        %v2148 = vunpack.c.l.b16 %v1195
        %v2149 = vunpack.c.h.b16 %v1195
        %v2150 = vunpack.c.l.b16 %v1196
        %v2151 = vunpack.c.h.b16 %v1196
        %v2152 = vunpack.c.l.b16 %v1197
        %v2153 = vunpack.c.h.b16 %v1197
        %v2154 = vunpack.c.l.b16 %v1198
        %v2155 = vunpack.c.h.b16 %v1198
        %v2156 = vunpack.c.l.b16 %v1199
        %v2157 = vunpack.c.h.b16 %v1199
        %v2158 = vunpack.c.l.b16 %v1200
        %v2159 = vunpack.c.h.b16 %v1200
        %v2160 = vunpack.c.l.b16 %v1201
        %v2161 = vunpack.c.h.b16 %v1201
        %v2162 = vunpack.c.l.b16 %v1202
        %v2163 = vunpack.c.h.b16 %v1202
        %v2164 = vunpack.c.l.b16 %v1203
        %v2165 = vunpack.c.h.b16 %v1203
        %v2166 = vunpack.c.l.b16 %v1204
        %v2167 = vunpack.c.h.b16 %v1204
        %v2168 = vunpack.c.l.b16 %v1205
        %v2169 = vunpack.c.h.b16 %v1205
        %v2170 = vunpack.c.l.b16 %v1206
        %v2171 = vunpack.c.h.b16 %v1206
        %v2172 = vunpack.c.l.b16 %v1207
        %v2173 = vunpack.c.h.b16 %v1207
        %v2174 = vunpack.c.l.b16 %v1208
        %v2175 = vunpack.c.h.b16 %v1208
        %v2176 = vpack.c.b16 %v1584, %v1576
        %v2177 = vpack.c.b16 %v1585, %v1577
        %v2178 = vpack.c.b16 %v1586, %v1578
        %v2179 = vpack.c.b16 %v1587, %v1579
        %v2180 = vpack.c.b16 %v1588, %v1580
        %v2181 = vpack.c.b16 %v1589, %v1581
        %v2182 = vpack.c.b16 %v1590, %v1582
        %v2183 = vpack.c.b16 %v1591, %v1583
        %v2184 = vpack.c.b16 %v1600, %v1592
        %v2185 = vpack.c.b16 %v1601, %v1593
        %v2186 = vpack.c.b16 %v1602, %v1594
        %v2187 = vpack.c.b16 %v1603, %v1595
        %v2188 = vpack.c.b16 %v1604, %v1596
        %v2189 = vpack.c.b16 %v1605, %v1597
        %v2190 = vpack.c.b16 %v1606, %v1598
        %v2191 = vpack.c.b16 %v1607, %v1599
        %v2192 = vpack.c.b16 %v1616, %v1608
        %v2193 = vpack.c.b16 %v1617, %v1609
        %v2194 = vpack.c.b16 %v1618, %v1610
        %v2195 = vpack.c.b16 %v1619, %v1611
        %v2196 = vpack.c.b16 %v1620, %v1612
        %v2197 = vpack.c.b16 %v1621, %v1613
        %v2198 = vpack.c.b16 %v1622, %v1614
        %v2199 = vpack.c.b16 %v1623, %v1615
        %v2200 = vpack.c.b16 %v1632, %v1624
        %v2201 = vpack.c.b16 %v1633, %v1625
        %v2202 = vpack.c.b16 %v1634, %v1626
        %v2203 = vpack.c.b16 %v1635, %v1627
        %v2204 = vpack.c.b16 %v1636, %v1628
        %v2205 = vpack.c.b16 %v1637, %v1629
        %v2206 = vpack.c.b16 %v1638, %v1630
        %v2207 = vpack.c.b16 %v1639, %v1631
        %v2208 = vpack.c.b16 %v1648, %v1640
        %v2209 = vpack.c.b16 %v1649, %v1641
        %v2210 = vpack.c.b16 %v1650, %v1642
        %v2211 = vpack.c.b16 %v1651, %v1643
        %v2212 = vpack.c.b16 %v1652, %v1644
        %v2213 = vpack.c.b16 %v1653, %v1645
        %v2214 = vpack.c.b16 %v1654, %v1646
        %v2215 = vpack.c.b16 %v1655, %v1647
        %v2216 = vpack.c.b16 %v1664, %v1656
        %v2217 = vpack.c.b16 %v1665, %v1657
        %v2218 = vpack.c.b16 %v1666, %v1658
        %v2219 = vpack.c.b16 %v1667, %v1659
        %v2220 = vpack.c.b16 %v1668, %v1660
        %v2221 = vpack.c.b16 %v1669, %v1661
        %v2222 = vpack.c.b16 %v1670, %v1662
        %v2223 = vpack.c.b16 %v1671, %v1663
        %v2224 = vpack.c.b16 %v1680, %v1672
        %v2225 = vpack.c.b16 %v1681, %v1673
        %v2226 = vpack.c.b16 %v1682, %v1674
        %v2227 = vpack.c.b16 %v1683, %v1675
        %v2228 = vpack.c.b16 %v1684, %v1676
        %v2229 = vpack.c.b16 %v1685, %v1677
        %v2230 = vpack.c.b16 %v1686, %v1678
        %v2231 = vpack.c.b16 %v1687, %v1679
        %v2232 = vpack.c.b16 %v1696, %v1688
        %v2233 = vpack.c.b16 %v1697, %v1689
        %v2234 = vpack.c.b16 %v1698, %v1690
        %v2235 = vpack.c.b16 %v1699, %v1691
        %v2236 = vpack.c.b16 %v1700, %v1692
        %v2237 = vpack.c.b16 %v1701, %v1693
        %v2238 = vpack.c.b16 %v1702, %v1694
        %v2239 = vpack.c.b16 %v1703, %v1695
        %v2240 = vpack.c.b16 %v1712, %v1704
        %v2241 = vpack.c.b16 %v1713, %v1705
        %v2242 = vpack.c.b16 %v1714, %v1706
        %v2243 = vpack.c.b16 %v1715, %v1707
        %v2244 = vpack.c.b16 %v1716, %v1708
        %v2245 = vpack.c.b16 %v1717, %v1709
        %v2246 = vpack.c.b16 %v1718, %v1710
        %v2247 = vpack.c.b16 %v1719, %v1711
        %v2248 = vpack.c.b16 %v1728, %v1720
        %v2249 = vpack.c.b16 %v1729, %v1721
        %v2250 = vpack.c.b16 %v1730, %v1722
        %v2251 = vpack.c.b16 %v1731, %v1723
        %v2252 = vpack.c.b16 %v1732, %v1724
        %v2253 = vpack.c.b16 %v1733, %v1725
        %v2254 = vpack.c.b16 %v1734, %v1726
        %v2255 = vpack.c.b16 %v1735, %v1727
        %v2256 = vpack.c.b16 %v1744, %v1736
        %v2257 = vpack.c.b16 %v1745, %v1737
        %v2258 = vpack.c.b16 %v1746, %v1738
        %v2259 = vpack.c.b16 %v1747, %v1739
        %v2260 = vpack.c.b16 %v1748, %v1740
        %v2261 = vpack.c.b16 %v1749, %v1741
        %v2262 = vpack.c.b16 %v1750, %v1742
        %v2263 = vpack.c.b16 %v1751, %v1743
        %v2264 = vpack.c.b16 %v1760, %v1752
        %v2265 = vpack.c.b16 %v1761, %v1753
        %v2266 = vpack.c.b16 %v1762, %v1754
        %v2267 = vpack.c.b16 %v1763, %v1755
        %v2268 = vpack.c.b16 %v1764, %v1756
        %v2269 = vpack.c.b16 %v1765, %v1757
        %v2270 = vpack.c.b16 %v1766, %v1758
        %v2271 = vpack.c.b16 %v1767, %v1759
        %v2272 = vpack.c.b16 %v1776, %v1768
        %v2273 = vpack.c.b16 %v1777, %v1769
        %v2274 = vpack.c.b16 %v1778, %v1770
        %v2275 = vpack.c.b16 %v1779, %v1771
        %v2276 = vpack.c.b16 %v1780, %v1772
        %v2277 = vpack.c.b16 %v1781, %v1773
        %v2278 = vpack.c.b16 %v1782, %v1774
        %v2279 = vpack.c.b16 %v1783, %v1775
        %v2280 = vpack.c.b16 %v1792, %v1784
        %v2281 = vpack.c.b16 %v1793, %v1785
        %v2282 = vpack.c.b16 %v1794, %v1786
        %v2283 = vpack.c.b16 %v1795, %v1787
        %v2284 = vpack.c.b16 %v1796, %v1788
        %v2285 = vpack.c.b16 %v1797, %v1789
        %v2286 = vpack.c.b16 %v1798, %v1790
        %v2287 = vpack.c.b16 %v1799, %v1791
        %v2288 = vpack.c.b16 %v1808, %v1800
        %v2289 = vpack.c.b16 %v1809, %v1801
        %v2290 = vpack.c.b16 %v1810, %v1802
        %v2291 = vpack.c.b16 %v1811, %v1803
        %v2292 = vpack.c.b16 %v1812, %v1804
        %v2293 = vpack.c.b16 %v1813, %v1805
        %v2294 = vpack.c.b16 %v1814, %v1806
        %v2295 = vpack.c.b16 %v1815, %v1807
        %v2296 = vpack.c.b16 %v1824, %v1816
        %v2297 = vpack.c.b16 %v1825, %v1817
        %v2298 = vpack.c.b16 %v1826, %v1818
        %v2299 = vpack.c.b16 %v1827, %v1819
        %v2300 = vpack.c.b16 %v1828, %v1820
        %v2301 = vpack.c.b16 %v1829, %v1821
        %v2302 = vpack.c.b16 %v1830, %v1822
        %v2303 = vpack.c.b16 %v1831, %v1823
        %v2304 = vpack.c.b16 %v1840, %v1832
        %v2305 = vpack.c.b16 %v1841, %v1833
        %v2306 = vpack.c.b16 %v1842, %v1834
        %v2307 = vpack.c.b16 %v1843, %v1835
        %v2308 = vpack.c.b16 %v1844, %v1836
        %v2309 = vpack.c.b16 %v1845, %v1837
        %v2310 = vpack.c.b16 %v1846, %v1838
        %v2311 = vpack.c.b16 %v1847, %v1839
        %v2312 = vpack.c.b16 %v1856, %v1848
        %v2313 = vpack.c.b16 %v1857, %v1849
        %v2314 = vpack.c.b16 %v1858, %v1850
        %v2315 = vpack.c.b16 %v1859, %v1851
        %v2316 = vpack.c.b16 %v1860, %v1852
        %v2317 = vpack.c.b16 %v1861, %v1853
        %v2318 = vpack.c.b16 %v1862, %v1854
        %v2319 = vpack.c.b16 %v1863, %v1855
        %v2320 = vpack.c.b16 %v1872, %v1864
        %v2321 = vpack.c.b16 %v1873, %v1865
        %v2322 = vpack.c.b16 %v1874, %v1866
        %v2323 = vpack.c.b16 %v1875, %v1867
        %v2324 = vpack.c.b16 %v1876, %v1868
        %v2325 = vpack.c.b16 %v1877, %v1869
        %v2326 = vpack.c.b16 %v1878, %v1870
        %v2327 = vpack.c.b16 %v1879, %v1871
        %v2328 = vpack.c.b16 %v1888, %v1880
        %v2329 = vpack.c.b16 %v1889, %v1881
        %v2330 = vpack.c.b16 %v1890, %v1882
        %v2331 = vpack.c.b16 %v1891, %v1883
        %v2332 = vpack.c.b16 %v1892, %v1884
        %v2333 = vpack.c.b16 %v1893, %v1885
        %v2334 = vpack.c.b16 %v1894, %v1886
        %v2335 = vpack.c.b16 %v1895, %v1887
        %v2336 = vpack.c.b16 %v1904, %v1896
        %v2337 = vpack.c.b16 %v1905, %v1897
        %v2338 = vpack.c.b16 %v1906, %v1898
        %v2339 = vpack.c.b16 %v1907, %v1899
        %v2340 = vpack.c.b16 %v1908, %v1900
        %v2341 = vpack.c.b16 %v1909, %v1901
        %v2342 = vpack.c.b16 %v1910, %v1902
        %v2343 = vpack.c.b16 %v1911, %v1903
        %v2344 = vpack.c.b16 %v1920, %v1912
        %v2345 = vpack.c.b16 %v1921, %v1913
        %v2346 = vpack.c.b16 %v1922, %v1914
        %v2347 = vpack.c.b16 %v1923, %v1915
        %v2348 = vpack.c.b16 %v1924, %v1916
        %v2349 = vpack.c.b16 %v1925, %v1917
        %v2350 = vpack.c.b16 %v1926, %v1918
        %v2351 = vpack.c.b16 %v1927, %v1919
        %v2352 = vpack.c.b16 %v1936, %v1928
        %v2353 = vpack.c.b16 %v1937, %v1929
        %v2354 = vpack.c.b16 %v1938, %v1930
        %v2355 = vpack.c.b16 %v1939, %v1931
        %v2356 = vpack.c.b16 %v1940, %v1932
        %v2357 = vpack.c.b16 %v1941, %v1933
        %v2358 = vpack.c.b16 %v1942, %v1934
        %v2359 = vpack.c.b16 %v1943, %v1935
        %v2360 = vpack.c.b16 %v1952, %v1944
        %v2361 = vpack.c.b16 %v1953, %v1945
        %v2362 = vpack.c.b16 %v1954, %v1946
        %v2363 = vpack.c.b16 %v1955, %v1947
        %v2364 = vpack.c.b16 %v1956, %v1948
        %v2365 = vpack.c.b16 %v1957, %v1949
        %v2366 = vpack.c.b16 %v1958, %v1950
        %v2367 = vpack.c.b16 %v1959, %v1951
        %v2368 = vpack.c.b16 %v1968, %v1960
        %v2369 = vpack.c.b16 %v1969, %v1961
        %v2370 = vpack.c.b16 %v1970, %v1962
        %v2371 = vpack.c.b16 %v1971, %v1963
        %v2372 = vpack.c.b16 %v1972, %v1964
        %v2373 = vpack.c.b16 %v1973, %v1965
        %v2374 = vpack.c.b16 %v1974, %v1966
        %v2375 = vpack.c.b16 %v1975, %v1967
        %v2376 = vpack.c.b16 %v1984, %v1976
        %v2377 = vpack.c.b16 %v1985, %v1977
        %v2378 = vpack.c.b16 %v1986, %v1978
        %v2379 = vpack.c.b16 %v1987, %v1979
        %v2380 = vpack.c.b16 %v1988, %v1980
        %v2381 = vpack.c.b16 %v1989, %v1981
        %v2382 = vpack.c.b16 %v1990, %v1982
        %v2383 = vpack.c.b16 %v1991, %v1983
        %v2384 = vpack.c.b16 %v2000, %v1992
        %v2385 = vpack.c.b16 %v2001, %v1993
        %v2386 = vpack.c.b16 %v2002, %v1994
        %v2387 = vpack.c.b16 %v2003, %v1995
        %v2388 = vpack.c.b16 %v2004, %v1996
        %v2389 = vpack.c.b16 %v2005, %v1997
        %v2390 = vpack.c.b16 %v2006, %v1998
        %v2391 = vpack.c.b16 %v2007, %v1999
        %v2392 = vpack.c.b16 %v2016, %v2008
        %v2393 = vpack.c.b16 %v2017, %v2009
        %v2394 = vpack.c.b16 %v2018, %v2010
        %v2395 = vpack.c.b16 %v2019, %v2011
        %v2396 = vpack.c.b16 %v2020, %v2012
        %v2397 = vpack.c.b16 %v2021, %v2013
        %v2398 = vpack.c.b16 %v2022, %v2014
        %v2399 = vpack.c.b16 %v2023, %v2015
        %v2400 = vpack.c.b16 %v2032, %v2024
        %v2401 = vpack.c.b16 %v2033, %v2025
        %v2402 = vpack.c.b16 %v2034, %v2026
        %v2403 = vpack.c.b16 %v2035, %v2027
        %v2404 = vpack.c.b16 %v2036, %v2028
        %v2405 = vpack.c.b16 %v2037, %v2029
        %v2406 = vpack.c.b16 %v2038, %v2030
        %v2407 = vpack.c.b16 %v2039, %v2031
        %v2408 = vpack.c.b16 %v2048, %v2040
        %v2409 = vpack.c.b16 %v2049, %v2041
        %v2410 = vpack.c.b16 %v2050, %v2042
        %v2411 = vpack.c.b16 %v2051, %v2043
        %v2412 = vpack.c.b16 %v2052, %v2044
        %v2413 = vpack.c.b16 %v2053, %v2045
        %v2414 = vpack.c.b16 %v2054, %v2046
        %v2415 = vpack.c.b16 %v2055, %v2047
        %v2416 = vpack.c.b16 %v2064, %v2056
        %v2417 = vpack.c.b16 %v2065, %v2057
        %v2418 = vpack.c.b16 %v2066, %v2058
        %v2419 = vpack.c.b16 %v2067, %v2059
        %v2420 = vpack.c.b16 %v2068, %v2060
        %v2421 = vpack.c.b16 %v2069, %v2061
        %v2422 = vpack.c.b16 %v2070, %v2062
        %v2423 = vpack.c.b16 %v2071, %v2063
        %v2424 = vpack.c.b16 %v2080, %v2072
        %v2425 = vpack.c.b16 %v2081, %v2073
        %v2426 = vpack.c.b16 %v2082, %v2074
        %v2427 = vpack.c.b16 %v2083, %v2075
        %v2428 = vpack.c.b16 %v2084, %v2076
        %v2429 = vpack.c.b16 %v2085, %v2077
        %v2430 = vpack.c.b16 %v2086, %v2078
        %v2431 = vpack.c.b16 %v2087, %v2079
        %v2432 = vpack.c.b16 %v2096, %v2088
        %v2433 = vpack.c.b16 %v2097, %v2089
        %v2434 = vpack.c.b16 %v2098, %v2090
        %v2435 = vpack.c.b16 %v2099, %v2091
        %v2436 = vpack.c.b16 %v2100, %v2092
        %v2437 = vpack.c.b16 %v2101, %v2093
        %v2438 = vpack.c.b16 %v2102, %v2094
        %v2439 = vpack.c.b16 %v2103, %v2095
        %v2440 = vpack.c.b16 %v2112, %v2104
        %v2441 = vpack.c.b16 %v2113, %v2105
        %v2442 = vpack.c.b16 %v2114, %v2106
        %v2443 = vpack.c.b16 %v2115, %v2107
        %v2444 = vpack.c.b16 %v2116, %v2108
        %v2445 = vpack.c.b16 %v2117, %v2109
        %v2446 = vpack.c.b16 %v2118, %v2110
        %v2447 = vpack.c.b16 %v2119, %v2111
        %v2448 = vpack.c.b16 %v2128, %v2120
        %v2449 = vpack.c.b16 %v2129, %v2121
        %v2450 = vpack.c.b16 %v2130, %v2122
        %v2451 = vpack.c.b16 %v2131, %v2123
        %v2452 = vpack.c.b16 %v2132, %v2124
        %v2453 = vpack.c.b16 %v2133, %v2125
        %v2454 = vpack.c.b16 %v2134, %v2126
        %v2455 = vpack.c.b16 %v2135, %v2127
        %v2456 = vpack.c.b16 %v2144, %v2136
        %v2457 = vpack.c.b16 %v2145, %v2137
        %v2458 = vpack.c.b16 %v2146, %v2138
        %v2459 = vpack.c.b16 %v2147, %v2139
        %v2460 = vpack.c.b16 %v2148, %v2140
        %v2461 = vpack.c.b16 %v2149, %v2141
        %v2462 = vpack.c.b16 %v2150, %v2142
        %v2463 = vpack.c.b16 %v2151, %v2143
        %v2464 = vpack.c.b16 %v2160, %v2152
        %v2465 = vpack.c.b16 %v2161, %v2153
        %v2466 = vpack.c.b16 %v2162, %v2154
        %v2467 = vpack.c.b16 %v2163, %v2155
        %v2468 = vpack.c.b16 %v2164, %v2156
        %v2469 = vpack.c.b16 %v2165, %v2157
        %v2470 = vpack.c.b16 %v2166, %v2158
        %v2471 = vpack.c.b16 %v2167, %v2159
        %v2472 = vpack.c.b16 %v2168, %v2168
        %v2473 = vpack.c.b16 %v2169, %v2169
        %v2474 = vpack.c.b16 %v2170, %v2170
        %v2475 = vpack.c.b16 %v2171, %v2171
        %v2476 = vpack.c.b16 %v2172, %v2172
        %v2477 = vpack.c.b16 %v2173, %v2173
        %v2478 = vpack.c.b16 %v2174, %v2174
        %v2479 = vpack.c.b16 %v2175, %v2175
        %vm2776 = vcmask 719872
        %v2778 = vsel %vm2776, %v1253, 0
        %v2781 = vsel %vm2776, %v1258, 0
        %v2784 = vsel %vm2776, %v1263, 0
        %vm2786 = vcmask 1043456
        %v2788 = vsel %vm2786, %v2472, 0
        %v2791 = vsel %vm2786, %v2473, 0
        %v2794 = vsel %vm2786, %v2474, 0
        %v2797 = vsel %vm2786, %v2475, 0
        %v2800 = vsel %vm2786, %v2476, 0
        %v2803 = vsel %vm2786, %v2477, 0
        %v2806 = vsel %vm2786, %v2478, 0
        %v2809 = vsel %vm2786, %v2479, 0
        %2811 = vmatprep.subr.bf16.mxu0 %v2233
        %2812 = vmatpush1.bf16.msra.mxu0 %v2232
        %2813 = vmatprep.subr.bf16.mxu0 %v2225
        %2814 = vmatpush1.bf16.msra.mxu0 %v2224
        %2815 = vmatprep.subr.bf16.mxu0 %v2217
        %2816 = vmatpush1.bf16.msra.mxu0 %v2216
        %2817 = vmatprep.subr.bf16.mxu0 %v2209
        %2818 = vmatpush1.bf16.msra.mxu0 %v2208
        %2819 = vmatprep.subr.bf16.mxu0 %v2201
        %2820 = vmatpush1.bf16.msra.mxu0 %v2200
        %2821 = vmatprep.subr.bf16.mxu0 %v2193
        %2822 = vmatpush1.bf16.msra.mxu0 %v2192
        %2823 = vmatprep.subr.bf16.mxu0 %v2185
        %2824 = vmatpush1.bf16.msra.mxu0 %v2184
        %2825 = vmatprep.subr.bf16.mxu0 %v2177
        %2826 = vmatpush1.bf16.msra.mxu0 %v2176
        %2827 = vmatprep.subr.bf16.mxu0 %v2297
        %2828 = vmatpush2.bf16.msra.mxu0 %v2296
        %2829 = vmatprep.subr.bf16.mxu0 %v2289
        %2830 = vmatpush2.bf16.msra.mxu0 %v2288
        %2831 = vmatprep.subr.bf16.mxu0 %v2281
        %2832 = vmatpush2.bf16.msra.mxu0 %v2280
        %2833 = vmatprep.subr.bf16.mxu0 %v2273
        %2834 = vmatpush2.bf16.msra.mxu0 %v2272
        %2835 = vmatprep.subr.bf16.mxu0 %v2265
        %2836 = vmatpush2.bf16.msra.mxu0 %v2264
        %2837 = vmatprep.subr.bf16.mxu0 %v2257
        %2838 = vmatpush2.bf16.msra.mxu0 %v2256
        %2839 = vmatprep.subr.bf16.mxu0 %v2249
        %2840 = vmatpush2.bf16.msra.mxu0 %v2248
        %2841 = vmatprep.subr.bf16.mxu0 %v2241
        %2842 = vmatpush2.bf16.msra.mxu0 %v2240
        %2843 = vmatprep.mubr.bf16.mxu0 %v1250
        %2844 = vmatmul.mubr.bf16.gmra.mxu0 %v1249
        %v2845 = vpop.f32.mrf.mxu0
        %v2846 = vadd.f32 0.0, %v2845
        %v2847 = vpop.f32.mrf.mxu0
        %v2848 = vadd.f32 0.0, %v2847
        %v2849 = vpop.f32.mrf.mxu0
        %v2850 = vadd.f32 0.0, %v2849
        %v2851 = vpop.f32.mrf.mxu0
        %v2852 = vadd.f32 0.0, %v2851
        %2853 = vmatprep.mubr.bf16.mxu0 %v1255
        %2854 = vmatmul.mubr.bf16.gmra.mxu0 %v1254
        %v2855 = vpop.f32.mrf.mxu0
        %v2856 = vadd.f32 0.0, %v2855
        %v2857 = vpop.f32.mrf.mxu0
        %v2858 = vadd.f32 0.0, %v2857
        %v2859 = vpop.f32.mrf.mxu0
        %v2860 = vadd.f32 0.0, %v2859
        %v2861 = vpop.f32.mrf.mxu0
        %v2862 = vadd.f32 0.0, %v2861
        %2863 = vmatprep.mubr.bf16.mxu0 %v1260
        %2864 = vmatmul.mubr.bf16.gmra.mxu0 %v1259
        %v2865 = vpop.f32.mrf.mxu0
        %v2866 = vadd.f32 0.0, %v2865
        %v2867 = vpop.f32.mrf.mxu0
        %v2868 = vadd.f32 0.0, %v2867
        %v2869 = vpop.f32.mrf.mxu0
        %v2870 = vpop.f32.mrf.mxu0
        %2871 = vdwg.mxu0
        %2872 = vmatprep.subr.bf16.mxu0 %v2361
        %2873 = vmatpush1.bf16.msra.mxu0 %v2360
        %2874 = vmatprep.subr.bf16.mxu0 %v2353
        %2875 = vmatpush1.bf16.msra.mxu0 %v2352
        %2876 = vmatprep.subr.bf16.mxu0 %v2345
        %2877 = vmatpush1.bf16.msra.mxu0 %v2344
        %2878 = vmatprep.subr.bf16.mxu0 %v2337
        %2879 = vmatpush1.bf16.msra.mxu0 %v2336
        %2880 = vmatprep.subr.bf16.mxu0 %v2329
        %2881 = vmatpush1.bf16.msra.mxu0 %v2328
        %2882 = vmatprep.subr.bf16.mxu0 %v2321
        %2883 = vmatpush1.bf16.msra.mxu0 %v2320
        %2884 = vmatprep.subr.bf16.mxu0 %v2313
        %2885 = vmatpush1.bf16.msra.mxu0 %v2312
        %2886 = vmatprep.subr.bf16.mxu0 %v2305
        %2887 = vmatpush1.bf16.msra.mxu0 %v2304
        %2888 = vmatprep.subr.bf16.mxu0 %v2425
        %2889 = vmatpush2.bf16.msra.mxu0 %v2424
        %2890 = vmatprep.subr.bf16.mxu0 %v2417
        %2891 = vmatpush2.bf16.msra.mxu0 %v2416
        %2892 = vmatprep.subr.bf16.mxu0 %v2409
        %2893 = vmatpush2.bf16.msra.mxu0 %v2408
        %2894 = vmatprep.subr.bf16.mxu0 %v2401
        %2895 = vmatpush2.bf16.msra.mxu0 %v2400
        %2896 = vmatprep.subr.bf16.mxu0 %v2393
        %2897 = vmatpush2.bf16.msra.mxu0 %v2392
        %2898 = vmatprep.subr.bf16.mxu0 %v2385
        %2899 = vmatpush2.bf16.msra.mxu0 %v2384
        %2900 = vmatprep.subr.bf16.mxu0 %v2377
        %2901 = vmatpush2.bf16.msra.mxu0 %v2376
        %2902 = vmatprep.subr.bf16.mxu0 %v2369
        %2903 = vmatpush2.bf16.msra.mxu0 %v2368
        %2904 = vmatprep.mubr.bf16.mxu0 %v1252
        %2905 = vmatmul.mubr.bf16.gmra.mxu0 %v1251
        %v2906 = vpop.f32.mrf.mxu0
        %v2907 = vadd.f32 %v2846, %v2906
        %v2908 = vpop.f32.mrf.mxu0
        %v2909 = vadd.f32 %v2848, %v2908
        %v2910 = vpop.f32.mrf.mxu0
        %v2911 = vadd.f32 %v2850, %v2910
        %v2912 = vpop.f32.mrf.mxu0
        %v2913 = vadd.f32 %v2852, %v2912
        %2914 = vmatprep.mubr.bf16.mxu0 %v1257
        %2915 = vmatmul.mubr.bf16.gmra.mxu0 %v1256
        %v2916 = vpop.f32.mrf.mxu0
        %v2917 = vadd.f32 %v2856, %v2916
        %v2918 = vpop.f32.mrf.mxu0
        %v2919 = vadd.f32 %v2858, %v2918
        %v2920 = vpop.f32.mrf.mxu0
        %v2921 = vadd.f32 %v2860, %v2920
        %v2922 = vpop.f32.mrf.mxu0
        %v2923 = vadd.f32 %v2862, %v2922
        %2924 = vmatprep.mubr.bf16.mxu0 %v1262
        %2925 = vmatmul.mubr.bf16.gmra.mxu0 %v1261
        %v2926 = vpop.f32.mrf.mxu0
        %v2927 = vadd.f32 %v2866, %v2926
        %v2928 = vpop.f32.mrf.mxu0
        %v2929 = vadd.f32 %v2868, %v2928
        %v2930 = vpop.f32.mrf.mxu0
        %v2931 = vpop.f32.mrf.mxu0
        %2932 = vdwg.mxu0
        %2933 = vmatprep.subr.bf16.mxu0 0
        %2934 = vmatpush1.bf16.msra.mxu0 0
        %2935 = vmatprep.subr.bf16.mxu0 0
        %2936 = vmatpush1.bf16.msra.mxu0 0
        %2937 = vmatprep.subr.bf16.mxu0 %v2791
        %2938 = vmatpush1.bf16.msra.mxu0 %v2788
        %2939 = vmatprep.subr.bf16.mxu0 %v2465
        %2940 = vmatpush1.bf16.msra.mxu0 %v2464
        %2941 = vmatprep.subr.bf16.mxu0 %v2457
        %2942 = vmatpush1.bf16.msra.mxu0 %v2456
        %2943 = vmatprep.subr.bf16.mxu0 %v2449
        %2944 = vmatpush1.bf16.msra.mxu0 %v2448
        %2945 = vmatprep.subr.bf16.mxu0 %v2441
        %2946 = vmatpush1.bf16.msra.mxu0 %v2440
        %2947 = vmatprep.subr.bf16.mxu0 %v2433
        %2948 = vmatpush1.bf16.msra.mxu0 %v2432
        %2949 = vmatprep.subr.bf16.mxu0 0
        %2950 = vmatpush2.bf16.msra.mxu0 0
        %2951 = vmatprep.subr.bf16.mxu0 0
        %2952 = vmatpush2.bf16.msra.mxu0 0
        %2953 = vmatprep.subr.bf16.mxu0 0
        %2954 = vmatpush2.bf16.msra.mxu0 0
        %2955 = vmatprep.subr.bf16.mxu0 0
        %2956 = vmatpush2.bf16.msra.mxu0 0
        %2957 = vmatprep.subr.bf16.mxu0 0
        %2958 = vmatpush2.bf16.msra.mxu0 0
        %2959 = vmatprep.subr.bf16.mxu0 0
        %2960 = vmatpush2.bf16.msra.mxu0 0
        %2961 = vmatprep.subr.bf16.mxu0 0
        %2962 = vmatpush2.bf16.msra.mxu0 0
        %2963 = vmatprep.subr.bf16.mxu0 0
        %2964 = vmatpush2.bf16.msra.mxu0 0
        %2965 = vmatprep.mubr.bf16.mxu0 0
        %2966 = vmatmul.mubr.bf16.gmra.mxu0 %v2778
        %v2967 = vpop.f32.mrf.mxu0
        %v2968 = vadd.f32 %v2907, %v2967
        %v2969 = vpop.f32.mrf.mxu0
        %v2970 = vadd.f32 %v2909, %v2969
        %v2971 = vpop.f32.mrf.mxu0
        %v2972 = vadd.f32 %v2911, %v2971
        %v2973 = vpop.f32.mrf.mxu0
        %v2974 = vadd.f32 %v2913, %v2973
        %2975 = vmatprep.mubr.bf16.mxu0 0
        %2976 = vmatmul.mubr.bf16.gmra.mxu0 %v2781
        %v2977 = vpop.f32.mrf.mxu0
        %v2978 = vadd.f32 %v2917, %v2977
        %v2979 = vpop.f32.mrf.mxu0
        %v2980 = vadd.f32 %v2919, %v2979
        %v2981 = vpop.f32.mrf.mxu0
        %v2982 = vadd.f32 %v2921, %v2981
        %v2983 = vpop.f32.mrf.mxu0
        %v2984 = vadd.f32 %v2923, %v2983
        %2985 = vmatprep.mubr.bf16.mxu0 0
        %2986 = vmatmul.mubr.bf16.gmra.mxu0 %v2784
        %v2987 = vpop.f32.mrf.mxu0
        %v2988 = vadd.f32 %v2927, %v2987
        %v2989 = vpop.f32.mrf.mxu0
        %v2990 = vadd.f32 %v2929, %v2989
        %v2991 = vpop.f32.mrf.mxu0
        %v2992 = vpop.f32.mrf.mxu0
        %2993 = vdwg.mxu0
        %2994 = vmatprep.subr.bf16.mxu0 %v2235
        %2995 = vmatpush1.bf16.msra.mxu0 %v2234
        %2996 = vmatprep.subr.bf16.mxu0 %v2227
        %2997 = vmatpush1.bf16.msra.mxu0 %v2226
        %2998 = vmatprep.subr.bf16.mxu0 %v2219
        %2999 = vmatpush1.bf16.msra.mxu0 %v2218
        %3000 = vmatprep.subr.bf16.mxu0 %v2211
        %3001 = vmatpush1.bf16.msra.mxu0 %v2210
        %3002 = vmatprep.subr.bf16.mxu0 %v2203
        %3003 = vmatpush1.bf16.msra.mxu0 %v2202
        %3004 = vmatprep.subr.bf16.mxu0 %v2195
        %3005 = vmatpush1.bf16.msra.mxu0 %v2194
        %3006 = vmatprep.subr.bf16.mxu0 %v2187
        %3007 = vmatpush1.bf16.msra.mxu0 %v2186
        %3008 = vmatprep.subr.bf16.mxu0 %v2179
        %3009 = vmatpush1.bf16.msra.mxu0 %v2178
        %3010 = vmatprep.subr.bf16.mxu0 %v2299
        %3011 = vmatpush2.bf16.msra.mxu0 %v2298
        %3012 = vmatprep.subr.bf16.mxu0 %v2291
        %3013 = vmatpush2.bf16.msra.mxu0 %v2290
        %3014 = vmatprep.subr.bf16.mxu0 %v2283
        %3015 = vmatpush2.bf16.msra.mxu0 %v2282
        %3016 = vmatprep.subr.bf16.mxu0 %v2275
        %3017 = vmatpush2.bf16.msra.mxu0 %v2274
        %3018 = vmatprep.subr.bf16.mxu0 %v2267
        %3019 = vmatpush2.bf16.msra.mxu0 %v2266
        %3020 = vmatprep.subr.bf16.mxu0 %v2259
        %3021 = vmatpush2.bf16.msra.mxu0 %v2258
        %3022 = vmatprep.subr.bf16.mxu0 %v2251
        %3023 = vmatpush2.bf16.msra.mxu0 %v2250
        %3024 = vmatprep.subr.bf16.mxu0 %v2243
        %3025 = vmatpush2.bf16.msra.mxu0 %v2242
        %3026 = vmatprep.mubr.bf16.mxu0 %v1250
        %3027 = vmatmul.mubr.bf16.gmra.mxu0 %v1249
        %v3028 = vpop.f32.mrf.mxu0
        %v3029 = vadd.f32 0.0, %v3028
        %v3030 = vpop.f32.mrf.mxu0
        %v3031 = vadd.f32 0.0, %v3030
        %v3032 = vpop.f32.mrf.mxu0
        %v3033 = vadd.f32 0.0, %v3032
        %v3034 = vpop.f32.mrf.mxu0
        %v3035 = vadd.f32 0.0, %v3034
        %3036 = vmatprep.mubr.bf16.mxu0 %v1255
        %3037 = vmatmul.mubr.bf16.gmra.mxu0 %v1254
        %v3038 = vpop.f32.mrf.mxu0
        %v3039 = vadd.f32 0.0, %v3038
        %v3040 = vpop.f32.mrf.mxu0
        %v3041 = vadd.f32 0.0, %v3040
        %v3042 = vpop.f32.mrf.mxu0
        %v3043 = vadd.f32 0.0, %v3042
        %v3044 = vpop.f32.mrf.mxu0
        %v3045 = vadd.f32 0.0, %v3044
        %3046 = vmatprep.mubr.bf16.mxu0 %v1260
        %3047 = vmatmul.mubr.bf16.gmra.mxu0 %v1259
        %v3048 = vpop.f32.mrf.mxu0
        %v3049 = vadd.f32 0.0, %v3048
        %v3050 = vpop.f32.mrf.mxu0
        %v3051 = vadd.f32 0.0, %v3050
        %v3052 = vpop.f32.mrf.mxu0
        %v3053 = vpop.f32.mrf.mxu0
        %3054 = vdwg.mxu0
        %3055 = vmatprep.subr.bf16.mxu0 %v2363
        %3056 = vmatpush1.bf16.msra.mxu0 %v2362
        %3057 = vmatprep.subr.bf16.mxu0 %v2355
        %3058 = vmatpush1.bf16.msra.mxu0 %v2354
        %3059 = vmatprep.subr.bf16.mxu0 %v2347
        %3060 = vmatpush1.bf16.msra.mxu0 %v2346
        %3061 = vmatprep.subr.bf16.mxu0 %v2339
        %3062 = vmatpush1.bf16.msra.mxu0 %v2338
        %3063 = vmatprep.subr.bf16.mxu0 %v2331
        %3064 = vmatpush1.bf16.msra.mxu0 %v2330
        %3065 = vmatprep.subr.bf16.mxu0 %v2323
        %3066 = vmatpush1.bf16.msra.mxu0 %v2322
        %3067 = vmatprep.subr.bf16.mxu0 %v2315
        %3068 = vmatpush1.bf16.msra.mxu0 %v2314
        %3069 = vmatprep.subr.bf16.mxu0 %v2307
        %3070 = vmatpush1.bf16.msra.mxu0 %v2306
        %3071 = vmatprep.subr.bf16.mxu0 %v2427
        %3072 = vmatpush2.bf16.msra.mxu0 %v2426
        %3073 = vmatprep.subr.bf16.mxu0 %v2419
        %3074 = vmatpush2.bf16.msra.mxu0 %v2418
        %3075 = vmatprep.subr.bf16.mxu0 %v2411
        %3076 = vmatpush2.bf16.msra.mxu0 %v2410
        %3077 = vmatprep.subr.bf16.mxu0 %v2403
        %3078 = vmatpush2.bf16.msra.mxu0 %v2402
        %3079 = vmatprep.subr.bf16.mxu0 %v2395
        %3080 = vmatpush2.bf16.msra.mxu0 %v2394
        %3081 = vmatprep.subr.bf16.mxu0 %v2387
        %3082 = vmatpush2.bf16.msra.mxu0 %v2386
        %3083 = vmatprep.subr.bf16.mxu0 %v2379
        %3084 = vmatpush2.bf16.msra.mxu0 %v2378
        %3085 = vmatprep.subr.bf16.mxu0 %v2371
        %3086 = vmatpush2.bf16.msra.mxu0 %v2370
        %3087 = vmatprep.mubr.bf16.mxu0 %v1252
        %3088 = vmatmul.mubr.bf16.gmra.mxu0 %v1251
        %v3089 = vpop.f32.mrf.mxu0
        %v3090 = vadd.f32 %v3029, %v3089
        %v3091 = vpop.f32.mrf.mxu0
        %v3092 = vadd.f32 %v3031, %v3091
        %v3093 = vpop.f32.mrf.mxu0
        %v3094 = vadd.f32 %v3033, %v3093
        %v3095 = vpop.f32.mrf.mxu0
        %v3096 = vadd.f32 %v3035, %v3095
        %3097 = vmatprep.mubr.bf16.mxu0 %v1257
        %3098 = vmatmul.mubr.bf16.gmra.mxu0 %v1256
        %v3099 = vpop.f32.mrf.mxu0
        %v3100 = vadd.f32 %v3039, %v3099
        %v3101 = vpop.f32.mrf.mxu0
        %v3102 = vadd.f32 %v3041, %v3101
        %v3103 = vpop.f32.mrf.mxu0
        %v3104 = vadd.f32 %v3043, %v3103
        %v3105 = vpop.f32.mrf.mxu0
        %v3106 = vadd.f32 %v3045, %v3105
        %3107 = vmatprep.mubr.bf16.mxu0 %v1262
        %3108 = vmatmul.mubr.bf16.gmra.mxu0 %v1261
        %v3109 = vpop.f32.mrf.mxu0
        %v3110 = vadd.f32 %v3049, %v3109
        %v3111 = vpop.f32.mrf.mxu0
        %v3112 = vadd.f32 %v3051, %v3111
        %v3113 = vpop.f32.mrf.mxu0
        %v3114 = vpop.f32.mrf.mxu0
        %3115 = vdwg.mxu0
        %3116 = vmatprep.subr.bf16.mxu0 0
        %3117 = vmatpush1.bf16.msra.mxu0 0
        %3118 = vmatprep.subr.bf16.mxu0 0
        %3119 = vmatpush1.bf16.msra.mxu0 0
        %3120 = vmatprep.subr.bf16.mxu0 %v2797
        %3121 = vmatpush1.bf16.msra.mxu0 %v2794
        %3122 = vmatprep.subr.bf16.mxu0 %v2467
        %3123 = vmatpush1.bf16.msra.mxu0 %v2466
        %3124 = vmatprep.subr.bf16.mxu0 %v2459
        %3125 = vmatpush1.bf16.msra.mxu0 %v2458
        %3126 = vmatprep.subr.bf16.mxu0 %v2451
        %3127 = vmatpush1.bf16.msra.mxu0 %v2450
        %3128 = vmatprep.subr.bf16.mxu0 %v2443
        %3129 = vmatpush1.bf16.msra.mxu0 %v2442
        %3130 = vmatprep.subr.bf16.mxu0 %v2435
        %3131 = vmatpush1.bf16.msra.mxu0 %v2434
        %3132 = vmatprep.subr.bf16.mxu0 0
        %3133 = vmatpush2.bf16.msra.mxu0 0
        %3134 = vmatprep.subr.bf16.mxu0 0
        %3135 = vmatpush2.bf16.msra.mxu0 0
        %3136 = vmatprep.subr.bf16.mxu0 0
        %3137 = vmatpush2.bf16.msra.mxu0 0
        %3138 = vmatprep.subr.bf16.mxu0 0
        %3139 = vmatpush2.bf16.msra.mxu0 0
        %3140 = vmatprep.subr.bf16.mxu0 0
        %3141 = vmatpush2.bf16.msra.mxu0 0
        %3142 = vmatprep.subr.bf16.mxu0 0
        %3143 = vmatpush2.bf16.msra.mxu0 0
        %3144 = vmatprep.subr.bf16.mxu0 0
        %3145 = vmatpush2.bf16.msra.mxu0 0
        %3146 = vmatprep.subr.bf16.mxu0 0
        %3147 = vmatpush2.bf16.msra.mxu0 0
        %3148 = vmatprep.mubr.bf16.mxu0 0
        %3149 = vmatmul.mubr.bf16.gmra.mxu0 %v2778
        %v3150 = vpop.f32.mrf.mxu0
        %v3151 = vadd.f32 %v3090, %v3150
        %v3152 = vpop.f32.mrf.mxu0
        %v3153 = vadd.f32 %v3092, %v3152
        %v3154 = vpop.f32.mrf.mxu0
        %v3155 = vadd.f32 %v3094, %v3154
        %v3156 = vpop.f32.mrf.mxu0
        %v3157 = vadd.f32 %v3096, %v3156
        %3158 = vmatprep.mubr.bf16.mxu0 0
        %3159 = vmatmul.mubr.bf16.gmra.mxu0 %v2781
        %v3160 = vpop.f32.mrf.mxu0
        %v3161 = vadd.f32 %v3100, %v3160
        %v3162 = vpop.f32.mrf.mxu0
        %v3163 = vadd.f32 %v3102, %v3162
        %v3164 = vpop.f32.mrf.mxu0
        %v3165 = vadd.f32 %v3104, %v3164
        %v3166 = vpop.f32.mrf.mxu0
        %v3167 = vadd.f32 %v3106, %v3166
        %3168 = vmatprep.mubr.bf16.mxu0 0
        %3169 = vmatmul.mubr.bf16.gmra.mxu0 %v2784
        %v3170 = vpop.f32.mrf.mxu0
        %v3171 = vadd.f32 %v3110, %v3170
        %v3172 = vpop.f32.mrf.mxu0
        %v3173 = vadd.f32 %v3112, %v3172
        %v3174 = vpop.f32.mrf.mxu0
        %v3175 = vpop.f32.mrf.mxu0
        %3176 = vdwg.mxu0
        %3177 = vmatprep.subr.bf16.mxu0 %v2237
        %3178 = vmatpush1.bf16.msra.mxu0 %v2236
        %3179 = vmatprep.subr.bf16.mxu0 %v2229
        %3180 = vmatpush1.bf16.msra.mxu0 %v2228
        %3181 = vmatprep.subr.bf16.mxu0 %v2221
        %3182 = vmatpush1.bf16.msra.mxu0 %v2220
        %3183 = vmatprep.subr.bf16.mxu0 %v2213
        %3184 = vmatpush1.bf16.msra.mxu0 %v2212
        %3185 = vmatprep.subr.bf16.mxu0 %v2205
        %3186 = vmatpush1.bf16.msra.mxu0 %v2204
        %3187 = vmatprep.subr.bf16.mxu0 %v2197
        %3188 = vmatpush1.bf16.msra.mxu0 %v2196
        %3189 = vmatprep.subr.bf16.mxu0 %v2189
        %3190 = vmatpush1.bf16.msra.mxu0 %v2188
        %3191 = vmatprep.subr.bf16.mxu0 %v2181
        %3192 = vmatpush1.bf16.msra.mxu0 %v2180
        %3193 = vmatprep.subr.bf16.mxu0 %v2301
        %3194 = vmatpush2.bf16.msra.mxu0 %v2300
        %3195 = vmatprep.subr.bf16.mxu0 %v2293
        %3196 = vmatpush2.bf16.msra.mxu0 %v2292
        %3197 = vmatprep.subr.bf16.mxu0 %v2285
        %3198 = vmatpush2.bf16.msra.mxu0 %v2284
        %3199 = vmatprep.subr.bf16.mxu0 %v2277
        %3200 = vmatpush2.bf16.msra.mxu0 %v2276
        %3201 = vmatprep.subr.bf16.mxu0 %v2269
        %3202 = vmatpush2.bf16.msra.mxu0 %v2268
        %3203 = vmatprep.subr.bf16.mxu0 %v2261
        %3204 = vmatpush2.bf16.msra.mxu0 %v2260
        %3205 = vmatprep.subr.bf16.mxu0 %v2253
        %3206 = vmatpush2.bf16.msra.mxu0 %v2252
        %3207 = vmatprep.subr.bf16.mxu0 %v2245
        %3208 = vmatpush2.bf16.msra.mxu0 %v2244
        %3209 = vmatprep.mubr.bf16.mxu0 %v1250
        %3210 = vmatmul.mubr.bf16.gmra.mxu0 %v1249
        %v3211 = vpop.f32.mrf.mxu0
        %v3212 = vadd.f32 0.0, %v3211
        %v3213 = vpop.f32.mrf.mxu0
        %v3214 = vadd.f32 0.0, %v3213
        %v3215 = vpop.f32.mrf.mxu0
        %v3216 = vadd.f32 0.0, %v3215
        %v3217 = vpop.f32.mrf.mxu0
        %v3218 = vadd.f32 0.0, %v3217
        %3219 = vmatprep.mubr.bf16.mxu0 %v1255
        %3220 = vmatmul.mubr.bf16.gmra.mxu0 %v1254
        %v3221 = vpop.f32.mrf.mxu0
        %v3222 = vadd.f32 0.0, %v3221
        %v3223 = vpop.f32.mrf.mxu0
        %v3224 = vadd.f32 0.0, %v3223
        %v3225 = vpop.f32.mrf.mxu0
        %v3226 = vadd.f32 0.0, %v3225
        %v3227 = vpop.f32.mrf.mxu0
        %v3228 = vadd.f32 0.0, %v3227
        %3229 = vmatprep.mubr.bf16.mxu0 %v1260
        %3230 = vmatmul.mubr.bf16.gmra.mxu0 %v1259
        %v3231 = vpop.f32.mrf.mxu0
        %v3232 = vadd.f32 0.0, %v3231
        %v3233 = vpop.f32.mrf.mxu0
        %v3234 = vadd.f32 0.0, %v3233
        %v3235 = vpop.f32.mrf.mxu0
        %v3236 = vpop.f32.mrf.mxu0
        %3237 = vdwg.mxu0
        %3238 = vmatprep.subr.bf16.mxu0 %v2365
        %3239 = vmatpush1.bf16.msra.mxu0 %v2364
        %3240 = vmatprep.subr.bf16.mxu0 %v2357
        %3241 = vmatpush1.bf16.msra.mxu0 %v2356
        %3242 = vmatprep.subr.bf16.mxu0 %v2349
        %3243 = vmatpush1.bf16.msra.mxu0 %v2348
        %3244 = vmatprep.subr.bf16.mxu0 %v2341
        %3245 = vmatpush1.bf16.msra.mxu0 %v2340
        %3246 = vmatprep.subr.bf16.mxu0 %v2333
        %3247 = vmatpush1.bf16.msra.mxu0 %v2332
        %3248 = vmatprep.subr.bf16.mxu0 %v2325
        %3249 = vmatpush1.bf16.msra.mxu0 %v2324
        %3250 = vmatprep.subr.bf16.mxu0 %v2317
        %3251 = vmatpush1.bf16.msra.mxu0 %v2316
        %3252 = vmatprep.subr.bf16.mxu0 %v2309
        %3253 = vmatpush1.bf16.msra.mxu0 %v2308
        %3254 = vmatprep.subr.bf16.mxu0 %v2429
        %3255 = vmatpush2.bf16.msra.mxu0 %v2428
        %3256 = vmatprep.subr.bf16.mxu0 %v2421
        %3257 = vmatpush2.bf16.msra.mxu0 %v2420
        %3258 = vmatprep.subr.bf16.mxu0 %v2413
        %3259 = vmatpush2.bf16.msra.mxu0 %v2412
        %3260 = vmatprep.subr.bf16.mxu0 %v2405
        %3261 = vmatpush2.bf16.msra.mxu0 %v2404
        %3262 = vmatprep.subr.bf16.mxu0 %v2397
        %3263 = vmatpush2.bf16.msra.mxu0 %v2396
        %3264 = vmatprep.subr.bf16.mxu0 %v2389
        %3265 = vmatpush2.bf16.msra.mxu0 %v2388
        %3266 = vmatprep.subr.bf16.mxu0 %v2381
        %3267 = vmatpush2.bf16.msra.mxu0 %v2380
        %3268 = vmatprep.subr.bf16.mxu0 %v2373
        %3269 = vmatpush2.bf16.msra.mxu0 %v2372
        %3270 = vmatprep.mubr.bf16.mxu0 %v1252
        %3271 = vmatmul.mubr.bf16.gmra.mxu0 %v1251
        %v3272 = vpop.f32.mrf.mxu0
        %v3273 = vadd.f32 %v3212, %v3272
        %v3274 = vpop.f32.mrf.mxu0
        %v3275 = vadd.f32 %v3214, %v3274
        %v3276 = vpop.f32.mrf.mxu0
        %v3277 = vadd.f32 %v3216, %v3276
        %v3278 = vpop.f32.mrf.mxu0
        %v3279 = vadd.f32 %v3218, %v3278
        %3280 = vmatprep.mubr.bf16.mxu0 %v1257
        %3281 = vmatmul.mubr.bf16.gmra.mxu0 %v1256
        %v3282 = vpop.f32.mrf.mxu0
        %v3283 = vadd.f32 %v3222, %v3282
        %v3284 = vpop.f32.mrf.mxu0
        %v3285 = vadd.f32 %v3224, %v3284
        %v3286 = vpop.f32.mrf.mxu0
        %v3287 = vadd.f32 %v3226, %v3286
        %v3288 = vpop.f32.mrf.mxu0
        %v3289 = vadd.f32 %v3228, %v3288
        %3290 = vmatprep.mubr.bf16.mxu0 %v1262
        %3291 = vmatmul.mubr.bf16.gmra.mxu0 %v1261
        %v3292 = vpop.f32.mrf.mxu0
        %v3293 = vadd.f32 %v3232, %v3292
        %v3294 = vpop.f32.mrf.mxu0
        %v3295 = vadd.f32 %v3234, %v3294
        %v3296 = vpop.f32.mrf.mxu0
        %v3297 = vpop.f32.mrf.mxu0
        %3298 = vdwg.mxu0
        %3299 = vmatprep.subr.bf16.mxu0 0
        %3300 = vmatpush1.bf16.msra.mxu0 0
        %3301 = vmatprep.subr.bf16.mxu0 0
        %3302 = vmatpush1.bf16.msra.mxu0 0
        %3303 = vmatprep.subr.bf16.mxu0 %v2803
        %3304 = vmatpush1.bf16.msra.mxu0 %v2800
        %3305 = vmatprep.subr.bf16.mxu0 %v2469
        %3306 = vmatpush1.bf16.msra.mxu0 %v2468
        %3307 = vmatprep.subr.bf16.mxu0 %v2461
        %3308 = vmatpush1.bf16.msra.mxu0 %v2460
        %3309 = vmatprep.subr.bf16.mxu0 %v2453
        %3310 = vmatpush1.bf16.msra.mxu0 %v2452
        %3311 = vmatprep.subr.bf16.mxu0 %v2445
        %3312 = vmatpush1.bf16.msra.mxu0 %v2444
        %3313 = vmatprep.subr.bf16.mxu0 %v2437
        %3314 = vmatpush1.bf16.msra.mxu0 %v2436
        %3315 = vmatprep.subr.bf16.mxu0 0
        %3316 = vmatpush2.bf16.msra.mxu0 0
        %3317 = vmatprep.subr.bf16.mxu0 0
        %3318 = vmatpush2.bf16.msra.mxu0 0
        %3319 = vmatprep.subr.bf16.mxu0 0
        %3320 = vmatpush2.bf16.msra.mxu0 0
        %3321 = vmatprep.subr.bf16.mxu0 0
        %3322 = vmatpush2.bf16.msra.mxu0 0
        %3323 = vmatprep.subr.bf16.mxu0 0
        %3324 = vmatpush2.bf16.msra.mxu0 0
        %3325 = vmatprep.subr.bf16.mxu0 0
        %3326 = vmatpush2.bf16.msra.mxu0 0
        %3327 = vmatprep.subr.bf16.mxu0 0
        %3328 = vmatpush2.bf16.msra.mxu0 0
        %3329 = vmatprep.subr.bf16.mxu0 0
        %3330 = vmatpush2.bf16.msra.mxu0 0
        %3331 = vmatprep.mubr.bf16.mxu0 0
        %3332 = vmatmul.mubr.bf16.gmra.mxu0 %v2778
        %v3333 = vpop.f32.mrf.mxu0
        %v3334 = vadd.f32 %v3273, %v3333
        %v3335 = vpop.f32.mrf.mxu0
        %v3336 = vadd.f32 %v3275, %v3335
        %v3337 = vpop.f32.mrf.mxu0
        %v3338 = vadd.f32 %v3277, %v3337
        %v3339 = vpop.f32.mrf.mxu0
        %v3340 = vadd.f32 %v3279, %v3339
        %3341 = vmatprep.mubr.bf16.mxu0 0
        %3342 = vmatmul.mubr.bf16.gmra.mxu0 %v2781
        %v3343 = vpop.f32.mrf.mxu0
        %v3344 = vadd.f32 %v3283, %v3343
        %v3345 = vpop.f32.mrf.mxu0
        %v3346 = vadd.f32 %v3285, %v3345
        %v3347 = vpop.f32.mrf.mxu0
        %v3348 = vadd.f32 %v3287, %v3347
        %v3349 = vpop.f32.mrf.mxu0
        %v3350 = vadd.f32 %v3289, %v3349
        %3351 = vmatprep.mubr.bf16.mxu0 0
        %3352 = vmatmul.mubr.bf16.gmra.mxu0 %v2784
        %v3353 = vpop.f32.mrf.mxu0
        %v3354 = vadd.f32 %v3293, %v3353
        %v3355 = vpop.f32.mrf.mxu0
        %v3356 = vadd.f32 %v3295, %v3355
        %v3357 = vpop.f32.mrf.mxu0
        %v3358 = vpop.f32.mrf.mxu0
        %3359 = vdwg.mxu0
        %3360 = vmatprep.subr.bf16.mxu0 %v2239
        %3361 = vmatpush1.bf16.msra.mxu0 %v2238
        %3362 = vmatprep.subr.bf16.mxu0 %v2231
        %3363 = vmatpush1.bf16.msra.mxu0 %v2230
        %3364 = vmatprep.subr.bf16.mxu0 %v2223
        %3365 = vmatpush1.bf16.msra.mxu0 %v2222
        %3366 = vmatprep.subr.bf16.mxu0 %v2215
        %3367 = vmatpush1.bf16.msra.mxu0 %v2214
        %3368 = vmatprep.subr.bf16.mxu0 %v2207
        %3369 = vmatpush1.bf16.msra.mxu0 %v2206
        %3370 = vmatprep.subr.bf16.mxu0 %v2199
        %3371 = vmatpush1.bf16.msra.mxu0 %v2198
        %3372 = vmatprep.subr.bf16.mxu0 %v2191
        %3373 = vmatpush1.bf16.msra.mxu0 %v2190
        %3374 = vmatprep.subr.bf16.mxu0 %v2183
        %3375 = vmatpush1.bf16.msra.mxu0 %v2182
        %3376 = vmatprep.subr.bf16.mxu0 %v2303
        %3377 = vmatpush2.bf16.msra.mxu0 %v2302
        %3378 = vmatprep.subr.bf16.mxu0 %v2295
        %3379 = vmatpush2.bf16.msra.mxu0 %v2294
        %3380 = vmatprep.subr.bf16.mxu0 %v2287
        %3381 = vmatpush2.bf16.msra.mxu0 %v2286
        %3382 = vmatprep.subr.bf16.mxu0 %v2279
        %3383 = vmatpush2.bf16.msra.mxu0 %v2278
        %3384 = vmatprep.subr.bf16.mxu0 %v2271
        %3385 = vmatpush2.bf16.msra.mxu0 %v2270
        %3386 = vmatprep.subr.bf16.mxu0 %v2263
        %3387 = vmatpush2.bf16.msra.mxu0 %v2262
        %3388 = vmatprep.subr.bf16.mxu0 %v2255
        %3389 = vmatpush2.bf16.msra.mxu0 %v2254
        %3390 = vmatprep.subr.bf16.mxu0 %v2247
        %3391 = vmatpush2.bf16.msra.mxu0 %v2246
        %3392 = vmatprep.mubr.bf16.mxu0 %v1250
        %3393 = vmatmul.mubr.bf16.gmra.mxu0 %v1249
        %v3394 = vpop.f32.mrf.mxu0
        %v3395 = vadd.f32 0.0, %v3394
        %v3396 = vpop.f32.mrf.mxu0
        %v3397 = vadd.f32 0.0, %v3396
        %v3398 = vpop.f32.mrf.mxu0
        %v3399 = vadd.f32 0.0, %v3398
        %v3400 = vpop.f32.mrf.mxu0
        %v3401 = vadd.f32 0.0, %v3400
        %3402 = vmatprep.mubr.bf16.mxu0 %v1255
        %3403 = vmatmul.mubr.bf16.gmra.mxu0 %v1254
        %v3404 = vpop.f32.mrf.mxu0
        %v3405 = vadd.f32 0.0, %v3404
        %v3406 = vpop.f32.mrf.mxu0
        %v3407 = vadd.f32 0.0, %v3406
        %v3408 = vpop.f32.mrf.mxu0
        %v3409 = vadd.f32 0.0, %v3408
        %v3410 = vpop.f32.mrf.mxu0
        %v3411 = vadd.f32 0.0, %v3410
        %3412 = vmatprep.mubr.bf16.mxu0 %v1260
        %3413 = vmatmul.mubr.bf16.gmra.mxu0 %v1259
        %v3414 = vpop.f32.mrf.mxu0
        %v3415 = vadd.f32 0.0, %v3414
        %v3416 = vpop.f32.mrf.mxu0
        %v3417 = vadd.f32 0.0, %v3416
        %v3418 = vpop.f32.mrf.mxu0
        %v3419 = vpop.f32.mrf.mxu0
        %3420 = vdwg.mxu0
        %3421 = vmatprep.subr.bf16.mxu0 %v2367
        %3422 = vmatpush1.bf16.msra.mxu0 %v2366
        %3423 = vmatprep.subr.bf16.mxu0 %v2359
        %3424 = vmatpush1.bf16.msra.mxu0 %v2358
        %3425 = vmatprep.subr.bf16.mxu0 %v2351
        %3426 = vmatpush1.bf16.msra.mxu0 %v2350
        %3427 = vmatprep.subr.bf16.mxu0 %v2343
        %3428 = vmatpush1.bf16.msra.mxu0 %v2342
        %3429 = vmatprep.subr.bf16.mxu0 %v2335
        %3430 = vmatpush1.bf16.msra.mxu0 %v2334
        %3431 = vmatprep.subr.bf16.mxu0 %v2327
        %3432 = vmatpush1.bf16.msra.mxu0 %v2326
        %3433 = vmatprep.subr.bf16.mxu0 %v2319
        %3434 = vmatpush1.bf16.msra.mxu0 %v2318
        %3435 = vmatprep.subr.bf16.mxu0 %v2311
        %3436 = vmatpush1.bf16.msra.mxu0 %v2310
        %3437 = vmatprep.subr.bf16.mxu0 %v2431
        %3438 = vmatpush2.bf16.msra.mxu0 %v2430
        %3439 = vmatprep.subr.bf16.mxu0 %v2423
        %3440 = vmatpush2.bf16.msra.mxu0 %v2422
        %3441 = vmatprep.subr.bf16.mxu0 %v2415
        %3442 = vmatpush2.bf16.msra.mxu0 %v2414
        %3443 = vmatprep.subr.bf16.mxu0 %v2407
        %3444 = vmatpush2.bf16.msra.mxu0 %v2406
        %3445 = vmatprep.subr.bf16.mxu0 %v2399
        %3446 = vmatpush2.bf16.msra.mxu0 %v2398
        %3447 = vmatprep.subr.bf16.mxu0 %v2391
        %3448 = vmatpush2.bf16.msra.mxu0 %v2390
        %3449 = vmatprep.subr.bf16.mxu0 %v2383
        %3450 = vmatpush2.bf16.msra.mxu0 %v2382
        %3451 = vmatprep.subr.bf16.mxu0 %v2375
        %3452 = vmatpush2.bf16.msra.mxu0 %v2374
        %3453 = vmatprep.mubr.bf16.mxu0 %v1252
        %3454 = vmatmul.mubr.bf16.gmra.mxu0 %v1251
        %v3455 = vpop.f32.mrf.mxu0
        %v3456 = vadd.f32 %v3395, %v3455
        %v3457 = vpop.f32.mrf.mxu0
        %v3458 = vadd.f32 %v3397, %v3457
        %v3459 = vpop.f32.mrf.mxu0
        %v3460 = vadd.f32 %v3399, %v3459
        %v3461 = vpop.f32.mrf.mxu0
        %v3462 = vadd.f32 %v3401, %v3461
        %3463 = vmatprep.mubr.bf16.mxu0 %v1257
        %3464 = vmatmul.mubr.bf16.gmra.mxu0 %v1256
        %v3465 = vpop.f32.mrf.mxu0
        %v3466 = vadd.f32 %v3405, %v3465
        %v3467 = vpop.f32.mrf.mxu0
        %v3468 = vadd.f32 %v3407, %v3467
        %v3469 = vpop.f32.mrf.mxu0
        %v3470 = vadd.f32 %v3409, %v3469
        %v3471 = vpop.f32.mrf.mxu0
        %v3472 = vadd.f32 %v3411, %v3471
        %3473 = vmatprep.mubr.bf16.mxu0 %v1262
        %3474 = vmatmul.mubr.bf16.gmra.mxu0 %v1261
        %v3475 = vpop.f32.mrf.mxu0
        %v3476 = vadd.f32 %v3415, %v3475
        %v3477 = vpop.f32.mrf.mxu0
        %v3478 = vadd.f32 %v3417, %v3477
        %v3479 = vpop.f32.mrf.mxu0
        %v3480 = vpop.f32.mrf.mxu0
        %3481 = vdwg.mxu0
        %3482 = vmatprep.subr.bf16.mxu0 0
        %3483 = vmatpush1.bf16.msra.mxu0 0
        %3484 = vmatprep.subr.bf16.mxu0 0
        %3485 = vmatpush1.bf16.msra.mxu0 0
        %3486 = vmatprep.subr.bf16.mxu0 %v2809
        %3487 = vmatpush1.bf16.msra.mxu0 %v2806
        %3488 = vmatprep.subr.bf16.mxu0 %v2471
        %3489 = vmatpush1.bf16.msra.mxu0 %v2470
        %3490 = vmatprep.subr.bf16.mxu0 %v2463
        %3491 = vmatpush1.bf16.msra.mxu0 %v2462
        %3492 = vmatprep.subr.bf16.mxu0 %v2455
        %3493 = vmatpush1.bf16.msra.mxu0 %v2454
        %3494 = vmatprep.subr.bf16.mxu0 %v2447
        %3495 = vmatpush1.bf16.msra.mxu0 %v2446
        %3496 = vmatprep.subr.bf16.mxu0 %v2439
        %3497 = vmatpush1.bf16.msra.mxu0 %v2438
        %3498 = vmatprep.subr.bf16.mxu0 0
        %3499 = vmatpush2.bf16.msra.mxu0 0
        %3500 = vmatprep.subr.bf16.mxu0 0
        %3501 = vmatpush2.bf16.msra.mxu0 0
        %3502 = vmatprep.subr.bf16.mxu0 0
        %3503 = vmatpush2.bf16.msra.mxu0 0
        %3504 = vmatprep.subr.bf16.mxu0 0
        %3505 = vmatpush2.bf16.msra.mxu0 0
        %3506 = vmatprep.subr.bf16.mxu0 0
        %3507 = vmatpush2.bf16.msra.mxu0 0
        %3508 = vmatprep.subr.bf16.mxu0 0
        %3509 = vmatpush2.bf16.msra.mxu0 0
        %3510 = vmatprep.subr.bf16.mxu0 0
        %3511 = vmatpush2.bf16.msra.mxu0 0
        %3512 = vmatprep.subr.bf16.mxu0 0
        %3513 = vmatpush2.bf16.msra.mxu0 0
        %3514 = vmatprep.mubr.bf16.mxu0 0
        %3515 = vmatmul.mubr.bf16.gmra.mxu0 %v2778
        %v3516 = vpop.f32.mrf.mxu0
        %v3517 = vadd.f32 %v3456, %v3516
        %v3518 = vpop.f32.mrf.mxu0
        %v3519 = vadd.f32 %v3458, %v3518
        %v3520 = vpop.f32.mrf.mxu0
        %v3521 = vadd.f32 %v3460, %v3520
        %v3522 = vpop.f32.mrf.mxu0
        %v3523 = vadd.f32 %v3462, %v3522
        %3524 = vmatprep.mubr.bf16.mxu0 0
        %3525 = vmatmul.mubr.bf16.gmra.mxu0 %v2781
        %v3526 = vpop.f32.mrf.mxu0
        %v3527 = vadd.f32 %v3466, %v3526
        %v3528 = vpop.f32.mrf.mxu0
        %v3529 = vadd.f32 %v3468, %v3528
        %v3530 = vpop.f32.mrf.mxu0
        %v3531 = vadd.f32 %v3470, %v3530
        %v3532 = vpop.f32.mrf.mxu0
        %v3533 = vadd.f32 %v3472, %v3532
        %3534 = vmatprep.mubr.bf16.mxu0 0
        %3535 = vmatmul.mubr.bf16.gmra.mxu0 %v2784
        %v3536 = vpop.f32.mrf.mxu0
        %v3537 = vadd.f32 %v3476, %v3536
        %v3538 = vpop.f32.mrf.mxu0
        %v3539 = vadd.f32 %v3478, %v3538
        %v3540 = vpop.f32.mrf.mxu0
        %v3541 = vpop.f32.mrf.mxu0
        %3542 = vdwg.mxu0
        %v3543 = vld [vmem:[%s2] sm:$0xff]
        %v3544 = vld [vmem:[%s2 + $0x8] sm:$0xff]
        %v3545 = vld [vmem:[%s2 + $0x10] sm:$0xff]
        %v3546 = vld [vmem:[%s2 + $0x18] sm:$0xff]
        %v3547 = vld [vmem:[%s2 + $0x20] sm:$0xf]
        %3549 = vset.pattern.permute.xlu0 0
        %3550 = vperm.xlu0 %3549, %v3543
        %v3551 = vpop.permute.xlu0 %3550
        %3554 = vset.pattern.permute.xlu0 0
        %3555 = vperm.xlu0 %3554, %v3544
        %v3556 = vpop.permute.xlu0 %3555
        %3559 = vset.pattern.permute.xlu0 0
        %3560 = vperm.xlu0 %3559, %v3545
        %v3561 = vpop.permute.xlu0 %3560
        %3564 = vset.pattern.permute.xlu0 0
        %3565 = vperm.xlu0 %3564, %v3546
        %v3566 = vpop.permute.xlu0 %3565
        %3569 = vset.pattern.permute.xlu0 0
        %3570 = vperm.xlu0 %3569, %v3547
        %v3571 = vpop.permute.xlu0 %3570
        %v3573 = vmul.f32 %v2968, %v3551
        %v3574 = vmul.f32 %v2970, %v3551
        %v3575 = vmul.f32 %v3151, %v3551
        %v3576 = vmul.f32 %v3153, %v3551
        %v3577 = vmul.f32 %v3334, %v3551
        %v3578 = vmul.f32 %v3336, %v3551
        %v3579 = vmul.f32 %v3517, %v3551
        %v3580 = vmul.f32 %v3519, %v3551
        %v3581 = vmul.f32 %v2972, %v3556
        %v3582 = vmul.f32 %v2974, %v3556
        %v3583 = vmul.f32 %v3155, %v3556
        %v3584 = vmul.f32 %v3157, %v3556
        %v3585 = vmul.f32 %v3338, %v3556
        %v3586 = vmul.f32 %v3340, %v3556
        %v3587 = vmul.f32 %v3521, %v3556
        %v3588 = vmul.f32 %v3523, %v3556
        %v3589 = vmul.f32 %v2978, %v3561
        %v3590 = vmul.f32 %v2980, %v3561
        %v3591 = vmul.f32 %v3161, %v3561
        %v3592 = vmul.f32 %v3163, %v3561
        %v3593 = vmul.f32 %v3344, %v3561
        %v3594 = vmul.f32 %v3346, %v3561
        %v3595 = vmul.f32 %v3527, %v3561
        %v3596 = vmul.f32 %v3529, %v3561
        %v3597 = vmul.f32 %v2982, %v3566
        %v3598 = vmul.f32 %v2984, %v3566
        %v3599 = vmul.f32 %v3165, %v3566
        %v3600 = vmul.f32 %v3167, %v3566
        %v3601 = vmul.f32 %v3348, %v3566
        %v3602 = vmul.f32 %v3350, %v3566
        %v3603 = vmul.f32 %v3531, %v3566
        %v3604 = vmul.f32 %v3533, %v3566
        %v3605 = vmul.f32 %v2988, %v3571
        %v3606 = vmul.f32 %v2990, %v3571
        %v3607 = vmul.f32 %v3171, %v3571
        %v3608 = vmul.f32 %v3173, %v3571
        %v3609 = vmul.f32 %v3354, %v3571
        %v3610 = vmul.f32 %v3356, %v3571
        %v3611 = vmul.f32 %v3537, %v3571
        %v3612 = vmul.f32 %v3539, %v3571
        %v3613 = vld [vmem:[%s3] sm:$0xff]
        %v3614 = vld [vmem:[%s3 + $0x8] sm:$0xff]
        %v3615 = vld [vmem:[%s3 + $0x10] sm:$0xff]
        %v3616 = vld [vmem:[%s3 + $0x18] sm:$0xff]
        %v3617 = vld [vmem:[%s3 + $0x20] sm:$0xf]
        %3619 = vset.pattern.permute.xlu0 0
        %3620 = vperm.xlu0 %3619, %v3613
        %v3621 = vpop.permute.xlu0 %3620
        %3624 = vset.pattern.permute.xlu0 0
        %3625 = vperm.xlu0 %3624, %v3614
        %v3626 = vpop.permute.xlu0 %3625
        %3629 = vset.pattern.permute.xlu0 0
        %3630 = vperm.xlu0 %3629, %v3615
        %v3631 = vpop.permute.xlu0 %3630
        %3634 = vset.pattern.permute.xlu0 0
        %3635 = vperm.xlu0 %3634, %v3616
        %v3636 = vpop.permute.xlu0 %3635
        %3639 = vset.pattern.permute.xlu0 0
        %3640 = vperm.xlu0 %3639, %v3617
        %v3641 = vpop.permute.xlu0 %3640
        %v3643 = vadd.f32 %v3573, %v3621
        %v3644 = vadd.f32 %v3574, %v3621
        %v3645 = vadd.f32 %v3575, %v3621
        %v3646 = vadd.f32 %v3576, %v3621
        %v3647 = vadd.f32 %v3577, %v3621
        %v3648 = vadd.f32 %v3578, %v3621
        %v3649 = vadd.f32 %v3579, %v3621
        %v3650 = vadd.f32 %v3580, %v3621
        %v3651 = vadd.f32 %v3581, %v3626
        %v3652 = vadd.f32 %v3582, %v3626
        %v3653 = vadd.f32 %v3583, %v3626
        %v3654 = vadd.f32 %v3584, %v3626
        %v3655 = vadd.f32 %v3585, %v3626
        %v3656 = vadd.f32 %v3586, %v3626
        %v3657 = vadd.f32 %v3587, %v3626
        %v3658 = vadd.f32 %v3588, %v3626
        %v3659 = vadd.f32 %v3589, %v3631
        %v3660 = vadd.f32 %v3590, %v3631
        %v3661 = vadd.f32 %v3591, %v3631
        %v3662 = vadd.f32 %v3592, %v3631
        %v3663 = vadd.f32 %v3593, %v3631
        %v3664 = vadd.f32 %v3594, %v3631
        %v3665 = vadd.f32 %v3595, %v3631
        %v3666 = vadd.f32 %v3596, %v3631
        %v3667 = vadd.f32 %v3597, %v3636
        %v3668 = vadd.f32 %v3598, %v3636
        %v3669 = vadd.f32 %v3599, %v3636
        %v3670 = vadd.f32 %v3600, %v3636
        %v3671 = vadd.f32 %v3601, %v3636
        %v3672 = vadd.f32 %v3602, %v3636
        %v3673 = vadd.f32 %v3603, %v3636
        %v3674 = vadd.f32 %v3604, %v3636
        %v3675 = vadd.f32 %v3605, %v3641
        %v3676 = vadd.f32 %v3606, %v3641
        %v3677 = vadd.f32 %v3607, %v3641
        %v3678 = vadd.f32 %v3608, %v3641
        %v3679 = vadd.f32 %v3609, %v3641
        %v3680 = vadd.f32 %v3610, %v3641
        %v3681 = vadd.f32 %v3611, %v3641
        %v3682 = vadd.f32 %v3612, %v3641
        %vm3683 = vcmp.gt.f32.partialorder %v3643, 0.0
        %vm3684 = vcmp.gt.f32.partialorder %v3644, 0.0
        %vm3685 = vcmp.gt.f32.partialorder %v3645, 0.0
        %vm3686 = vcmp.gt.f32.partialorder %v3646, 0.0
        %vm3687 = vcmp.gt.f32.partialorder %v3647, 0.0
        %vm3688 = vcmp.gt.f32.partialorder %v3648, 0.0
        %vm3689 = vcmp.gt.f32.partialorder %v3649, 0.0
        %vm3690 = vcmp.gt.f32.partialorder %v3650, 0.0
        %vm3691 = vcmp.gt.f32.partialorder %v3651, 0.0
        %vm3692 = vcmp.gt.f32.partialorder %v3652, 0.0
        %vm3693 = vcmp.gt.f32.partialorder %v3653, 0.0
        %vm3694 = vcmp.gt.f32.partialorder %v3654, 0.0
        %vm3695 = vcmp.gt.f32.partialorder %v3655, 0.0
        %vm3696 = vcmp.gt.f32.partialorder %v3656, 0.0
        %vm3697 = vcmp.gt.f32.partialorder %v3657, 0.0
        %vm3698 = vcmp.gt.f32.partialorder %v3658, 0.0
        %vm3699 = vcmp.gt.f32.partialorder %v3659, 0.0
        %vm3700 = vcmp.gt.f32.partialorder %v3660, 0.0
        %vm3701 = vcmp.gt.f32.partialorder %v3661, 0.0
        %vm3702 = vcmp.gt.f32.partialorder %v3662, 0.0
        %vm3703 = vcmp.gt.f32.partialorder %v3663, 0.0
        %vm3704 = vcmp.gt.f32.partialorder %v3664, 0.0
        %vm3705 = vcmp.gt.f32.partialorder %v3665, 0.0
        %vm3706 = vcmp.gt.f32.partialorder %v3666, 0.0
        %vm3707 = vcmp.gt.f32.partialorder %v3667, 0.0
        %vm3708 = vcmp.gt.f32.partialorder %v3668, 0.0
        %vm3709 = vcmp.gt.f32.partialorder %v3669, 0.0
        %vm3710 = vcmp.gt.f32.partialorder %v3670, 0.0
        %vm3711 = vcmp.gt.f32.partialorder %v3671, 0.0
        %vm3712 = vcmp.gt.f32.partialorder %v3672, 0.0
        %vm3713 = vcmp.gt.f32.partialorder %v3673, 0.0
        %vm3714 = vcmp.gt.f32.partialorder %v3674, 0.0
        %vm3715 = vcmp.gt.f32.partialorder %v3675, 0.0
        %vm3716 = vcmp.gt.f32.partialorder %v3676, 0.0
        %vm3717 = vcmp.gt.f32.partialorder %v3677, 0.0
        %vm3718 = vcmp.gt.f32.partialorder %v3678, 0.0
        %vm3719 = vcmp.gt.f32.partialorder %v3679, 0.0
        %vm3720 = vcmp.gt.f32.partialorder %v3680, 0.0
        %vm3721 = vcmp.gt.f32.partialorder %v3681, 0.0
        %vm3722 = vcmp.gt.f32.partialorder %v3682, 0.0
        %v3723 = vmin.f32 %v3643, 0.0
        %v3724 = vmin.f32 %v3644, 0.0
        %v3725 = vmin.f32 %v3645, 0.0
        %v3726 = vmin.f32 %v3646, 0.0
        %v3727 = vmin.f32 %v3647, 0.0
        %v3728 = vmin.f32 %v3648, 0.0
        %v3729 = vmin.f32 %v3649, 0.0
        %v3730 = vmin.f32 %v3650, 0.0
        %v3731 = vmin.f32 %v3651, 0.0
        %v3732 = vmin.f32 %v3652, 0.0
        %v3733 = vmin.f32 %v3653, 0.0
        %v3734 = vmin.f32 %v3654, 0.0
        %v3735 = vmin.f32 %v3655, 0.0
        %v3736 = vmin.f32 %v3656, 0.0
        %v3737 = vmin.f32 %v3657, 0.0
        %v3738 = vmin.f32 %v3658, 0.0
        %v3739 = vmin.f32 %v3659, 0.0
        %v3740 = vmin.f32 %v3660, 0.0
        %v3741 = vmin.f32 %v3661, 0.0
        %v3742 = vmin.f32 %v3662, 0.0
        %v3743 = vmin.f32 %v3663, 0.0
        %v3744 = vmin.f32 %v3664, 0.0
        %v3745 = vmin.f32 %v3665, 0.0
        %v3746 = vmin.f32 %v3666, 0.0
        %v3747 = vmin.f32 %v3667, 0.0
        %v3748 = vmin.f32 %v3668, 0.0
        %v3749 = vmin.f32 %v3669, 0.0
        %v3750 = vmin.f32 %v3670, 0.0
        %v3751 = vmin.f32 %v3671, 0.0
        %v3752 = vmin.f32 %v3672, 0.0
        %v3753 = vmin.f32 %v3673, 0.0
        %v3754 = vmin.f32 %v3674, 0.0
        %v3755 = vmin.f32 %v3675, 0.0
        %v3756 = vmin.f32 %v3676, 0.0
        %v3757 = vmin.f32 %v3677, 0.0
        %v3758 = vmin.f32 %v3678, 0.0
        %v3759 = vmin.f32 %v3679, 0.0
        %v3760 = vmin.f32 %v3680, 0.0
        %v3761 = vmin.f32 %v3681, 0.0
        %v3762 = vmin.f32 %v3682, 0.0
        %v3763 = vmul.f32 %v3723, 1.442695
        %v3764 = vpow.pop %v3763
        %v3765 = vmul.f32 %v3724, 1.442695
        %v3766 = vpow.pop %v3765
        %v3767 = vmul.f32 %v3725, 1.442695
        %v3768 = vpow.pop %v3767
        %v3769 = vmul.f32 %v3726, 1.442695
        %v3770 = vpow.pop %v3769
        %v3771 = vmul.f32 %v3727, 1.442695
        %v3772 = vpow.pop %v3771
        %v3773 = vmul.f32 %v3728, 1.442695
        %v3774 = vpow.pop %v3773
        %v3775 = vmul.f32 %v3729, 1.442695
        %v3776 = vpow.pop %v3775
        %v3777 = vmul.f32 %v3730, 1.442695
        %v3778 = vpow.pop %v3777
        %v3779 = vmul.f32 %v3731, 1.442695
        %v3780 = vpow.pop %v3779
        %v3781 = vmul.f32 %v3732, 1.442695
        %v3782 = vpow.pop %v3781
        %v3783 = vmul.f32 %v3733, 1.442695
        %v3784 = vpow.pop %v3783
        %v3785 = vmul.f32 %v3734, 1.442695
        %v3786 = vpow.pop %v3785
        %v3787 = vmul.f32 %v3735, 1.442695
        %v3788 = vpow.pop %v3787
        %v3789 = vmul.f32 %v3736, 1.442695
        %v3790 = vpow.pop %v3789
        %v3791 = vmul.f32 %v3737, 1.442695
        %v3792 = vpow.pop %v3791
        %v3793 = vmul.f32 %v3738, 1.442695
        %v3794 = vpow.pop %v3793
        %v3795 = vmul.f32 %v3739, 1.442695
        %v3796 = vpow.pop %v3795
        %v3797 = vmul.f32 %v3740, 1.442695
        %v3798 = vpow.pop %v3797
        %v3799 = vmul.f32 %v3741, 1.442695
        %v3800 = vpow.pop %v3799
        %v3801 = vmul.f32 %v3742, 1.442695
        %v3802 = vpow.pop %v3801
        %v3803 = vmul.f32 %v3743, 1.442695
        %v3804 = vpow.pop %v3803
        %v3805 = vmul.f32 %v3744, 1.442695
        %v3806 = vpow.pop %v3805
        %v3807 = vmul.f32 %v3745, 1.442695
        %v3808 = vpow.pop %v3807
        %v3809 = vmul.f32 %v3746, 1.442695
        %v3810 = vpow.pop %v3809
        %v3811 = vmul.f32 %v3747, 1.442695
        %v3812 = vpow.pop %v3811
        %v3813 = vmul.f32 %v3748, 1.442695
        %v3814 = vpow.pop %v3813
        %v3815 = vmul.f32 %v3749, 1.442695
        %v3816 = vpow.pop %v3815
        %v3817 = vmul.f32 %v3750, 1.442695
        %v3818 = vpow.pop %v3817
        %v3819 = vmul.f32 %v3751, 1.442695
        %v3820 = vpow.pop %v3819
        %v3821 = vmul.f32 %v3752, 1.442695
        %v3822 = vpow.pop %v3821
        %v3823 = vmul.f32 %v3753, 1.442695
        %v3824 = vpow.pop %v3823
        %v3825 = vmul.f32 %v3754, 1.442695
        %v3826 = vpow.pop %v3825
        %v3827 = vmul.f32 %v3755, 1.442695
        %v3828 = vpow.pop %v3827
        %v3829 = vmul.f32 %v3756, 1.442695
        %v3830 = vpow.pop %v3829
        %v3831 = vmul.f32 %v3757, 1.442695
        %v3832 = vpow.pop %v3831
        %v3833 = vmul.f32 %v3758, 1.442695
        %v3834 = vpow.pop %v3833
        %v3835 = vmul.f32 %v3759, 1.442695
        %v3836 = vpow.pop %v3835
        %v3837 = vmul.f32 %v3760, 1.442695
        %v3838 = vpow.pop %v3837
        %v3839 = vmul.f32 %v3761, 1.442695
        %v3840 = vpow.pop %v3839
        %v3841 = vmul.f32 %v3762, 1.442695
        %v3842 = vpow.pop %v3841
        %v3843 = vsub.f32 %v3764, 1.0
        %v3844 = vsub.f32 %v3766, 1.0
        %v3845 = vsub.f32 %v3768, 1.0
        %v3846 = vsub.f32 %v3770, 1.0
        %v3847 = vsub.f32 %v3772, 1.0
        %v3848 = vsub.f32 %v3774, 1.0
        %v3849 = vsub.f32 %v3776, 1.0
        %v3850 = vsub.f32 %v3778, 1.0
        %v3851 = vsub.f32 %v3780, 1.0
        %v3852 = vsub.f32 %v3782, 1.0
        %v3853 = vsub.f32 %v3784, 1.0
        %v3854 = vsub.f32 %v3786, 1.0
        %v3855 = vsub.f32 %v3788, 1.0
        %v3856 = vsub.f32 %v3790, 1.0
        %v3857 = vsub.f32 %v3792, 1.0
        %v3858 = vsub.f32 %v3794, 1.0
        %v3859 = vsub.f32 %v3796, 1.0
        %v3860 = vsub.f32 %v3798, 1.0
        %v3861 = vsub.f32 %v3800, 1.0
        %v3862 = vsub.f32 %v3802, 1.0
        %v3863 = vsub.f32 %v3804, 1.0
        %v3864 = vsub.f32 %v3806, 1.0
        %v3865 = vsub.f32 %v3808, 1.0
        %v3866 = vsub.f32 %v3810, 1.0
        %v3867 = vsub.f32 %v3812, 1.0
        %v3868 = vsub.f32 %v3814, 1.0
        %v3869 = vsub.f32 %v3816, 1.0
        %v3870 = vsub.f32 %v3818, 1.0
        %v3871 = vsub.f32 %v3820, 1.0
        %v3872 = vsub.f32 %v3822, 1.0
        %v3873 = vsub.f32 %v3824, 1.0
        %v3874 = vsub.f32 %v3826, 1.0
        %v3875 = vsub.f32 %v3828, 1.0
        %v3876 = vsub.f32 %v3830, 1.0
        %v3877 = vsub.f32 %v3832, 1.0
        %v3878 = vsub.f32 %v3834, 1.0
        %v3879 = vsub.f32 %v3836, 1.0
        %v3880 = vsub.f32 %v3838, 1.0
        %v3881 = vsub.f32 %v3840, 1.0
        %v3882 = vsub.f32 %v3842, 1.0
        %v3883 = vsel %vm3683, %v3643, %v3843
        %v3884 = vsel %vm3684, %v3644, %v3844
        %v3885 = vsel %vm3685, %v3645, %v3845
        %v3886 = vsel %vm3686, %v3646, %v3846
        %v3887 = vsel %vm3687, %v3647, %v3847
        %v3888 = vsel %vm3688, %v3648, %v3848
        %v3889 = vsel %vm3689, %v3649, %v3849
        %v3890 = vsel %vm3690, %v3650, %v3850
        %v3891 = vsel %vm3691, %v3651, %v3851
        %v3892 = vsel %vm3692, %v3652, %v3852
        %v3893 = vsel %vm3693, %v3653, %v3853
        %v3894 = vsel %vm3694, %v3654, %v3854
        %v3895 = vsel %vm3695, %v3655, %v3855
        %v3896 = vsel %vm3696, %v3656, %v3856
        %v3897 = vsel %vm3697, %v3657, %v3857
        %v3898 = vsel %vm3698, %v3658, %v3858
        %v3899 = vsel %vm3699, %v3659, %v3859
        %v3900 = vsel %vm3700, %v3660, %v3860
        %v3901 = vsel %vm3701, %v3661, %v3861
        %v3902 = vsel %vm3702, %v3662, %v3862
        %v3903 = vsel %vm3703, %v3663, %v3863
        %v3904 = vsel %vm3704, %v3664, %v3864
        %v3905 = vsel %vm3705, %v3665, %v3865
        %v3906 = vsel %vm3706, %v3666, %v3866
        %v3907 = vsel %vm3707, %v3667, %v3867
        %v3908 = vsel %vm3708, %v3668, %v3868
        %v3909 = vsel %vm3709, %v3669, %v3869
        %v3910 = vsel %vm3710, %v3670, %v3870
        %v3911 = vsel %vm3711, %v3671, %v3871
        %v3912 = vsel %vm3712, %v3672, %v3872
        %v3913 = vsel %vm3713, %v3673, %v3873
        %v3914 = vsel %vm3714, %v3674, %v3874
        %v3915 = vsel %vm3715, %v3675, %v3875
        %v3916 = vsel %vm3716, %v3676, %v3876
        %v3917 = vsel %vm3717, %v3677, %v3877
        %v3918 = vsel %vm3718, %v3678, %v3878
        %v3919 = vsel %vm3719, %v3679, %v3879
        %v3920 = vsel %vm3720, %v3680, %v3880
        %v3921 = vsel %vm3721, %v3681, %v3881
        %v3922 = vsel %vm3722, %v3682, %v3882
        %3923 = vst [vmem:[%s882] sm:$0xff] %v3883
        %3924 = vst [vmem:[%s882 + $0x8] sm:$0xff] %v3884
        %3925 = vst [vmem:[%s882 + $0x10] sm:$0xff] %v3885
        %3926 = vst [vmem:[%s882 + $0x18] sm:$0xff] %v3886
        %3927 = vst [vmem:[%s882 + $0x20] sm:$0xff] %v3887
        %3928 = vst [vmem:[%s882 + $0x28] sm:$0xff] %v3888
        %3929 = vst [vmem:[%s882 + $0x30] sm:$0xff] %v3889
        %3930 = vst [vmem:[%s882 + $0x38] sm:$0xff] %v3890
        %3931 = vst [vmem:[%s882 + $0x40] sm:$0xff] %v3891
        %3932 = vst [vmem:[%s882 + $0x48] sm:$0xff] %v3892
        %3933 = vst [vmem:[%s882 + $0x50] sm:$0xff] %v3893
        %3934 = vst [vmem:[%s882 + $0x58] sm:$0xff] %v3894
        %3935 = vst [vmem:[%s882 + $0x60] sm:$0xff] %v3895
        %3936 = vst [vmem:[%s882 + $0x68] sm:$0xff] %v3896
        %3937 = vst [vmem:[%s882 + $0x70] sm:$0xff] %v3897
        %3938 = vst [vmem:[%s882 + $0x78] sm:$0xff] %v3898
        %3939 = vst [vmem:[%s882 + $0x80] sm:$0xff] %v3899
        %3940 = vst [vmem:[%s882 + $0x88] sm:$0xff] %v3900
        %3941 = vst [vmem:[%s882 + $0x90] sm:$0xff] %v3901
        %3942 = vst [vmem:[%s882 + $0x98] sm:$0xff] %v3902
        %3943 = vst [vmem:[%s882 + $0xa0] sm:$0xff] %v3903
        %3944 = vst [vmem:[%s882 + $0xa8] sm:$0xff] %v3904
        %3945 = vst [vmem:[%s882 + $0xb0] sm:$0xff] %v3905
        %3946 = vst [vmem:[%s882 + $0xb8] sm:$0xff] %v3906
        %3947 = vst [vmem:[%s882 + $0xc0] sm:$0xff] %v3907
        %3948 = vst [vmem:[%s882 + $0xc8] sm:$0xff] %v3908
        %3949 = vst [vmem:[%s882 + $0xd0] sm:$0xff] %v3909
        %3950 = vst [vmem:[%s882 + $0xd8] sm:$0xff] %v3910
        %3951 = vst [vmem:[%s882 + $0xe0] sm:$0xff] %v3911
        %3952 = vst [vmem:[%s882 + $0xe8] sm:$0xff] %v3912
        %3953 = vst [vmem:[%s882 + $0xf0] sm:$0xff] %v3913
        %3954 = vst [vmem:[%s882 + $0xf8] sm:$0xff] %v3914
        %3955 = vst [vmem:[%s882 + $0x100] sm:$0xf] %v3915
        %3956 = vst [vmem:[%s882 + $0x108] sm:$0xf] %v3916
        %3957 = vst [vmem:[%s882 + $0x110] sm:$0xf] %v3917
        %3958 = vst [vmem:[%s882 + $0x118] sm:$0xf] %v3918
        %3959 = vst [vmem:[%s882 + $0x120] sm:$0xf] %v3919
        %3960 = vst [vmem:[%s882 + $0x128] sm:$0xf] %v3920
        %3961 = vst [vmem:[%s882 + $0x130] sm:$0xf] %v3921
        %3962 = vst [vmem:[%s882 + $0x138] sm:$0xf] %v3922
        %s3963 = sand.u32 %s112, 1
        %s3964 = sand.u32 %s112, 1
        %s3965 = smul.addr %s3964, 320
        %s3966 = scalar_lea.vmem [#allocation3], %s3965
        // Predicated region
        $region89: #{nvidia_forward.7} parent=83 // pred_check
          %p3967 = pneg %p122
        $region90: #{nvidia_forward.7} parent=83 // pred_check_branch
          %3969 = sbr.rel (%p3967) target = $region92
        $region91: #{nvidia_forward.7} parent=83 // pred_region
          %s3970 = smul.u32 8, %s15
          %s3971 = ssub.s32 11, %s3970
          %p3972 = scmp.lt.s32.totalorder %s3971, 8
          %s3973 = scalar_select %p3972, %s3971, 8
          %s3974 = smul.u32 640, %s3973
          %p3975 = scmp.ne.s32.totalorder 0, %s3974
          %s3976 = smul.addr %s3970, 8
          %s3977 = scalar_lea.vmem %s4, %s3976
          %s3978 = smul.u32 %s3973, 8
          // Predicated region
          $region93: #{nvidia_forward.7} parent=91 // pred_check
            %p3979 = pneg %p3975
          $region94: #{nvidia_forward.7} parent=91 // pred_check_branch
            %3981 = sbr.rel (%p3979) target = $region96
          $region95: #{nvidia_forward.7} parent=91 // pred_region
            %p3982 = scmp.lt.u32.totalorder %s3978, 8
            %p3983 = pneg %p3982
            // Predicated region
            $region97: #{nvidia_forward.7} parent=95 // pred_check
              _
            $region98: #{nvidia_forward.7} parent=95 // pred_check_branch
              %3985 = sbr.rel (%p3982) target = $region100
            $region99: #{nvidia_forward.7} parent=95 // pred_region
              %s4009 = sand.u32 %s3978, 7
              %p4010 = scmp.eq.s32.totalorder %s4009, 0
              // Predicated region
              $region112: #{nvidia_forward.7} parent=99 // pred_check
                %p4011 = pneg %p4010
              $region113: #{nvidia_forward.7} parent=99 // pred_check_branch
                %4013 = sbr.rel (%p4011) target = $region115
              $region114: #{nvidia_forward.7} parent=99 // pred_region
                %s4014 = sshrl.u32 %s3978, 3
                %s4015 = sshrl.u32 %s4014, 4
                // While loop
                $region116: #{nvidia_forward.7} parent=114 // loop_pre_header
                  _
                $region117: #{nvidia_forward.7} parent=114 // loop_header
                  %s4019 = sphi 0, %s4021
                  %p4020 = scmp.ge.s32.totalorder %s4019, %s4015
                  %s4024 = sphi 0, %s4189
                  %s4025 = sphi %s3966, %s4192
                  %s4026 = sphi %s3977, %s4193
                $region118: #{nvidia_forward.7} parent=114 // loop_header_branch
                  %4023 = sbr.rel (%p4020) target = $region122
                $region119: #{nvidia_forward.7} parent=114 // loop_body
                  %v4027 = vld [vmem:[%s4025] sm:$0xff]
                  %4028 = vst [vmem:[%s4026] sm:$0xff] %v4027
                  %v4029 = vld [vmem:[%s4025 + $0x8] sm:$0xff]
                  %4030 = vst [vmem:[%s4026 + $0x8] sm:$0xff] %v4029
                  %v4031 = vld [vmem:[%s4025 + $0x10] sm:$0xff]
                  %4032 = vst [vmem:[%s4026 + $0x10] sm:$0xff] %v4031
                  %v4033 = vld [vmem:[%s4025 + $0x18] sm:$0xff]
                  %4034 = vst [vmem:[%s4026 + $0x18] sm:$0xff] %v4033
                  %v4035 = vld [vmem:[%s4025 + $0x20] sm:$0xff]
                  %4036 = vst [vmem:[%s4026 + $0x20] sm:$0xff] %v4035
                  %v4037 = vld [vmem:[%s4025 + $0x28] sm:$0xff]
                  %4038 = vst [vmem:[%s4026 + $0x28] sm:$0xff] %v4037
                  %v4039 = vld [vmem:[%s4025 + $0x30] sm:$0xff]
                  %4040 = vst [vmem:[%s4026 + $0x30] sm:$0xff] %v4039
                  %v4041 = vld [vmem:[%s4025 + $0x38] sm:$0xff]
                  %4042 = vst [vmem:[%s4026 + $0x38] sm:$0xff] %v4041
                  %v4043 = vld [vmem:[%s4025 + $0x40] sm:$0xff]
                  %4044 = vst [vmem:[%s4026 + $0x40] sm:$0xff] %v4043
                  %v4045 = vld [vmem:[%s4025 + $0x48] sm:$0xff]
                  %4046 = vst [vmem:[%s4026 + $0x48] sm:$0xff] %v4045
                  %v4047 = vld [vmem:[%s4025 + $0x50] sm:$0xff]
                  %4048 = vst [vmem:[%s4026 + $0x50] sm:$0xff] %v4047
                  %v4049 = vld [vmem:[%s4025 + $0x58] sm:$0xff]
                  %4050 = vst [vmem:[%s4026 + $0x58] sm:$0xff] %v4049
                  %v4051 = vld [vmem:[%s4025 + $0x60] sm:$0xff]
                  %4052 = vst [vmem:[%s4026 + $0x60] sm:$0xff] %v4051
                  %v4053 = vld [vmem:[%s4025 + $0x68] sm:$0xff]
                  %4054 = vst [vmem:[%s4026 + $0x68] sm:$0xff] %v4053
                  %v4055 = vld [vmem:[%s4025 + $0x70] sm:$0xff]
                  %4056 = vst [vmem:[%s4026 + $0x70] sm:$0xff] %v4055
                  %v4057 = vld [vmem:[%s4025 + $0x78] sm:$0xff]
                  %4058 = vst [vmem:[%s4026 + $0x78] sm:$0xff] %v4057
                  %v4059 = vld [vmem:[%s4025 + $0x40] sm:$0xff]
                  %4060 = vst [vmem:[%s4026 + $0x58] sm:$0xff] %v4059
                  %v4061 = vld [vmem:[%s4025 + $0x48] sm:$0xff]
                  %4062 = vst [vmem:[%s4026 + $0x60] sm:$0xff] %v4061
                  %v4063 = vld [vmem:[%s4025 + $0x50] sm:$0xff]
                  %4064 = vst [vmem:[%s4026 + $0x68] sm:$0xff] %v4063
                  %v4065 = vld [vmem:[%s4025 + $0x58] sm:$0xff]
                  %4066 = vst [vmem:[%s4026 + $0x70] sm:$0xff] %v4065
                  %v4067 = vld [vmem:[%s4025 + $0x60] sm:$0xff]
                  %4068 = vst [vmem:[%s4026 + $0x78] sm:$0xff] %v4067
                  %v4069 = vld [vmem:[%s4025 + $0x68] sm:$0xff]
                  %4070 = vst [vmem:[%s4026 + $0x80] sm:$0xff] %v4069
                  %v4071 = vld [vmem:[%s4025 + $0x70] sm:$0xff]
                  %4072 = vst [vmem:[%s4026 + $0x88] sm:$0xff] %v4071
                  %v4073 = vld [vmem:[%s4025 + $0x78] sm:$0xff]
                  %4074 = vst [vmem:[%s4026 + $0x90] sm:$0xff] %v4073
                  %v4075 = vld [vmem:[%s4025 + $0x80] sm:$0xff]
                  %4076 = vst [vmem:[%s4026 + $0x98] sm:$0xff] %v4075
                  %v4077 = vld [vmem:[%s4025 + $0x88] sm:$0xff]
                  %4078 = vst [vmem:[%s4026 + $0xa0] sm:$0xff] %v4077
                  %v4079 = vld [vmem:[%s4025 + $0x90] sm:$0xff]
                  %4080 = vst [vmem:[%s4026 + $0xa8] sm:$0xff] %v4079
                  %v4081 = vld [vmem:[%s4025 + $0x98] sm:$0xff]
                  %4082 = vst [vmem:[%s4026 + $0xb0] sm:$0xff] %v4081
                  %v4083 = vld [vmem:[%s4025 + $0xa0] sm:$0xff]
                  %4084 = vst [vmem:[%s4026 + $0xb8] sm:$0xff] %v4083
                  %v4085 = vld [vmem:[%s4025 + $0xa8] sm:$0xff]
                  %4086 = vst [vmem:[%s4026 + $0xc0] sm:$0xff] %v4085
                  %v4087 = vld [vmem:[%s4025 + $0xb0] sm:$0xff]
                  %4088 = vst [vmem:[%s4026 + $0xc8] sm:$0xff] %v4087
                  %v4089 = vld [vmem:[%s4025 + $0xb8] sm:$0xff]
                  %4090 = vst [vmem:[%s4026 + $0xd0] sm:$0xff] %v4089
                  %v4091 = vld [vmem:[%s4025 + $0x80] sm:$0xff]
                  %4092 = vst [vmem:[%s4026 + $0xb0] sm:$0xff] %v4091
                  %v4093 = vld [vmem:[%s4025 + $0x88] sm:$0xff]
                  %4094 = vst [vmem:[%s4026 + $0xb8] sm:$0xff] %v4093
                  %v4095 = vld [vmem:[%s4025 + $0x90] sm:$0xff]
                  %4096 = vst [vmem:[%s4026 + $0xc0] sm:$0xff] %v4095
                  %v4097 = vld [vmem:[%s4025 + $0x98] sm:$0xff]
                  %4098 = vst [vmem:[%s4026 + $0xc8] sm:$0xff] %v4097
                  %v4099 = vld [vmem:[%s4025 + $0xa0] sm:$0xff]
                  %4100 = vst [vmem:[%s4026 + $0xd0] sm:$0xff] %v4099
                  %v4101 = vld [vmem:[%s4025 + $0xa8] sm:$0xff]
                  %4102 = vst [vmem:[%s4026 + $0xd8] sm:$0xff] %v4101
                  %v4103 = vld [vmem:[%s4025 + $0xb0] sm:$0xff]
                  %4104 = vst [vmem:[%s4026 + $0xe0] sm:$0xff] %v4103
                  %v4105 = vld [vmem:[%s4025 + $0xb8] sm:$0xff]
                  %4106 = vst [vmem:[%s4026 + $0xe8] sm:$0xff] %v4105
                  %v4107 = vld [vmem:[%s4025 + $0xc0] sm:$0xff]
                  %4108 = vst [vmem:[%s4026 + $0xf0] sm:$0xff] %v4107
                  %v4109 = vld [vmem:[%s4025 + $0xc8] sm:$0xff]
                  %4110 = vst [vmem:[%s4026 + $0xf8] sm:$0xff] %v4109
                  %v4111 = vld [vmem:[%s4025 + $0xd0] sm:$0xff]
                  %4112 = vst [vmem:[%s4026 + $0x100] sm:$0xff] %v4111
                  %v4113 = vld [vmem:[%s4025 + $0xd8] sm:$0xff]
                  %4114 = vst [vmem:[%s4026 + $0x108] sm:$0xff] %v4113
                  %v4115 = vld [vmem:[%s4025 + $0xe0] sm:$0xff]
                  %4116 = vst [vmem:[%s4026 + $0x110] sm:$0xff] %v4115
                  %v4117 = vld [vmem:[%s4025 + $0xe8] sm:$0xff]
                  %4118 = vst [vmem:[%s4026 + $0x118] sm:$0xff] %v4117
                  %v4119 = vld [vmem:[%s4025 + $0xf0] sm:$0xff]
                  %4120 = vst [vmem:[%s4026 + $0x120] sm:$0xff] %v4119
                  %v4121 = vld [vmem:[%s4025 + $0xf8] sm:$0xff]
                  %4122 = vst [vmem:[%s4026 + $0x128] sm:$0xff] %v4121
                  %v4123 = vld [vmem:[%s4025 + $0xc0] sm:$0xff]
                  %4124 = vst [vmem:[%s4026 + $0x108] sm:$0xff] %v4123
                  %v4125 = vld [vmem:[%s4025 + $0xc8] sm:$0xff]
                  %4126 = vst [vmem:[%s4026 + $0x110] sm:$0xff] %v4125
                  %v4127 = vld [vmem:[%s4025 + $0xd0] sm:$0xff]
                  %4128 = vst [vmem:[%s4026 + $0x118] sm:$0xff] %v4127
                  %v4129 = vld [vmem:[%s4025 + $0xd8] sm:$0xff]
                  %4130 = vst [vmem:[%s4026 + $0x120] sm:$0xff] %v4129
                  %v4131 = vld [vmem:[%s4025 + $0xe0] sm:$0xff]
                  %4132 = vst [vmem:[%s4026 + $0x128] sm:$0xff] %v4131
                  %v4133 = vld [vmem:[%s4025 + $0xe8] sm:$0xff]
                  %4134 = vst [vmem:[%s4026 + $0x130] sm:$0xff] %v4133
                  %v4135 = vld [vmem:[%s4025 + $0xf0] sm:$0xff]
                  %4136 = vst [vmem:[%s4026 + $0x138] sm:$0xff] %v4135
                  %v4137 = vld [vmem:[%s4025 + $0xf8] sm:$0xff]
                  %4138 = vst [vmem:[%s4026 + $0x140] sm:$0xff] %v4137
                  %v4139 = vld [vmem:[%s4025 + $0x100] sm:$0xff]
                  %4140 = vst [vmem:[%s4026 + $0x148] sm:$0xff] %v4139
                  %v4141 = vld [vmem:[%s4025 + $0x108] sm:$0xff]
                  %4142 = vst [vmem:[%s4026 + $0x150] sm:$0xff] %v4141
                  %v4143 = vld [vmem:[%s4025 + $0x110] sm:$0xff]
                  %4144 = vst [vmem:[%s4026 + $0x158] sm:$0xff] %v4143
                  %v4145 = vld [vmem:[%s4025 + $0x118] sm:$0xff]
                  %4146 = vst [vmem:[%s4026 + $0x160] sm:$0xff] %v4145
                  %v4147 = vld [vmem:[%s4025 + $0x120] sm:$0xff]
                  %4148 = vst [vmem:[%s4026 + $0x168] sm:$0xff] %v4147
                  %v4149 = vld [vmem:[%s4025 + $0x128] sm:$0xff]
                  %4150 = vst [vmem:[%s4026 + $0x170] sm:$0xff] %v4149
                  %v4151 = vld [vmem:[%s4025 + $0x130] sm:$0xff]
                  %4152 = vst [vmem:[%s4026 + $0x178] sm:$0xff] %v4151
                  %v4153 = vld [vmem:[%s4025 + $0x138] sm:$0xff]
                  %4154 = vst [vmem:[%s4026 + $0x180] sm:$0xff] %v4153
                  %v4155 = vld [vmem:[%s4025 + $0x100] sm:$0xff]
                  %4156 = vst [vmem:[%s4026 + $0x160] sm:$0xff] %v4155
                  %v4157 = vld [vmem:[%s4025 + $0x108] sm:$0xff]
                  %4158 = vst [vmem:[%s4026 + $0x168] sm:$0xff] %v4157
                  %v4159 = vld [vmem:[%s4025 + $0x110] sm:$0xff]
                  %4160 = vst [vmem:[%s4026 + $0x170] sm:$0xff] %v4159
                  %v4161 = vld [vmem:[%s4025 + $0x118] sm:$0xff]
                  %4162 = vst [vmem:[%s4026 + $0x178] sm:$0xff] %v4161
                  %v4163 = vld [vmem:[%s4025 + $0x120] sm:$0xff]
                  %4164 = vst [vmem:[%s4026 + $0x180] sm:$0xff] %v4163
                  %v4165 = vld [vmem:[%s4025 + $0x128] sm:$0xff]
                  %4166 = vst [vmem:[%s4026 + $0x188] sm:$0xff] %v4165
                  %v4167 = vld [vmem:[%s4025 + $0x130] sm:$0xff]
                  %4168 = vst [vmem:[%s4026 + $0x190] sm:$0xff] %v4167
                  %v4169 = vld [vmem:[%s4025 + $0x138] sm:$0xff]
                  %4170 = vst [vmem:[%s4026 + $0x198] sm:$0xff] %v4169
                  %v4171 = vld [vmem:[%s4025 + $0x140] sm:$0xff]
                  %4172 = vst [vmem:[%s4026 + $0x1a0] sm:$0xff] %v4171
                  %v4173 = vld [vmem:[%s4025 + $0x148] sm:$0xff]
                  %4174 = vst [vmem:[%s4026 + $0x1a8] sm:$0xff] %v4173
                  %v4175 = vld [vmem:[%s4025 + $0x150] sm:$0xff]
                  %4176 = vst [vmem:[%s4026 + $0x1b0] sm:$0xff] %v4175
                  %v4177 = vld [vmem:[%s4025 + $0x158] sm:$0xff]
                  %4178 = vst [vmem:[%s4026 + $0x1b8] sm:$0xff] %v4177
                  %v4179 = vld [vmem:[%s4025 + $0x160] sm:$0xff]
                  %4180 = vst [vmem:[%s4026 + $0x1c0] sm:$0xff] %v4179
                  %v4181 = vld [vmem:[%s4025 + $0x168] sm:$0xff]
                  %4182 = vst [vmem:[%s4026 + $0x1c8] sm:$0xff] %v4181
                  %v4183 = vld [vmem:[%s4025 + $0x170] sm:$0xff]
                  %4184 = vst [vmem:[%s4026 + $0x1d0] sm:$0xff] %v4183
                  %v4185 = vld [vmem:[%s4025 + $0x178] sm:$0xff]
                  %4186 = vst [vmem:[%s4026 + $0x1d8] sm:$0xff] %v4185
                  %s4187 = sadd.s32 1, %s4024
                  %p4188 = scmp.ge.s32.totalorder %s4187, %s4015
                  %s4189 = scalar_select %p4188, 0, %s4187
                  %s4190 = smul.u32 %s4189, 128
                  %s4191 = smul.u32 %s4189, 128
                  %s4192 = scalar_lea.vmem %s3966, %s4190 [#allocation3]
                  %s4193 = scalar_lea.vmem %s3977, %s4191
                $region120: #{nvidia_forward.7} parent=114 // loop_footer
                  %s4021 = sadd.s32 %s4019, 1
                $region121: #{nvidia_forward.7} parent=114 // loop_footer_branch
                  %4018 = sbr.rel target = $region117
                $region122: #{nvidia_forward.7} parent=114 // loop_exit
                  _
                %s4194 = sshrl.u32 %s4014, 4
                %s4195 = sand.u32 %s4014, 15
                %s4196 = smul.u32 %s4194, 16
                %s4197 = smul.u32 128, %s4196
                %s4198 = sshra.s32 %s4197, 4
                %s4199 = scalar_lea.vmem %s3966, %s4198 [#allocation3]
                %s4200 = smul.u32 128, %s4196
                %s4201 = sshra.s32 %s4200, 4
                %s4202 = scalar_lea.vmem %s3977, %s4201
                // While loop
                $region123: #{nvidia_forward.7} parent=114 // loop_pre_header
                  _
                $region124: #{nvidia_forward.7} parent=114 // loop_header
                  %s4206 = sphi 0, %s4208
                  %p4207 = scmp.ge.s32.totalorder %s4206, %s4195
                  %s4211 = sphi 0, %s4226
                  %s4212 = sphi %s4199, %s4229
                  %s4213 = sphi %s4202, %s4230
                $region125: #{nvidia_forward.7} parent=114 // loop_header_branch
                  %4210 = sbr.rel (%p4207) target = $region129
                $region126: #{nvidia_forward.7} parent=114 // loop_body
                  %v4214 = vld [vmem:[%s4212] sm:$0xff]
                  %4215 = vst [vmem:[%s4213] sm:$0xff] %v4214
                  %v4216 = vld [vmem:[%s4212 + $0x40] sm:$0xff]
                  %4217 = vst [vmem:[%s4213 + $0x58] sm:$0xff] %v4216
                  %v4218 = vld [vmem:[%s4212 + $0x80] sm:$0xff]
                  %4219 = vst [vmem:[%s4213 + $0xb0] sm:$0xff] %v4218
                  %v4220 = vld [vmem:[%s4212 + $0xc0] sm:$0xff]
                  %4221 = vst [vmem:[%s4213 + $0x108] sm:$0xff] %v4220
                  %v4222 = vld [vmem:[%s4212 + $0x100] sm:$0xff]
                  %4223 = vst [vmem:[%s4213 + $0x160] sm:$0xff] %v4222
                  %s4224 = sadd.s32 1, %s4211
                  %p4225 = scmp.ge.s32.totalorder %s4224, %s4195
                  %s4226 = scalar_select %p4225, 0, %s4224
                  %s4227 = smul.u32 %s4226, 8
                  %s4228 = smul.u32 %s4226, 8
                  %s4229 = scalar_lea.vmem %s4199, %s4227 [#allocation3]
                  %s4230 = scalar_lea.vmem %s4202, %s4228
                $region127: #{nvidia_forward.7} parent=114 // loop_footer
                  %s4208 = sadd.s32 %s4206, 1
                $region128: #{nvidia_forward.7} parent=114 // loop_footer_branch
                  %4205 = sbr.rel target = $region124
                $region129: #{nvidia_forward.7} parent=114 // loop_exit
                  _
              $region115: #{nvidia_forward.7} parent=99 // pred_fallthru
                _
              %p4231 = pneg %p4010
              // Predicated region
              $region130: #{nvidia_forward.7} parent=99 // pred_check
                _
              $region131: #{nvidia_forward.7} parent=99 // pred_check_branch
                %4233 = sbr.rel (%p4010) target = $region133
              $region132: #{nvidia_forward.7} parent=99 // pred_region
                %s4234 = sand.u32 %s3978, 7
                %s4235 = ssub.s32 %s3978, %s4234
                %s4236 = scalar_lea.vmem %s3966, %s4235 [#allocation3]
                %s4237 = ssub.s32 %s3978, %s4234
                %s4238 = scalar_lea.vmem %s3977, %s4237
                %s4239 = sshrl.u32 %s3978, 3
                %s4240 = sshrl.u32 %s4239, 4
                // While loop
                $region134: #{nvidia_forward.7} parent=132 // loop_pre_header
                  _
                $region135: #{nvidia_forward.7} parent=132 // loop_header
                  %s4244 = sphi 0, %s4246
                  %p4245 = scmp.ge.s32.totalorder %s4244, %s4240
                  %s4249 = sphi 0, %s4414
                  %s4250 = sphi %s3966, %s4417
                  %s4251 = sphi %s3977, %s4418
                $region136: #{nvidia_forward.7} parent=132 // loop_header_branch
                  %4248 = sbr.rel (%p4245) target = $region140
                $region137: #{nvidia_forward.7} parent=132 // loop_body
                  %v4252 = vld [vmem:[%s4250] sm:$0xff]
                  %4253 = vst [vmem:[%s4251] sm:$0xff] %v4252
                  %v4254 = vld [vmem:[%s4250 + $0x8] sm:$0xff]
                  %4255 = vst [vmem:[%s4251 + $0x8] sm:$0xff] %v4254
                  %v4256 = vld [vmem:[%s4250 + $0x10] sm:$0xff]
                  %4257 = vst [vmem:[%s4251 + $0x10] sm:$0xff] %v4256
                  %v4258 = vld [vmem:[%s4250 + $0x18] sm:$0xff]
                  %4259 = vst [vmem:[%s4251 + $0x18] sm:$0xff] %v4258
                  %v4260 = vld [vmem:[%s4250 + $0x20] sm:$0xff]
                  %4261 = vst [vmem:[%s4251 + $0x20] sm:$0xff] %v4260
                  %v4262 = vld [vmem:[%s4250 + $0x28] sm:$0xff]
                  %4263 = vst [vmem:[%s4251 + $0x28] sm:$0xff] %v4262
                  %v4264 = vld [vmem:[%s4250 + $0x30] sm:$0xff]
                  %4265 = vst [vmem:[%s4251 + $0x30] sm:$0xff] %v4264
                  %v4266 = vld [vmem:[%s4250 + $0x38] sm:$0xff]
                  %4267 = vst [vmem:[%s4251 + $0x38] sm:$0xff] %v4266
                  %v4268 = vld [vmem:[%s4250 + $0x40] sm:$0xff]
                  %4269 = vst [vmem:[%s4251 + $0x40] sm:$0xff] %v4268
                  %v4270 = vld [vmem:[%s4250 + $0x48] sm:$0xff]
                  %4271 = vst [vmem:[%s4251 + $0x48] sm:$0xff] %v4270
                  %v4272 = vld [vmem:[%s4250 + $0x50] sm:$0xff]
                  %4273 = vst [vmem:[%s4251 + $0x50] sm:$0xff] %v4272
                  %v4274 = vld [vmem:[%s4250 + $0x58] sm:$0xff]
                  %4275 = vst [vmem:[%s4251 + $0x58] sm:$0xff] %v4274
                  %v4276 = vld [vmem:[%s4250 + $0x60] sm:$0xff]
                  %4277 = vst [vmem:[%s4251 + $0x60] sm:$0xff] %v4276
                  %v4278 = vld [vmem:[%s4250 + $0x68] sm:$0xff]
                  %4279 = vst [vmem:[%s4251 + $0x68] sm:$0xff] %v4278
                  %v4280 = vld [vmem:[%s4250 + $0x70] sm:$0xff]
                  %4281 = vst [vmem:[%s4251 + $0x70] sm:$0xff] %v4280
                  %v4282 = vld [vmem:[%s4250 + $0x78] sm:$0xff]
                  %4283 = vst [vmem:[%s4251 + $0x78] sm:$0xff] %v4282
                  %v4284 = vld [vmem:[%s4250 + $0x40] sm:$0xff]
                  %4285 = vst [vmem:[%s4251 + $0x58] sm:$0xff] %v4284
                  %v4286 = vld [vmem:[%s4250 + $0x48] sm:$0xff]
                  %4287 = vst [vmem:[%s4251 + $0x60] sm:$0xff] %v4286
                  %v4288 = vld [vmem:[%s4250 + $0x50] sm:$0xff]
                  %4289 = vst [vmem:[%s4251 + $0x68] sm:$0xff] %v4288
                  %v4290 = vld [vmem:[%s4250 + $0x58] sm:$0xff]
                  %4291 = vst [vmem:[%s4251 + $0x70] sm:$0xff] %v4290
                  %v4292 = vld [vmem:[%s4250 + $0x60] sm:$0xff]
                  %4293 = vst [vmem:[%s4251 + $0x78] sm:$0xff] %v4292
                  %v4294 = vld [vmem:[%s4250 + $0x68] sm:$0xff]
                  %4295 = vst [vmem:[%s4251 + $0x80] sm:$0xff] %v4294
                  %v4296 = vld [vmem:[%s4250 + $0x70] sm:$0xff]
                  %4297 = vst [vmem:[%s4251 + $0x88] sm:$0xff] %v4296
                  %v4298 = vld [vmem:[%s4250 + $0x78] sm:$0xff]
                  %4299 = vst [vmem:[%s4251 + $0x90] sm:$0xff] %v4298
                  %v4300 = vld [vmem:[%s4250 + $0x80] sm:$0xff]
                  %4301 = vst [vmem:[%s4251 + $0x98] sm:$0xff] %v4300
                  %v4302 = vld [vmem:[%s4250 + $0x88] sm:$0xff]
                  %4303 = vst [vmem:[%s4251 + $0xa0] sm:$0xff] %v4302
                  %v4304 = vld [vmem:[%s4250 + $0x90] sm:$0xff]
                  %4305 = vst [vmem:[%s4251 + $0xa8] sm:$0xff] %v4304
                  %v4306 = vld [vmem:[%s4250 + $0x98] sm:$0xff]
                  %4307 = vst [vmem:[%s4251 + $0xb0] sm:$0xff] %v4306
                  %v4308 = vld [vmem:[%s4250 + $0xa0] sm:$0xff]
                  %4309 = vst [vmem:[%s4251 + $0xb8] sm:$0xff] %v4308
                  %v4310 = vld [vmem:[%s4250 + $0xa8] sm:$0xff]
                  %4311 = vst [vmem:[%s4251 + $0xc0] sm:$0xff] %v4310
                  %v4312 = vld [vmem:[%s4250 + $0xb0] sm:$0xff]
                  %4313 = vst [vmem:[%s4251 + $0xc8] sm:$0xff] %v4312
                  %v4314 = vld [vmem:[%s4250 + $0xb8] sm:$0xff]
                  %4315 = vst [vmem:[%s4251 + $0xd0] sm:$0xff] %v4314
                  %v4316 = vld [vmem:[%s4250 + $0x80] sm:$0xff]
                  %4317 = vst [vmem:[%s4251 + $0xb0] sm:$0xff] %v4316
                  %v4318 = vld [vmem:[%s4250 + $0x88] sm:$0xff]
                  %4319 = vst [vmem:[%s4251 + $0xb8] sm:$0xff] %v4318
                  %v4320 = vld [vmem:[%s4250 + $0x90] sm:$0xff]
                  %4321 = vst [vmem:[%s4251 + $0xc0] sm:$0xff] %v4320
                  %v4322 = vld [vmem:[%s4250 + $0x98] sm:$0xff]
                  %4323 = vst [vmem:[%s4251 + $0xc8] sm:$0xff] %v4322
                  %v4324 = vld [vmem:[%s4250 + $0xa0] sm:$0xff]
                  %4325 = vst [vmem:[%s4251 + $0xd0] sm:$0xff] %v4324
                  %v4326 = vld [vmem:[%s4250 + $0xa8] sm:$0xff]
                  %4327 = vst [vmem:[%s4251 + $0xd8] sm:$0xff] %v4326
                  %v4328 = vld [vmem:[%s4250 + $0xb0] sm:$0xff]
                  %4329 = vst [vmem:[%s4251 + $0xe0] sm:$0xff] %v4328
                  %v4330 = vld [vmem:[%s4250 + $0xb8] sm:$0xff]
                  %4331 = vst [vmem:[%s4251 + $0xe8] sm:$0xff] %v4330
                  %v4332 = vld [vmem:[%s4250 + $0xc0] sm:$0xff]
                  %4333 = vst [vmem:[%s4251 + $0xf0] sm:$0xff] %v4332
                  %v4334 = vld [vmem:[%s4250 + $0xc8] sm:$0xff]
                  %4335 = vst [vmem:[%s4251 + $0xf8] sm:$0xff] %v4334
                  %v4336 = vld [vmem:[%s4250 + $0xd0] sm:$0xff]
                  %4337 = vst [vmem:[%s4251 + $0x100] sm:$0xff] %v4336
                  %v4338 = vld [vmem:[%s4250 + $0xd8] sm:$0xff]
                  %4339 = vst [vmem:[%s4251 + $0x108] sm:$0xff] %v4338
                  %v4340 = vld [vmem:[%s4250 + $0xe0] sm:$0xff]
                  %4341 = vst [vmem:[%s4251 + $0x110] sm:$0xff] %v4340
                  %v4342 = vld [vmem:[%s4250 + $0xe8] sm:$0xff]
                  %4343 = vst [vmem:[%s4251 + $0x118] sm:$0xff] %v4342
                  %v4344 = vld [vmem:[%s4250 + $0xf0] sm:$0xff]
                  %4345 = vst [vmem:[%s4251 + $0x120] sm:$0xff] %v4344
                  %v4346 = vld [vmem:[%s4250 + $0xf8] sm:$0xff]
                  %4347 = vst [vmem:[%s4251 + $0x128] sm:$0xff] %v4346
                  %v4348 = vld [vmem:[%s4250 + $0xc0] sm:$0xff]
                  %4349 = vst [vmem:[%s4251 + $0x108] sm:$0xff] %v4348
                  %v4350 = vld [vmem:[%s4250 + $0xc8] sm:$0xff]
                  %4351 = vst [vmem:[%s4251 + $0x110] sm:$0xff] %v4350
                  %v4352 = vld [vmem:[%s4250 + $0xd0] sm:$0xff]
                  %4353 = vst [vmem:[%s4251 + $0x118] sm:$0xff] %v4352
                  %v4354 = vld [vmem:[%s4250 + $0xd8] sm:$0xff]
                  %4355 = vst [vmem:[%s4251 + $0x120] sm:$0xff] %v4354
                  %v4356 = vld [vmem:[%s4250 + $0xe0] sm:$0xff]
                  %4357 = vst [vmem:[%s4251 + $0x128] sm:$0xff] %v4356
                  %v4358 = vld [vmem:[%s4250 + $0xe8] sm:$0xff]
                  %4359 = vst [vmem:[%s4251 + $0x130] sm:$0xff] %v4358
                  %v4360 = vld [vmem:[%s4250 + $0xf0] sm:$0xff]
                  %4361 = vst [vmem:[%s4251 + $0x138] sm:$0xff] %v4360
                  %v4362 = vld [vmem:[%s4250 + $0xf8] sm:$0xff]
                  %4363 = vst [vmem:[%s4251 + $0x140] sm:$0xff] %v4362
                  %v4364 = vld [vmem:[%s4250 + $0x100] sm:$0xff]
                  %4365 = vst [vmem:[%s4251 + $0x148] sm:$0xff] %v4364
                  %v4366 = vld [vmem:[%s4250 + $0x108] sm:$0xff]
                  %4367 = vst [vmem:[%s4251 + $0x150] sm:$0xff] %v4366
                  %v4368 = vld [vmem:[%s4250 + $0x110] sm:$0xff]
                  %4369 = vst [vmem:[%s4251 + $0x158] sm:$0xff] %v4368
                  %v4370 = vld [vmem:[%s4250 + $0x118] sm:$0xff]
                  %4371 = vst [vmem:[%s4251 + $0x160] sm:$0xff] %v4370
                  %v4372 = vld [vmem:[%s4250 + $0x120] sm:$0xff]
                  %4373 = vst [vmem:[%s4251 + $0x168] sm:$0xff] %v4372
                  %v4374 = vld [vmem:[%s4250 + $0x128] sm:$0xff]
                  %4375 = vst [vmem:[%s4251 + $0x170] sm:$0xff] %v4374
                  %v4376 = vld [vmem:[%s4250 + $0x130] sm:$0xff]
                  %4377 = vst [vmem:[%s4251 + $0x178] sm:$0xff] %v4376
                  %v4378 = vld [vmem:[%s4250 + $0x138] sm:$0xff]
                  %4379 = vst [vmem:[%s4251 + $0x180] sm:$0xff] %v4378
                  %v4380 = vld [vmem:[%s4250 + $0x100] sm:$0xff]
                  %4381 = vst [vmem:[%s4251 + $0x160] sm:$0xff] %v4380
                  %v4382 = vld [vmem:[%s4250 + $0x108] sm:$0xff]
                  %4383 = vst [vmem:[%s4251 + $0x168] sm:$0xff] %v4382
                  %v4384 = vld [vmem:[%s4250 + $0x110] sm:$0xff]
                  %4385 = vst [vmem:[%s4251 + $0x170] sm:$0xff] %v4384
                  %v4386 = vld [vmem:[%s4250 + $0x118] sm:$0xff]
                  %4387 = vst [vmem:[%s4251 + $0x178] sm:$0xff] %v4386
                  %v4388 = vld [vmem:[%s4250 + $0x120] sm:$0xff]
                  %4389 = vst [vmem:[%s4251 + $0x180] sm:$0xff] %v4388
                  %v4390 = vld [vmem:[%s4250 + $0x128] sm:$0xff]
                  %4391 = vst [vmem:[%s4251 + $0x188] sm:$0xff] %v4390
                  %v4392 = vld [vmem:[%s4250 + $0x130] sm:$0xff]
                  %4393 = vst [vmem:[%s4251 + $0x190] sm:$0xff] %v4392
                  %v4394 = vld [vmem:[%s4250 + $0x138] sm:$0xff]
                  %4395 = vst [vmem:[%s4251 + $0x198] sm:$0xff] %v4394
                  %v4396 = vld [vmem:[%s4250 + $0x140] sm:$0xff]
                  %4397 = vst [vmem:[%s4251 + $0x1a0] sm:$0xff] %v4396
                  %v4398 = vld [vmem:[%s4250 + $0x148] sm:$0xff]
                  %4399 = vst [vmem:[%s4251 + $0x1a8] sm:$0xff] %v4398
                  %v4400 = vld [vmem:[%s4250 + $0x150] sm:$0xff]
                  %4401 = vst [vmem:[%s4251 + $0x1b0] sm:$0xff] %v4400
                  %v4402 = vld [vmem:[%s4250 + $0x158] sm:$0xff]
                  %4403 = vst [vmem:[%s4251 + $0x1b8] sm:$0xff] %v4402
                  %v4404 = vld [vmem:[%s4250 + $0x160] sm:$0xff]
                  %4405 = vst [vmem:[%s4251 + $0x1c0] sm:$0xff] %v4404
                  %v4406 = vld [vmem:[%s4250 + $0x168] sm:$0xff]
                  %4407 = vst [vmem:[%s4251 + $0x1c8] sm:$0xff] %v4406
                  %v4408 = vld [vmem:[%s4250 + $0x170] sm:$0xff]
                  %4409 = vst [vmem:[%s4251 + $0x1d0] sm:$0xff] %v4408
                  %v4410 = vld [vmem:[%s4250 + $0x178] sm:$0xff]
                  %4411 = vst [vmem:[%s4251 + $0x1d8] sm:$0xff] %v4410
                  %s4412 = sadd.s32 1, %s4249
                  %p4413 = scmp.ge.s32.totalorder %s4412, %s4240
                  %s4414 = scalar_select %p4413, 0, %s4412
                  %s4415 = smul.u32 %s4414, 128
                  %s4416 = smul.u32 %s4414, 128
                  %s4417 = scalar_lea.vmem %s3966, %s4415 [#allocation3]
                  %s4418 = scalar_lea.vmem %s3977, %s4416
                $region138: #{nvidia_forward.7} parent=132 // loop_footer
                  %s4246 = sadd.s32 %s4244, 1
                $region139: #{nvidia_forward.7} parent=132 // loop_footer_branch
                  %4243 = sbr.rel target = $region135
                $region140: #{nvidia_forward.7} parent=132 // loop_exit
                  _
                %s4419 = sshrl.u32 %s4239, 4
                %s4420 = sand.u32 %s4239, 15
                %s4421 = smul.u32 %s4419, 16
                %s4422 = smul.u32 128, %s4421
                %s4423 = sshra.s32 %s4422, 4
                %s4424 = scalar_lea.vmem %s3966, %s4423 [#allocation3]
                %s4425 = smul.u32 128, %s4421
                %s4426 = sshra.s32 %s4425, 4
                %s4427 = scalar_lea.vmem %s3977, %s4426
                // While loop
                $region141: #{nvidia_forward.7} parent=132 // loop_pre_header
                  _
                $region142: #{nvidia_forward.7} parent=132 // loop_header
                  %s4431 = sphi 0, %s4433
                  %p4432 = scmp.ge.s32.totalorder %s4431, %s4420
                  %s4436 = sphi 0, %s4451
                  %s4437 = sphi %s4424, %s4454
                  %s4438 = sphi %s4427, %s4455
                $region143: #{nvidia_forward.7} parent=132 // loop_header_branch
                  %4435 = sbr.rel (%p4432) target = $region147
                $region144: #{nvidia_forward.7} parent=132 // loop_body
                  %v4439 = vld [vmem:[%s4437] sm:$0xff]
                  %4440 = vst [vmem:[%s4438] sm:$0xff] %v4439
                  %v4441 = vld [vmem:[%s4437 + $0x40] sm:$0xff]
                  %4442 = vst [vmem:[%s4438 + $0x58] sm:$0xff] %v4441
                  %v4443 = vld [vmem:[%s4437 + $0x80] sm:$0xff]
                  %4444 = vst [vmem:[%s4438 + $0xb0] sm:$0xff] %v4443
                  %v4445 = vld [vmem:[%s4437 + $0xc0] sm:$0xff]
                  %4446 = vst [vmem:[%s4438 + $0x108] sm:$0xff] %v4445
                  %v4447 = vld [vmem:[%s4437 + $0x100] sm:$0xff]
                  %4448 = vst [vmem:[%s4438 + $0x160] sm:$0xff] %v4447
                  %s4449 = sadd.s32 1, %s4436
                  %p4450 = scmp.ge.s32.totalorder %s4449, %s4420
                  %s4451 = scalar_select %p4450, 0, %s4449
                  %s4452 = smul.u32 %s4451, 8
                  %s4453 = smul.u32 %s4451, 8
                  %s4454 = scalar_lea.vmem %s4424, %s4452 [#allocation3]
                  %s4455 = scalar_lea.vmem %s4427, %s4453
                $region145: #{nvidia_forward.7} parent=132 // loop_footer
                  %s4433 = sadd.s32 %s4431, 1
                $region146: #{nvidia_forward.7} parent=132 // loop_footer_branch
                  %4430 = sbr.rel target = $region142
                $region147: #{nvidia_forward.7} parent=132 // loop_exit
                  _
                %s4456 = sshll.u32 1, %s4234
                %s4457 = ssub.s32 %s4456, 1
                loop: start=0, step=1, limit=1
                $region148: #{nvidia_forward.7} parent=132 // loop_pre_header
                  _
                $region149: #{nvidia_forward.7} parent=132 // loop_header
                  %s4459 = sphi 0, %s4463
                  %p4460 = scmp.ge.s32.totalorder %s4459, 1
                  %s4464 = sphi %s4236, %s4236
                  %s4465 = sphi %s4238, %s4238
                $region150: #{nvidia_forward.7} parent=132 // loop_header_branch
                  %4462 = sbr.rel (%p4460) target = $region154
                $region151: #{nvidia_forward.7} parent=132 // loop_body
                  %v4466 = vld [vmem:[%s4464] sm:%s4457]
                  %4467 = vst [vmem:[%s4465] sm:%s4457] %v4466
                  %v4468 = vld [vmem:[%s4464 + $0x40] sm:%s4457]
                  %4469 = vst [vmem:[%s4465 + $0x58] sm:%s4457] %v4468
                  %v4470 = vld [vmem:[%s4464 + $0x80] sm:%s4457]
                  %4471 = vst [vmem:[%s4465 + $0xb0] sm:%s4457] %v4470
                  %v4472 = vld [vmem:[%s4464 + $0xc0] sm:%s4457]
                  %4473 = vst [vmem:[%s4465 + $0x108] sm:%s4457] %v4472
                  %v4474 = vld [vmem:[%s4464 + $0x100] sm:%s4457]
                  %4475 = vst [vmem:[%s4465 + $0x160] sm:%s4457] %v4474
                $region152: #{nvidia_forward.7} parent=132 // loop_footer
                  %s4463 = sadd.s32 1, %s4459
                $region153: #{nvidia_forward.7} parent=132 // loop_footer_branch
                  %4458 = sbr.rel target = $region149
                $region154: #{nvidia_forward.7} parent=132 // loop_exit
                  _
              $region133: #{nvidia_forward.7} parent=99 // pred_fallthru
                _
            $region100: #{nvidia_forward.7} parent=95 // pred_fallthru
              _
            // Predicated region
            $region101: #{nvidia_forward.7} parent=95 // pred_check
              %p3986 = pneg %p3982
            $region102: #{nvidia_forward.7} parent=95 // pred_check_branch
              %3988 = sbr.rel (%p3986) target = $region104
            $region103: #{nvidia_forward.7} parent=95 // pred_region
              %s3989 = sshll.u32 1, %s3978
              %s3990 = ssub.s32 %s3989, 1
              loop: start=0, step=1, limit=1
              $region105: #{nvidia_forward.7} parent=103 // loop_pre_header
                _
              $region106: #{nvidia_forward.7} parent=103 // loop_header
                %s3992 = sphi 0, %s3996
                %p3993 = scmp.ge.s32.totalorder %s3992, 1
                %s3997 = sphi %s3966, %s3966
                %s3998 = sphi %s3977, %s3977
              $region107: #{nvidia_forward.7} parent=103 // loop_header_branch
                %3995 = sbr.rel (%p3993) target = $region111
              $region108: #{nvidia_forward.7} parent=103 // loop_body
                %v3999 = vld [vmem:[%s3997] sm:%s3990]
                %4000 = vst [vmem:[%s3998] sm:%s3990] %v3999
                %v4001 = vld [vmem:[%s3997 + $0x40] sm:%s3990]
                %4002 = vst [vmem:[%s3998 + $0x58] sm:%s3990] %v4001
                %v4003 = vld [vmem:[%s3997 + $0x80] sm:%s3990]
                %4004 = vst [vmem:[%s3998 + $0xb0] sm:%s3990] %v4003
                %v4005 = vld [vmem:[%s3997 + $0xc0] sm:%s3990]
                %4006 = vst [vmem:[%s3998 + $0x108] sm:%s3990] %v4005
                %v4007 = vld [vmem:[%s3997 + $0x100] sm:%s3990]
                %4008 = vst [vmem:[%s3998 + $0x160] sm:%s3990] %v4007
              $region109: #{nvidia_forward.7} parent=103 // loop_footer
                %s3996 = sadd.s32 1, %s3992
              $region110: #{nvidia_forward.7} parent=103 // loop_footer_branch
                %3991 = sbr.rel target = $region106
              $region111: #{nvidia_forward.7} parent=103 // loop_exit
                _
            $region104: #{nvidia_forward.7} parent=95 // pred_fallthru
              _
          $region96: #{nvidia_forward.7} parent=91 // pred_fallthru
            _
          %4476 = vnop
        $region92: #{nvidia_forward.7} parent=83 // pred_fallthru
          _
      $region84: #{nvidia_forward.7} parent=5 // pred_fallthru
        _
      %p4477 = scmp.le.s32.totalorder 2, %s10
      // Predicated region
      $region155: #{nvidia_forward.7} parent=5 // pred_check
        %p4478 = pneg %p4477
      $region156: #{nvidia_forward.7} parent=5 // pred_check_branch
        %4480 = sbr.rel (%p4478) target = $region158
      $region157: #{nvidia_forward.7} parent=5 // pred_region
        %s4481 = ssub.s32 %s10, 2
        // Predicated region
        $region159: #{nvidia_forward.7} parent=157 // pred_check
          %p4482 = pneg %p128
        $region160: #{nvidia_forward.7} parent=157 // pred_check_branch
          %4484 = sbr.rel (%p4482) target = $region162
        $region161: #{nvidia_forward.7} parent=157 // pred_region
          %s4485 = sand.u32 %s113, 1
          %s4486 = sand.u32 %s113, 1
          %s4487 = smul.addr %s4486, 320
          %s4488 = scalar_lea.vmem [#allocation3], %s4487
        $region162: #{nvidia_forward.7} parent=157 // pred_fallthru
          _
      $region158: #{nvidia_forward.7} parent=5 // pred_fallthru
        _
    $region6: #{nvidia_forward.7} parent=1 // loop_footer
      %s14 = sadd.s32 1, %s10
    $region7: #{nvidia_forward.7} parent=1 // loop_footer_branch
      %9 = sbr.rel target = $region3
    $region8: #{nvidia_forward.7} parent=1 // loop_exit
      _

// kernel: nvidia_forward.8
$region0: #{nvidia_forward.8}
  #allocation0 [shape = 'u32[]', space=smem, size = 0x4, offset = 0x4, fixed_abs, tag = 'smem constant byte address 0x4 - core index']
  #allocation1 [shape = 'u32[144,128]{1,0:T(1,128)}', space=vmem, size = 0x12000, scoped, tag = 'internal scratch']
  %s0 = inlined_call_operand.vmem [shape: bf16[48,900], index: 0, kind: input, shape index: {}]
  %s1 = inlined_call_operand.vmem [shape: bf16[900,220], index: 1, kind: input, shape index: {}]
  %s2 = inlined_call_operand.vmem [shape: f32[48,1], index: 2, kind: input, shape index: {}]
  %s3 = inlined_call_operand.vmem [shape: f32[48,1], index: 3, kind: input, shape index: {}]
  %s4 = inlined_call_operand.vmem [shape: f32[48,220], index: 4, kind: output, shape index: {}]
  %s5 = sld [smem:[#allocation0]]
  $region26: #{nvidia_forward.8} parent=0
    _
  %s7 = ssub.s32 1, %s5
  %s8 = scalar_select 0, %s7, %s5
  // Predicated region
  $region2: #{nvidia_forward.8} parent=0 // pred_check
    _
  $region3: #{nvidia_forward.8} parent=0 // pred_check_branch
    %10 = sbr.rel (0) target = $region5
  $region4: #{nvidia_forward.8} parent=0 // pred_region
    _
  $region5: #{nvidia_forward.8} parent=0 // pred_fallthru
    _
  // Predicated region
  $region6: #{nvidia_forward.8} parent=0 // pred_check
    _
  $region7: #{nvidia_forward.8} parent=0 // pred_check_branch
    %12 = sbr.rel (0) target = $region9
  $region8: #{nvidia_forward.8} parent=0 // pred_region
    _
  $region9: #{nvidia_forward.8} parent=0 // pred_fallthru
    _
  // Predicated region
  $region10: #{nvidia_forward.8} parent=0 // pred_check
    _
  $region11: #{nvidia_forward.8} parent=0 // pred_check_branch
    %14 = sbr.rel (0) target = $region13
  $region12: #{nvidia_forward.8} parent=0 // pred_region
    _
  $region13: #{nvidia_forward.8} parent=0 // pred_fallthru
    _
  // Predicated region
  $region14: #{nvidia_forward.8} parent=0 // pred_check
    _
  $region15: #{nvidia_forward.8} parent=0 // pred_check_branch
    %16 = sbr.rel (0) target = $region17
  $region16: #{nvidia_forward.8} parent=0 // pred_region
    _
  $region17: #{nvidia_forward.8} parent=0 // pred_fallthru
    _
  %v18 = vld [vmem:[%s0] sm:$0xff]
  %v19 = vld [vmem:[%s0 + $0x8] sm:$0xff]
  %v20 = vld [vmem:[%s0 + $0x10] sm:$0xff]
  %v21 = vld [vmem:[%s0 + $0x18] sm:$0xff]
  %v22 = vld [vmem:[%s0 + $0x20] sm:$0xff]
  %v23 = vld [vmem:[%s0 + $0x28] sm:$0xff]
  %v24 = vld [vmem:[%s0 + $0x30] sm:$0xff]
  %v25 = vld [vmem:[%s0 + $0x38] sm:$0xff]
  %v26 = vld [vmem:[%s0 + $0x40] sm:$0xff]
  %v27 = vld [vmem:[%s0 + $0x48] sm:$0xff]
  %v28 = vld [vmem:[%s0 + $0x50] sm:$0xff]
  %v29 = vld [vmem:[%s0 + $0x58] sm:$0xff]
  %v30 = vld [vmem:[%s0 + $0x60] sm:$0xff]
  %v31 = vld [vmem:[%s0 + $0x68] sm:$0xff]
  %v32 = vld [vmem:[%s0 + $0x70] sm:$0xff]
  %v33 = vld [vmem:[%s0 + $0x78] sm:$0xff]
  %v34 = vld [vmem:[%s0 + $0x80] sm:$0xff]
  %v35 = vld [vmem:[%s0 + $0x88] sm:$0xff]
  %v36 = vld [vmem:[%s0 + $0x90] sm:$0xff]
  %v37 = vld [vmem:[%s0 + $0x98] sm:$0xff]
  %v38 = vld [vmem:[%s0 + $0xa0] sm:$0xff]
  %v39 = vld [vmem:[%s0 + $0xa8] sm:$0xff]
  %v40 = vld [vmem:[%s0 + $0xb0] sm:$0xff]
  %v41 = vld [vmem:[%s0 + $0xb8] sm:$0xff]
  %v42 = vld [vmem:[%s1] sm:$0xff]
  %v43 = vld [vmem:[%s1 + $0x8] sm:$0xff]
  %v44 = vld [vmem:[%s1 + $0x10] sm:$0xff]
  %v45 = vld [vmem:[%s1 + $0x18] sm:$0xff]
  %v46 = vld [vmem:[%s1 + $0x20] sm:$0xff]
  %v47 = vld [vmem:[%s1 + $0x28] sm:$0xff]
  %v48 = vld [vmem:[%s1 + $0x30] sm:$0xff]
  %v49 = vld [vmem:[%s1 + $0x38] sm:$0xff]
  %v50 = vld [vmem:[%s1 + $0x40] sm:$0xff]
  %v51 = vld [vmem:[%s1 + $0x48] sm:$0xff]
  %v52 = vld [vmem:[%s1 + $0x50] sm:$0xff]
  %v53 = vld [vmem:[%s1 + $0x58] sm:$0xff]
  %v54 = vld [vmem:[%s1 + $0x60] sm:$0xff]
  %v55 = vld [vmem:[%s1 + $0x68] sm:$0xff]
  %v56 = vld [vmem:[%s1 + $0x70] sm:$0xff]
  %v57 = vld [vmem:[%s1 + $0x78] sm:$0xff]
  %v58 = vld [vmem:[%s1 + $0x80] sm:$0xff]
  %v59 = vld [vmem:[%s1 + $0x88] sm:$0xff]
  %v60 = vld [vmem:[%s1 + $0x90] sm:$0xff]
  %v61 = vld [vmem:[%s1 + $0x98] sm:$0xff]
  %v62 = vld [vmem:[%s1 + $0xa0] sm:$0xff]
  %v63 = vld [vmem:[%s1 + $0xa8] sm:$0xff]
  %v64 = vld [vmem:[%s1 + $0xb0] sm:$0xff]
  %v65 = vld [vmem:[%s1 + $0xb8] sm:$0xff]
  %v66 = vld [vmem:[%s1 + $0xc0] sm:$0xff]
  %v67 = vld [vmem:[%s1 + $0xc8] sm:$0xff]
  %v68 = vld [vmem:[%s1 + $0xd0] sm:$0xff]
  %v69 = vld [vmem:[%s1 + $0xd8] sm:$0xff]
  %v70 = vld [vmem:[%s1 + $0xe0] sm:$0xff]
  %v71 = vld [vmem:[%s1 + $0xe8] sm:$0xff]
  %v72 = vld [vmem:[%s1 + $0xf0] sm:$0xff]
  %v73 = vld [vmem:[%s1 + $0xf8] sm:$0xff]
  %v74 = vld [vmem:[%s1 + $0x100] sm:$0xff]
  %v75 = vld [vmem:[%s1 + $0x108] sm:$0xff]
  %v76 = vld [vmem:[%s1 + $0x110] sm:$0xff]
  %v77 = vld [vmem:[%s1 + $0x118] sm:$0xff]
  %v78 = vld [vmem:[%s1 + $0x120] sm:$0xff]
  %v79 = vld [vmem:[%s1 + $0x128] sm:$0xff]
  %v80 = vld [vmem:[%s1 + $0x130] sm:$0xff]
  %v81 = vld [vmem:[%s1 + $0x138] sm:$0xff]
  %v82 = vld [vmem:[%s1 + $0x140] sm:$0xff]
  %v83 = vld [vmem:[%s1 + $0x148] sm:$0xff]
  %v84 = vld [vmem:[%s1 + $0x150] sm:$0xff]
  %v85 = vld [vmem:[%s1 + $0x158] sm:$0xff]
  %v86 = vld [vmem:[%s1 + $0x160] sm:$0xff]
  %v87 = vld [vmem:[%s1 + $0x168] sm:$0xff]
  %v88 = vld [vmem:[%s1 + $0x170] sm:$0xff]
  %v89 = vld [vmem:[%s1 + $0x178] sm:$0xff]
  %v90 = vld [vmem:[%s1 + $0x180] sm:$0xff]
  %v91 = vld [vmem:[%s1 + $0x188] sm:$0xff]
  %v92 = vld [vmem:[%s1 + $0x190] sm:$0xff]
  %v93 = vld [vmem:[%s1 + $0x198] sm:$0xff]
  %v94 = vld [vmem:[%s1 + $0x1a0] sm:$0xff]
  %v95 = vld [vmem:[%s1 + $0x1a8] sm:$0xff]
  %v96 = vld [vmem:[%s1 + $0x1b0] sm:$0xff]
  %v97 = vld [vmem:[%s1 + $0x1b8] sm:$0xff]
  %v98 = vld [vmem:[%s1 + $0x1c0] sm:$0xff]
  %v99 = vld [vmem:[%s1 + $0x1c8] sm:$0xff]
  %v100 = vld [vmem:[%s1 + $0x1d0] sm:$0xff]
  %v101 = vld [vmem:[%s1 + $0x1d8] sm:$0xff]
  %v102 = vld [vmem:[%s1 + $0x1e0] sm:$0xff]
  %v103 = vld [vmem:[%s1 + $0x1e8] sm:$0xff]
  %v104 = vld [vmem:[%s1 + $0x1f0] sm:$0xff]
  %v105 = vld [vmem:[%s1 + $0x1f8] sm:$0xff]
  %v106 = vld [vmem:[%s1 + $0x200] sm:$0xff]
  %v107 = vld [vmem:[%s1 + $0x208] sm:$0xff]
  %v108 = vld [vmem:[%s1 + $0x210] sm:$0xff]
  %v109 = vld [vmem:[%s1 + $0x218] sm:$0xff]
  %v110 = vld [vmem:[%s1 + $0x220] sm:$0xff]
  %v111 = vld [vmem:[%s1 + $0x228] sm:$0xff]
  %v112 = vld [vmem:[%s1 + $0x230] sm:$0xff]
  %v113 = vld [vmem:[%s1 + $0x238] sm:$0xff]
  %v114 = vld [vmem:[%s1 + $0x240] sm:$0xff]
  %v115 = vld [vmem:[%s1 + $0x248] sm:$0xff]
  %v116 = vld [vmem:[%s1 + $0x250] sm:$0xff]
  %v117 = vld [vmem:[%s1 + $0x258] sm:$0xff]
  %v118 = vld [vmem:[%s1 + $0x260] sm:$0xff]
  %v119 = vld [vmem:[%s1 + $0x268] sm:$0xff]
  %v120 = vld [vmem:[%s1 + $0x270] sm:$0xff]
  %v121 = vld [vmem:[%s1 + $0x278] sm:$0xff]
  %v122 = vld [vmem:[%s1 + $0x280] sm:$0xff]
  %v123 = vld [vmem:[%s1 + $0x288] sm:$0xff]
  %v124 = vld [vmem:[%s1 + $0x290] sm:$0xff]
  %v125 = vld [vmem:[%s1 + $0x298] sm:$0xff]
  %v126 = vld [vmem:[%s1 + $0x2a0] sm:$0xff]
  %v127 = vld [vmem:[%s1 + $0x2a8] sm:$0xff]
  %v128 = vld [vmem:[%s1 + $0x2b0] sm:$0xff]
  %v129 = vld [vmem:[%s1 + $0x2b8] sm:$0xff]
  %v130 = vld [vmem:[%s1 + $0x2c0] sm:$0xff]
  %v131 = vld [vmem:[%s1 + $0x2c8] sm:$0xff]
  %v132 = vld [vmem:[%s1 + $0x2d0] sm:$0xff]
  %v133 = vld [vmem:[%s1 + $0x2d8] sm:$0xff]
  %v134 = vld [vmem:[%s1 + $0x2e0] sm:$0xff]
  %v135 = vld [vmem:[%s1 + $0x2e8] sm:$0xff]
  %v136 = vld [vmem:[%s1 + $0x2f0] sm:$0xff]
  %v137 = vld [vmem:[%s1 + $0x2f8] sm:$0xff]
  %v138 = vld [vmem:[%s1 + $0x300] sm:$0xff]
  %v139 = vld [vmem:[%s1 + $0x308] sm:$0xff]
  %v140 = vld [vmem:[%s1 + $0x310] sm:$0xff]
  %v141 = vld [vmem:[%s1 + $0x318] sm:$0xff]
  %v142 = vld [vmem:[%s1 + $0x320] sm:$0xff]
  %v143 = vld [vmem:[%s1 + $0x328] sm:$0xff]
  %v144 = vld [vmem:[%s1 + $0x330] sm:$0xff]
  %v145 = vld [vmem:[%s1 + $0x338] sm:$0xff]
  %v146 = vld [vmem:[%s1 + $0x340] sm:$0xff]
  %v147 = vld [vmem:[%s1 + $0x348] sm:$0xff]
  %v148 = vld [vmem:[%s1 + $0x350] sm:$0xff]
  %v149 = vld [vmem:[%s1 + $0x358] sm:$0xff]
  %v150 = vld [vmem:[%s1 + $0x360] sm:$0xff]
  %v151 = vld [vmem:[%s1 + $0x368] sm:$0xff]
  %v152 = vld [vmem:[%s1 + $0x370] sm:$0xff]
  %v153 = vld [vmem:[%s1 + $0x378] sm:$0xff]
  %v154 = vld [vmem:[%s1 + $0x380] sm:$0x33]
  %v179 = vunpack.c.l.b16 %v18
  %v180 = vunpack.c.h.b16 %v18
  %v181 = vunpack.c.l.b16 %v19
  %v182 = vunpack.c.h.b16 %v19
  %v183 = vunpack.c.l.b16 %v20
  %v184 = vunpack.c.h.b16 %v20
  %v185 = vunpack.c.l.b16 %v21
  %v186 = vunpack.c.h.b16 %v21
  %v187 = vunpack.c.l.b16 %v22
  %v188 = vunpack.c.h.b16 %v22
  %v189 = vunpack.c.l.b16 %v23
  %v190 = vunpack.c.h.b16 %v23
  %v191 = vunpack.c.l.b16 %v24
  %v192 = vunpack.c.h.b16 %v24
  %v193 = vunpack.c.l.b16 %v25
  %v194 = vunpack.c.h.b16 %v25
  %v195 = vunpack.c.l.b16 %v26
  %v196 = vunpack.c.h.b16 %v26
  %v197 = vunpack.c.l.b16 %v27
  %v198 = vunpack.c.h.b16 %v27
  %v199 = vunpack.c.l.b16 %v28
  %v200 = vunpack.c.h.b16 %v28
  %v201 = vunpack.c.l.b16 %v29
  %v202 = vunpack.c.h.b16 %v29
  %v203 = vunpack.c.l.b16 %v30
  %v204 = vunpack.c.h.b16 %v30
  %v205 = vunpack.c.l.b16 %v31
  %v206 = vunpack.c.h.b16 %v31
  %v207 = vunpack.c.l.b16 %v32
  %v208 = vunpack.c.h.b16 %v32
  %v209 = vunpack.c.l.b16 %v33
  %v210 = vunpack.c.h.b16 %v33
  %v211 = vunpack.c.l.b16 %v34
  %v212 = vunpack.c.h.b16 %v34
  %v213 = vunpack.c.l.b16 %v35
  %v214 = vunpack.c.h.b16 %v35
  %v215 = vunpack.c.l.b16 %v36
  %v216 = vunpack.c.h.b16 %v36
  %v217 = vunpack.c.l.b16 %v37
  %v218 = vunpack.c.h.b16 %v37
  %v219 = vunpack.c.l.b16 %v38
  %v220 = vunpack.c.h.b16 %v38
  %v221 = vunpack.c.l.b16 %v39
  %v222 = vunpack.c.h.b16 %v39
  %v223 = vunpack.c.l.b16 %v40
  %v224 = vunpack.c.h.b16 %v40
  %v225 = vunpack.c.l.b16 %v41
  %v226 = vunpack.c.h.b16 %v41
  %v227 = vpack.c.b16 %v187, %v179
  %v228 = vpack.c.b16 %v188, %v180
  %v229 = vpack.c.b16 %v189, %v181
  %v230 = vpack.c.b16 %v190, %v182
  %v231 = vpack.c.b16 %v191, %v183
  %v232 = vpack.c.b16 %v192, %v184
  %v233 = vpack.c.b16 %v193, %v185
  %v234 = vpack.c.b16 %v194, %v186
  %v235 = vpack.c.b16 %v203, %v195
  %v236 = vpack.c.b16 %v204, %v196
  %v237 = vpack.c.b16 %v205, %v197
  %v238 = vpack.c.b16 %v206, %v198
  %v239 = vpack.c.b16 %v207, %v199
  %v240 = vpack.c.b16 %v208, %v200
  %v241 = vpack.c.b16 %v209, %v201
  %v242 = vpack.c.b16 %v210, %v202
  %v243 = vpack.c.b16 %v219, %v211
  %v244 = vpack.c.b16 %v220, %v212
  %v245 = vpack.c.b16 %v221, %v213
  %v246 = vpack.c.b16 %v222, %v214
  %v247 = vpack.c.b16 %v223, %v215
  %v248 = vpack.c.b16 %v224, %v216
  %v249 = vpack.c.b16 %v225, %v217
  %v250 = vpack.c.b16 %v226, %v218
  %v385 = vunpack.c.l.b16 %v42
  %v386 = vunpack.c.h.b16 %v42
  %v387 = vunpack.c.l.b16 %v43
  %v388 = vunpack.c.h.b16 %v43
  %v389 = vunpack.c.l.b16 %v44
  %v390 = vunpack.c.h.b16 %v44
  %v391 = vunpack.c.l.b16 %v45
  %v392 = vunpack.c.h.b16 %v45
  %v393 = vunpack.c.l.b16 %v46
  %v394 = vunpack.c.h.b16 %v46
  %v395 = vunpack.c.l.b16 %v47
  %v396 = vunpack.c.h.b16 %v47
  %v397 = vunpack.c.l.b16 %v48
  %v398 = vunpack.c.h.b16 %v48
  %v399 = vunpack.c.l.b16 %v49
  %v400 = vunpack.c.h.b16 %v49
  %v401 = vunpack.c.l.b16 %v50
  %v402 = vunpack.c.h.b16 %v50
  %v403 = vunpack.c.l.b16 %v51
  %v404 = vunpack.c.h.b16 %v51
  %v405 = vunpack.c.l.b16 %v52
  %v406 = vunpack.c.h.b16 %v52
  %v407 = vunpack.c.l.b16 %v53
  %v408 = vunpack.c.h.b16 %v53
  %v409 = vunpack.c.l.b16 %v54
  %v410 = vunpack.c.h.b16 %v54
  %v411 = vunpack.c.l.b16 %v55
  %v412 = vunpack.c.h.b16 %v55
  %v413 = vunpack.c.l.b16 %v56
  %v414 = vunpack.c.h.b16 %v56
  %v415 = vunpack.c.l.b16 %v57
  %v416 = vunpack.c.h.b16 %v57
  %v417 = vunpack.c.l.b16 %v58
  %v418 = vunpack.c.h.b16 %v58
  %v419 = vunpack.c.l.b16 %v59
  %v420 = vunpack.c.h.b16 %v59
  %v421 = vunpack.c.l.b16 %v60
  %v422 = vunpack.c.h.b16 %v60
  %v423 = vunpack.c.l.b16 %v61
  %v424 = vunpack.c.h.b16 %v61
  %v425 = vunpack.c.l.b16 %v62
  %v426 = vunpack.c.h.b16 %v62
  %v427 = vunpack.c.l.b16 %v63
  %v428 = vunpack.c.h.b16 %v63
  %v429 = vunpack.c.l.b16 %v64
  %v430 = vunpack.c.h.b16 %v64
  %v431 = vunpack.c.l.b16 %v65
  %v432 = vunpack.c.h.b16 %v65
  %v433 = vunpack.c.l.b16 %v66
  %v434 = vunpack.c.h.b16 %v66
  %v435 = vunpack.c.l.b16 %v67
  %v436 = vunpack.c.h.b16 %v67
  %v437 = vunpack.c.l.b16 %v68
  %v438 = vunpack.c.h.b16 %v68
  %v439 = vunpack.c.l.b16 %v69
  %v440 = vunpack.c.h.b16 %v69
  %v441 = vunpack.c.l.b16 %v70
  %v442 = vunpack.c.h.b16 %v70
  %v443 = vunpack.c.l.b16 %v71
  %v444 = vunpack.c.h.b16 %v71
  %v445 = vunpack.c.l.b16 %v72
  %v446 = vunpack.c.h.b16 %v72
  %v447 = vunpack.c.l.b16 %v73
  %v448 = vunpack.c.h.b16 %v73
  %v449 = vunpack.c.l.b16 %v74
  %v450 = vunpack.c.h.b16 %v74
  %v451 = vunpack.c.l.b16 %v75
  %v452 = vunpack.c.h.b16 %v75
  %v453 = vunpack.c.l.b16 %v76
  %v454 = vunpack.c.h.b16 %v76
  %v455 = vunpack.c.l.b16 %v77
  %v456 = vunpack.c.h.b16 %v77
  %v457 = vunpack.c.l.b16 %v78
  %v458 = vunpack.c.h.b16 %v78
  %v459 = vunpack.c.l.b16 %v79
  %v460 = vunpack.c.h.b16 %v79
  %v461 = vunpack.c.l.b16 %v80
  %v462 = vunpack.c.h.b16 %v80
  %v463 = vunpack.c.l.b16 %v81
  %v464 = vunpack.c.h.b16 %v81
  %v465 = vunpack.c.l.b16 %v82
  %v466 = vunpack.c.h.b16 %v82
  %v467 = vunpack.c.l.b16 %v83
  %v468 = vunpack.c.h.b16 %v83
  %v469 = vunpack.c.l.b16 %v84
  %v470 = vunpack.c.h.b16 %v84
  %v471 = vunpack.c.l.b16 %v85
  %v472 = vunpack.c.h.b16 %v85
  %v473 = vunpack.c.l.b16 %v86
  %v474 = vunpack.c.h.b16 %v86
  %v475 = vunpack.c.l.b16 %v87
  %v476 = vunpack.c.h.b16 %v87
  %v477 = vunpack.c.l.b16 %v88
  %v478 = vunpack.c.h.b16 %v88
  %v479 = vunpack.c.l.b16 %v89
  %v480 = vunpack.c.h.b16 %v89
  %v481 = vunpack.c.l.b16 %v90
  %v482 = vunpack.c.h.b16 %v90
  %v483 = vunpack.c.l.b16 %v91
  %v484 = vunpack.c.h.b16 %v91
  %v485 = vunpack.c.l.b16 %v92
  %v486 = vunpack.c.h.b16 %v92
  %v487 = vunpack.c.l.b16 %v93
  %v488 = vunpack.c.h.b16 %v93
  %v489 = vunpack.c.l.b16 %v94
  %v490 = vunpack.c.h.b16 %v94
  %v491 = vunpack.c.l.b16 %v95
  %v492 = vunpack.c.h.b16 %v95
  %v493 = vunpack.c.l.b16 %v96
  %v494 = vunpack.c.h.b16 %v96
  %v495 = vunpack.c.l.b16 %v97
  %v496 = vunpack.c.h.b16 %v97
  %v497 = vunpack.c.l.b16 %v98
  %v498 = vunpack.c.h.b16 %v98
  %v499 = vunpack.c.l.b16 %v99
  %v500 = vunpack.c.h.b16 %v99
  %v501 = vunpack.c.l.b16 %v100
  %v502 = vunpack.c.h.b16 %v100
  %v503 = vunpack.c.l.b16 %v101
  %v504 = vunpack.c.h.b16 %v101
  %v505 = vunpack.c.l.b16 %v102
  %v506 = vunpack.c.h.b16 %v102
  %v507 = vunpack.c.l.b16 %v103
  %v508 = vunpack.c.h.b16 %v103
  %v509 = vunpack.c.l.b16 %v104
  %v510 = vunpack.c.h.b16 %v104
  %v511 = vunpack.c.l.b16 %v105
  %v512 = vunpack.c.h.b16 %v105
  %v513 = vunpack.c.l.b16 %v106
  %v514 = vunpack.c.h.b16 %v106
  %v515 = vunpack.c.l.b16 %v107
  %v516 = vunpack.c.h.b16 %v107
  %v517 = vunpack.c.l.b16 %v108
  %v518 = vunpack.c.h.b16 %v108
  %v519 = vunpack.c.l.b16 %v109
  %v520 = vunpack.c.h.b16 %v109
  %v521 = vunpack.c.l.b16 %v110
  %v522 = vunpack.c.h.b16 %v110
  %v523 = vunpack.c.l.b16 %v111
  %v524 = vunpack.c.h.b16 %v111
  %v525 = vunpack.c.l.b16 %v112
  %v526 = vunpack.c.h.b16 %v112
  %v527 = vunpack.c.l.b16 %v113
  %v528 = vunpack.c.h.b16 %v113
  %v529 = vunpack.c.l.b16 %v114
  %v530 = vunpack.c.h.b16 %v114
  %v531 = vunpack.c.l.b16 %v115
  %v532 = vunpack.c.h.b16 %v115
  %v533 = vunpack.c.l.b16 %v116
  %v534 = vunpack.c.h.b16 %v116
  %v535 = vunpack.c.l.b16 %v117
  %v536 = vunpack.c.h.b16 %v117
  %v537 = vunpack.c.l.b16 %v118
  %v538 = vunpack.c.h.b16 %v118
  %v539 = vunpack.c.l.b16 %v119
  %v540 = vunpack.c.h.b16 %v119
  %v541 = vunpack.c.l.b16 %v120
  %v542 = vunpack.c.h.b16 %v120
  %v543 = vunpack.c.l.b16 %v121
  %v544 = vunpack.c.h.b16 %v121
  %v545 = vunpack.c.l.b16 %v122
  %v546 = vunpack.c.h.b16 %v122
  %v547 = vunpack.c.l.b16 %v123
  %v548 = vunpack.c.h.b16 %v123
  %v549 = vunpack.c.l.b16 %v124
  %v550 = vunpack.c.h.b16 %v124
  %v551 = vunpack.c.l.b16 %v125
  %v552 = vunpack.c.h.b16 %v125
  %v553 = vunpack.c.l.b16 %v126
  %v554 = vunpack.c.h.b16 %v126
  %v555 = vunpack.c.l.b16 %v127
  %v556 = vunpack.c.h.b16 %v127
  %v557 = vunpack.c.l.b16 %v128
  %v558 = vunpack.c.h.b16 %v128
  %v559 = vunpack.c.l.b16 %v129
  %v560 = vunpack.c.h.b16 %v129
  %v561 = vunpack.c.l.b16 %v130
  %v562 = vunpack.c.h.b16 %v130
  %v563 = vunpack.c.l.b16 %v131
  %v564 = vunpack.c.h.b16 %v131
  %v565 = vunpack.c.l.b16 %v132
  %v566 = vunpack.c.h.b16 %v132
  %v567 = vunpack.c.l.b16 %v133
  %v568 = vunpack.c.h.b16 %v133
  %v569 = vunpack.c.l.b16 %v134
  %v570 = vunpack.c.h.b16 %v134
  %v571 = vunpack.c.l.b16 %v135
  %v572 = vunpack.c.h.b16 %v135
  %v573 = vunpack.c.l.b16 %v136
  %v574 = vunpack.c.h.b16 %v136
  %v575 = vunpack.c.l.b16 %v137
  %v576 = vunpack.c.h.b16 %v137
  %v577 = vunpack.c.l.b16 %v138
  %v578 = vunpack.c.h.b16 %v138
  %v579 = vunpack.c.l.b16 %v139
  %v580 = vunpack.c.h.b16 %v139
  %v581 = vunpack.c.l.b16 %v140
  %v582 = vunpack.c.h.b16 %v140
  %v583 = vunpack.c.l.b16 %v141
  %v584 = vunpack.c.h.b16 %v141
  %v585 = vunpack.c.l.b16 %v142
  %v586 = vunpack.c.h.b16 %v142
  %v587 = vunpack.c.l.b16 %v143
  %v588 = vunpack.c.h.b16 %v143
  %v589 = vunpack.c.l.b16 %v144
  %v590 = vunpack.c.h.b16 %v144
  %v591 = vunpack.c.l.b16 %v145
  %v592 = vunpack.c.h.b16 %v145
  %v593 = vunpack.c.l.b16 %v146
  %v594 = vunpack.c.h.b16 %v146
  %v595 = vunpack.c.l.b16 %v147
  %v596 = vunpack.c.h.b16 %v147
  %v597 = vunpack.c.l.b16 %v148
  %v598 = vunpack.c.h.b16 %v148
  %v599 = vunpack.c.l.b16 %v149
  %v600 = vunpack.c.h.b16 %v149
  %v601 = vunpack.c.l.b16 %v150
  %v602 = vunpack.c.h.b16 %v150
  %v603 = vunpack.c.l.b16 %v151
  %v604 = vunpack.c.h.b16 %v151
  %v605 = vunpack.c.l.b16 %v152
  %v606 = vunpack.c.h.b16 %v152
  %v607 = vunpack.c.l.b16 %v153
  %v608 = vunpack.c.h.b16 %v153
  %v609 = vunpack.c.l.b16 %v154
  %v610 = vunpack.c.h.b16 %v154
  %v611 = vpack.c.b16 %v387, %v385
  %v612 = vpack.c.b16 %v388, %v386
  %v613 = vpack.c.b16 %v391, %v389
  %v614 = vpack.c.b16 %v392, %v390
  %v615 = vpack.c.b16 %v395, %v393
  %v616 = vpack.c.b16 %v396, %v394
  %v617 = vpack.c.b16 %v399, %v397
  %v618 = vpack.c.b16 %v400, %v398
  %v619 = vpack.c.b16 %v403, %v401
  %v620 = vpack.c.b16 %v404, %v402
  %v621 = vpack.c.b16 %v407, %v405
  %v622 = vpack.c.b16 %v408, %v406
  %v623 = vpack.c.b16 %v411, %v409
  %v624 = vpack.c.b16 %v412, %v410
  %v625 = vpack.c.b16 %v415, %v413
  %v626 = vpack.c.b16 %v416, %v414
  %v627 = vpack.c.b16 %v419, %v417
  %v628 = vpack.c.b16 %v420, %v418
  %v629 = vpack.c.b16 %v423, %v421
  %v630 = vpack.c.b16 %v424, %v422
  %v631 = vpack.c.b16 %v427, %v425
  %v632 = vpack.c.b16 %v428, %v426
  %v633 = vpack.c.b16 %v431, %v429
  %v634 = vpack.c.b16 %v432, %v430
  %v635 = vpack.c.b16 %v435, %v433
  %v636 = vpack.c.b16 %v436, %v434
  %v637 = vpack.c.b16 %v439, %v437
  %v638 = vpack.c.b16 %v440, %v438
  %v639 = vpack.c.b16 %v443, %v441
  %v640 = vpack.c.b16 %v444, %v442
  %v641 = vpack.c.b16 %v447, %v445
  %v642 = vpack.c.b16 %v448, %v446
  %v643 = vpack.c.b16 %v451, %v449
  %v644 = vpack.c.b16 %v452, %v450
  %v645 = vpack.c.b16 %v455, %v453
  %v646 = vpack.c.b16 %v456, %v454
  %v647 = vpack.c.b16 %v459, %v457
  %v648 = vpack.c.b16 %v460, %v458
  %v649 = vpack.c.b16 %v463, %v461
  %v650 = vpack.c.b16 %v464, %v462
  %v651 = vpack.c.b16 %v467, %v465
  %v652 = vpack.c.b16 %v468, %v466
  %v653 = vpack.c.b16 %v471, %v469
  %v654 = vpack.c.b16 %v472, %v470
  %v655 = vpack.c.b16 %v475, %v473
  %v656 = vpack.c.b16 %v476, %v474
  %v657 = vpack.c.b16 %v479, %v477
  %v658 = vpack.c.b16 %v480, %v478
  %v659 = vpack.c.b16 %v483, %v481
  %v660 = vpack.c.b16 %v484, %v482
  %v661 = vpack.c.b16 %v487, %v485
  %v662 = vpack.c.b16 %v488, %v486
  %v663 = vpack.c.b16 %v491, %v489
  %v664 = vpack.c.b16 %v492, %v490
  %v665 = vpack.c.b16 %v495, %v493
  %v666 = vpack.c.b16 %v496, %v494
  %v667 = vpack.c.b16 %v499, %v497
  %v668 = vpack.c.b16 %v500, %v498
  %v669 = vpack.c.b16 %v503, %v501
  %v670 = vpack.c.b16 %v504, %v502
  %v671 = vpack.c.b16 %v507, %v505
  %v672 = vpack.c.b16 %v508, %v506
  %v673 = vpack.c.b16 %v511, %v509
  %v674 = vpack.c.b16 %v512, %v510
  %v675 = vpack.c.b16 %v515, %v513
  %v676 = vpack.c.b16 %v516, %v514
  %v677 = vpack.c.b16 %v519, %v517
  %v678 = vpack.c.b16 %v520, %v518
  %v679 = vpack.c.b16 %v523, %v521
  %v680 = vpack.c.b16 %v524, %v522
  %v681 = vpack.c.b16 %v527, %v525
  %v682 = vpack.c.b16 %v528, %v526
  %v683 = vpack.c.b16 %v531, %v529
  %v684 = vpack.c.b16 %v532, %v530
  %v685 = vpack.c.b16 %v535, %v533
  %v686 = vpack.c.b16 %v536, %v534
  %v687 = vpack.c.b16 %v539, %v537
  %v688 = vpack.c.b16 %v540, %v538
  %v689 = vpack.c.b16 %v543, %v541
  %v690 = vpack.c.b16 %v544, %v542
  %v691 = vpack.c.b16 %v547, %v545
  %v692 = vpack.c.b16 %v548, %v546
  %v693 = vpack.c.b16 %v551, %v549
  %v694 = vpack.c.b16 %v552, %v550
  %v695 = vpack.c.b16 %v555, %v553
  %v696 = vpack.c.b16 %v556, %v554
  %v697 = vpack.c.b16 %v559, %v557
  %v698 = vpack.c.b16 %v560, %v558
  %v699 = vpack.c.b16 %v563, %v561
  %v700 = vpack.c.b16 %v564, %v562
  %v701 = vpack.c.b16 %v567, %v565
  %v702 = vpack.c.b16 %v568, %v566
  %v703 = vpack.c.b16 %v571, %v569
  %v704 = vpack.c.b16 %v572, %v570
  %v705 = vpack.c.b16 %v575, %v573
  %v706 = vpack.c.b16 %v576, %v574
  %v707 = vpack.c.b16 %v579, %v577
  %v708 = vpack.c.b16 %v580, %v578
  %v709 = vpack.c.b16 %v583, %v581
  %v710 = vpack.c.b16 %v584, %v582
  %v711 = vpack.c.b16 %v587, %v585
  %v712 = vpack.c.b16 %v588, %v586
  %v713 = vpack.c.b16 %v591, %v589
  %v714 = vpack.c.b16 %v592, %v590
  %v715 = vpack.c.b16 %v595, %v593
  %v716 = vpack.c.b16 %v596, %v594
  %v717 = vpack.c.b16 %v599, %v597
  %v718 = vpack.c.b16 %v600, %v598
  %v719 = vpack.c.b16 %v603, %v601
  %v720 = vpack.c.b16 %v604, %v602
  %v721 = vpack.c.b16 %v607, %v605
  %v722 = vpack.c.b16 %v608, %v606
  %v723 = vpack.c.b16 %v609, %v609
  %v724 = vpack.c.b16 %v610, %v610
  %vm837 = vcmask 31744
  %v839 = vsel %vm837, %v234, 0
  %v842 = vsel %vm837, %v242, 0
  %v845 = vsel %vm837, %v250, 0
  %vm847 = vcmask 1041408
  %v849 = vsel %vm847, %v723, 0
  %v852 = vsel %vm847, %v724, 0
  %854 = vmatprep.subr.bf16.mxu0 %v626
  %855 = vmatpush1.bf16.msra.mxu0 %v625
  %856 = vmatprep.subr.bf16.mxu0 %v624
  %857 = vmatpush1.bf16.msra.mxu0 %v623
  %858 = vmatprep.subr.bf16.mxu0 %v622
  %859 = vmatpush1.bf16.msra.mxu0 %v621
  %860 = vmatprep.subr.bf16.mxu0 %v620
  %861 = vmatpush1.bf16.msra.mxu0 %v619
  %862 = vmatprep.subr.bf16.mxu0 %v618
  %863 = vmatpush1.bf16.msra.mxu0 %v617
  %864 = vmatprep.subr.bf16.mxu0 %v616
  %865 = vmatpush1.bf16.msra.mxu0 %v615
  %866 = vmatprep.subr.bf16.mxu0 %v614
  %867 = vmatpush1.bf16.msra.mxu0 %v613
  %868 = vmatprep.subr.bf16.mxu0 %v612
  %869 = vmatpush1.bf16.msra.mxu0 %v611
  %870 = vmatprep.subr.bf16.mxu0 %v642
  %871 = vmatpush2.bf16.msra.mxu0 %v641
  %872 = vmatprep.subr.bf16.mxu0 %v640
  %873 = vmatpush2.bf16.msra.mxu0 %v639
  %874 = vmatprep.subr.bf16.mxu0 %v638
  %875 = vmatpush2.bf16.msra.mxu0 %v637
  %876 = vmatprep.subr.bf16.mxu0 %v636
  %877 = vmatpush2.bf16.msra.mxu0 %v635
  %878 = vmatprep.subr.bf16.mxu0 %v634
  %879 = vmatpush2.bf16.msra.mxu0 %v633
  %880 = vmatprep.subr.bf16.mxu0 %v632
  %881 = vmatpush2.bf16.msra.mxu0 %v631
  %882 = vmatprep.subr.bf16.mxu0 %v630
  %883 = vmatpush2.bf16.msra.mxu0 %v629
  %884 = vmatprep.subr.bf16.mxu0 %v628
  %885 = vmatpush2.bf16.msra.mxu0 %v627
  %886 = vmatprep.mubr.bf16.mxu0 %v228
  %887 = vmatmul.mubr.bf16.gmra.mxu0 %v227
  %v888 = vpop.f32.mrf.mxu0
  %v889 = vadd.f32 0.0, %v888
  %v890 = vpop.f32.mrf.mxu0
  %v891 = vadd.f32 0.0, %v890
  %v892 = vpop.f32.mrf.mxu0
  %v893 = vadd.f32 0.0, %v892
  %v894 = vpop.f32.mrf.mxu0
  %v895 = vadd.f32 0.0, %v894
  %896 = vmatprep.mubr.bf16.mxu0 %v236
  %897 = vmatmul.mubr.bf16.gmra.mxu0 %v235
  %v898 = vpop.f32.mrf.mxu0
  %v899 = vadd.f32 0.0, %v898
  %v900 = vpop.f32.mrf.mxu0
  %v901 = vadd.f32 0.0, %v900
  %v902 = vpop.f32.mrf.mxu0
  %v903 = vadd.f32 0.0, %v902
  %v904 = vpop.f32.mrf.mxu0
  %v905 = vadd.f32 0.0, %v904
  %906 = vmatprep.mubr.bf16.mxu0 %v244
  %907 = vmatmul.mubr.bf16.gmra.mxu0 %v243
  %v908 = vpop.f32.mrf.mxu0
  %v909 = vadd.f32 0.0, %v908
  %v910 = vpop.f32.mrf.mxu0
  %v911 = vadd.f32 0.0, %v910
  %v912 = vpop.f32.mrf.mxu0
  %v913 = vadd.f32 0.0, %v912
  %v914 = vpop.f32.mrf.mxu0
  %v915 = vadd.f32 0.0, %v914
  %916 = vdwg.mxu0
  %917 = vmatprep.subr.bf16.mxu0 %v658
  %918 = vmatpush1.bf16.msra.mxu0 %v657
  %919 = vmatprep.subr.bf16.mxu0 %v656
  %920 = vmatpush1.bf16.msra.mxu0 %v655
  %921 = vmatprep.subr.bf16.mxu0 %v654
  %922 = vmatpush1.bf16.msra.mxu0 %v653
  %923 = vmatprep.subr.bf16.mxu0 %v652
  %924 = vmatpush1.bf16.msra.mxu0 %v651
  %925 = vmatprep.subr.bf16.mxu0 %v650
  %926 = vmatpush1.bf16.msra.mxu0 %v649
  %927 = vmatprep.subr.bf16.mxu0 %v648
  %928 = vmatpush1.bf16.msra.mxu0 %v647
  %929 = vmatprep.subr.bf16.mxu0 %v646
  %930 = vmatpush1.bf16.msra.mxu0 %v645
  %931 = vmatprep.subr.bf16.mxu0 %v644
  %932 = vmatpush1.bf16.msra.mxu0 %v643
  %933 = vmatprep.subr.bf16.mxu0 %v674
  %934 = vmatpush2.bf16.msra.mxu0 %v673
  %935 = vmatprep.subr.bf16.mxu0 %v672
  %936 = vmatpush2.bf16.msra.mxu0 %v671
  %937 = vmatprep.subr.bf16.mxu0 %v670
  %938 = vmatpush2.bf16.msra.mxu0 %v669
  %939 = vmatprep.subr.bf16.mxu0 %v668
  %940 = vmatpush2.bf16.msra.mxu0 %v667
  %941 = vmatprep.subr.bf16.mxu0 %v666
  %942 = vmatpush2.bf16.msra.mxu0 %v665
  %943 = vmatprep.subr.bf16.mxu0 %v664
  %944 = vmatpush2.bf16.msra.mxu0 %v663
  %945 = vmatprep.subr.bf16.mxu0 %v662
  %946 = vmatpush2.bf16.msra.mxu0 %v661
  %947 = vmatprep.subr.bf16.mxu0 %v660
  %948 = vmatpush2.bf16.msra.mxu0 %v659
  %949 = vmatprep.mubr.bf16.mxu0 %v230
  %950 = vmatmul.mubr.bf16.gmra.mxu0 %v229
  %v951 = vpop.f32.mrf.mxu0
  %v952 = vadd.f32 %v889, %v951
  %v953 = vpop.f32.mrf.mxu0
  %v954 = vadd.f32 %v891, %v953
  %v955 = vpop.f32.mrf.mxu0
  %v956 = vadd.f32 %v893, %v955
  %v957 = vpop.f32.mrf.mxu0
  %v958 = vadd.f32 %v895, %v957
  %959 = vmatprep.mubr.bf16.mxu0 %v238
  %960 = vmatmul.mubr.bf16.gmra.mxu0 %v237
  %v961 = vpop.f32.mrf.mxu0
  %v962 = vadd.f32 %v899, %v961
  %v963 = vpop.f32.mrf.mxu0
  %v964 = vadd.f32 %v901, %v963
  %v965 = vpop.f32.mrf.mxu0
  %v966 = vadd.f32 %v903, %v965
  %v967 = vpop.f32.mrf.mxu0
  %v968 = vadd.f32 %v905, %v967
  %969 = vmatprep.mubr.bf16.mxu0 %v246
  %970 = vmatmul.mubr.bf16.gmra.mxu0 %v245
  %v971 = vpop.f32.mrf.mxu0
  %v972 = vadd.f32 %v909, %v971
  %v973 = vpop.f32.mrf.mxu0
  %v974 = vadd.f32 %v911, %v973
  %v975 = vpop.f32.mrf.mxu0
  %v976 = vadd.f32 %v913, %v975
  %v977 = vpop.f32.mrf.mxu0
  %v978 = vadd.f32 %v915, %v977
  %979 = vdwg.mxu0
  %980 = vmatprep.subr.bf16.mxu0 %v690
  %981 = vmatpush1.bf16.msra.mxu0 %v689
  %982 = vmatprep.subr.bf16.mxu0 %v688
  %983 = vmatpush1.bf16.msra.mxu0 %v687
  %984 = vmatprep.subr.bf16.mxu0 %v686
  %985 = vmatpush1.bf16.msra.mxu0 %v685
  %986 = vmatprep.subr.bf16.mxu0 %v684
  %987 = vmatpush1.bf16.msra.mxu0 %v683
  %988 = vmatprep.subr.bf16.mxu0 %v682
  %989 = vmatpush1.bf16.msra.mxu0 %v681
  %990 = vmatprep.subr.bf16.mxu0 %v680
  %991 = vmatpush1.bf16.msra.mxu0 %v679
  %992 = vmatprep.subr.bf16.mxu0 %v678
  %993 = vmatpush1.bf16.msra.mxu0 %v677
  %994 = vmatprep.subr.bf16.mxu0 %v676
  %995 = vmatpush1.bf16.msra.mxu0 %v675
  %996 = vmatprep.subr.bf16.mxu0 %v706
  %997 = vmatpush2.bf16.msra.mxu0 %v705
  %998 = vmatprep.subr.bf16.mxu0 %v704
  %999 = vmatpush2.bf16.msra.mxu0 %v703
  %1000 = vmatprep.subr.bf16.mxu0 %v702
  %1001 = vmatpush2.bf16.msra.mxu0 %v701
  %1002 = vmatprep.subr.bf16.mxu0 %v700
  %1003 = vmatpush2.bf16.msra.mxu0 %v699
  %1004 = vmatprep.subr.bf16.mxu0 %v698
  %1005 = vmatpush2.bf16.msra.mxu0 %v697
  %1006 = vmatprep.subr.bf16.mxu0 %v696
  %1007 = vmatpush2.bf16.msra.mxu0 %v695
  %1008 = vmatprep.subr.bf16.mxu0 %v694
  %1009 = vmatpush2.bf16.msra.mxu0 %v693
  %1010 = vmatprep.subr.bf16.mxu0 %v692
  %1011 = vmatpush2.bf16.msra.mxu0 %v691
  %1012 = vmatprep.mubr.bf16.mxu0 %v232
  %1013 = vmatmul.mubr.bf16.gmra.mxu0 %v231
  %v1014 = vpop.f32.mrf.mxu0
  %v1015 = vadd.f32 %v952, %v1014
  %v1016 = vpop.f32.mrf.mxu0
  %v1017 = vadd.f32 %v954, %v1016
  %v1018 = vpop.f32.mrf.mxu0
  %v1019 = vadd.f32 %v956, %v1018
  %v1020 = vpop.f32.mrf.mxu0
  %v1021 = vadd.f32 %v958, %v1020
  %1022 = vmatprep.mubr.bf16.mxu0 %v240
  %1023 = vmatmul.mubr.bf16.gmra.mxu0 %v239
  %v1024 = vpop.f32.mrf.mxu0
  %v1025 = vadd.f32 %v962, %v1024
  %v1026 = vpop.f32.mrf.mxu0
  %v1027 = vadd.f32 %v964, %v1026
  %v1028 = vpop.f32.mrf.mxu0
  %v1029 = vadd.f32 %v966, %v1028
  %v1030 = vpop.f32.mrf.mxu0
  %v1031 = vadd.f32 %v968, %v1030
  %1032 = vmatprep.mubr.bf16.mxu0 %v248
  %1033 = vmatmul.mubr.bf16.gmra.mxu0 %v247
  %v1034 = vpop.f32.mrf.mxu0
  %v1035 = vadd.f32 %v972, %v1034
  %v1036 = vpop.f32.mrf.mxu0
  %v1037 = vadd.f32 %v974, %v1036
  %v1038 = vpop.f32.mrf.mxu0
  %v1039 = vadd.f32 %v976, %v1038
  %v1040 = vpop.f32.mrf.mxu0
  %v1041 = vadd.f32 %v978, %v1040
  %1042 = vdwg.mxu0
  %1043 = vmatprep.subr.bf16.mxu0 %v722
  %1044 = vmatpush1.bf16.msra.mxu0 %v721
  %1045 = vmatprep.subr.bf16.mxu0 %v720
  %1046 = vmatpush1.bf16.msra.mxu0 %v719
  %1047 = vmatprep.subr.bf16.mxu0 %v718
  %1048 = vmatpush1.bf16.msra.mxu0 %v717
  %1049 = vmatprep.subr.bf16.mxu0 %v716
  %1050 = vmatpush1.bf16.msra.mxu0 %v715
  %1051 = vmatprep.subr.bf16.mxu0 %v714
  %1052 = vmatpush1.bf16.msra.mxu0 %v713
  %1053 = vmatprep.subr.bf16.mxu0 %v712
  %1054 = vmatpush1.bf16.msra.mxu0 %v711
  %1055 = vmatprep.subr.bf16.mxu0 %v710
  %1056 = vmatpush1.bf16.msra.mxu0 %v709
  %1057 = vmatprep.subr.bf16.mxu0 %v708
  %1058 = vmatpush1.bf16.msra.mxu0 %v707
  %1059 = vmatprep.subr.bf16.mxu0 0
  %1060 = vmatpush2.bf16.msra.mxu0 0
  %1061 = vmatprep.subr.bf16.mxu0 0
  %1062 = vmatpush2.bf16.msra.mxu0 0
  %1063 = vmatprep.subr.bf16.mxu0 0
  %1064 = vmatpush2.bf16.msra.mxu0 0
  %1065 = vmatprep.subr.bf16.mxu0 0
  %1066 = vmatpush2.bf16.msra.mxu0 0
  %1067 = vmatprep.subr.bf16.mxu0 0
  %1068 = vmatpush2.bf16.msra.mxu0 0
  %1069 = vmatprep.subr.bf16.mxu0 0
  %1070 = vmatpush2.bf16.msra.mxu0 0
  %1071 = vmatprep.subr.bf16.mxu0 0
  %1072 = vmatpush2.bf16.msra.mxu0 0
  %1073 = vmatprep.subr.bf16.mxu0 %v852
  %1074 = vmatpush2.bf16.msra.mxu0 %v849
  %1075 = vmatprep.mubr.bf16.mxu0 %v839
  %1076 = vmatmul.mubr.bf16.gmra.mxu0 %v233
  %v1077 = vpop.f32.mrf.mxu0
  %v1078 = vadd.f32 %v1015, %v1077
  %v1079 = vpop.f32.mrf.mxu0
  %v1080 = vadd.f32 %v1017, %v1079
  %v1081 = vpop.f32.mrf.mxu0
  %v1082 = vadd.f32 %v1019, %v1081
  %v1083 = vpop.f32.mrf.mxu0
  %v1084 = vadd.f32 %v1021, %v1083
  %1085 = vmatprep.mubr.bf16.mxu0 %v842
  %1086 = vmatmul.mubr.bf16.gmra.mxu0 %v241
  %v1087 = vpop.f32.mrf.mxu0
  %v1088 = vadd.f32 %v1025, %v1087
  %v1089 = vpop.f32.mrf.mxu0
  %v1090 = vadd.f32 %v1027, %v1089
  %v1091 = vpop.f32.mrf.mxu0
  %v1092 = vadd.f32 %v1029, %v1091
  %v1093 = vpop.f32.mrf.mxu0
  %v1094 = vadd.f32 %v1031, %v1093
  %1095 = vmatprep.mubr.bf16.mxu0 %v845
  %1096 = vmatmul.mubr.bf16.gmra.mxu0 %v249
  %v1097 = vpop.f32.mrf.mxu0
  %v1098 = vadd.f32 %v1035, %v1097
  %v1099 = vpop.f32.mrf.mxu0
  %v1100 = vadd.f32 %v1037, %v1099
  %v1101 = vpop.f32.mrf.mxu0
  %v1102 = vadd.f32 %v1039, %v1101
  %v1103 = vpop.f32.mrf.mxu0
  %v1104 = vadd.f32 %v1041, %v1103
  %1105 = vdwg.mxu0
  %v1106 = vld [vmem:[%s2] sm:$0xff]
  %v1107 = vld [vmem:[%s2 + $0x8] sm:$0xff]
  %v1108 = vld [vmem:[%s2 + $0x10] sm:$0xff]
  %v1109 = vld [vmem:[%s2 + $0x18] sm:$0xff]
  %v1110 = vld [vmem:[%s2 + $0x20] sm:$0xff]
  %v1111 = vld [vmem:[%s2 + $0x28] sm:$0xff]
  %1113 = vset.pattern.permute.xlu0 0
  %1114 = vperm.xlu0 %1113, %v1106
  %v1115 = vpop.permute.xlu0 %1114
  %1118 = vset.pattern.permute.xlu0 0
  %1119 = vperm.xlu0 %1118, %v1107
  %v1120 = vpop.permute.xlu0 %1119
  %1123 = vset.pattern.permute.xlu0 0
  %1124 = vperm.xlu0 %1123, %v1108
  %v1125 = vpop.permute.xlu0 %1124
  %1128 = vset.pattern.permute.xlu0 0
  %1129 = vperm.xlu0 %1128, %v1109
  %v1130 = vpop.permute.xlu0 %1129
  %1133 = vset.pattern.permute.xlu0 0
  %1134 = vperm.xlu0 %1133, %v1110
  %v1135 = vpop.permute.xlu0 %1134
  %1138 = vset.pattern.permute.xlu0 0
  %1139 = vperm.xlu0 %1138, %v1111
  %v1140 = vpop.permute.xlu0 %1139
  %v1142 = vmul.f32 %v1078, %v1115
  %v1143 = vmul.f32 %v1080, %v1115
  %v1144 = vmul.f32 %v1082, %v1120
  %v1145 = vmul.f32 %v1084, %v1120
  %v1146 = vmul.f32 %v1088, %v1125
  %v1147 = vmul.f32 %v1090, %v1125
  %v1148 = vmul.f32 %v1092, %v1130
  %v1149 = vmul.f32 %v1094, %v1130
  %v1150 = vmul.f32 %v1098, %v1135
  %v1151 = vmul.f32 %v1100, %v1135
  %v1152 = vmul.f32 %v1102, %v1140
  %v1153 = vmul.f32 %v1104, %v1140
  %v1154 = vld [vmem:[%s3] sm:$0xff]
  %v1155 = vld [vmem:[%s3 + $0x8] sm:$0xff]
  %v1156 = vld [vmem:[%s3 + $0x10] sm:$0xff]
  %v1157 = vld [vmem:[%s3 + $0x18] sm:$0xff]
  %v1158 = vld [vmem:[%s3 + $0x20] sm:$0xff]
  %v1159 = vld [vmem:[%s3 + $0x28] sm:$0xff]
  %1161 = vset.pattern.permute.xlu0 0
  %1162 = vperm.xlu0 %1161, %v1154
  %v1163 = vpop.permute.xlu0 %1162
  %1166 = vset.pattern.permute.xlu0 0
  %1167 = vperm.xlu0 %1166, %v1155
  %v1168 = vpop.permute.xlu0 %1167
  %1171 = vset.pattern.permute.xlu0 0
  %1172 = vperm.xlu0 %1171, %v1156
  %v1173 = vpop.permute.xlu0 %1172
  %1176 = vset.pattern.permute.xlu0 0
  %1177 = vperm.xlu0 %1176, %v1157
  %v1178 = vpop.permute.xlu0 %1177
  %1181 = vset.pattern.permute.xlu0 0
  %1182 = vperm.xlu0 %1181, %v1158
  %v1183 = vpop.permute.xlu0 %1182
  %1186 = vset.pattern.permute.xlu0 0
  %1187 = vperm.xlu0 %1186, %v1159
  %v1188 = vpop.permute.xlu0 %1187
  %v1190 = vadd.f32 %v1142, %v1163
  %v1191 = vadd.f32 %v1143, %v1163
  %v1192 = vadd.f32 %v1144, %v1168
  %v1193 = vadd.f32 %v1145, %v1168
  %v1194 = vadd.f32 %v1146, %v1173
  %v1195 = vadd.f32 %v1147, %v1173
  %v1196 = vadd.f32 %v1148, %v1178
  %v1197 = vadd.f32 %v1149, %v1178
  %v1198 = vadd.f32 %v1150, %v1183
  %v1199 = vadd.f32 %v1151, %v1183
  %v1200 = vadd.f32 %v1152, %v1188
  %v1201 = vadd.f32 %v1153, %v1188
  %vm1202 = vcmp.gt.f32.partialorder %v1190, 0.0
  %vm1203 = vcmp.gt.f32.partialorder %v1191, 0.0
  %vm1204 = vcmp.gt.f32.partialorder %v1192, 0.0
  %vm1205 = vcmp.gt.f32.partialorder %v1193, 0.0
  %vm1206 = vcmp.gt.f32.partialorder %v1194, 0.0
  %vm1207 = vcmp.gt.f32.partialorder %v1195, 0.0
  %vm1208 = vcmp.gt.f32.partialorder %v1196, 0.0
  %vm1209 = vcmp.gt.f32.partialorder %v1197, 0.0
  %vm1210 = vcmp.gt.f32.partialorder %v1198, 0.0
  %vm1211 = vcmp.gt.f32.partialorder %v1199, 0.0
  %vm1212 = vcmp.gt.f32.partialorder %v1200, 0.0
  %vm1213 = vcmp.gt.f32.partialorder %v1201, 0.0
  %v1214 = vmin.f32 %v1190, 0.0
  %v1215 = vmin.f32 %v1191, 0.0
  %v1216 = vmin.f32 %v1192, 0.0
  %v1217 = vmin.f32 %v1193, 0.0
  %v1218 = vmin.f32 %v1194, 0.0
  %v1219 = vmin.f32 %v1195, 0.0
  %v1220 = vmin.f32 %v1196, 0.0
  %v1221 = vmin.f32 %v1197, 0.0
  %v1222 = vmin.f32 %v1198, 0.0
  %v1223 = vmin.f32 %v1199, 0.0
  %v1224 = vmin.f32 %v1200, 0.0
  %v1225 = vmin.f32 %v1201, 0.0
  %v1226 = vmul.f32 %v1214, 1.442695
  %v1227 = vpow.pop %v1226
  %v1228 = vmul.f32 %v1215, 1.442695
  %v1229 = vpow.pop %v1228
  %v1230 = vmul.f32 %v1216, 1.442695
  %v1231 = vpow.pop %v1230
  %v1232 = vmul.f32 %v1217, 1.442695
  %v1233 = vpow.pop %v1232
  %v1234 = vmul.f32 %v1218, 1.442695
  %v1235 = vpow.pop %v1234
  %v1236 = vmul.f32 %v1219, 1.442695
  %v1237 = vpow.pop %v1236
  %v1238 = vmul.f32 %v1220, 1.442695
  %v1239 = vpow.pop %v1238
  %v1240 = vmul.f32 %v1221, 1.442695
  %v1241 = vpow.pop %v1240
  %v1242 = vmul.f32 %v1222, 1.442695
  %v1243 = vpow.pop %v1242
  %v1244 = vmul.f32 %v1223, 1.442695
  %v1245 = vpow.pop %v1244
  %v1246 = vmul.f32 %v1224, 1.442695
  %v1247 = vpow.pop %v1246
  %v1248 = vmul.f32 %v1225, 1.442695
  %v1249 = vpow.pop %v1248
  %v1250 = vsub.f32 %v1227, 1.0
  %v1251 = vsub.f32 %v1229, 1.0
  %v1252 = vsub.f32 %v1231, 1.0
  %v1253 = vsub.f32 %v1233, 1.0
  %v1254 = vsub.f32 %v1235, 1.0
  %v1255 = vsub.f32 %v1237, 1.0
  %v1256 = vsub.f32 %v1239, 1.0
  %v1257 = vsub.f32 %v1241, 1.0
  %v1258 = vsub.f32 %v1243, 1.0
  %v1259 = vsub.f32 %v1245, 1.0
  %v1260 = vsub.f32 %v1247, 1.0
  %v1261 = vsub.f32 %v1249, 1.0
  %v1262 = vsel %vm1202, %v1190, %v1250
  %v1263 = vsel %vm1203, %v1191, %v1251
  %v1264 = vsel %vm1204, %v1192, %v1252
  %v1265 = vsel %vm1205, %v1193, %v1253
  %v1266 = vsel %vm1206, %v1194, %v1254
  %v1267 = vsel %vm1207, %v1195, %v1255
  %v1268 = vsel %vm1208, %v1196, %v1256
  %v1269 = vsel %vm1209, %v1197, %v1257
  %v1270 = vsel %vm1210, %v1198, %v1258
  %v1271 = vsel %vm1211, %v1199, %v1259
  %v1272 = vsel %vm1212, %v1200, %v1260
  %v1273 = vsel %vm1213, %v1201, %v1261
  %1274 = vst [vmem:[%s4] sm:$0xff] %v1262
  %vm1275 = vcmask 752640
  %1276 = vst.msk [vmem:[%s4 + $0x8] sm:$0xff] %vm1275, %v1263
  %1277 = vst [vmem:[%s4 + $0x10] sm:$0xff] %v1264
  %1278 = vst.msk [vmem:[%s4 + $0x18] sm:$0xff] %vm1275, %v1265
  %1279 = vst [vmem:[%s4 + $0x20] sm:$0xff] %v1266
  %1280 = vst.msk [vmem:[%s4 + $0x28] sm:$0xff] %vm1275, %v1267
  %1281 = vst [vmem:[%s4 + $0x30] sm:$0xff] %v1268
  %1282 = vst.msk [vmem:[%s4 + $0x38] sm:$0xff] %vm1275, %v1269
  %1283 = vst [vmem:[%s4 + $0x40] sm:$0xff] %v1270
  %1284 = vst.msk [vmem:[%s4 + $0x48] sm:$0xff] %vm1275, %v1271
  %1285 = vst [vmem:[%s4 + $0x50] sm:$0xff] %v1272
  %1286 = vst.msk [vmem:[%s4 + $0x58] sm:$0xff] %vm1275, %v1273
  // Predicated region
  $region18: #{nvidia_forward.8} parent=0 // pred_check
    _
  $region19: #{nvidia_forward.8} parent=0 // pred_check_branch
    %1288 = sbr.rel (0) target = $region21
  $region20: #{nvidia_forward.8} parent=0 // pred_region
    _
  $region21: #{nvidia_forward.8} parent=0 // pred_fallthru
    _
  // Predicated region
  $region22: #{nvidia_forward.8} parent=0 // pred_check
    _
  $region23: #{nvidia_forward.8} parent=0 // pred_check_branch
    %1290 = sbr.rel (0) target = $region25
  $region24: #{nvidia_forward.8} parent=0 // pred_region
    _
  $region25: #{nvidia_forward.8} parent=0 // pred_fallthru
    _

// kernel: nvidia_forward.9
$region0: #{nvidia_forward.9}
  #allocation0 [shape = 'u32[]', space=smem, size = 0x4, offset = 0x4, fixed_abs, tag = 'smem constant byte address 0x4 - core index']
  #allocation1 [shape = 'u32[144,128]{1,0:T(1,128)}', space=vmem, size = 0x12000, scoped, tag = 'internal scratch']
  %s0 = inlined_call_operand.vmem [shape: bf16[64,432], index: 0, kind: input, shape index: {}]
  %s1 = inlined_call_operand.vmem [shape: bf16[432,120], index: 1, kind: input, shape index: {}]
  %s2 = inlined_call_operand.vmem [shape: f32[64,1], index: 2, kind: input, shape index: {}]
  %s3 = inlined_call_operand.vmem [shape: f32[64,1], index: 3, kind: input, shape index: {}]
  %s4 = inlined_call_operand.vmem [shape: f32[64,120], index: 4, kind: output, shape index: {}]
  %s5 = sld [smem:[#allocation0]]
  $region26: #{nvidia_forward.9} parent=0
    _
  %s7 = ssub.s32 1, %s5
  %s8 = scalar_select 0, %s7, %s5
  // Predicated region
  $region2: #{nvidia_forward.9} parent=0 // pred_check
    _
  $region3: #{nvidia_forward.9} parent=0 // pred_check_branch
    %10 = sbr.rel (0) target = $region5
  $region4: #{nvidia_forward.9} parent=0 // pred_region
    _
  $region5: #{nvidia_forward.9} parent=0 // pred_fallthru
    _
  // Predicated region
  $region6: #{nvidia_forward.9} parent=0 // pred_check
    _
  $region7: #{nvidia_forward.9} parent=0 // pred_check_branch
    %12 = sbr.rel (0) target = $region9
  $region8: #{nvidia_forward.9} parent=0 // pred_region
    _
  $region9: #{nvidia_forward.9} parent=0 // pred_fallthru
    _
  // Predicated region
  $region10: #{nvidia_forward.9} parent=0 // pred_check
    _
  $region11: #{nvidia_forward.9} parent=0 // pred_check_branch
    %14 = sbr.rel (0) target = $region13
  $region12: #{nvidia_forward.9} parent=0 // pred_region
    _
  $region13: #{nvidia_forward.9} parent=0 // pred_fallthru
    _
  // Predicated region
  $region14: #{nvidia_forward.9} parent=0 // pred_check
    _
  $region15: #{nvidia_forward.9} parent=0 // pred_check_branch
    %16 = sbr.rel (0) target = $region17
  $region16: #{nvidia_forward.9} parent=0 // pred_region
    _
  $region17: #{nvidia_forward.9} parent=0 // pred_fallthru
    _
  %v18 = vld [vmem:[%s0] sm:$0xff]
  %v19 = vld [vmem:[%s0 + $0x8] sm:$0xff]
  %v20 = vld [vmem:[%s0 + $0x10] sm:$0xff]
  %v21 = vld [vmem:[%s0 + $0x18] sm:$0xff]
  %v22 = vld [vmem:[%s0 + $0x20] sm:$0xff]
  %v23 = vld [vmem:[%s0 + $0x28] sm:$0xff]
  %v24 = vld [vmem:[%s0 + $0x30] sm:$0xff]
  %v25 = vld [vmem:[%s0 + $0x38] sm:$0xff]
  %v26 = vld [vmem:[%s0 + $0x40] sm:$0xff]
  %v27 = vld [vmem:[%s0 + $0x48] sm:$0xff]
  %v28 = vld [vmem:[%s0 + $0x50] sm:$0xff]
  %v29 = vld [vmem:[%s0 + $0x58] sm:$0xff]
  %v30 = vld [vmem:[%s0 + $0x60] sm:$0xff]
  %v31 = vld [vmem:[%s0 + $0x68] sm:$0xff]
  %v32 = vld [vmem:[%s0 + $0x70] sm:$0xff]
  %v33 = vld [vmem:[%s0 + $0x78] sm:$0xff]
  %v34 = vld [vmem:[%s1] sm:$0xf]
  %v35 = vld [vmem:[%s1 + $0x4] sm:$0xf]
  %v36 = vld [vmem:[%s1 + $0x8] sm:$0xf]
  %v37 = vld [vmem:[%s1 + $0xc] sm:$0xf]
  %v38 = vld [vmem:[%s1 + $0x10] sm:$0xf]
  %v39 = vld [vmem:[%s1 + $0x14] sm:$0xf]
  %v40 = vld [vmem:[%s1 + $0x18] sm:$0xf]
  %v41 = vld [vmem:[%s1 + $0x1c] sm:$0xf]
  %v42 = vld [vmem:[%s1 + $0x20] sm:$0xf]
  %v43 = vld [vmem:[%s1 + $0x24] sm:$0xf]
  %v44 = vld [vmem:[%s1 + $0x28] sm:$0xf]
  %v45 = vld [vmem:[%s1 + $0x2c] sm:$0xf]
  %v46 = vld [vmem:[%s1 + $0x30] sm:$0xf]
  %v47 = vld [vmem:[%s1 + $0x34] sm:$0xf]
  %v48 = vld [vmem:[%s1 + $0x38] sm:$0xf]
  %v49 = vld [vmem:[%s1 + $0x3c] sm:$0xf]
  %v50 = vld [vmem:[%s1 + $0x40] sm:$0xf]
  %v51 = vld [vmem:[%s1 + $0x44] sm:$0xf]
  %v52 = vld [vmem:[%s1 + $0x48] sm:$0xf]
  %v53 = vld [vmem:[%s1 + $0x4c] sm:$0xf]
  %v54 = vld [vmem:[%s1 + $0x50] sm:$0xf]
  %v55 = vld [vmem:[%s1 + $0x54] sm:$0xf]
  %v56 = vld [vmem:[%s1 + $0x58] sm:$0xf]
  %v57 = vld [vmem:[%s1 + $0x5c] sm:$0xf]
  %v58 = vld [vmem:[%s1 + $0x60] sm:$0xf]
  %v59 = vld [vmem:[%s1 + $0x64] sm:$0xf]
  %v60 = vld [vmem:[%s1 + $0x68] sm:$0xf]
  %v61 = vld [vmem:[%s1 + $0x6c] sm:$0xf]
  %v62 = vld [vmem:[%s1 + $0x70] sm:$0xf]
  %v63 = vld [vmem:[%s1 + $0x74] sm:$0xf]
  %v64 = vld [vmem:[%s1 + $0x78] sm:$0xf]
  %v65 = vld [vmem:[%s1 + $0x7c] sm:$0xf]
  %v66 = vld [vmem:[%s1 + $0x80] sm:$0xf]
  %v67 = vld [vmem:[%s1 + $0x84] sm:$0xf]
  %v68 = vld [vmem:[%s1 + $0x88] sm:$0xf]
  %v69 = vld [vmem:[%s1 + $0x8c] sm:$0xf]
  %v70 = vld [vmem:[%s1 + $0x90] sm:$0xf]
  %v71 = vld [vmem:[%s1 + $0x94] sm:$0xf]
  %v72 = vld [vmem:[%s1 + $0x98] sm:$0xf]
  %v73 = vld [vmem:[%s1 + $0x9c] sm:$0xf]
  %v74 = vld [vmem:[%s1 + $0xa0] sm:$0xf]
  %v75 = vld [vmem:[%s1 + $0xa4] sm:$0xf]
  %v76 = vld [vmem:[%s1 + $0xa8] sm:$0xf]
  %v77 = vld [vmem:[%s1 + $0xac] sm:$0xf]
  %v78 = vld [vmem:[%s1 + $0xb0] sm:$0xf]
  %v79 = vld [vmem:[%s1 + $0xb4] sm:$0xf]
  %v80 = vld [vmem:[%s1 + $0xb8] sm:$0xf]
  %v81 = vld [vmem:[%s1 + $0xbc] sm:$0xf]
  %v82 = vld [vmem:[%s1 + $0xc0] sm:$0xf]
  %v83 = vld [vmem:[%s1 + $0xc4] sm:$0xf]
  %v84 = vld [vmem:[%s1 + $0xc8] sm:$0xf]
  %v85 = vld [vmem:[%s1 + $0xcc] sm:$0xf]
  %v86 = vld [vmem:[%s1 + $0xd0] sm:$0xf]
  %v87 = vld [vmem:[%s1 + $0xd4] sm:$0xf]
  %v104 = vunpack.c.l.b16 %v18
  %v105 = vunpack.c.h.b16 %v18
  %v106 = vunpack.c.l.b16 %v19
  %v107 = vunpack.c.h.b16 %v19
  %v108 = vunpack.c.l.b16 %v20
  %v109 = vunpack.c.h.b16 %v20
  %v110 = vunpack.c.l.b16 %v21
  %v111 = vunpack.c.h.b16 %v21
  %v112 = vunpack.c.l.b16 %v22
  %v113 = vunpack.c.h.b16 %v22
  %v114 = vunpack.c.l.b16 %v23
  %v115 = vunpack.c.h.b16 %v23
  %v116 = vunpack.c.l.b16 %v24
  %v117 = vunpack.c.h.b16 %v24
  %v118 = vunpack.c.l.b16 %v25
  %v119 = vunpack.c.h.b16 %v25
  %v120 = vunpack.c.l.b16 %v26
  %v121 = vunpack.c.h.b16 %v26
  %v122 = vunpack.c.l.b16 %v27
  %v123 = vunpack.c.h.b16 %v27
  %v124 = vunpack.c.l.b16 %v28
  %v125 = vunpack.c.h.b16 %v28
  %v126 = vunpack.c.l.b16 %v29
  %v127 = vunpack.c.h.b16 %v29
  %v128 = vunpack.c.l.b16 %v30
  %v129 = vunpack.c.h.b16 %v30
  %v130 = vunpack.c.l.b16 %v31
  %v131 = vunpack.c.h.b16 %v31
  %v132 = vunpack.c.l.b16 %v32
  %v133 = vunpack.c.h.b16 %v32
  %v134 = vunpack.c.l.b16 %v33
  %v135 = vunpack.c.h.b16 %v33
  %v136 = vpack.c.b16 %v108, %v104
  %v137 = vpack.c.b16 %v109, %v105
  %v138 = vpack.c.b16 %v110, %v106
  %v139 = vpack.c.b16 %v111, %v107
  %v140 = vpack.c.b16 %v116, %v112
  %v141 = vpack.c.b16 %v117, %v113
  %v142 = vpack.c.b16 %v118, %v114
  %v143 = vpack.c.b16 %v119, %v115
  %v144 = vpack.c.b16 %v124, %v120
  %v145 = vpack.c.b16 %v125, %v121
  %v146 = vpack.c.b16 %v126, %v122
  %v147 = vpack.c.b16 %v127, %v123
  %v148 = vpack.c.b16 %v132, %v128
  %v149 = vpack.c.b16 %v133, %v129
  %v150 = vpack.c.b16 %v134, %v130
  %v151 = vpack.c.b16 %v135, %v131
  %v218 = vunpack.c.l.b16 %v34
  %v219 = vunpack.c.l.b16 %v35
  %v220 = vunpack.c.l.b16 %v36
  %v221 = vunpack.c.l.b16 %v37
  %v222 = vunpack.c.l.b16 %v38
  %v223 = vunpack.c.l.b16 %v39
  %v224 = vunpack.c.l.b16 %v40
  %v225 = vunpack.c.l.b16 %v41
  %v226 = vunpack.c.l.b16 %v42
  %v227 = vunpack.c.l.b16 %v43
  %v228 = vunpack.c.l.b16 %v44
  %v229 = vunpack.c.l.b16 %v45
  %v230 = vunpack.c.l.b16 %v46
  %v231 = vunpack.c.l.b16 %v47
  %v232 = vunpack.c.l.b16 %v48
  %v233 = vunpack.c.l.b16 %v49
  %v234 = vunpack.c.l.b16 %v50
  %v235 = vunpack.c.l.b16 %v51
  %v236 = vunpack.c.l.b16 %v52
  %v237 = vunpack.c.l.b16 %v53
  %v238 = vunpack.c.l.b16 %v54
  %v239 = vunpack.c.l.b16 %v55
  %v240 = vunpack.c.l.b16 %v56
  %v241 = vunpack.c.l.b16 %v57
  %v242 = vunpack.c.l.b16 %v58
  %v243 = vunpack.c.l.b16 %v59
  %v244 = vunpack.c.l.b16 %v60
  %v245 = vunpack.c.l.b16 %v61
  %v246 = vunpack.c.l.b16 %v62
  %v247 = vunpack.c.l.b16 %v63
  %v248 = vunpack.c.l.b16 %v64
  %v249 = vunpack.c.l.b16 %v65
  %v250 = vunpack.c.l.b16 %v66
  %v251 = vunpack.c.l.b16 %v67
  %v252 = vunpack.c.l.b16 %v68
  %v253 = vunpack.c.l.b16 %v69
  %v254 = vunpack.c.l.b16 %v70
  %v255 = vunpack.c.l.b16 %v71
  %v256 = vunpack.c.l.b16 %v72
  %v257 = vunpack.c.l.b16 %v73
  %v258 = vunpack.c.l.b16 %v74
  %v259 = vunpack.c.l.b16 %v75
  %v260 = vunpack.c.l.b16 %v76
  %v261 = vunpack.c.l.b16 %v77
  %v262 = vunpack.c.l.b16 %v78
  %v263 = vunpack.c.l.b16 %v79
  %v264 = vunpack.c.l.b16 %v80
  %v265 = vunpack.c.l.b16 %v81
  %v266 = vunpack.c.l.b16 %v82
  %v267 = vunpack.c.l.b16 %v83
  %v268 = vunpack.c.l.b16 %v84
  %v269 = vunpack.c.l.b16 %v85
  %v270 = vunpack.c.l.b16 %v86
  %v271 = vunpack.c.l.b16 %v87
  %v272 = vpack.c.b16 %v219, %v218
  %v273 = vpack.c.b16 %v221, %v220
  %v274 = vpack.c.b16 %v223, %v222
  %v275 = vpack.c.b16 %v225, %v224
  %v276 = vpack.c.b16 %v227, %v226
  %v277 = vpack.c.b16 %v229, %v228
  %v278 = vpack.c.b16 %v231, %v230
  %v279 = vpack.c.b16 %v233, %v232
  %v280 = vpack.c.b16 %v235, %v234
  %v281 = vpack.c.b16 %v237, %v236
  %v282 = vpack.c.b16 %v239, %v238
  %v283 = vpack.c.b16 %v241, %v240
  %v284 = vpack.c.b16 %v243, %v242
  %v285 = vpack.c.b16 %v245, %v244
  %v286 = vpack.c.b16 %v247, %v246
  %v287 = vpack.c.b16 %v249, %v248
  %v288 = vpack.c.b16 %v251, %v250
  %v289 = vpack.c.b16 %v253, %v252
  %v290 = vpack.c.b16 %v255, %v254
  %v291 = vpack.c.b16 %v257, %v256
  %v292 = vpack.c.b16 %v259, %v258
  %v293 = vpack.c.b16 %v261, %v260
  %v294 = vpack.c.b16 %v263, %v262
  %v295 = vpack.c.b16 %v265, %v264
  %v296 = vpack.c.b16 %v267, %v266
  %v297 = vpack.c.b16 %v269, %v268
  %v298 = vpack.c.b16 %v271, %v270
  %vm326 = vcmask 392192
  %v328 = vsel %vm326, %v139, 0
  %v331 = vsel %vm326, %v143, 0
  %v334 = vsel %vm326, %v147, 0
  %v337 = vsel %vm326, %v151, 0
  %339 = vmatprep.subr.bf16.mxu0 0
  %340 = vmatpush1.bf16.msra.mxu0 %v279
  %341 = vmatprep.subr.bf16.mxu0 0
  %342 = vmatpush1.bf16.msra.mxu0 %v278
  %343 = vmatprep.subr.bf16.mxu0 0
  %344 = vmatpush1.bf16.msra.mxu0 %v277
  %345 = vmatprep.subr.bf16.mxu0 0
  %346 = vmatpush1.bf16.msra.mxu0 %v276
  %347 = vmatprep.subr.bf16.mxu0 0
  %348 = vmatpush1.bf16.msra.mxu0 %v275
  %349 = vmatprep.subr.bf16.mxu0 0
  %350 = vmatpush1.bf16.msra.mxu0 %v274
  %351 = vmatprep.subr.bf16.mxu0 0
  %352 = vmatpush1.bf16.msra.mxu0 %v273
  %353 = vmatprep.subr.bf16.mxu0 0
  %354 = vmatpush1.bf16.msra.mxu0 %v272
  %355 = vmatprep.subr.bf16.mxu0 0
  %356 = vmatpush2.bf16.msra.mxu0 %v287
  %357 = vmatprep.subr.bf16.mxu0 0
  %358 = vmatpush2.bf16.msra.mxu0 %v286
  %359 = vmatprep.subr.bf16.mxu0 0
  %360 = vmatpush2.bf16.msra.mxu0 %v285
  %361 = vmatprep.subr.bf16.mxu0 0
  %362 = vmatpush2.bf16.msra.mxu0 %v284
  %363 = vmatprep.subr.bf16.mxu0 0
  %364 = vmatpush2.bf16.msra.mxu0 %v283
  %365 = vmatprep.subr.bf16.mxu0 0
  %366 = vmatpush2.bf16.msra.mxu0 %v282
  %367 = vmatprep.subr.bf16.mxu0 0
  %368 = vmatpush2.bf16.msra.mxu0 %v281
  %369 = vmatprep.subr.bf16.mxu0 0
  %370 = vmatpush2.bf16.msra.mxu0 %v280
  %371 = vmatprep.mubr.bf16.mxu0 %v137
  %372 = vmatmul.mubr.bf16.gmra.mxu0 %v136
  %v373 = vpop.f32.mrf.mxu0
  %v374 = vadd.f32 0.0, %v373
  %v375 = vpop.f32.mrf.mxu0
  %v376 = vpop.f32.mrf.mxu0
  %v377 = vadd.f32 0.0, %v376
  %v378 = vpop.f32.mrf.mxu0
  %379 = vmatprep.mubr.bf16.mxu0 %v141
  %380 = vmatmul.mubr.bf16.gmra.mxu0 %v140
  %v381 = vpop.f32.mrf.mxu0
  %v382 = vadd.f32 0.0, %v381
  %v383 = vpop.f32.mrf.mxu0
  %v384 = vpop.f32.mrf.mxu0
  %v385 = vadd.f32 0.0, %v384
  %v386 = vpop.f32.mrf.mxu0
  %387 = vmatprep.mubr.bf16.mxu0 %v145
  %388 = vmatmul.mubr.bf16.gmra.mxu0 %v144
  %v389 = vpop.f32.mrf.mxu0
  %v390 = vadd.f32 0.0, %v389
  %v391 = vpop.f32.mrf.mxu0
  %v392 = vpop.f32.mrf.mxu0
  %v393 = vadd.f32 0.0, %v392
  %v394 = vpop.f32.mrf.mxu0
  %395 = vmatprep.mubr.bf16.mxu0 %v149
  %396 = vmatmul.mubr.bf16.gmra.mxu0 %v148
  %v397 = vpop.f32.mrf.mxu0
  %v398 = vadd.f32 0.0, %v397
  %v399 = vpop.f32.mrf.mxu0
  %v400 = vpop.f32.mrf.mxu0
  %v401 = vadd.f32 0.0, %v400
  %v402 = vpop.f32.mrf.mxu0
  %403 = vdwg.mxu0
  %404 = vmatprep.subr.bf16.mxu0 0
  %405 = vmatpush1.bf16.msra.mxu0 %v295
  %406 = vmatprep.subr.bf16.mxu0 0
  %407 = vmatpush1.bf16.msra.mxu0 %v294
  %408 = vmatprep.subr.bf16.mxu0 0
  %409 = vmatpush1.bf16.msra.mxu0 %v293
  %410 = vmatprep.subr.bf16.mxu0 0
  %411 = vmatpush1.bf16.msra.mxu0 %v292
  %412 = vmatprep.subr.bf16.mxu0 0
  %413 = vmatpush1.bf16.msra.mxu0 %v291
  %414 = vmatprep.subr.bf16.mxu0 0
  %415 = vmatpush1.bf16.msra.mxu0 %v290
  %416 = vmatprep.subr.bf16.mxu0 0
  %417 = vmatpush1.bf16.msra.mxu0 %v289
  %418 = vmatprep.subr.bf16.mxu0 0
  %419 = vmatpush1.bf16.msra.mxu0 %v288
  %420 = vmatprep.subr.bf16.mxu0 0
  %421 = vmatpush2.bf16.msra.mxu0 0
  %422 = vmatprep.subr.bf16.mxu0 0
  %423 = vmatpush2.bf16.msra.mxu0 0
  %424 = vmatprep.subr.bf16.mxu0 0
  %425 = vmatpush2.bf16.msra.mxu0 0
  %426 = vmatprep.subr.bf16.mxu0 0
  %427 = vmatpush2.bf16.msra.mxu0 0
  %428 = vmatprep.subr.bf16.mxu0 0
  %429 = vmatpush2.bf16.msra.mxu0 0
  %430 = vmatprep.subr.bf16.mxu0 0
  %431 = vmatpush2.bf16.msra.mxu0 %v298
  %432 = vmatprep.subr.bf16.mxu0 0
  %433 = vmatpush2.bf16.msra.mxu0 %v297
  %434 = vmatprep.subr.bf16.mxu0 0
  %435 = vmatpush2.bf16.msra.mxu0 %v296
  %436 = vmatprep.mubr.bf16.mxu0 %v328
  %437 = vmatmul.mubr.bf16.gmra.mxu0 %v138
  %v438 = vpop.f32.mrf.mxu0
  %v439 = vadd.f32 %v374, %v438
  %v440 = vpop.f32.mrf.mxu0
  %v441 = vpop.f32.mrf.mxu0
  %v442 = vadd.f32 %v377, %v441
  %v443 = vpop.f32.mrf.mxu0
  %444 = vmatprep.mubr.bf16.mxu0 %v331
  %445 = vmatmul.mubr.bf16.gmra.mxu0 %v142
  %v446 = vpop.f32.mrf.mxu0
  %v447 = vadd.f32 %v382, %v446
  %v448 = vpop.f32.mrf.mxu0
  %v449 = vpop.f32.mrf.mxu0
  %v450 = vadd.f32 %v385, %v449
  %v451 = vpop.f32.mrf.mxu0
  %452 = vmatprep.mubr.bf16.mxu0 %v334
  %453 = vmatmul.mubr.bf16.gmra.mxu0 %v146
  %v454 = vpop.f32.mrf.mxu0
  %v455 = vadd.f32 %v390, %v454
  %v456 = vpop.f32.mrf.mxu0
  %v457 = vpop.f32.mrf.mxu0
  %v458 = vadd.f32 %v393, %v457
  %v459 = vpop.f32.mrf.mxu0
  %460 = vmatprep.mubr.bf16.mxu0 %v337
  %461 = vmatmul.mubr.bf16.gmra.mxu0 %v150
  %v462 = vpop.f32.mrf.mxu0
  %v463 = vadd.f32 %v398, %v462
  %v464 = vpop.f32.mrf.mxu0
  %v465 = vpop.f32.mrf.mxu0
  %v466 = vadd.f32 %v401, %v465
  %v467 = vpop.f32.mrf.mxu0
  %468 = vdwg.mxu0
  %v469 = vld [vmem:[%s2] sm:$0xff]
  %v470 = vld [vmem:[%s2 + $0x8] sm:$0xff]
  %v471 = vld [vmem:[%s2 + $0x10] sm:$0xff]
  %v472 = vld [vmem:[%s2 + $0x18] sm:$0xff]
  %v473 = vld [vmem:[%s2 + $0x20] sm:$0xff]
  %v474 = vld [vmem:[%s2 + $0x28] sm:$0xff]
  %v475 = vld [vmem:[%s2 + $0x30] sm:$0xff]
  %v476 = vld [vmem:[%s2 + $0x38] sm:$0xff]
  %478 = vset.pattern.permute.xlu0 0
  %479 = vperm.xlu0 %478, %v469
  %v480 = vpop.permute.xlu0 %479
  %483 = vset.pattern.permute.xlu0 0
  %484 = vperm.xlu0 %483, %v470
  %v485 = vpop.permute.xlu0 %484
  %488 = vset.pattern.permute.xlu0 0
  %489 = vperm.xlu0 %488, %v471
  %v490 = vpop.permute.xlu0 %489
  %493 = vset.pattern.permute.xlu0 0
  %494 = vperm.xlu0 %493, %v472
  %v495 = vpop.permute.xlu0 %494
  %498 = vset.pattern.permute.xlu0 0
  %499 = vperm.xlu0 %498, %v473
  %v500 = vpop.permute.xlu0 %499
  %503 = vset.pattern.permute.xlu0 0
  %504 = vperm.xlu0 %503, %v474
  %v505 = vpop.permute.xlu0 %504
  %508 = vset.pattern.permute.xlu0 0
  %509 = vperm.xlu0 %508, %v475
  %v510 = vpop.permute.xlu0 %509
  %513 = vset.pattern.permute.xlu0 0
  %514 = vperm.xlu0 %513, %v476
  %v515 = vpop.permute.xlu0 %514
  %v517 = vmul.f32 %v439, %v480
  %v518 = vmul.f32 %v442, %v485
  %v519 = vmul.f32 %v447, %v490
  %v520 = vmul.f32 %v450, %v495
  %v521 = vmul.f32 %v455, %v500
  %v522 = vmul.f32 %v458, %v505
  %v523 = vmul.f32 %v463, %v510
  %v524 = vmul.f32 %v466, %v515
  %v525 = vld [vmem:[%s3] sm:$0xff]
  %v526 = vld [vmem:[%s3 + $0x8] sm:$0xff]
  %v527 = vld [vmem:[%s3 + $0x10] sm:$0xff]
  %v528 = vld [vmem:[%s3 + $0x18] sm:$0xff]
  %v529 = vld [vmem:[%s3 + $0x20] sm:$0xff]
  %v530 = vld [vmem:[%s3 + $0x28] sm:$0xff]
  %v531 = vld [vmem:[%s3 + $0x30] sm:$0xff]
  %v532 = vld [vmem:[%s3 + $0x38] sm:$0xff]
  %534 = vset.pattern.permute.xlu0 0
  %535 = vperm.xlu0 %534, %v525
  %v536 = vpop.permute.xlu0 %535
  %539 = vset.pattern.permute.xlu0 0
  %540 = vperm.xlu0 %539, %v526
  %v541 = vpop.permute.xlu0 %540
  %544 = vset.pattern.permute.xlu0 0
  %545 = vperm.xlu0 %544, %v527
  %v546 = vpop.permute.xlu0 %545
  %549 = vset.pattern.permute.xlu0 0
  %550 = vperm.xlu0 %549, %v528
  %v551 = vpop.permute.xlu0 %550
  %554 = vset.pattern.permute.xlu0 0
  %555 = vperm.xlu0 %554, %v529
  %v556 = vpop.permute.xlu0 %555
  %559 = vset.pattern.permute.xlu0 0
  %560 = vperm.xlu0 %559, %v530
  %v561 = vpop.permute.xlu0 %560
  %564 = vset.pattern.permute.xlu0 0
  %565 = vperm.xlu0 %564, %v531
  %v566 = vpop.permute.xlu0 %565
  %569 = vset.pattern.permute.xlu0 0
  %570 = vperm.xlu0 %569, %v532
  %v571 = vpop.permute.xlu0 %570
  %v573 = vadd.f32 %v517, %v536
  %v574 = vadd.f32 %v518, %v541
  %v575 = vadd.f32 %v519, %v546
  %v576 = vadd.f32 %v520, %v551
  %v577 = vadd.f32 %v521, %v556
  %v578 = vadd.f32 %v522, %v561
  %v579 = vadd.f32 %v523, %v566
  %v580 = vadd.f32 %v524, %v571
  %vm581 = vcmp.gt.f32.partialorder %v573, 0.0
  %vm582 = vcmp.gt.f32.partialorder %v574, 0.0
  %vm583 = vcmp.gt.f32.partialorder %v575, 0.0
  %vm584 = vcmp.gt.f32.partialorder %v576, 0.0
  %vm585 = vcmp.gt.f32.partialorder %v577, 0.0
  %vm586 = vcmp.gt.f32.partialorder %v578, 0.0
  %vm587 = vcmp.gt.f32.partialorder %v579, 0.0
  %vm588 = vcmp.gt.f32.partialorder %v580, 0.0
  %v589 = vmin.f32 %v573, 0.0
  %v590 = vmin.f32 %v574, 0.0
  %v591 = vmin.f32 %v575, 0.0
  %v592 = vmin.f32 %v576, 0.0
  %v593 = vmin.f32 %v577, 0.0
  %v594 = vmin.f32 %v578, 0.0
  %v595 = vmin.f32 %v579, 0.0
  %v596 = vmin.f32 %v580, 0.0
  %v597 = vmul.f32 %v589, 1.442695
  %v598 = vpow.pop %v597
  %v599 = vmul.f32 %v590, 1.442695
  %v600 = vpow.pop %v599
  %v601 = vmul.f32 %v591, 1.442695
  %v602 = vpow.pop %v601
  %v603 = vmul.f32 %v592, 1.442695
  %v604 = vpow.pop %v603
  %v605 = vmul.f32 %v593, 1.442695
  %v606 = vpow.pop %v605
  %v607 = vmul.f32 %v594, 1.442695
  %v608 = vpow.pop %v607
  %v609 = vmul.f32 %v595, 1.442695
  %v610 = vpow.pop %v609
  %v611 = vmul.f32 %v596, 1.442695
  %v612 = vpow.pop %v611
  %v613 = vsub.f32 %v598, 1.0
  %v614 = vsub.f32 %v600, 1.0
  %v615 = vsub.f32 %v602, 1.0
  %v616 = vsub.f32 %v604, 1.0
  %v617 = vsub.f32 %v606, 1.0
  %v618 = vsub.f32 %v608, 1.0
  %v619 = vsub.f32 %v610, 1.0
  %v620 = vsub.f32 %v612, 1.0
  %v621 = vsel %vm581, %v573, %v613
  %v622 = vsel %vm582, %v574, %v614
  %v623 = vsel %vm583, %v575, %v615
  %v624 = vsel %vm584, %v576, %v616
  %v625 = vsel %vm585, %v577, %v617
  %v626 = vsel %vm586, %v578, %v618
  %v627 = vsel %vm587, %v579, %v619
  %v628 = vsel %vm588, %v580, %v620
  %vm629 = vcmask 982016
  %630 = vst.msk [vmem:[%s4] sm:$0xff] %vm629, %v621
  %631 = vst.msk [vmem:[%s4 + $0x8] sm:$0xff] %vm629, %v622
  %632 = vst.msk [vmem:[%s4 + $0x10] sm:$0xff] %vm629, %v623
  %633 = vst.msk [vmem:[%s4 + $0x18] sm:$0xff] %vm629, %v624
  %634 = vst.msk [vmem:[%s4 + $0x20] sm:$0xff] %vm629, %v625
  %635 = vst.msk [vmem:[%s4 + $0x28] sm:$0xff] %vm629, %v626
  %636 = vst.msk [vmem:[%s4 + $0x30] sm:$0xff] %vm629, %v627
  %637 = vst.msk [vmem:[%s4 + $0x38] sm:$0xff] %vm629, %v628
  // Predicated region
  $region18: #{nvidia_forward.9} parent=0 // pred_check
    _
  $region19: #{nvidia_forward.9} parent=0 // pred_check_branch
    %639 = sbr.rel (0) target = $region21
  $region20: #{nvidia_forward.9} parent=0 // pred_region
    _
  $region21: #{nvidia_forward.9} parent=0 // pred_fallthru
    _
  // Predicated region
  $region22: #{nvidia_forward.9} parent=0 // pred_check
    _
  $region23: #{nvidia_forward.9} parent=0 // pred_check_branch
    %641 = sbr.rel (0) target = $region25
  $region24: #{nvidia_forward.9} parent=0 // pred_region
    _
  $region25: #{nvidia_forward.9} parent=0 // pred_fallthru
    _

// kernel: nvidia_forward.10
$region0: #{nvidia_forward.10}
  #allocation0 [shape = 'u32[]', space=smem, size = 0x4, offset = 0x4, fixed_abs, tag = 'smem constant byte address 0x4 - core index']
  #allocation1 [shape = 'u32[144,128]{1,0:T(1,128)}', space=vmem, size = 0x12000, scoped, tag = 'internal scratch']
  %s0 = inlined_call_operand.vmem [shape: bf16[64,576], index: 0, kind: input, shape index: {}]
  %s1 = inlined_call_operand.vmem [shape: bf16[576,36], index: 1, kind: input, shape index: {}]
  %s2 = inlined_call_operand.vmem [shape: f32[64,1], index: 2, kind: input, shape index: {}]
  %s3 = inlined_call_operand.vmem [shape: f32[64,1], index: 3, kind: input, shape index: {}]
  %s4 = inlined_call_operand.vmem [shape: f32[64,36], index: 4, kind: output, shape index: {}]
  %s5 = sld [smem:[#allocation0]]
  $region26: #{nvidia_forward.10} parent=0
    _
  %s7 = ssub.s32 1, %s5
  %s8 = scalar_select 0, %s7, %s5
  // Predicated region
  $region2: #{nvidia_forward.10} parent=0 // pred_check
    _
  $region3: #{nvidia_forward.10} parent=0 // pred_check_branch
    %10 = sbr.rel (0) target = $region5
  $region4: #{nvidia_forward.10} parent=0 // pred_region
    _
  $region5: #{nvidia_forward.10} parent=0 // pred_fallthru
    _
  // Predicated region
  $region6: #{nvidia_forward.10} parent=0 // pred_check
    _
  $region7: #{nvidia_forward.10} parent=0 // pred_check_branch
    %12 = sbr.rel (0) target = $region9
  $region8: #{nvidia_forward.10} parent=0 // pred_region
    _
  $region9: #{nvidia_forward.10} parent=0 // pred_fallthru
    _
  // Predicated region
  $region10: #{nvidia_forward.10} parent=0 // pred_check
    _
  $region11: #{nvidia_forward.10} parent=0 // pred_check_branch
    %14 = sbr.rel (0) target = $region13
  $region12: #{nvidia_forward.10} parent=0 // pred_region
    _
  $region13: #{nvidia_forward.10} parent=0 // pred_fallthru
    _
  // Predicated region
  $region14: #{nvidia_forward.10} parent=0 // pred_check
    _
  $region15: #{nvidia_forward.10} parent=0 // pred_check_branch
    %16 = sbr.rel (0) target = $region17
  $region16: #{nvidia_forward.10} parent=0 // pred_region
    _
  $region17: #{nvidia_forward.10} parent=0 // pred_fallthru
    _
  %v18 = vld [vmem:[%s0] sm:$0xff]
  %v19 = vld [vmem:[%s0 + $0x8] sm:$0xff]
  %v20 = vld [vmem:[%s0 + $0x10] sm:$0xf]
  %v21 = vld [vmem:[%s0 + $0x14] sm:$0xff]
  %v22 = vld [vmem:[%s0 + $0x1c] sm:$0xff]
  %v23 = vld [vmem:[%s0 + $0x24] sm:$0xf]
  %v24 = vld [vmem:[%s0 + $0x28] sm:$0xff]
  %v25 = vld [vmem:[%s0 + $0x30] sm:$0xff]
  %v26 = vld [vmem:[%s0 + $0x38] sm:$0xf]
  %v27 = vld [vmem:[%s0 + $0x3c] sm:$0xff]
  %v28 = vld [vmem:[%s0 + $0x44] sm:$0xff]
  %v29 = vld [vmem:[%s0 + $0x4c] sm:$0xf]
  %v30 = vld [vmem:[%s0 + $0x50] sm:$0xff]
  %v31 = vld [vmem:[%s0 + $0x58] sm:$0xff]
  %v32 = vld [vmem:[%s0 + $0x60] sm:$0xf]
  %v33 = vld [vmem:[%s0 + $0x64] sm:$0xff]
  %v34 = vld [vmem:[%s0 + $0x6c] sm:$0xff]
  %v35 = vld [vmem:[%s0 + $0x74] sm:$0xf]
  %v36 = vld [vmem:[%s0 + $0x78] sm:$0xff]
  %v37 = vld [vmem:[%s0 + $0x80] sm:$0xff]
  %v38 = vld [vmem:[%s0 + $0x88] sm:$0xf]
  %v39 = vld [vmem:[%s0 + $0x8c] sm:$0xff]
  %v40 = vld [vmem:[%s0 + $0x94] sm:$0xff]
  %v41 = vld [vmem:[%s0 + $0x9c] sm:$0xf]
  %v42 = vld [vmem:[%s1] sm:$0xf]
  %v43 = vld [vmem:[%s1 + $0x4] sm:$0xf]
  %v44 = vld [vmem:[%s1 + $0x8] sm:$0xf]
  %v45 = vld [vmem:[%s1 + $0xc] sm:$0xf]
  %v46 = vld [vmem:[%s1 + $0x10] sm:$0xf]
  %v47 = vld [vmem:[%s1 + $0x14] sm:$0xf]
  %v48 = vld [vmem:[%s1 + $0x18] sm:$0xf]
  %v49 = vld [vmem:[%s1 + $0x1c] sm:$0xf]
  %v50 = vld [vmem:[%s1 + $0x20] sm:$0xf]
  %v51 = vld [vmem:[%s1 + $0x24] sm:$0xf]
  %v52 = vld [vmem:[%s1 + $0x28] sm:$0xf]
  %v53 = vld [vmem:[%s1 + $0x2c] sm:$0xf]
  %v54 = vld [vmem:[%s1 + $0x30] sm:$0xf]
  %v55 = vld [vmem:[%s1 + $0x34] sm:$0xf]
  %v56 = vld [vmem:[%s1 + $0x38] sm:$0xf]
  %v57 = vld [vmem:[%s1 + $0x3c] sm:$0xf]
  %v58 = vld [vmem:[%s1 + $0x40] sm:$0xf]
  %v59 = vld [vmem:[%s1 + $0x44] sm:$0xf]
  %v60 = vld [vmem:[%s1 + $0x48] sm:$0xf]
  %v61 = vld [vmem:[%s1 + $0x4c] sm:$0xf]
  %v62 = vld [vmem:[%s1 + $0x50] sm:$0xf]
  %v63 = vld [vmem:[%s1 + $0x54] sm:$0xf]
  %v64 = vld [vmem:[%s1 + $0x58] sm:$0xf]
  %v65 = vld [vmem:[%s1 + $0x5c] sm:$0xf]
  %v66 = vld [vmem:[%s1 + $0x60] sm:$0xf]
  %v67 = vld [vmem:[%s1 + $0x64] sm:$0xf]
  %v68 = vld [vmem:[%s1 + $0x68] sm:$0xf]
  %v69 = vld [vmem:[%s1 + $0x6c] sm:$0xf]
  %v70 = vld [vmem:[%s1 + $0x70] sm:$0xf]
  %v71 = vld [vmem:[%s1 + $0x74] sm:$0xf]
  %v72 = vld [vmem:[%s1 + $0x78] sm:$0xf]
  %v73 = vld [vmem:[%s1 + $0x7c] sm:$0xf]
  %v74 = vld [vmem:[%s1 + $0x80] sm:$0xf]
  %v75 = vld [vmem:[%s1 + $0x84] sm:$0xf]
  %v76 = vld [vmem:[%s1 + $0x88] sm:$0xf]
  %v77 = vld [vmem:[%s1 + $0x8c] sm:$0xf]
  %v78 = vld [vmem:[%s1 + $0x90] sm:$0xf]
  %v79 = vld [vmem:[%s1 + $0x94] sm:$0xf]
  %v80 = vld [vmem:[%s1 + $0x98] sm:$0xf]
  %v81 = vld [vmem:[%s1 + $0x9c] sm:$0xf]
  %v82 = vld [vmem:[%s1 + $0xa0] sm:$0xf]
  %v83 = vld [vmem:[%s1 + $0xa4] sm:$0xf]
  %v84 = vld [vmem:[%s1 + $0xa8] sm:$0xf]
  %v85 = vld [vmem:[%s1 + $0xac] sm:$0xf]
  %v86 = vld [vmem:[%s1 + $0xb0] sm:$0xf]
  %v87 = vld [vmem:[%s1 + $0xb4] sm:$0xf]
  %v88 = vld [vmem:[%s1 + $0xb8] sm:$0xf]
  %v89 = vld [vmem:[%s1 + $0xbc] sm:$0xf]
  %v90 = vld [vmem:[%s1 + $0xc0] sm:$0xf]
  %v91 = vld [vmem:[%s1 + $0xc4] sm:$0xf]
  %v92 = vld [vmem:[%s1 + $0xc8] sm:$0xf]
  %v93 = vld [vmem:[%s1 + $0xcc] sm:$0xf]
  %v94 = vld [vmem:[%s1 + $0xd0] sm:$0xf]
  %v95 = vld [vmem:[%s1 + $0xd4] sm:$0xf]
  %v96 = vld [vmem:[%s1 + $0xd8] sm:$0xf]
  %v97 = vld [vmem:[%s1 + $0xdc] sm:$0xf]
  %v98 = vld [vmem:[%s1 + $0xe0] sm:$0xf]
  %v99 = vld [vmem:[%s1 + $0xe4] sm:$0xf]
  %v100 = vld [vmem:[%s1 + $0xe8] sm:$0xf]
  %v101 = vld [vmem:[%s1 + $0xec] sm:$0xf]
  %v102 = vld [vmem:[%s1 + $0xf0] sm:$0xf]
  %v103 = vld [vmem:[%s1 + $0xf4] sm:$0xf]
  %v104 = vld [vmem:[%s1 + $0xf8] sm:$0xf]
  %v105 = vld [vmem:[%s1 + $0xfc] sm:$0xf]
  %v106 = vld [vmem:[%s1 + $0x100] sm:$0xf]
  %v107 = vld [vmem:[%s1 + $0x104] sm:$0xf]
  %v108 = vld [vmem:[%s1 + $0x108] sm:$0xf]
  %v109 = vld [vmem:[%s1 + $0x10c] sm:$0xf]
  %v110 = vld [vmem:[%s1 + $0x110] sm:$0xf]
  %v111 = vld [vmem:[%s1 + $0x114] sm:$0xf]
  %v112 = vld [vmem:[%s1 + $0x118] sm:$0xf]
  %v113 = vld [vmem:[%s1 + $0x11c] sm:$0xf]
  %v138 = vunpack.c.l.b16 %v18
  %v139 = vunpack.c.h.b16 %v18
  %v140 = vunpack.c.l.b16 %v19
  %v141 = vunpack.c.h.b16 %v19
  %v142 = vunpack.c.l.b16 %v20
  %v143 = vunpack.c.l.b16 %v21
  %v144 = vunpack.c.h.b16 %v21
  %v145 = vunpack.c.l.b16 %v22
  %v146 = vunpack.c.h.b16 %v22
  %v147 = vunpack.c.l.b16 %v23
  %v148 = vunpack.c.l.b16 %v24
  %v149 = vunpack.c.h.b16 %v24
  %v150 = vunpack.c.l.b16 %v25
  %v151 = vunpack.c.h.b16 %v25
  %v152 = vunpack.c.l.b16 %v26
  %v153 = vunpack.c.l.b16 %v27
  %v154 = vunpack.c.h.b16 %v27
  %v155 = vunpack.c.l.b16 %v28
  %v156 = vunpack.c.h.b16 %v28
  %v157 = vunpack.c.l.b16 %v29
  %v158 = vunpack.c.l.b16 %v30
  %v159 = vunpack.c.h.b16 %v30
  %v160 = vunpack.c.l.b16 %v31
  %v161 = vunpack.c.h.b16 %v31
  %v162 = vunpack.c.l.b16 %v32
  %v163 = vunpack.c.l.b16 %v33
  %v164 = vunpack.c.h.b16 %v33
  %v165 = vunpack.c.l.b16 %v34
  %v166 = vunpack.c.h.b16 %v34
  %v167 = vunpack.c.l.b16 %v35
  %v168 = vunpack.c.l.b16 %v36
  %v169 = vunpack.c.h.b16 %v36
  %v170 = vunpack.c.l.b16 %v37
  %v171 = vunpack.c.h.b16 %v37
  %v172 = vunpack.c.l.b16 %v38
  %v173 = vunpack.c.l.b16 %v39
  %v174 = vunpack.c.h.b16 %v39
  %v175 = vunpack.c.l.b16 %v40
  %v176 = vunpack.c.h.b16 %v40
  %v177 = vunpack.c.l.b16 %v41
  %v178 = vpack.c.b16 %v143, %v138
  %v179 = vpack.c.b16 %v144, %v139
  %v180 = vpack.c.b16 %v145, %v140
  %v181 = vpack.c.b16 %v146, %v141
  %v182 = vpack.c.b16 %v147, %v142
  %v183 = vpack.c.b16 %v153, %v148
  %v184 = vpack.c.b16 %v154, %v149
  %v185 = vpack.c.b16 %v155, %v150
  %v186 = vpack.c.b16 %v156, %v151
  %v187 = vpack.c.b16 %v157, %v152
  %v188 = vpack.c.b16 %v163, %v158
  %v189 = vpack.c.b16 %v164, %v159
  %v190 = vpack.c.b16 %v165, %v160
  %v191 = vpack.c.b16 %v166, %v161
  %v192 = vpack.c.b16 %v167, %v162
  %v193 = vpack.c.b16 %v173, %v168
  %v194 = vpack.c.b16 %v174, %v169
  %v195 = vpack.c.b16 %v175, %v170
  %v196 = vpack.c.b16 %v176, %v171
  %v197 = vpack.c.b16 %v177, %v172
  %v286 = vunpack.c.l.b16 %v42
  %v287 = vunpack.c.l.b16 %v43
  %v288 = vunpack.c.l.b16 %v44
  %v289 = vunpack.c.l.b16 %v45
  %v290 = vunpack.c.l.b16 %v46
  %v291 = vunpack.c.l.b16 %v47
  %v292 = vunpack.c.l.b16 %v48
  %v293 = vunpack.c.l.b16 %v49
  %v294 = vunpack.c.l.b16 %v50
  %v295 = vunpack.c.l.b16 %v51
  %v296 = vunpack.c.l.b16 %v52
  %v297 = vunpack.c.l.b16 %v53
  %v298 = vunpack.c.l.b16 %v54
  %v299 = vunpack.c.l.b16 %v55
  %v300 = vunpack.c.l.b16 %v56
  %v301 = vunpack.c.l.b16 %v57
  %v302 = vunpack.c.l.b16 %v58
  %v303 = vunpack.c.l.b16 %v59
  %v304 = vunpack.c.l.b16 %v60
  %v305 = vunpack.c.l.b16 %v61
  %v306 = vunpack.c.l.b16 %v62
  %v307 = vunpack.c.l.b16 %v63
  %v308 = vunpack.c.l.b16 %v64
  %v309 = vunpack.c.l.b16 %v65
  %v310 = vunpack.c.l.b16 %v66
  %v311 = vunpack.c.l.b16 %v67
  %v312 = vunpack.c.l.b16 %v68
  %v313 = vunpack.c.l.b16 %v69
  %v314 = vunpack.c.l.b16 %v70
  %v315 = vunpack.c.l.b16 %v71
  %v316 = vunpack.c.l.b16 %v72
  %v317 = vunpack.c.l.b16 %v73
  %v318 = vunpack.c.l.b16 %v74
  %v319 = vunpack.c.l.b16 %v75
  %v320 = vunpack.c.l.b16 %v76
  %v321 = vunpack.c.l.b16 %v77
  %v322 = vunpack.c.l.b16 %v78
  %v323 = vunpack.c.l.b16 %v79
  %v324 = vunpack.c.l.b16 %v80
  %v325 = vunpack.c.l.b16 %v81
  %v326 = vunpack.c.l.b16 %v82
  %v327 = vunpack.c.l.b16 %v83
  %v328 = vunpack.c.l.b16 %v84
  %v329 = vunpack.c.l.b16 %v85
  %v330 = vunpack.c.l.b16 %v86
  %v331 = vunpack.c.l.b16 %v87
  %v332 = vunpack.c.l.b16 %v88
  %v333 = vunpack.c.l.b16 %v89
  %v334 = vunpack.c.l.b16 %v90
  %v335 = vunpack.c.l.b16 %v91
  %v336 = vunpack.c.l.b16 %v92
  %v337 = vunpack.c.l.b16 %v93
  %v338 = vunpack.c.l.b16 %v94
  %v339 = vunpack.c.l.b16 %v95
  %v340 = vunpack.c.l.b16 %v96
  %v341 = vunpack.c.l.b16 %v97
  %v342 = vunpack.c.l.b16 %v98
  %v343 = vunpack.c.l.b16 %v99
  %v344 = vunpack.c.l.b16 %v100
  %v345 = vunpack.c.l.b16 %v101
  %v346 = vunpack.c.l.b16 %v102
  %v347 = vunpack.c.l.b16 %v103
  %v348 = vunpack.c.l.b16 %v104
  %v349 = vunpack.c.l.b16 %v105
  %v350 = vunpack.c.l.b16 %v106
  %v351 = vunpack.c.l.b16 %v107
  %v352 = vunpack.c.l.b16 %v108
  %v353 = vunpack.c.l.b16 %v109
  %v354 = vunpack.c.l.b16 %v110
  %v355 = vunpack.c.l.b16 %v111
  %v356 = vunpack.c.l.b16 %v112
  %v357 = vunpack.c.l.b16 %v113
  %v358 = vpack.c.b16 %v287, %v286
  %v359 = vpack.c.b16 %v289, %v288
  %v360 = vpack.c.b16 %v291, %v290
  %v361 = vpack.c.b16 %v293, %v292
  %v362 = vpack.c.b16 %v295, %v294
  %v363 = vpack.c.b16 %v297, %v296
  %v364 = vpack.c.b16 %v299, %v298
  %v365 = vpack.c.b16 %v301, %v300
  %v366 = vpack.c.b16 %v303, %v302
  %v367 = vpack.c.b16 %v305, %v304
  %v368 = vpack.c.b16 %v307, %v306
  %v369 = vpack.c.b16 %v309, %v308
  %v370 = vpack.c.b16 %v311, %v310
  %v371 = vpack.c.b16 %v313, %v312
  %v372 = vpack.c.b16 %v315, %v314
  %v373 = vpack.c.b16 %v317, %v316
  %v374 = vpack.c.b16 %v319, %v318
  %v375 = vpack.c.b16 %v321, %v320
  %v376 = vpack.c.b16 %v323, %v322
  %v377 = vpack.c.b16 %v325, %v324
  %v378 = vpack.c.b16 %v327, %v326
  %v379 = vpack.c.b16 %v329, %v328
  %v380 = vpack.c.b16 %v331, %v330
  %v381 = vpack.c.b16 %v333, %v332
  %v382 = vpack.c.b16 %v335, %v334
  %v383 = vpack.c.b16 %v337, %v336
  %v384 = vpack.c.b16 %v339, %v338
  %v385 = vpack.c.b16 %v341, %v340
  %v386 = vpack.c.b16 %v343, %v342
  %v387 = vpack.c.b16 %v345, %v344
  %v388 = vpack.c.b16 %v347, %v346
  %v389 = vpack.c.b16 %v349, %v348
  %v390 = vpack.c.b16 %v351, %v350
  %v391 = vpack.c.b16 %v353, %v352
  %v392 = vpack.c.b16 %v355, %v354
  %v393 = vpack.c.b16 %v357, %v356
  %vm430 = vcmask 523264
  %v432 = vsel %vm430, %v182, 0
  %v435 = vsel %vm430, %v187, 0
  %v438 = vsel %vm430, %v192, 0
  %v441 = vsel %vm430, %v197, 0
  %443 = vmatprep.subr.bf16.mxu0 0
  %444 = vmatpush1.bf16.msra.mxu0 %v365
  %445 = vmatprep.subr.bf16.mxu0 0
  %446 = vmatpush1.bf16.msra.mxu0 %v364
  %447 = vmatprep.subr.bf16.mxu0 0
  %448 = vmatpush1.bf16.msra.mxu0 %v363
  %449 = vmatprep.subr.bf16.mxu0 0
  %450 = vmatpush1.bf16.msra.mxu0 %v362
  %451 = vmatprep.subr.bf16.mxu0 0
  %452 = vmatpush1.bf16.msra.mxu0 %v361
  %453 = vmatprep.subr.bf16.mxu0 0
  %454 = vmatpush1.bf16.msra.mxu0 %v360
  %455 = vmatprep.subr.bf16.mxu0 0
  %456 = vmatpush1.bf16.msra.mxu0 %v359
  %457 = vmatprep.subr.bf16.mxu0 0
  %458 = vmatpush1.bf16.msra.mxu0 %v358
  %459 = vmatprep.subr.bf16.mxu0 0
  %460 = vmatpush2.bf16.msra.mxu0 %v373
  %461 = vmatprep.subr.bf16.mxu0 0
  %462 = vmatpush2.bf16.msra.mxu0 %v372
  %463 = vmatprep.subr.bf16.mxu0 0
  %464 = vmatpush2.bf16.msra.mxu0 %v371
  %465 = vmatprep.subr.bf16.mxu0 0
  %466 = vmatpush2.bf16.msra.mxu0 %v370
  %467 = vmatprep.subr.bf16.mxu0 0
  %468 = vmatpush2.bf16.msra.mxu0 %v369
  %469 = vmatprep.subr.bf16.mxu0 0
  %470 = vmatpush2.bf16.msra.mxu0 %v368
  %471 = vmatprep.subr.bf16.mxu0 0
  %472 = vmatpush2.bf16.msra.mxu0 %v367
  %473 = vmatprep.subr.bf16.mxu0 0
  %474 = vmatpush2.bf16.msra.mxu0 %v366
  %475 = vmatprep.mubr.bf16.mxu0 %v179
  %476 = vmatmul.mubr.bf16.gmra.mxu0 %v178
  %v477 = vpop.f32.mrf.mxu0
  %v478 = vadd.f32 0.0, %v477
  %v479 = vpop.f32.mrf.mxu0
  %v480 = vpop.f32.mrf.mxu0
  %v481 = vadd.f32 0.0, %v480
  %v482 = vpop.f32.mrf.mxu0
  %483 = vmatprep.mubr.bf16.mxu0 %v184
  %484 = vmatmul.mubr.bf16.gmra.mxu0 %v183
  %v485 = vpop.f32.mrf.mxu0
  %v486 = vadd.f32 0.0, %v485
  %v487 = vpop.f32.mrf.mxu0
  %v488 = vpop.f32.mrf.mxu0
  %v489 = vadd.f32 0.0, %v488
  %v490 = vpop.f32.mrf.mxu0
  %491 = vmatprep.mubr.bf16.mxu0 %v189
  %492 = vmatmul.mubr.bf16.gmra.mxu0 %v188
  %v493 = vpop.f32.mrf.mxu0
  %v494 = vadd.f32 0.0, %v493
  %v495 = vpop.f32.mrf.mxu0
  %v496 = vpop.f32.mrf.mxu0
  %v497 = vadd.f32 0.0, %v496
  %v498 = vpop.f32.mrf.mxu0
  %499 = vmatprep.mubr.bf16.mxu0 %v194
  %500 = vmatmul.mubr.bf16.gmra.mxu0 %v193
  %v501 = vpop.f32.mrf.mxu0
  %v502 = vadd.f32 0.0, %v501
  %v503 = vpop.f32.mrf.mxu0
  %v504 = vpop.f32.mrf.mxu0
  %v505 = vadd.f32 0.0, %v504
  %v506 = vpop.f32.mrf.mxu0
  %507 = vdwg.mxu0
  %508 = vmatprep.subr.bf16.mxu0 0
  %509 = vmatpush1.bf16.msra.mxu0 %v381
  %510 = vmatprep.subr.bf16.mxu0 0
  %511 = vmatpush1.bf16.msra.mxu0 %v380
  %512 = vmatprep.subr.bf16.mxu0 0
  %513 = vmatpush1.bf16.msra.mxu0 %v379
  %514 = vmatprep.subr.bf16.mxu0 0
  %515 = vmatpush1.bf16.msra.mxu0 %v378
  %516 = vmatprep.subr.bf16.mxu0 0
  %517 = vmatpush1.bf16.msra.mxu0 %v377
  %518 = vmatprep.subr.bf16.mxu0 0
  %519 = vmatpush1.bf16.msra.mxu0 %v376
  %520 = vmatprep.subr.bf16.mxu0 0
  %521 = vmatpush1.bf16.msra.mxu0 %v375
  %522 = vmatprep.subr.bf16.mxu0 0
  %523 = vmatpush1.bf16.msra.mxu0 %v374
  %524 = vmatprep.subr.bf16.mxu0 0
  %525 = vmatpush2.bf16.msra.mxu0 %v389
  %526 = vmatprep.subr.bf16.mxu0 0
  %527 = vmatpush2.bf16.msra.mxu0 %v388
  %528 = vmatprep.subr.bf16.mxu0 0
  %529 = vmatpush2.bf16.msra.mxu0 %v387
  %530 = vmatprep.subr.bf16.mxu0 0
  %531 = vmatpush2.bf16.msra.mxu0 %v386
  %532 = vmatprep.subr.bf16.mxu0 0
  %533 = vmatpush2.bf16.msra.mxu0 %v385
  %534 = vmatprep.subr.bf16.mxu0 0
  %535 = vmatpush2.bf16.msra.mxu0 %v384
  %536 = vmatprep.subr.bf16.mxu0 0
  %537 = vmatpush2.bf16.msra.mxu0 %v383
  %538 = vmatprep.subr.bf16.mxu0 0
  %539 = vmatpush2.bf16.msra.mxu0 %v382
  %540 = vmatprep.mubr.bf16.mxu0 %v181
  %541 = vmatmul.mubr.bf16.gmra.mxu0 %v180
  %v542 = vpop.f32.mrf.mxu0
  %v543 = vadd.f32 %v478, %v542
  %v544 = vpop.f32.mrf.mxu0
  %v545 = vpop.f32.mrf.mxu0
  %v546 = vadd.f32 %v481, %v545
  %v547 = vpop.f32.mrf.mxu0
  %548 = vmatprep.mubr.bf16.mxu0 %v186
  %549 = vmatmul.mubr.bf16.gmra.mxu0 %v185
  %v550 = vpop.f32.mrf.mxu0
  %v551 = vadd.f32 %v486, %v550
  %v552 = vpop.f32.mrf.mxu0
  %v553 = vpop.f32.mrf.mxu0
  %v554 = vadd.f32 %v489, %v553
  %v555 = vpop.f32.mrf.mxu0
  %556 = vmatprep.mubr.bf16.mxu0 %v191
  %557 = vmatmul.mubr.bf16.gmra.mxu0 %v190
  %v558 = vpop.f32.mrf.mxu0
  %v559 = vadd.f32 %v494, %v558
  %v560 = vpop.f32.mrf.mxu0
  %v561 = vpop.f32.mrf.mxu0
  %v562 = vadd.f32 %v497, %v561
  %v563 = vpop.f32.mrf.mxu0
  %564 = vmatprep.mubr.bf16.mxu0 %v196
  %565 = vmatmul.mubr.bf16.gmra.mxu0 %v195
  %v566 = vpop.f32.mrf.mxu0
  %v567 = vadd.f32 %v502, %v566
  %v568 = vpop.f32.mrf.mxu0
  %v569 = vpop.f32.mrf.mxu0
  %v570 = vadd.f32 %v505, %v569
  %v571 = vpop.f32.mrf.mxu0
  %572 = vdwg.mxu0
  %573 = vmatprep.subr.bf16.mxu0 0
  %574 = vmatpush1.bf16.msra.mxu0 0
  %575 = vmatprep.subr.bf16.mxu0 0
  %576 = vmatpush1.bf16.msra.mxu0 0
  %577 = vmatprep.subr.bf16.mxu0 0
  %578 = vmatpush1.bf16.msra.mxu0 0
  %579 = vmatprep.subr.bf16.mxu0 0
  %580 = vmatpush1.bf16.msra.mxu0 0
  %581 = vmatprep.subr.bf16.mxu0 0
  %582 = vmatpush1.bf16.msra.mxu0 %v393
  %583 = vmatprep.subr.bf16.mxu0 0
  %584 = vmatpush1.bf16.msra.mxu0 %v392
  %585 = vmatprep.subr.bf16.mxu0 0
  %586 = vmatpush1.bf16.msra.mxu0 %v391
  %587 = vmatprep.subr.bf16.mxu0 0
  %588 = vmatpush1.bf16.msra.mxu0 %v390
  %589 = vmatprep.subr.bf16.mxu0 0
  %590 = vmatpush2.bf16.msra.mxu0 0
  %591 = vmatprep.subr.bf16.mxu0 0
  %592 = vmatpush2.bf16.msra.mxu0 0
  %593 = vmatprep.subr.bf16.mxu0 0
  %594 = vmatpush2.bf16.msra.mxu0 0
  %595 = vmatprep.subr.bf16.mxu0 0
  %596 = vmatpush2.bf16.msra.mxu0 0
  %597 = vmatprep.subr.bf16.mxu0 0
  %598 = vmatpush2.bf16.msra.mxu0 0
  %599 = vmatprep.subr.bf16.mxu0 0
  %600 = vmatpush2.bf16.msra.mxu0 0
  %601 = vmatprep.subr.bf16.mxu0 0
  %602 = vmatpush2.bf16.msra.mxu0 0
  %603 = vmatprep.subr.bf16.mxu0 0
  %604 = vmatpush2.bf16.msra.mxu0 0
  %605 = vmatprep.mubr.bf16.mxu0 0
  %606 = vmatmul.mubr.bf16.gmra.mxu0 %v432
  %v607 = vpop.f32.mrf.mxu0
  %v608 = vadd.f32 %v543, %v607
  %v609 = vpop.f32.mrf.mxu0
  %v610 = vpop.f32.mrf.mxu0
  %v611 = vadd.f32 %v546, %v610
  %v612 = vpop.f32.mrf.mxu0
  %613 = vmatprep.mubr.bf16.mxu0 0
  %614 = vmatmul.mubr.bf16.gmra.mxu0 %v435
  %v615 = vpop.f32.mrf.mxu0
  %v616 = vadd.f32 %v551, %v615
  %v617 = vpop.f32.mrf.mxu0
  %v618 = vpop.f32.mrf.mxu0
  %v619 = vadd.f32 %v554, %v618
  %v620 = vpop.f32.mrf.mxu0
  %621 = vmatprep.mubr.bf16.mxu0 0
  %622 = vmatmul.mubr.bf16.gmra.mxu0 %v438
  %v623 = vpop.f32.mrf.mxu0
  %v624 = vadd.f32 %v559, %v623
  %v625 = vpop.f32.mrf.mxu0
  %v626 = vpop.f32.mrf.mxu0
  %v627 = vadd.f32 %v562, %v626
  %v628 = vpop.f32.mrf.mxu0
  %629 = vmatprep.mubr.bf16.mxu0 0
  %630 = vmatmul.mubr.bf16.gmra.mxu0 %v441
  %v631 = vpop.f32.mrf.mxu0
  %v632 = vadd.f32 %v567, %v631
  %v633 = vpop.f32.mrf.mxu0
  %v634 = vpop.f32.mrf.mxu0
  %v635 = vadd.f32 %v570, %v634
  %v636 = vpop.f32.mrf.mxu0
  %637 = vdwg.mxu0
  %v638 = vld [vmem:[%s2] sm:$0xff]
  %v639 = vld [vmem:[%s2 + $0x8] sm:$0xff]
  %v640 = vld [vmem:[%s2 + $0x10] sm:$0xff]
  %v641 = vld [vmem:[%s2 + $0x18] sm:$0xff]
  %v642 = vld [vmem:[%s2 + $0x20] sm:$0xff]
  %v643 = vld [vmem:[%s2 + $0x28] sm:$0xff]
  %v644 = vld [vmem:[%s2 + $0x30] sm:$0xff]
  %v645 = vld [vmem:[%s2 + $0x38] sm:$0xff]
  %647 = vset.pattern.permute.xlu0 0
  %648 = vperm.xlu0 %647, %v638
  %v649 = vpop.permute.xlu0 %648
  %652 = vset.pattern.permute.xlu0 0
  %653 = vperm.xlu0 %652, %v639
  %v654 = vpop.permute.xlu0 %653
  %657 = vset.pattern.permute.xlu0 0
  %658 = vperm.xlu0 %657, %v640
  %v659 = vpop.permute.xlu0 %658
  %662 = vset.pattern.permute.xlu0 0
  %663 = vperm.xlu0 %662, %v641
  %v664 = vpop.permute.xlu0 %663
  %667 = vset.pattern.permute.xlu0 0
  %668 = vperm.xlu0 %667, %v642
  %v669 = vpop.permute.xlu0 %668
  %672 = vset.pattern.permute.xlu0 0
  %673 = vperm.xlu0 %672, %v643
  %v674 = vpop.permute.xlu0 %673
  %677 = vset.pattern.permute.xlu0 0
  %678 = vperm.xlu0 %677, %v644
  %v679 = vpop.permute.xlu0 %678
  %682 = vset.pattern.permute.xlu0 0
  %683 = vperm.xlu0 %682, %v645
  %v684 = vpop.permute.xlu0 %683
  %v686 = vmul.f32 %v608, %v649
  %v687 = vmul.f32 %v611, %v654
  %v688 = vmul.f32 %v616, %v659
  %v689 = vmul.f32 %v619, %v664
  %v690 = vmul.f32 %v624, %v669
  %v691 = vmul.f32 %v627, %v674
  %v692 = vmul.f32 %v632, %v679
  %v693 = vmul.f32 %v635, %v684
  %v694 = vld [vmem:[%s3] sm:$0xff]
  %v695 = vld [vmem:[%s3 + $0x8] sm:$0xff]
  %v696 = vld [vmem:[%s3 + $0x10] sm:$0xff]
  %v697 = vld [vmem:[%s3 + $0x18] sm:$0xff]
  %v698 = vld [vmem:[%s3 + $0x20] sm:$0xff]
  %v699 = vld [vmem:[%s3 + $0x28] sm:$0xff]
  %v700 = vld [vmem:[%s3 + $0x30] sm:$0xff]
  %v701 = vld [vmem:[%s3 + $0x38] sm:$0xff]
  %703 = vset.pattern.permute.xlu0 0
  %704 = vperm.xlu0 %703, %v694
  %v705 = vpop.permute.xlu0 %704
  %708 = vset.pattern.permute.xlu0 0
  %709 = vperm.xlu0 %708, %v695
  %v710 = vpop.permute.xlu0 %709
  %713 = vset.pattern.permute.xlu0 0
  %714 = vperm.xlu0 %713, %v696
  %v715 = vpop.permute.xlu0 %714
  %718 = vset.pattern.permute.xlu0 0
  %719 = vperm.xlu0 %718, %v697
  %v720 = vpop.permute.xlu0 %719
  %723 = vset.pattern.permute.xlu0 0
  %724 = vperm.xlu0 %723, %v698
  %v725 = vpop.permute.xlu0 %724
  %728 = vset.pattern.permute.xlu0 0
  %729 = vperm.xlu0 %728, %v699
  %v730 = vpop.permute.xlu0 %729
  %733 = vset.pattern.permute.xlu0 0
  %734 = vperm.xlu0 %733, %v700
  %v735 = vpop.permute.xlu0 %734
  %738 = vset.pattern.permute.xlu0 0
  %739 = vperm.xlu0 %738, %v701
  %v740 = vpop.permute.xlu0 %739
  %v742 = vadd.f32 %v686, %v705
  %v743 = vadd.f32 %v687, %v710
  %v744 = vadd.f32 %v688, %v715
  %v745 = vadd.f32 %v689, %v720
  %v746 = vadd.f32 %v690, %v725
  %v747 = vadd.f32 %v691, %v730
  %v748 = vadd.f32 %v692, %v735
  %v749 = vadd.f32 %v693, %v740
  %vm750 = vcmp.gt.f32.partialorder %v742, 0.0
  %vm751 = vcmp.gt.f32.partialorder %v743, 0.0
  %vm752 = vcmp.gt.f32.partialorder %v744, 0.0
  %vm753 = vcmp.gt.f32.partialorder %v745, 0.0
  %vm754 = vcmp.gt.f32.partialorder %v746, 0.0
  %vm755 = vcmp.gt.f32.partialorder %v747, 0.0
  %vm756 = vcmp.gt.f32.partialorder %v748, 0.0
  %vm757 = vcmp.gt.f32.partialorder %v749, 0.0
  %v758 = vmin.f32 %v742, 0.0
  %v759 = vmin.f32 %v743, 0.0
  %v760 = vmin.f32 %v744, 0.0
  %v761 = vmin.f32 %v745, 0.0
  %v762 = vmin.f32 %v746, 0.0
  %v763 = vmin.f32 %v747, 0.0
  %v764 = vmin.f32 %v748, 0.0
  %v765 = vmin.f32 %v749, 0.0
  %v766 = vmul.f32 %v758, 1.442695
  %v767 = vpow.pop %v766
  %v768 = vmul.f32 %v759, 1.442695
  %v769 = vpow.pop %v768
  %v770 = vmul.f32 %v760, 1.442695
  %v771 = vpow.pop %v770
  %v772 = vmul.f32 %v761, 1.442695
  %v773 = vpow.pop %v772
  %v774 = vmul.f32 %v762, 1.442695
  %v775 = vpow.pop %v774
  %v776 = vmul.f32 %v763, 1.442695
  %v777 = vpow.pop %v776
  %v778 = vmul.f32 %v764, 1.442695
  %v779 = vpow.pop %v778
  %v780 = vmul.f32 %v765, 1.442695
  %v781 = vpow.pop %v780
  %v782 = vsub.f32 %v767, 1.0
  %v783 = vsub.f32 %v769, 1.0
  %v784 = vsub.f32 %v771, 1.0
  %v785 = vsub.f32 %v773, 1.0
  %v786 = vsub.f32 %v775, 1.0
  %v787 = vsub.f32 %v777, 1.0
  %v788 = vsub.f32 %v779, 1.0
  %v789 = vsub.f32 %v781, 1.0
  %v790 = vsel %vm750, %v742, %v782
  %v791 = vsel %vm751, %v743, %v783
  %v792 = vsel %vm752, %v744, %v784
  %v793 = vsel %vm753, %v745, %v785
  %v794 = vsel %vm754, %v746, %v786
  %v795 = vsel %vm755, %v747, %v787
  %v796 = vsel %vm756, %v748, %v788
  %v797 = vsel %vm757, %v749, %v789
  %vm798 = vcmask 293888
  %799 = vst.msk [vmem:[%s4] sm:$0xff] %vm798, %v790
  %800 = vst.msk [vmem:[%s4 + $0x8] sm:$0xff] %vm798, %v791
  %801 = vst.msk [vmem:[%s4 + $0x10] sm:$0xff] %vm798, %v792
  %802 = vst.msk [vmem:[%s4 + $0x18] sm:$0xff] %vm798, %v793
  %803 = vst.msk [vmem:[%s4 + $0x20] sm:$0xff] %vm798, %v794
  %804 = vst.msk [vmem:[%s4 + $0x28] sm:$0xff] %vm798, %v795
  %805 = vst.msk [vmem:[%s4 + $0x30] sm:$0xff] %vm798, %v796
  %806 = vst.msk [vmem:[%s4 + $0x38] sm:$0xff] %vm798, %v797
  // Predicated region
  $region18: #{nvidia_forward.10} parent=0 // pred_check
    _
  $region19: #{nvidia_forward.10} parent=0 // pred_check_branch
    %808 = sbr.rel (0) target = $region21
  $region20: #{nvidia_forward.10} parent=0 // pred_region
    _
  $region21: #{nvidia_forward.10} parent=0 // pred_fallthru
    _
  // Predicated region
  $region22: #{nvidia_forward.10} parent=0 // pred_check
    _
  $region23: #{nvidia_forward.10} parent=0 // pred_check_branch
    %810 = sbr.rel (0) target = $region25
  $region24: #{nvidia_forward.10} parent=0 // pred_region
    _
  $region25: #{nvidia_forward.10} parent=0 // pred_fallthru
    _

// kernel: nvidia_forward.11
$region0: #{nvidia_forward.11}
  #allocation0 [shape = 'u32[]', space=smem, size = 0x4, offset = 0x4, fixed_abs, tag = 'smem constant byte address 0x4 - core index']
  #allocation1 [shape = 'u32[144,128]{1,0:T(1,128)}', space=vmem, size = 0x12000, scoped, tag = 'internal scratch']
  #allocation2 [shape = 'f32[1,1]{1,0:T(1,128)S(1)}', space=vmem, size = 0x200, scoped, tag = 'scoped memory for nvidia_forward.11']
  %s0 = inlined_call_operand.vmem [shape: f32[8,1152], index: 0, kind: input, shape index: {}]
  %s1 = inlined_call_operand.vmem [shape: bf16[1152,100], index: 1, kind: input, shape index: {}]
  %s2 = inlined_call_operand.vmem [shape: f32[1,100], index: 2, kind: input, shape index: {}]
  %s3 = inlined_call_operand.vmem [shape: bf16[100,50], index: 3, kind: input, shape index: {}]
  %s4 = inlined_call_operand.vmem [shape: f32[1,50], index: 4, kind: input, shape index: {}]
  %s5 = inlined_call_operand.vmem [shape: bf16[50,10], index: 5, kind: input, shape index: {}]
  %s6 = inlined_call_operand.vmem [shape: f32[1,10], index: 6, kind: input, shape index: {}]
  %s7 = inlined_call_operand.vmem [shape: bf16[10,1], index: 7, kind: input, shape index: {}]
  %s8 = inlined_call_operand.<no memory space> [shape: f32[1,1], index: 8, kind: input, shape index: {}]
  %s9 = inlined_call_operand.vmem [shape: f32[8,1], index: 9, kind: output, shape index: {}]
  %s10 = sld [smem:[#allocation0]]
  $region46: #{nvidia_forward.11} parent=0
    _
  %s12 = ssub.s32 1, %s10
  %s13 = scalar_select 0, %s12, %s10
  %v14 = vstv %s8
  %15 = vst [vmem:[#allocation2] sm:$0x1] %v14
  // Predicated region
  $region2: #{nvidia_forward.11} parent=0 // pred_check
    _
  $region3: #{nvidia_forward.11} parent=0 // pred_check_branch
    %17 = sbr.rel (0) target = $region5
  $region4: #{nvidia_forward.11} parent=0 // pred_region
    _
  $region5: #{nvidia_forward.11} parent=0 // pred_fallthru
    _
  // Predicated region
  $region6: #{nvidia_forward.11} parent=0 // pred_check
    _
  $region7: #{nvidia_forward.11} parent=0 // pred_check_branch
    %19 = sbr.rel (0) target = $region9
  $region8: #{nvidia_forward.11} parent=0 // pred_region
    _
  $region9: #{nvidia_forward.11} parent=0 // pred_fallthru
    _
  // Predicated region
  $region10: #{nvidia_forward.11} parent=0 // pred_check
    _
  $region11: #{nvidia_forward.11} parent=0 // pred_check_branch
    %21 = sbr.rel (0) target = $region13
  $region12: #{nvidia_forward.11} parent=0 // pred_region
    _
  $region13: #{nvidia_forward.11} parent=0 // pred_fallthru
    _
  // Predicated region
  $region14: #{nvidia_forward.11} parent=0 // pred_check
    _
  $region15: #{nvidia_forward.11} parent=0 // pred_check_branch
    %23 = sbr.rel (0) target = $region17
  $region16: #{nvidia_forward.11} parent=0 // pred_region
    _
  $region17: #{nvidia_forward.11} parent=0 // pred_fallthru
    _
  // Predicated region
  $region18: #{nvidia_forward.11} parent=0 // pred_check
    _
  $region19: #{nvidia_forward.11} parent=0 // pred_check_branch
    %25 = sbr.rel (0) target = $region21
  $region20: #{nvidia_forward.11} parent=0 // pred_region
    _
  $region21: #{nvidia_forward.11} parent=0 // pred_fallthru
    _
  // Predicated region
  $region22: #{nvidia_forward.11} parent=0 // pred_check
    _
  $region23: #{nvidia_forward.11} parent=0 // pred_check_branch
    %27 = sbr.rel (0) target = $region25
  $region24: #{nvidia_forward.11} parent=0 // pred_region
    _
  $region25: #{nvidia_forward.11} parent=0 // pred_fallthru
    _
  // Predicated region
  $region26: #{nvidia_forward.11} parent=0 // pred_check
    _
  $region27: #{nvidia_forward.11} parent=0 // pred_check_branch
    %29 = sbr.rel (0) target = $region29
  $region28: #{nvidia_forward.11} parent=0 // pred_region
    _
  $region29: #{nvidia_forward.11} parent=0 // pred_fallthru
    _
  // Predicated region
  $region30: #{nvidia_forward.11} parent=0 // pred_check
    _
  $region31: #{nvidia_forward.11} parent=0 // pred_check_branch
    %31 = sbr.rel (0) target = $region33
  $region32: #{nvidia_forward.11} parent=0 // pred_region
    _
  $region33: #{nvidia_forward.11} parent=0 // pred_fallthru
    _
  // Predicated region
  $region34: #{nvidia_forward.11} parent=0 // pred_check
    _
  $region35: #{nvidia_forward.11} parent=0 // pred_check_branch
    %33 = sbr.rel (0) target = $region37
  $region36: #{nvidia_forward.11} parent=0 // pred_region
    _
  $region37: #{nvidia_forward.11} parent=0 // pred_fallthru
    _
  %v35 = vld [vmem:[%s0] sm:$0xff]
  %v36 = vld [vmem:[%s0 + $0x8] sm:$0xff]
  %v37 = vld [vmem:[%s0 + $0x10] sm:$0xff]
  %v38 = vld [vmem:[%s0 + $0x18] sm:$0xff]
  %v39 = vld [vmem:[%s0 + $0x20] sm:$0xff]
  %v40 = vld [vmem:[%s0 + $0x28] sm:$0xff]
  %v41 = vld [vmem:[%s0 + $0x30] sm:$0xff]
  %v42 = vld [vmem:[%s0 + $0x38] sm:$0xff]
  %v43 = vld [vmem:[%s0 + $0x40] sm:$0xff]
  %v44 = vpack.c.bf16 %v35, %v35
  %v45 = vpack.c.bf16 %v36, %v36
  %v46 = vpack.c.bf16 %v37, %v37
  %v47 = vpack.c.bf16 %v38, %v38
  %v48 = vpack.c.bf16 %v39, %v39
  %v49 = vpack.c.bf16 %v40, %v40
  %v50 = vpack.c.bf16 %v41, %v41
  %v51 = vpack.c.bf16 %v42, %v42
  %v52 = vpack.c.bf16 %v43, %v43
  %v53 = vld [vmem:[%s1] sm:$0xf]
  %v54 = vld [vmem:[%s1 + $0x4] sm:$0xf]
  %v55 = vld [vmem:[%s1 + $0x8] sm:$0xf]
  %v56 = vld [vmem:[%s1 + $0xc] sm:$0xf]
  %v57 = vld [vmem:[%s1 + $0x10] sm:$0xf]
  %v58 = vld [vmem:[%s1 + $0x14] sm:$0xf]
  %v59 = vld [vmem:[%s1 + $0x18] sm:$0xf]
  %v60 = vld [vmem:[%s1 + $0x1c] sm:$0xf]
  %v61 = vld [vmem:[%s1 + $0x20] sm:$0xf]
  %v62 = vld [vmem:[%s1 + $0x24] sm:$0xf]
  %v63 = vld [vmem:[%s1 + $0x28] sm:$0xf]
  %v64 = vld [vmem:[%s1 + $0x2c] sm:$0xf]
  %v65 = vld [vmem:[%s1 + $0x30] sm:$0xf]
  %v66 = vld [vmem:[%s1 + $0x34] sm:$0xf]
  %v67 = vld [vmem:[%s1 + $0x38] sm:$0xf]
  %v68 = vld [vmem:[%s1 + $0x3c] sm:$0xf]
  %v69 = vld [vmem:[%s1 + $0x40] sm:$0xf]
  %v70 = vld [vmem:[%s1 + $0x44] sm:$0xf]
  %v71 = vld [vmem:[%s1 + $0x48] sm:$0xf]
  %v72 = vld [vmem:[%s1 + $0x4c] sm:$0xf]
  %v73 = vld [vmem:[%s1 + $0x50] sm:$0xf]
  %v74 = vld [vmem:[%s1 + $0x54] sm:$0xf]
  %v75 = vld [vmem:[%s1 + $0x58] sm:$0xf]
  %v76 = vld [vmem:[%s1 + $0x5c] sm:$0xf]
  %v77 = vld [vmem:[%s1 + $0x60] sm:$0xf]
  %v78 = vld [vmem:[%s1 + $0x64] sm:$0xf]
  %v79 = vld [vmem:[%s1 + $0x68] sm:$0xf]
  %v80 = vld [vmem:[%s1 + $0x6c] sm:$0xf]
  %v81 = vld [vmem:[%s1 + $0x70] sm:$0xf]
  %v82 = vld [vmem:[%s1 + $0x74] sm:$0xf]
  %v83 = vld [vmem:[%s1 + $0x78] sm:$0xf]
  %v84 = vld [vmem:[%s1 + $0x7c] sm:$0xf]
  %v85 = vld [vmem:[%s1 + $0x80] sm:$0xf]
  %v86 = vld [vmem:[%s1 + $0x84] sm:$0xf]
  %v87 = vld [vmem:[%s1 + $0x88] sm:$0xf]
  %v88 = vld [vmem:[%s1 + $0x8c] sm:$0xf]
  %v89 = vld [vmem:[%s1 + $0x90] sm:$0xf]
  %v90 = vld [vmem:[%s1 + $0x94] sm:$0xf]
  %v91 = vld [vmem:[%s1 + $0x98] sm:$0xf]
  %v92 = vld [vmem:[%s1 + $0x9c] sm:$0xf]
  %v93 = vld [vmem:[%s1 + $0xa0] sm:$0xf]
  %v94 = vld [vmem:[%s1 + $0xa4] sm:$0xf]
  %v95 = vld [vmem:[%s1 + $0xa8] sm:$0xf]
  %v96 = vld [vmem:[%s1 + $0xac] sm:$0xf]
  %v97 = vld [vmem:[%s1 + $0xb0] sm:$0xf]
  %v98 = vld [vmem:[%s1 + $0xb4] sm:$0xf]
  %v99 = vld [vmem:[%s1 + $0xb8] sm:$0xf]
  %v100 = vld [vmem:[%s1 + $0xbc] sm:$0xf]
  %v101 = vld [vmem:[%s1 + $0xc0] sm:$0xf]
  %v102 = vld [vmem:[%s1 + $0xc4] sm:$0xf]
  %v103 = vld [vmem:[%s1 + $0xc8] sm:$0xf]
  %v104 = vld [vmem:[%s1 + $0xcc] sm:$0xf]
  %v105 = vld [vmem:[%s1 + $0xd0] sm:$0xf]
  %v106 = vld [vmem:[%s1 + $0xd4] sm:$0xf]
  %v107 = vld [vmem:[%s1 + $0xd8] sm:$0xf]
  %v108 = vld [vmem:[%s1 + $0xdc] sm:$0xf]
  %v109 = vld [vmem:[%s1 + $0xe0] sm:$0xf]
  %v110 = vld [vmem:[%s1 + $0xe4] sm:$0xf]
  %v111 = vld [vmem:[%s1 + $0xe8] sm:$0xf]
  %v112 = vld [vmem:[%s1 + $0xec] sm:$0xf]
  %v113 = vld [vmem:[%s1 + $0xf0] sm:$0xf]
  %v114 = vld [vmem:[%s1 + $0xf4] sm:$0xf]
  %v115 = vld [vmem:[%s1 + $0xf8] sm:$0xf]
  %v116 = vld [vmem:[%s1 + $0xfc] sm:$0xf]
  %v117 = vld [vmem:[%s1 + $0x100] sm:$0xf]
  %v118 = vld [vmem:[%s1 + $0x104] sm:$0xf]
  %v119 = vld [vmem:[%s1 + $0x108] sm:$0xf]
  %v120 = vld [vmem:[%s1 + $0x10c] sm:$0xf]
  %v121 = vld [vmem:[%s1 + $0x110] sm:$0xf]
  %v122 = vld [vmem:[%s1 + $0x114] sm:$0xf]
  %v123 = vld [vmem:[%s1 + $0x118] sm:$0xf]
  %v124 = vld [vmem:[%s1 + $0x11c] sm:$0xf]
  %v125 = vld [vmem:[%s1 + $0x120] sm:$0xf]
  %v126 = vld [vmem:[%s1 + $0x124] sm:$0xf]
  %v127 = vld [vmem:[%s1 + $0x128] sm:$0xf]
  %v128 = vld [vmem:[%s1 + $0x12c] sm:$0xf]
  %v129 = vld [vmem:[%s1 + $0x130] sm:$0xf]
  %v130 = vld [vmem:[%s1 + $0x134] sm:$0xf]
  %v131 = vld [vmem:[%s1 + $0x138] sm:$0xf]
  %v132 = vld [vmem:[%s1 + $0x13c] sm:$0xf]
  %v133 = vld [vmem:[%s1 + $0x140] sm:$0xf]
  %v134 = vld [vmem:[%s1 + $0x144] sm:$0xf]
  %v135 = vld [vmem:[%s1 + $0x148] sm:$0xf]
  %v136 = vld [vmem:[%s1 + $0x14c] sm:$0xf]
  %v137 = vld [vmem:[%s1 + $0x150] sm:$0xf]
  %v138 = vld [vmem:[%s1 + $0x154] sm:$0xf]
  %v139 = vld [vmem:[%s1 + $0x158] sm:$0xf]
  %v140 = vld [vmem:[%s1 + $0x15c] sm:$0xf]
  %v141 = vld [vmem:[%s1 + $0x160] sm:$0xf]
  %v142 = vld [vmem:[%s1 + $0x164] sm:$0xf]
  %v143 = vld [vmem:[%s1 + $0x168] sm:$0xf]
  %v144 = vld [vmem:[%s1 + $0x16c] sm:$0xf]
  %v145 = vld [vmem:[%s1 + $0x170] sm:$0xf]
  %v146 = vld [vmem:[%s1 + $0x174] sm:$0xf]
  %v147 = vld [vmem:[%s1 + $0x178] sm:$0xf]
  %v148 = vld [vmem:[%s1 + $0x17c] sm:$0xf]
  %v149 = vld [vmem:[%s1 + $0x180] sm:$0xf]
  %v150 = vld [vmem:[%s1 + $0x184] sm:$0xf]
  %v151 = vld [vmem:[%s1 + $0x188] sm:$0xf]
  %v152 = vld [vmem:[%s1 + $0x18c] sm:$0xf]
  %v153 = vld [vmem:[%s1 + $0x190] sm:$0xf]
  %v154 = vld [vmem:[%s1 + $0x194] sm:$0xf]
  %v155 = vld [vmem:[%s1 + $0x198] sm:$0xf]
  %v156 = vld [vmem:[%s1 + $0x19c] sm:$0xf]
  %v157 = vld [vmem:[%s1 + $0x1a0] sm:$0xf]
  %v158 = vld [vmem:[%s1 + $0x1a4] sm:$0xf]
  %v159 = vld [vmem:[%s1 + $0x1a8] sm:$0xf]
  %v160 = vld [vmem:[%s1 + $0x1ac] sm:$0xf]
  %v161 = vld [vmem:[%s1 + $0x1b0] sm:$0xf]
  %v162 = vld [vmem:[%s1 + $0x1b4] sm:$0xf]
  %v163 = vld [vmem:[%s1 + $0x1b8] sm:$0xf]
  %v164 = vld [vmem:[%s1 + $0x1bc] sm:$0xf]
  %v165 = vld [vmem:[%s1 + $0x1c0] sm:$0xf]
  %v166 = vld [vmem:[%s1 + $0x1c4] sm:$0xf]
  %v167 = vld [vmem:[%s1 + $0x1c8] sm:$0xf]
  %v168 = vld [vmem:[%s1 + $0x1cc] sm:$0xf]
  %v169 = vld [vmem:[%s1 + $0x1d0] sm:$0xf]
  %v170 = vld [vmem:[%s1 + $0x1d4] sm:$0xf]
  %v171 = vld [vmem:[%s1 + $0x1d8] sm:$0xf]
  %v172 = vld [vmem:[%s1 + $0x1dc] sm:$0xf]
  %v173 = vld [vmem:[%s1 + $0x1e0] sm:$0xf]
  %v174 = vld [vmem:[%s1 + $0x1e4] sm:$0xf]
  %v175 = vld [vmem:[%s1 + $0x1e8] sm:$0xf]
  %v176 = vld [vmem:[%s1 + $0x1ec] sm:$0xf]
  %v177 = vld [vmem:[%s1 + $0x1f0] sm:$0xf]
  %v178 = vld [vmem:[%s1 + $0x1f4] sm:$0xf]
  %v179 = vld [vmem:[%s1 + $0x1f8] sm:$0xf]
  %v180 = vld [vmem:[%s1 + $0x1fc] sm:$0xf]
  %v181 = vld [vmem:[%s1 + $0x200] sm:$0xf]
  %v182 = vld [vmem:[%s1 + $0x204] sm:$0xf]
  %v183 = vld [vmem:[%s1 + $0x208] sm:$0xf]
  %v184 = vld [vmem:[%s1 + $0x20c] sm:$0xf]
  %v185 = vld [vmem:[%s1 + $0x210] sm:$0xf]
  %v186 = vld [vmem:[%s1 + $0x214] sm:$0xf]
  %v187 = vld [vmem:[%s1 + $0x218] sm:$0xf]
  %v188 = vld [vmem:[%s1 + $0x21c] sm:$0xf]
  %v189 = vld [vmem:[%s1 + $0x220] sm:$0xf]
  %v190 = vld [vmem:[%s1 + $0x224] sm:$0xf]
  %v191 = vld [vmem:[%s1 + $0x228] sm:$0xf]
  %v192 = vld [vmem:[%s1 + $0x22c] sm:$0xf]
  %v193 = vld [vmem:[%s1 + $0x230] sm:$0xf]
  %v194 = vld [vmem:[%s1 + $0x234] sm:$0xf]
  %v195 = vld [vmem:[%s1 + $0x238] sm:$0xf]
  %v196 = vld [vmem:[%s1 + $0x23c] sm:$0xf]
  %v197 = vld [vmem:[%s2] sm:$0x1]
  %v199 = vlaneseq
  %v200 = vshrl.u32 %v199, 7
  %v201 = vsub.s32 0, %v200
  %v202 = vrot.slane %v197, %v201
  %v348 = vunpack.c.l.b16 %v53
  %v349 = vunpack.c.l.b16 %v54
  %v350 = vunpack.c.l.b16 %v55
  %v351 = vunpack.c.l.b16 %v56
  %v352 = vunpack.c.l.b16 %v57
  %v353 = vunpack.c.l.b16 %v58
  %v354 = vunpack.c.l.b16 %v59
  %v355 = vunpack.c.l.b16 %v60
  %v356 = vunpack.c.l.b16 %v61
  %v357 = vunpack.c.l.b16 %v62
  %v358 = vunpack.c.l.b16 %v63
  %v359 = vunpack.c.l.b16 %v64
  %v360 = vunpack.c.l.b16 %v65
  %v361 = vunpack.c.l.b16 %v66
  %v362 = vunpack.c.l.b16 %v67
  %v363 = vunpack.c.l.b16 %v68
  %v364 = vunpack.c.l.b16 %v69
  %v365 = vunpack.c.l.b16 %v70
  %v366 = vunpack.c.l.b16 %v71
  %v367 = vunpack.c.l.b16 %v72
  %v368 = vunpack.c.l.b16 %v73
  %v369 = vunpack.c.l.b16 %v74
  %v370 = vunpack.c.l.b16 %v75
  %v371 = vunpack.c.l.b16 %v76
  %v372 = vunpack.c.l.b16 %v77
  %v373 = vunpack.c.l.b16 %v78
  %v374 = vunpack.c.l.b16 %v79
  %v375 = vunpack.c.l.b16 %v80
  %v376 = vunpack.c.l.b16 %v81
  %v377 = vunpack.c.l.b16 %v82
  %v378 = vunpack.c.l.b16 %v83
  %v379 = vunpack.c.l.b16 %v84
  %v380 = vunpack.c.l.b16 %v85
  %v381 = vunpack.c.l.b16 %v86
  %v382 = vunpack.c.l.b16 %v87
  %v383 = vunpack.c.l.b16 %v88
  %v384 = vunpack.c.l.b16 %v89
  %v385 = vunpack.c.l.b16 %v90
  %v386 = vunpack.c.l.b16 %v91
  %v387 = vunpack.c.l.b16 %v92
  %v388 = vunpack.c.l.b16 %v93
  %v389 = vunpack.c.l.b16 %v94
  %v390 = vunpack.c.l.b16 %v95
  %v391 = vunpack.c.l.b16 %v96
  %v392 = vunpack.c.l.b16 %v97
  %v393 = vunpack.c.l.b16 %v98
  %v394 = vunpack.c.l.b16 %v99
  %v395 = vunpack.c.l.b16 %v100
  %v396 = vunpack.c.l.b16 %v101
  %v397 = vunpack.c.l.b16 %v102
  %v398 = vunpack.c.l.b16 %v103
  %v399 = vunpack.c.l.b16 %v104
  %v400 = vunpack.c.l.b16 %v105
  %v401 = vunpack.c.l.b16 %v106
  %v402 = vunpack.c.l.b16 %v107
  %v403 = vunpack.c.l.b16 %v108
  %v404 = vunpack.c.l.b16 %v109
  %v405 = vunpack.c.l.b16 %v110
  %v406 = vunpack.c.l.b16 %v111
  %v407 = vunpack.c.l.b16 %v112
  %v408 = vunpack.c.l.b16 %v113
  %v409 = vunpack.c.l.b16 %v114
  %v410 = vunpack.c.l.b16 %v115
  %v411 = vunpack.c.l.b16 %v116
  %v412 = vunpack.c.l.b16 %v117
  %v413 = vunpack.c.l.b16 %v118
  %v414 = vunpack.c.l.b16 %v119
  %v415 = vunpack.c.l.b16 %v120
  %v416 = vunpack.c.l.b16 %v121
  %v417 = vunpack.c.l.b16 %v122
  %v418 = vunpack.c.l.b16 %v123
  %v419 = vunpack.c.l.b16 %v124
  %v420 = vunpack.c.l.b16 %v125
  %v421 = vunpack.c.l.b16 %v126
  %v422 = vunpack.c.l.b16 %v127
  %v423 = vunpack.c.l.b16 %v128
  %v424 = vunpack.c.l.b16 %v129
  %v425 = vunpack.c.l.b16 %v130
  %v426 = vunpack.c.l.b16 %v131
  %v427 = vunpack.c.l.b16 %v132
  %v428 = vunpack.c.l.b16 %v133
  %v429 = vunpack.c.l.b16 %v134
  %v430 = vunpack.c.l.b16 %v135
  %v431 = vunpack.c.l.b16 %v136
  %v432 = vunpack.c.l.b16 %v137
  %v433 = vunpack.c.l.b16 %v138
  %v434 = vunpack.c.l.b16 %v139
  %v435 = vunpack.c.l.b16 %v140
  %v436 = vunpack.c.l.b16 %v141
  %v437 = vunpack.c.l.b16 %v142
  %v438 = vunpack.c.l.b16 %v143
  %v439 = vunpack.c.l.b16 %v144
  %v440 = vunpack.c.l.b16 %v145
  %v441 = vunpack.c.l.b16 %v146
  %v442 = vunpack.c.l.b16 %v147
  %v443 = vunpack.c.l.b16 %v148
  %v444 = vunpack.c.l.b16 %v149
  %v445 = vunpack.c.l.b16 %v150
  %v446 = vunpack.c.l.b16 %v151
  %v447 = vunpack.c.l.b16 %v152
  %v448 = vunpack.c.l.b16 %v153
  %v449 = vunpack.c.l.b16 %v154
  %v450 = vunpack.c.l.b16 %v155
  %v451 = vunpack.c.l.b16 %v156
  %v452 = vunpack.c.l.b16 %v157
  %v453 = vunpack.c.l.b16 %v158
  %v454 = vunpack.c.l.b16 %v159
  %v455 = vunpack.c.l.b16 %v160
  %v456 = vunpack.c.l.b16 %v161
  %v457 = vunpack.c.l.b16 %v162
  %v458 = vunpack.c.l.b16 %v163
  %v459 = vunpack.c.l.b16 %v164
  %v460 = vunpack.c.l.b16 %v165
  %v461 = vunpack.c.l.b16 %v166
  %v462 = vunpack.c.l.b16 %v167
  %v463 = vunpack.c.l.b16 %v168
  %v464 = vunpack.c.l.b16 %v169
  %v465 = vunpack.c.l.b16 %v170
  %v466 = vunpack.c.l.b16 %v171
  %v467 = vunpack.c.l.b16 %v172
  %v468 = vunpack.c.l.b16 %v173
  %v469 = vunpack.c.l.b16 %v174
  %v470 = vunpack.c.l.b16 %v175
  %v471 = vunpack.c.l.b16 %v176
  %v472 = vunpack.c.l.b16 %v177
  %v473 = vunpack.c.l.b16 %v178
  %v474 = vunpack.c.l.b16 %v179
  %v475 = vunpack.c.l.b16 %v180
  %v476 = vunpack.c.l.b16 %v181
  %v477 = vunpack.c.l.b16 %v182
  %v478 = vunpack.c.l.b16 %v183
  %v479 = vunpack.c.l.b16 %v184
  %v480 = vunpack.c.l.b16 %v185
  %v481 = vunpack.c.l.b16 %v186
  %v482 = vunpack.c.l.b16 %v187
  %v483 = vunpack.c.l.b16 %v188
  %v484 = vunpack.c.l.b16 %v189
  %v485 = vunpack.c.l.b16 %v190
  %v486 = vunpack.c.l.b16 %v191
  %v487 = vunpack.c.l.b16 %v192
  %v488 = vunpack.c.l.b16 %v193
  %v489 = vunpack.c.l.b16 %v194
  %v490 = vunpack.c.l.b16 %v195
  %v491 = vunpack.c.l.b16 %v196
  %v492 = vpack.c.b16 %v349, %v348
  %v493 = vpack.c.b16 %v351, %v350
  %v494 = vpack.c.b16 %v353, %v352
  %v495 = vpack.c.b16 %v355, %v354
  %v496 = vpack.c.b16 %v357, %v356
  %v497 = vpack.c.b16 %v359, %v358
  %v498 = vpack.c.b16 %v361, %v360
  %v499 = vpack.c.b16 %v363, %v362
  %v500 = vpack.c.b16 %v365, %v364
  %v501 = vpack.c.b16 %v367, %v366
  %v502 = vpack.c.b16 %v369, %v368
  %v503 = vpack.c.b16 %v371, %v370
  %v504 = vpack.c.b16 %v373, %v372
  %v505 = vpack.c.b16 %v375, %v374
  %v506 = vpack.c.b16 %v377, %v376
  %v507 = vpack.c.b16 %v379, %v378
  %v508 = vpack.c.b16 %v381, %v380
  %v509 = vpack.c.b16 %v383, %v382
  %v510 = vpack.c.b16 %v385, %v384
  %v511 = vpack.c.b16 %v387, %v386
  %v512 = vpack.c.b16 %v389, %v388
  %v513 = vpack.c.b16 %v391, %v390
  %v514 = vpack.c.b16 %v393, %v392
  %v515 = vpack.c.b16 %v395, %v394
  %v516 = vpack.c.b16 %v397, %v396
  %v517 = vpack.c.b16 %v399, %v398
  %v518 = vpack.c.b16 %v401, %v400
  %v519 = vpack.c.b16 %v403, %v402
  %v520 = vpack.c.b16 %v405, %v404
  %v521 = vpack.c.b16 %v407, %v406
  %v522 = vpack.c.b16 %v409, %v408
  %v523 = vpack.c.b16 %v411, %v410
  %v524 = vpack.c.b16 %v413, %v412
  %v525 = vpack.c.b16 %v415, %v414
  %v526 = vpack.c.b16 %v417, %v416
  %v527 = vpack.c.b16 %v419, %v418
  %v528 = vpack.c.b16 %v421, %v420
  %v529 = vpack.c.b16 %v423, %v422
  %v530 = vpack.c.b16 %v425, %v424
  %v531 = vpack.c.b16 %v427, %v426
  %v532 = vpack.c.b16 %v429, %v428
  %v533 = vpack.c.b16 %v431, %v430
  %v534 = vpack.c.b16 %v433, %v432
  %v535 = vpack.c.b16 %v435, %v434
  %v536 = vpack.c.b16 %v437, %v436
  %v537 = vpack.c.b16 %v439, %v438
  %v538 = vpack.c.b16 %v441, %v440
  %v539 = vpack.c.b16 %v443, %v442
  %v540 = vpack.c.b16 %v445, %v444
  %v541 = vpack.c.b16 %v447, %v446
  %v542 = vpack.c.b16 %v449, %v448
  %v543 = vpack.c.b16 %v451, %v450
  %v544 = vpack.c.b16 %v453, %v452
  %v545 = vpack.c.b16 %v455, %v454
  %v546 = vpack.c.b16 %v457, %v456
  %v547 = vpack.c.b16 %v459, %v458
  %v548 = vpack.c.b16 %v461, %v460
  %v549 = vpack.c.b16 %v463, %v462
  %v550 = vpack.c.b16 %v465, %v464
  %v551 = vpack.c.b16 %v467, %v466
  %v552 = vpack.c.b16 %v469, %v468
  %v553 = vpack.c.b16 %v471, %v470
  %v554 = vpack.c.b16 %v473, %v472
  %v555 = vpack.c.b16 %v475, %v474
  %v556 = vpack.c.b16 %v477, %v476
  %v557 = vpack.c.b16 %v479, %v478
  %v558 = vpack.c.b16 %v481, %v480
  %v559 = vpack.c.b16 %v483, %v482
  %v560 = vpack.c.b16 %v485, %v484
  %v561 = vpack.c.b16 %v487, %v486
  %v562 = vpack.c.b16 %v489, %v488
  %v563 = vpack.c.b16 %v491, %v490
  %636 = vmatprep.subr.bf16.mxu0 0
  %637 = vmatpush1.bf16.msra.mxu0 %v499
  %638 = vmatprep.subr.bf16.mxu0 0
  %639 = vmatpush1.bf16.msra.mxu0 %v498
  %640 = vmatprep.subr.bf16.mxu0 0
  %641 = vmatpush1.bf16.msra.mxu0 %v497
  %642 = vmatprep.subr.bf16.mxu0 0
  %643 = vmatpush1.bf16.msra.mxu0 %v496
  %644 = vmatprep.subr.bf16.mxu0 0
  %645 = vmatpush1.bf16.msra.mxu0 %v495
  %646 = vmatprep.subr.bf16.mxu0 0
  %647 = vmatpush1.bf16.msra.mxu0 %v494
  %648 = vmatprep.subr.bf16.mxu0 0
  %649 = vmatpush1.bf16.msra.mxu0 %v493
  %650 = vmatprep.subr.bf16.mxu0 0
  %651 = vmatpush1.bf16.msra.mxu0 %v492
  %652 = vmatprep.subr.bf16.mxu0 0
  %653 = vmatpush2.bf16.msra.mxu0 %v507
  %654 = vmatprep.subr.bf16.mxu0 0
  %655 = vmatpush2.bf16.msra.mxu0 %v506
  %656 = vmatprep.subr.bf16.mxu0 0
  %657 = vmatpush2.bf16.msra.mxu0 %v505
  %658 = vmatprep.subr.bf16.mxu0 0
  %659 = vmatpush2.bf16.msra.mxu0 %v504
  %660 = vmatprep.subr.bf16.mxu0 0
  %661 = vmatpush2.bf16.msra.mxu0 %v503
  %662 = vmatprep.subr.bf16.mxu0 0
  %663 = vmatpush2.bf16.msra.mxu0 %v502
  %664 = vmatprep.subr.bf16.mxu0 0
  %665 = vmatpush2.bf16.msra.mxu0 %v501
  %666 = vmatprep.subr.bf16.mxu0 0
  %667 = vmatpush2.bf16.msra.mxu0 %v500
  %668 = vmatprep.mubr.bf16.mxu0 %v45
  %669 = vmatmul.mubr.bf16.gmra.mxu0 %v44
  %v670 = vpop.f32.mrf.mxu0
  %v671 = vadd.f32 %v202, %v670
  %v672 = vpop.f32.mrf.mxu0
  %v673 = vpop.f32.mrf.mxu0
  %v674 = vpop.f32.mrf.mxu0
  %675 = vdwg.mxu0
  %676 = vmatprep.subr.bf16.mxu0 0
  %677 = vmatpush1.bf16.msra.mxu0 %v515
  %678 = vmatprep.subr.bf16.mxu0 0
  %679 = vmatpush1.bf16.msra.mxu0 %v514
  %680 = vmatprep.subr.bf16.mxu0 0
  %681 = vmatpush1.bf16.msra.mxu0 %v513
  %682 = vmatprep.subr.bf16.mxu0 0
  %683 = vmatpush1.bf16.msra.mxu0 %v512
  %684 = vmatprep.subr.bf16.mxu0 0
  %685 = vmatpush1.bf16.msra.mxu0 %v511
  %686 = vmatprep.subr.bf16.mxu0 0
  %687 = vmatpush1.bf16.msra.mxu0 %v510
  %688 = vmatprep.subr.bf16.mxu0 0
  %689 = vmatpush1.bf16.msra.mxu0 %v509
  %690 = vmatprep.subr.bf16.mxu0 0
  %691 = vmatpush1.bf16.msra.mxu0 %v508
  %692 = vmatprep.subr.bf16.mxu0 0
  %693 = vmatpush2.bf16.msra.mxu0 %v523
  %694 = vmatprep.subr.bf16.mxu0 0
  %695 = vmatpush2.bf16.msra.mxu0 %v522
  %696 = vmatprep.subr.bf16.mxu0 0
  %697 = vmatpush2.bf16.msra.mxu0 %v521
  %698 = vmatprep.subr.bf16.mxu0 0
  %699 = vmatpush2.bf16.msra.mxu0 %v520
  %700 = vmatprep.subr.bf16.mxu0 0
  %701 = vmatpush2.bf16.msra.mxu0 %v519
  %702 = vmatprep.subr.bf16.mxu0 0
  %703 = vmatpush2.bf16.msra.mxu0 %v518
  %704 = vmatprep.subr.bf16.mxu0 0
  %705 = vmatpush2.bf16.msra.mxu0 %v517
  %706 = vmatprep.subr.bf16.mxu0 0
  %707 = vmatpush2.bf16.msra.mxu0 %v516
  %708 = vmatprep.mubr.bf16.mxu0 %v47
  %709 = vmatmul.mubr.bf16.gmra.mxu0 %v46
  %v710 = vpop.f32.mrf.mxu0
  %v711 = vadd.f32 %v671, %v710
  %v712 = vpop.f32.mrf.mxu0
  %v713 = vpop.f32.mrf.mxu0
  %v714 = vpop.f32.mrf.mxu0
  %715 = vdwg.mxu0
  %716 = vmatprep.subr.bf16.mxu0 0
  %717 = vmatpush1.bf16.msra.mxu0 %v531
  %718 = vmatprep.subr.bf16.mxu0 0
  %719 = vmatpush1.bf16.msra.mxu0 %v530
  %720 = vmatprep.subr.bf16.mxu0 0
  %721 = vmatpush1.bf16.msra.mxu0 %v529
  %722 = vmatprep.subr.bf16.mxu0 0
  %723 = vmatpush1.bf16.msra.mxu0 %v528
  %724 = vmatprep.subr.bf16.mxu0 0
  %725 = vmatpush1.bf16.msra.mxu0 %v527
  %726 = vmatprep.subr.bf16.mxu0 0
  %727 = vmatpush1.bf16.msra.mxu0 %v526
  %728 = vmatprep.subr.bf16.mxu0 0
  %729 = vmatpush1.bf16.msra.mxu0 %v525
  %730 = vmatprep.subr.bf16.mxu0 0
  %731 = vmatpush1.bf16.msra.mxu0 %v524
  %732 = vmatprep.subr.bf16.mxu0 0
  %733 = vmatpush2.bf16.msra.mxu0 %v539
  %734 = vmatprep.subr.bf16.mxu0 0
  %735 = vmatpush2.bf16.msra.mxu0 %v538
  %736 = vmatprep.subr.bf16.mxu0 0
  %737 = vmatpush2.bf16.msra.mxu0 %v537
  %738 = vmatprep.subr.bf16.mxu0 0
  %739 = vmatpush2.bf16.msra.mxu0 %v536
  %740 = vmatprep.subr.bf16.mxu0 0
  %741 = vmatpush2.bf16.msra.mxu0 %v535
  %742 = vmatprep.subr.bf16.mxu0 0
  %743 = vmatpush2.bf16.msra.mxu0 %v534
  %744 = vmatprep.subr.bf16.mxu0 0
  %745 = vmatpush2.bf16.msra.mxu0 %v533
  %746 = vmatprep.subr.bf16.mxu0 0
  %747 = vmatpush2.bf16.msra.mxu0 %v532
  %748 = vmatprep.mubr.bf16.mxu0 %v49
  %749 = vmatmul.mubr.bf16.gmra.mxu0 %v48
  %v750 = vpop.f32.mrf.mxu0
  %v751 = vadd.f32 %v711, %v750
  %v752 = vpop.f32.mrf.mxu0
  %v753 = vpop.f32.mrf.mxu0
  %v754 = vpop.f32.mrf.mxu0
  %755 = vdwg.mxu0
  %756 = vmatprep.subr.bf16.mxu0 0
  %757 = vmatpush1.bf16.msra.mxu0 %v547
  %758 = vmatprep.subr.bf16.mxu0 0
  %759 = vmatpush1.bf16.msra.mxu0 %v546
  %760 = vmatprep.subr.bf16.mxu0 0
  %761 = vmatpush1.bf16.msra.mxu0 %v545
  %762 = vmatprep.subr.bf16.mxu0 0
  %763 = vmatpush1.bf16.msra.mxu0 %v544
  %764 = vmatprep.subr.bf16.mxu0 0
  %765 = vmatpush1.bf16.msra.mxu0 %v543
  %766 = vmatprep.subr.bf16.mxu0 0
  %767 = vmatpush1.bf16.msra.mxu0 %v542
  %768 = vmatprep.subr.bf16.mxu0 0
  %769 = vmatpush1.bf16.msra.mxu0 %v541
  %770 = vmatprep.subr.bf16.mxu0 0
  %771 = vmatpush1.bf16.msra.mxu0 %v540
  %772 = vmatprep.subr.bf16.mxu0 0
  %773 = vmatpush2.bf16.msra.mxu0 %v555
  %774 = vmatprep.subr.bf16.mxu0 0
  %775 = vmatpush2.bf16.msra.mxu0 %v554
  %776 = vmatprep.subr.bf16.mxu0 0
  %777 = vmatpush2.bf16.msra.mxu0 %v553
  %778 = vmatprep.subr.bf16.mxu0 0
  %779 = vmatpush2.bf16.msra.mxu0 %v552
  %780 = vmatprep.subr.bf16.mxu0 0
  %781 = vmatpush2.bf16.msra.mxu0 %v551
  %782 = vmatprep.subr.bf16.mxu0 0
  %783 = vmatpush2.bf16.msra.mxu0 %v550
  %784 = vmatprep.subr.bf16.mxu0 0
  %785 = vmatpush2.bf16.msra.mxu0 %v549
  %786 = vmatprep.subr.bf16.mxu0 0
  %787 = vmatpush2.bf16.msra.mxu0 %v548
  %788 = vmatprep.mubr.bf16.mxu0 %v51
  %789 = vmatmul.mubr.bf16.gmra.mxu0 %v50
  %v790 = vpop.f32.mrf.mxu0
  %v791 = vadd.f32 %v751, %v790
  %v792 = vpop.f32.mrf.mxu0
  %v793 = vpop.f32.mrf.mxu0
  %v794 = vpop.f32.mrf.mxu0
  %795 = vdwg.mxu0
  %796 = vmatprep.subr.bf16.mxu0 0
  %797 = vmatpush1.bf16.msra.mxu0 %v563
  %798 = vmatprep.subr.bf16.mxu0 0
  %799 = vmatpush1.bf16.msra.mxu0 %v562
  %800 = vmatprep.subr.bf16.mxu0 0
  %801 = vmatpush1.bf16.msra.mxu0 %v561
  %802 = vmatprep.subr.bf16.mxu0 0
  %803 = vmatpush1.bf16.msra.mxu0 %v560
  %804 = vmatprep.subr.bf16.mxu0 0
  %805 = vmatpush1.bf16.msra.mxu0 %v559
  %806 = vmatprep.subr.bf16.mxu0 0
  %807 = vmatpush1.bf16.msra.mxu0 %v558
  %808 = vmatprep.subr.bf16.mxu0 0
  %809 = vmatpush1.bf16.msra.mxu0 %v557
  %810 = vmatprep.subr.bf16.mxu0 0
  %811 = vmatpush1.bf16.msra.mxu0 %v556
  %812 = vmatprep.subr.bf16.mxu0 0
  %813 = vmatpush2.bf16.msra.mxu0 0
  %814 = vmatprep.subr.bf16.mxu0 0
  %815 = vmatpush2.bf16.msra.mxu0 0
  %816 = vmatprep.subr.bf16.mxu0 0
  %817 = vmatpush2.bf16.msra.mxu0 0
  %818 = vmatprep.subr.bf16.mxu0 0
  %819 = vmatpush2.bf16.msra.mxu0 0
  %820 = vmatprep.subr.bf16.mxu0 0
  %821 = vmatpush2.bf16.msra.mxu0 0
  %822 = vmatprep.subr.bf16.mxu0 0
  %823 = vmatpush2.bf16.msra.mxu0 0
  %824 = vmatprep.subr.bf16.mxu0 0
  %825 = vmatpush2.bf16.msra.mxu0 0
  %826 = vmatprep.subr.bf16.mxu0 0
  %827 = vmatpush2.bf16.msra.mxu0 0
  %828 = vmatprep.mubr.bf16.mxu0 0
  %829 = vmatmul.mubr.bf16.gmra.mxu0 %v52
  %v830 = vpop.f32.mrf.mxu0
  %v831 = vadd.f32 %v791, %v830
  %v832 = vpop.f32.mrf.mxu0
  %v833 = vpop.f32.mrf.mxu0
  %v834 = vpop.f32.mrf.mxu0
  %835 = vdwg.mxu0
  %vm836 = vcmp.gt.f32.partialorder %v831, 0.0
  %v837 = vmin.f32 %v831, 0.0
  %v838 = vmul.f32 %v837, 1.442695
  %v839 = vpow.pop %v838
  %v840 = vsub.f32 %v839, 1.0
  %v841 = vsel %vm836, %v831, %v840
  %v842 = vpack.c.bf16 %v841, %v841
  %v843 = vld [vmem:[%s3] sm:$0xf]
  %v844 = vld [vmem:[%s3 + $0x4] sm:$0xf]
  %v845 = vld [vmem:[%s3 + $0x8] sm:$0xf]
  %v846 = vld [vmem:[%s3 + $0xc] sm:$0xf]
  %v847 = vld [vmem:[%s3 + $0x10] sm:$0xf]
  %v848 = vld [vmem:[%s3 + $0x14] sm:$0xf]
  %v849 = vld [vmem:[%s3 + $0x18] sm:$0xf]
  %v850 = vld [vmem:[%s3 + $0x1c] sm:$0xf]
  %v851 = vld [vmem:[%s3 + $0x20] sm:$0xf]
  %v852 = vld [vmem:[%s3 + $0x24] sm:$0xf]
  %v853 = vld [vmem:[%s3 + $0x28] sm:$0xf]
  %v854 = vld [vmem:[%s3 + $0x2c] sm:$0xf]
  %v855 = vld [vmem:[%s3 + $0x30] sm:$0x3]
  %v856 = vld [vmem:[%s4] sm:$0x1]
  %v858 = vlaneseq
  %v859 = vshrl.u32 %v858, 7
  %v860 = vsub.s32 0, %v859
  %v861 = vrot.slane %v856, %v860
  %v876 = vunpack.c.l.b16 %v843
  %v877 = vunpack.c.l.b16 %v844
  %v878 = vunpack.c.l.b16 %v845
  %v879 = vunpack.c.l.b16 %v846
  %v880 = vunpack.c.l.b16 %v847
  %v881 = vunpack.c.l.b16 %v848
  %v882 = vunpack.c.l.b16 %v849
  %v883 = vunpack.c.l.b16 %v850
  %v884 = vunpack.c.l.b16 %v851
  %v885 = vunpack.c.l.b16 %v852
  %v886 = vunpack.c.l.b16 %v853
  %v887 = vunpack.c.l.b16 %v854
  %v888 = vunpack.c.l.b16 %v855
  %v889 = vpack.c.b16 %v877, %v876
  %v890 = vpack.c.b16 %v879, %v878
  %v891 = vpack.c.b16 %v881, %v880
  %v892 = vpack.c.b16 %v883, %v882
  %v893 = vpack.c.b16 %v885, %v884
  %v894 = vpack.c.b16 %v887, %v886
  %v895 = vpack.c.b16 %v888, %v888
  %vm902 = vcmask 818176
  %v904 = vsel %vm902, %v842, 0
  %vm906 = vcmask 1041408
  %v908 = vsel %vm906, %v895, 0
  %910 = vmatprep.subr.bf16.mxu0 0
  %911 = vmatpush1.bf16.msra.mxu0 0
  %912 = vmatprep.subr.bf16.mxu0 0
  %913 = vmatpush1.bf16.msra.mxu0 %v908
  %914 = vmatprep.subr.bf16.mxu0 0
  %915 = vmatpush1.bf16.msra.mxu0 %v894
  %916 = vmatprep.subr.bf16.mxu0 0
  %917 = vmatpush1.bf16.msra.mxu0 %v893
  %918 = vmatprep.subr.bf16.mxu0 0
  %919 = vmatpush1.bf16.msra.mxu0 %v892
  %920 = vmatprep.subr.bf16.mxu0 0
  %921 = vmatpush1.bf16.msra.mxu0 %v891
  %922 = vmatprep.subr.bf16.mxu0 0
  %923 = vmatpush1.bf16.msra.mxu0 %v890
  %924 = vmatprep.subr.bf16.mxu0 0
  %925 = vmatpush1.bf16.msra.mxu0 %v889
  %926 = vmatprep.subr.bf16.mxu0 0
  %927 = vmatpush2.bf16.msra.mxu0 0
  %928 = vmatprep.subr.bf16.mxu0 0
  %929 = vmatpush2.bf16.msra.mxu0 0
  %930 = vmatprep.subr.bf16.mxu0 0
  %931 = vmatpush2.bf16.msra.mxu0 0
  %932 = vmatprep.subr.bf16.mxu0 0
  %933 = vmatpush2.bf16.msra.mxu0 0
  %934 = vmatprep.subr.bf16.mxu0 0
  %935 = vmatpush2.bf16.msra.mxu0 0
  %936 = vmatprep.subr.bf16.mxu0 0
  %937 = vmatpush2.bf16.msra.mxu0 0
  %938 = vmatprep.subr.bf16.mxu0 0
  %939 = vmatpush2.bf16.msra.mxu0 0
  %940 = vmatprep.subr.bf16.mxu0 0
  %941 = vmatpush2.bf16.msra.mxu0 0
  %942 = vmatprep.mubr.bf16.mxu0 0
  %943 = vmatmul.mubr.bf16.gmra.mxu0 %v904
  %v944 = vpop.f32.mrf.mxu0
  %v945 = vadd.f32 %v861, %v944
  %v946 = vpop.f32.mrf.mxu0
  %v947 = vpop.f32.mrf.mxu0
  %v948 = vpop.f32.mrf.mxu0
  %949 = vdwg.mxu0
  %vm950 = vcmp.gt.f32.partialorder %v945, 0.0
  %v951 = vmin.f32 %v945, 0.0
  %v952 = vmul.f32 %v951, 1.442695
  %v953 = vpow.pop %v952
  %v954 = vsub.f32 %v953, 1.0
  %v955 = vsel %vm950, %v945, %v954
  %v956 = vpack.c.bf16 %v955, %v955
  %v957 = vld [vmem:[%s5] sm:$0xf]
  %v958 = vld [vmem:[%s5 + $0x4] sm:$0xf]
  %v959 = vld [vmem:[%s5 + $0x8] sm:$0xf]
  %v960 = vld [vmem:[%s5 + $0xc] sm:$0xf]
  %v961 = vld [vmem:[%s5 + $0x10] sm:$0xf]
  %v962 = vld [vmem:[%s5 + $0x14] sm:$0xf]
  %v963 = vld [vmem:[%s5 + $0x18] sm:$0x1]
  %v964 = vld [vmem:[%s6] sm:$0x1]
  %v966 = vlaneseq
  %v967 = vshrl.u32 %v966, 7
  %v968 = vsub.s32 0, %v967
  %v969 = vrot.slane %v964, %v968
  %v978 = vunpack.c.l.b16 %v957
  %v979 = vunpack.c.l.b16 %v958
  %v980 = vunpack.c.l.b16 %v959
  %v981 = vunpack.c.l.b16 %v960
  %v982 = vunpack.c.l.b16 %v961
  %v983 = vunpack.c.l.b16 %v962
  %v984 = vunpack.c.l.b16 %v963
  %v985 = vpack.c.b16 %v979, %v978
  %v986 = vpack.c.b16 %v981, %v980
  %v987 = vpack.c.b16 %v983, %v982
  %v988 = vpack.c.b16 %v984, %v984
  %vm992 = vcmask 408576
  %v994 = vsel %vm992, %v956, 0
  %vm996 = vcmask 1040384
  %v998 = vsel %vm996, %v988, 0
  %1000 = vmatprep.subr.bf16.mxu0 0
  %1001 = vmatpush1.bf16.msra.mxu0 0
  %1002 = vmatprep.subr.bf16.mxu0 0
  %1003 = vmatpush1.bf16.msra.mxu0 0
  %1004 = vmatprep.subr.bf16.mxu0 0
  %1005 = vmatpush1.bf16.msra.mxu0 0
  %1006 = vmatprep.subr.bf16.mxu0 0
  %1007 = vmatpush1.bf16.msra.mxu0 0
  %1008 = vmatprep.subr.bf16.mxu0 0
  %1009 = vmatpush1.bf16.msra.mxu0 %v998
  %1010 = vmatprep.subr.bf16.mxu0 0
  %1011 = vmatpush1.bf16.msra.mxu0 %v987
  %1012 = vmatprep.subr.bf16.mxu0 0
  %1013 = vmatpush1.bf16.msra.mxu0 %v986
  %1014 = vmatprep.subr.bf16.mxu0 0
  %1015 = vmatpush1.bf16.msra.mxu0 %v985
  %1016 = vmatprep.subr.bf16.mxu0 0
  %1017 = vmatpush2.bf16.msra.mxu0 0
  %1018 = vmatprep.subr.bf16.mxu0 0
  %1019 = vmatpush2.bf16.msra.mxu0 0
  %1020 = vmatprep.subr.bf16.mxu0 0
  %1021 = vmatpush2.bf16.msra.mxu0 0
  %1022 = vmatprep.subr.bf16.mxu0 0
  %1023 = vmatpush2.bf16.msra.mxu0 0
  %1024 = vmatprep.subr.bf16.mxu0 0
  %1025 = vmatpush2.bf16.msra.mxu0 0
  %1026 = vmatprep.subr.bf16.mxu0 0
  %1027 = vmatpush2.bf16.msra.mxu0 0
  %1028 = vmatprep.subr.bf16.mxu0 0
  %1029 = vmatpush2.bf16.msra.mxu0 0
  %1030 = vmatprep.subr.bf16.mxu0 0
  %1031 = vmatpush2.bf16.msra.mxu0 0
  %1032 = vmatprep.mubr.bf16.mxu0 0
  %1033 = vmatmul.mubr.bf16.gmra.mxu0 %v994
  %v1034 = vpop.f32.mrf.mxu0
  %v1035 = vadd.f32 %v969, %v1034
  %v1036 = vpop.f32.mrf.mxu0
  %v1037 = vpop.f32.mrf.mxu0
  %v1038 = vpop.f32.mrf.mxu0
  %1039 = vdwg.mxu0
  %vm1040 = vcmp.gt.f32.partialorder %v1035, 0.0
  %v1041 = vmin.f32 %v1035, 0.0
  %v1042 = vmul.f32 %v1041, 1.442695
  %v1043 = vpow.pop %v1042
  %v1044 = vsub.f32 %v1043, 1.0
  %v1045 = vsel %vm1040, %v1035, %v1044
  %v1046 = vpack.c.bf16 %v1045, %v1045
  %v1047 = vld [vmem:[%s7] sm:$0xf]
  %v1048 = vld [vmem:[%s7 + $0x4] sm:$0x1]
  %v1049 = vld [vmem:[#allocation2] sm:$0x1]
  %v1051 = vlaneseq
  %v1052 = vshrl.u32 %v1051, 7
  %v1053 = vsub.s32 0, %v1052
  %v1054 = vrot.slane %v1049, %v1053
  %v1058 = vunpack.c.l.b16 %v1047
  %v1059 = vunpack.c.l.b16 %v1048
  %v1060 = vpack.c.b16 %v1059, %v1058
  %vm1061 = vcmask 80896
  %v1063 = vsel %vm1061, %v1046, 0
  %vm1065 = vcmask 1044480
  %v1067 = vsel %vm1065, %v1060, 0
  %1069 = vmatprep.subr.bf16.mxu0 0
  %1070 = vmatpush1.bf16.msra.mxu0 0
  %1071 = vmatprep.subr.bf16.mxu0 0
  %1072 = vmatpush1.bf16.msra.mxu0 0
  %1073 = vmatprep.subr.bf16.mxu0 0
  %1074 = vmatpush1.bf16.msra.mxu0 0
  %1075 = vmatprep.subr.bf16.mxu0 0
  %1076 = vmatpush1.bf16.msra.mxu0 0
  %1077 = vmatprep.subr.bf16.mxu0 0
  %1078 = vmatpush1.bf16.msra.mxu0 0
  %1079 = vmatprep.subr.bf16.mxu0 0
  %1080 = vmatpush1.bf16.msra.mxu0 0
  %1081 = vmatprep.subr.bf16.mxu0 0
  %1082 = vmatpush1.bf16.msra.mxu0 0
  %1083 = vmatprep.subr.bf16.mxu0 0
  %1084 = vmatpush1.bf16.msra.mxu0 %v1067
  %1085 = vmatprep.subr.bf16.mxu0 0
  %1086 = vmatpush2.bf16.msra.mxu0 0
  %1087 = vmatprep.subr.bf16.mxu0 0
  %1088 = vmatpush2.bf16.msra.mxu0 0
  %1089 = vmatprep.subr.bf16.mxu0 0
  %1090 = vmatpush2.bf16.msra.mxu0 0
  %1091 = vmatprep.subr.bf16.mxu0 0
  %1092 = vmatpush2.bf16.msra.mxu0 0
  %1093 = vmatprep.subr.bf16.mxu0 0
  %1094 = vmatpush2.bf16.msra.mxu0 0
  %1095 = vmatprep.subr.bf16.mxu0 0
  %1096 = vmatpush2.bf16.msra.mxu0 0
  %1097 = vmatprep.subr.bf16.mxu0 0
  %1098 = vmatpush2.bf16.msra.mxu0 0
  %1099 = vmatprep.subr.bf16.mxu0 0
  %1100 = vmatpush2.bf16.msra.mxu0 0
  %1101 = vmatprep.mubr.bf16.mxu0 0
  %1102 = vmatmul.mubr.bf16.gmra.mxu0 %v1063
  %v1103 = vpop.f32.mrf.mxu0
  %v1104 = vadd.f32 %v1054, %v1103
  %v1105 = vpop.f32.mrf.mxu0
  %v1106 = vpop.f32.mrf.mxu0
  %v1107 = vpop.f32.mrf.mxu0
  %1108 = vdwg.mxu0
  %vm1109 = vcmp.gt.f32.partialorder %v1104, 0.0
  %v1110 = vmin.f32 %v1104, 0.0
  %v1111 = vmul.f32 %v1110, 1.442695
  %v1112 = vpow.pop %v1111
  %v1113 = vsub.f32 %v1112, 1.0
  %v1114 = vsel %vm1109, %v1104, %v1113
  %vm1115 = vcmask 7168
  %1116 = vst.msk [vmem:[%s9] sm:$0xff] %vm1115, %v1114
  // Predicated region
  $region38: #{nvidia_forward.11} parent=0 // pred_check
    _
  $region39: #{nvidia_forward.11} parent=0 // pred_check_branch
    %1118 = sbr.rel (0) target = $region41
  $region40: #{nvidia_forward.11} parent=0 // pred_region
    _
  $region41: #{nvidia_forward.11} parent=0 // pred_fallthru
    _
  // Predicated region
  $region42: #{nvidia_forward.11} parent=0 // pred_check
    _
  $region43: #{nvidia_forward.11} parent=0 // pred_check_branch
    %1120 = sbr.rel (0) target = $region45
  $region44: #{nvidia_forward.11} parent=0 // pred_region
    _
  $region45: #{nvidia_forward.11} parent=0 // pred_fallthru
    _

</llo_original>
